<compile_context>
chip_gen: v5e
topology: v5e:2x2
jax: 0.10.0
libtpu: 0.0.40
codegen_flags: <defaults>
</compile_context>

<pallas_src>
import math
from functools import partial

import jax
import jax.numpy as jnp
from jax.experimental import pallas as pl
from jax.experimental.pallas import tpu as pltpu

LN_EPS = 1e-5


# ----------------------------- kernel helpers ------------------------------

def _layernorm_f32(x, gamma, beta):
    # x: (rows, E) f32; gamma/beta: (E,) f32
    mu = jnp.mean(x, axis=-1, keepdims=True)
    var = jnp.mean((x - mu) ** 2, axis=-1, keepdims=True)
    return (x - mu) * jax.lax.rsqrt(var + LN_EPS) * gamma + beta


def _split_heads(t, n_batch, seq, n_head, head_dim):
    """(n_batch*seq, E) f32 -> (n_batch*n_head, seq, head_dim) bf16."""
    t = t.astype(jnp.bfloat16)            # cast BEFORE the per-head slices (half traffic)
    return jnp.stack(
        [t[b * seq:(b + 1) * seq, h * head_dim:(h + 1) * head_dim]
         for b in range(n_batch) for h in range(n_head)],
        axis=0)


def _merge_heads(o, n_batch, n_head):
    """(n_batch*n_head, seq, head_dim) bf16 -> (n_batch*seq, E) bf16 (lane-dense)."""
    per_b = [jnp.concatenate([o[b * n_head + h] for h in range(n_head)], axis=-1)
             for b in range(n_batch)]
    return per_b[0] if n_batch == 1 else jnp.concatenate(per_b, axis=0)


# --------------------------------- kernel ----------------------------------

def _block_kernel(x_ref,
                  ln1_g_ref, ln1_b_ref,
                  wqkv_ref, bqkv_ref,
                  wo_ref, bo_ref,
                  ln2_g_ref, ln2_b_ref,
                  wfc_ref, bfc_ref,
                  wproj_ref, bproj_ref,
                  out_ref, *, n_head):
    f32, bf16 = jnp.float32, jnp.bfloat16

    if len(x_ref.shape) == 3:                      # batch-major block (B_blk, L, E)
        B, L, E = x_ref.shape
        x = x_ref[0] if B == 1 else x_ref[...].reshape(B * L, E)
    else:                                          # lane-slice block (L, E)
        B = 1
        L, E = x_ref.shape
        x = x_ref[...]
    x = x.astype(f32)                              # (R, E) with R = B*L
    H, Dh = n_head, E // n_head

    # ---- ln_1 (fp32) + packed QKV projection (bf16 x bf16 -> f32 on the MXU) ----
    h = _layernorm_f32(x, ln1_g_ref[0], ln1_b_ref[0])
    qkv = jnp.dot(h.astype(bf16), wqkv_ref[...],
                  preferred_element_type=f32) + bqkv_ref[0]               # (R, 3E)

    # 1/sqrt(Dh) is already folded into the Q columns of wqkv/bqkv (prepare_params).
    q = _split_heads(qkv[:, 0 * E:1 * E], B, L, H, Dh)                    # (B*H, L, Dh)
    k = _split_heads(qkv[:, 1 * E:2 * E], B, L, H, Dh)
    v = _split_heads(qkv[:, 2 * E:3 * E], B, L, H, Dh)

    # ---- attention: all (batch, head) pairs batched on the MXU ----
    s = jnp.einsum('bqd,bkd->bqk', q, k, preferred_element_type=f32)      # (B*H, L, L)
    s = s - jnp.max(s, axis=-1, keepdims=True)
    p = jnp.exp(s)
    inv = pl.reciprocal(jnp.sum(p, axis=-1, keepdims=True), approx=True)  # (B*H, L, 1)
    o = jnp.einsum('bqk,bkd->bqd', p.astype(bf16), v,
                   preferred_element_type=f32)                            # (B*H, L, Dh)
    o = (o * inv).astype(bf16)        # normalize after PV: touches (L,Dh), not (L,L)

    # Lane-dense merged head output -> one full-width out-projection matmul.
    attn = jnp.dot(_merge_heads(o, B, H), wo_ref[...],
                   preferred_element_type=f32) + bo_ref[0]                # (R, E)
    x1 = x + attn                                                         # residual 1

    # ---- ln_2 + MLP (c_fc -> QuickGELU -> c_proj) ----
    h2 = _layernorm_f32(x1, ln2_g_ref[0], ln2_b_ref[0])
    ff = jnp.dot(h2.astype(bf16), wfc_ref[...],
                 preferred_element_type=f32) + bfc_ref[0]                 # (R, 4E)
    ff = ff * jax.nn.sigmoid(1.702 * ff)                                  # QuickGELU
    ff = jnp.dot(ff.astype(bf16), wproj_ref[...],
                 preferred_element_type=f32) + bproj_ref[0]               # (R, E)

    res = (x1 + ff).astype(out_ref.dtype)
    if len(out_ref.shape) == 3:
        if out_ref.shape[0] == 1:
            out_ref[0] = res
        else:
            out_ref[...] = res.reshape(out_ref.shape)
    else:
        out_ref[...] = res


# ------------------------- VMEM sizing / tiling policy ---------------------

def _tpu_vmem_capacity_bytes():
    try:
        return int(pltpu.get_tpu_info().vmem_capacity_bytes)
    except Exception:
        return 64 << 20                      # conservative: v7x per-TensorCore VMEM


def _estimate_vmem_bytes(rows, seq, d_model, n_head, batch_blk):
    f32, bf16 = 4, 2
    E, BH = d_model, batch_blk * n_head
    weights = 12 * E * E * bf16 + 10 * E * f32        # bf16 matmul weights + biases/LN
    io = 2 * 2 * rows * E * f32                       # in + out blocks, double-buffered
    act = (6 * rows * E * f32                         # x, h, x1, h2, attn, o(f32)
           + 3 * rows * E * bf16                      # bf16 copies of h / h2 / merged o
           + rows * 3 * E * (f32 + 2 * bf16)          # qkv f32 + q/k/v bf16 slices+stacks
           + BH * seq * seq * (f32 + bf16)            # scores f32 + probs bf16
           + rows * 4 * E * (f32 + bf16))             # MLP hidden f32 + bf16
    return weights + io + int(1.3 * act) + (2 << 20)


def _vmem_limit_bytes(rows, seq, d_model, n_head, batch_blk, capacity):
    need = _estimate_vmem_bytes(rows, seq, d_model, n_head, batch_blk)
    if need <= (16 << 20):                            # default scoped limit is enough
        return None
    return min(need, int(0.9 * capacity))             # never above physical VMEM


def _choose_batch_block(n_batch, seq, d_model, n_head, budget):
    """How many batch elements to process per grid step (batch-major path)."""
    if n_batch == 1 or seq >= 256 or seq % 8 != 0:
        # TODO(synk): allow packing for seq % 8 != 0 (e.g. CLIP text L=77) by doing
        #             per-element attention inside the kernel instead of a row flatten.
        return 1
    best = 1
    for d in range(2, n_batch + 1):
        if n_batch % d or n_batch // d < 2:           # keep >= 2 grid steps (v7x: 2 TCs)
            continue
        if d * seq > 512:                             # M already fills MXU; bound scores
            continue
        if _estimate_vmem_bytes(d * seq, seq, d_model, n_head, d) > budget:
            continue
        best = d
    return best


# -------------------------------- wrapper -----------------------------------

def residual_attention_block(x, kparams, *, d_model, n_head):
    """x: (L, N, E) in PyTorch batch_first=False layout.  Returns (L, N, E)."""
    L, N, E = x.shape
    assert E == d_model and E % n_head == 0

    weight_list = [
        kparams["ln1_g"], kparams["ln1_b"],
        kparams["wqkv_t"], kparams["bqkv"],
        kparams["wo_t"], kparams["bo"],
        kparams["ln2_g"], kparams["ln2_b"],
        kparams["wfc_t"], kparams["bfc"],
        kparams["wproj_t"], kparams["bproj"],
    ]
    capacity = _tpu_vmem_capacity_bytes()
    kernel = partial(_block_kernel, n_head=n_head)
    # Lane-slice view (L, N*E) avoids any wrapper transpose when E is lane aligned
    # and L alone already fills the MXU rows; otherwise use batch-major packing.
    lane_slice = (E % 128 == 0) and (N == 1 or L >= 256)

    def run(single_buffer_weights):
        def wspec(w):
            if single_buffer_weights:
                # Grid-invariant weights: one VMEM buffer is enough (halves residency).
                return pl.BlockSpec(w.shape, lambda b: (0, 0),
                                    pipeline_mode=pl.Buffered(1))
            return pl.BlockSpec(w.shape, lambda b: (0, 0))
        weight_specs = [wspec(w) for w in weight_list]

        if lane_slice:
            cparams = pltpu.CompilerParams(
                dimension_semantics=("parallel",),
                vmem_limit_bytes=_vmem_limit_bytes(L, L, E, n_head, 1, capacity))
            x2 = x.reshape(L, N * E)                       # free view
            out2 = pl.pallas_call(
                kernel,
                out_shape=jax.ShapeDtypeStruct((L, N * E), x.dtype),
                grid_spec=pltpu.PrefetchScalarGridSpec(
                    num_scalar_prefetch=0,
                    grid=(N,),
                    in_specs=[pl.BlockSpec((L, E), lambda b: (0, b))] + weight_specs,
                    out_specs=pl.BlockSpec((L, E), lambda b: (0, b)),
                ),
                compiler_params=cparams,
            )(x2, *weight_list)
            return out2.reshape(L, N, E)

        bblk = _choose_batch_block(N, L, E, n_head, int(0.85 * capacity))
        rows = bblk * L
        cparams = pltpu.CompilerParams(
            dimension_semantics=("parallel",),
            vmem_limit_bytes=_vmem_limit_bytes(rows, L, E, n_head, bblk, capacity))
        xb = jnp.transpose(x, (1, 0, 2))                   # (N, L, E) batch-major
        outb = pl.pallas_call(
            kernel,
            out_shape=jax.ShapeDtypeStruct((N, L, E), x.dtype),
            grid_spec=pltpu.PrefetchScalarGridSpec(
                num_scalar_prefetch=0,
                grid=(N // bblk,),
                in_specs=[pl.BlockSpec((bblk, L, E), lambda b: (b, 0, 0))] + weight_specs,
                out_specs=pl.BlockSpec((bblk, L, E), lambda b: (b, 0, 0)),
            ),
            compiler_params=cparams,
        )(xb, *weight_list)
        return jnp.transpose(outb, (1, 0, 2))

    try:
        return run(single_buffer_weights=True)
    except Exception:
        # Compatibility fallback: pl.Buffered(1) rejected on this jax version/backend.
        return run(single_buffer_weights=False)


# ------------------------------ params / reference --------------------------

def init_params(key, d_model):
    """Deterministic synthetic parameters with the PyTorch module's shapes (f32)."""
    ks = jax.random.split(key, 8)
    s = 0.02
    return {
        "ln1_g": jnp.ones((1, d_model), jnp.float32),
        "ln1_b": jnp.zeros((1, d_model), jnp.float32),
        "ln2_g": jnp.ones((1, d_model), jnp.float32),
        "ln2_b": jnp.zeros((1, d_model), jnp.float32),
        "wqkv": s * jax.random.normal(ks[0], (3 * d_model, d_model), jnp.float32),
        "bqkv": s * jax.random.normal(ks[1], (1, 3 * d_model), jnp.float32),
        "wo": s * jax.random.normal(ks[2], (d_model, d_model), jnp.float32),
        "bo": s * jax.random.normal(ks[3], (1, d_model), jnp.float32),
        "wfc": s * jax.random.normal(ks[4], (4 * d_model, d_model), jnp.float32),
        "bfc": s * jax.random.normal(ks[5], (1, 4 * d_model), jnp.float32),
        "wproj": s * jax.random.normal(ks[6], (d_model, 4 * d_model), jnp.float32),
        "bproj": s * jax.random.normal(ks[7], (1, d_model), jnp.float32),
    }


def prepare_params(params, *, n_head):
    """Host-side one-time prep: (out,in)->(in,out), bf16 matmul weights, fold 1/sqrt(Dh)."""
    f32, bf16 = jnp.float32, jnp.bfloat16
    E = params["wo"].shape[0]
    scale = 1.0 / math.sqrt(E // n_head)
    col_scale = jnp.concatenate([jnp.full((E,), scale, f32), jnp.ones((2 * E,), f32)])
    wqkv_t = params["wqkv"].astype(f32).T * col_scale[None, :]        # (E, 3E), Q scaled
    bqkv = params["bqkv"].astype(f32) * col_scale[None, :]
    return {
        "ln1_g": params["ln1_g"].astype(f32),
        "ln1_b": params["ln1_b"].astype(f32),
        "ln2_g": params["ln2_g"].astype(f32),
        "ln2_b": params["ln2_b"].astype(f32),
        "wqkv_t": wqkv_t.astype(bf16),
        "bqkv": bqkv,
        "wo_t": jnp.asarray(params["wo"].T, bf16),                    # (E, E)
        "bo": params["bo"].astype(f32),
        "wfc_t": jnp.asarray(params["wfc"].T, bf16),                  # (E, 4E)
        "bfc": params["bfc"].astype(f32),
        "wproj_t": jnp.asarray(params["wproj"].T, bf16),              # (4E, E)
        "bproj": params["bproj"].astype(f32),
    }


def reference(x, params, *, d_model, n_head):
    """Pure-JAX f32 reference of the same forward pass, for a sanity check."""
    head_dim = d_model // n_head
    scale = 1.0 / math.sqrt(head_dim)
    L, N, E = x.shape

    def ln(v, g, b):
        mu = jnp.mean(v, axis=-1, keepdims=True)
        var = jnp.mean((v - mu) ** 2, axis=-1, keepdims=True)
        return (v - mu) * jax.lax.rsqrt(var + LN_EPS) * g[0] + b[0]

    xb = jnp.transpose(x, (1, 0, 2)).astype(jnp.float32)              # (N, L, E)
    h = ln(xb, params["ln1_g"], params["ln1_b"])
    qkv = h @ params["wqkv"].T + params["bqkv"][0]
    q, k, v = jnp.split(qkv, 3, axis=-1)
    q = q.reshape(N, L, n_head, head_dim).transpose(0, 2, 1, 3) * scale
    k = k.reshape(N, L, n_head, head_dim).transpose(0, 2, 1, 3)
    v = v.reshape(N, L, n_head, head_dim).transpose(0, 2, 1, 3)
    p = jax.nn.softmax(q @ jnp.swapaxes(k, -1, -2), axis=-1)
    a = (p @ v).transpose(0, 2, 1, 3).reshape(N, L, E)
    a = a @ params["wo"].T + params["bo"][0]
    x1 = xb + a
    h2 = ln(x1, params["ln2_g"], params["ln2_b"])
    ff = h2 @ params["wfc"].T + params["bfc"][0]
    ff = ff * jax.nn.sigmoid(1.702 * ff)
    ff = ff @ params["wproj"].T + params["bproj"][0]
    out = x1 + ff
    return jnp.transpose(out, (1, 0, 2)).astype(x.dtype)


if __name__ == "__main__":
    # Small lane-aligned demo (head_dim = 128 -> lane-aligned head slices).
    d_model, n_head = 256, 2
    L, N = 8, 4                                            # (seq, batch)

    key = jax.random.PRNGKey(0)
    kx, kp = jax.random.split(key)
    x = jax.random.normal(kx, (L, N, d_model), jnp.float32)
    params = init_params(kp, d_model)
    kparams = prepare_params(params, n_head=n_head)        # one-time weight prep

    # 1) batch-packed (batch-major) path: 2 batch elements per grid step, 2 grid steps.
    out = residual_attention_block(x, kparams, d_model=d_model, n_head=n_head)
    out = jax.block_until_ready(out)
    ref = reference(x, params, d_model=d_model, n_head=n_head)
    assert out.shape == (L, N, d_model)
    err = float(jnp.max(jnp.abs(out - ref)))
    assert err < 2e-2, f"packed path: max abs err {err}"   # bf16 matmuls vs f32 reference

    # 2) lane-slice path (N == 1): zero-copy (L, N*E) view, no wrapper transposes.
    x1 = x[:, :1, :]
    out1 = jax.block_until_ready(
        residual_attention_block(x1, kparams, d_model=d_model, n_head=n_head))
    ref1 = reference(x1, params, d_model=d_model, n_head=n_head)
    err1 = float(jnp.max(jnp.abs(out1 - ref1)))
    assert err1 < 2e-2, f"lane-slice path: max abs err {err1}"

    print("KERNEL_OK")
</pallas_src>

<mosaic_0001>
module attributes {stable_mosaic.version = 11 : i64} {
  func.func @_block_kernel(%arg0: i32, %arg1: memref<2x8x256xf32, #tpu.memory_space<vmem>>, %arg2: memref<1x256xf32, #tpu.memory_space<vmem>>, %arg3: memref<1x256xf32, #tpu.memory_space<vmem>>, %arg4: memref<256x768xbf16, #tpu.memory_space<vmem>>, %arg5: memref<1x768xf32, #tpu.memory_space<vmem>>, %arg6: memref<256x256xbf16, #tpu.memory_space<vmem>>, %arg7: memref<1x256xf32, #tpu.memory_space<vmem>>, %arg8: memref<1x256xf32, #tpu.memory_space<vmem>>, %arg9: memref<1x256xf32, #tpu.memory_space<vmem>>, %arg10: memref<256x1024xbf16, #tpu.memory_space<vmem>>, %arg11: memref<1x1024xf32, #tpu.memory_space<vmem>>, %arg12: memref<1024x256xbf16, #tpu.memory_space<vmem>>, %arg13: memref<1x256xf32, #tpu.memory_space<vmem>>, %arg14: memref<2x8x256xf32, #tpu.memory_space<vmem>>) attributes {dimension_semantics = [#tpu.dimension_semantics<parallel>], iteration_bounds = array<i64: 2>, scalar_prefetch = 0 : i64, scratch_operands = 0 : i64, tpu.core_type = #tpu.core_type<tc>, window_params = [{transform_indices = @transform_0, window_bounds = array<i64: 2, 8, 256>}, {pipeline_mode = #tpu.pipeline_mode<synchronous>, transform_indices = @transform_1, window_bounds = array<i64: 1, 256>}, {pipeline_mode = #tpu.pipeline_mode<synchronous>, transform_indices = @transform_2, window_bounds = array<i64: 1, 256>}, {pipeline_mode = #tpu.pipeline_mode<synchronous>, transform_indices = @transform_3, window_bounds = array<i64: 256, 768>}, {pipeline_mode = #tpu.pipeline_mode<synchronous>, transform_indices = @transform_4, window_bounds = array<i64: 1, 768>}, {pipeline_mode = #tpu.pipeline_mode<synchronous>, transform_indices = @transform_5, window_bounds = array<i64: 256, 256>}, {pipeline_mode = #tpu.pipeline_mode<synchronous>, transform_indices = @transform_6, window_bounds = array<i64: 1, 256>}, {pipeline_mode = #tpu.pipeline_mode<synchronous>, transform_indices = @transform_7, window_bounds = array<i64: 1, 256>}, {pipeline_mode = #tpu.pipeline_mode<synchronous>, transform_indices = @transform_8, window_bounds = array<i64: 1, 256>}, {pipeline_mode = #tpu.pipeline_mode<synchronous>, transform_indices = @transform_9, window_bounds = array<i64: 256, 1024>}, {pipeline_mode = #tpu.pipeline_mode<synchronous>, transform_indices = @transform_10, window_bounds = array<i64: 1, 1024>}, {pipeline_mode = #tpu.pipeline_mode<synchronous>, transform_indices = @transform_11, window_bounds = array<i64: 1024, 256>}, {pipeline_mode = #tpu.pipeline_mode<synchronous>, transform_indices = @transform_12, window_bounds = array<i64: 1, 256>}, {transform_indices = @transform_13, window_bounds = array<i64: 2, 8, 256>}]} {
    %c0 = arith.constant 0 : index
    %c0_0 = arith.constant 0 : index
    %c0_1 = arith.constant 0 : index
    %0 = vector.load %arg1[%c0, %c0_0, %c0_1] : memref<2x8x256xf32, #tpu.memory_space<vmem>>, vector<2x8x256xf32>
    %1 = vector.shape_cast %0 : vector<2x8x256xf32> to vector<16x256xf32>
    %c0_2 = arith.constant 0 : index
    %c0_3 = arith.constant 0 : index
    %2 = vector.load %arg2[%c0_2, %c0_3] : memref<1x256xf32, #tpu.memory_space<vmem>>, vector<1x256xf32>
    %3 = vector.shape_cast %2 : vector<1x256xf32> to vector<256xf32>
    %c0_4 = arith.constant 0 : index
    %c0_5 = arith.constant 0 : index
    %4 = vector.load %arg3[%c0_4, %c0_5] : memref<1x256xf32, #tpu.memory_space<vmem>>, vector<1x256xf32>
    %5 = vector.shape_cast %4 : vector<1x256xf32> to vector<256xf32>
    %cst = arith.constant dense<0.000000e+00> : vector<16xf32>
    %6 = vector.multi_reduction <add>, %1, %cst [1] : vector<16x256xf32> to vector<16xf32>
    %7 = vector.shape_cast %6 : vector<16xf32> to vector<16x1xf32>
    %cst_6 = arith.constant 2.560000e+02 : f32
    %8 = vector.broadcast %cst_6 : f32 to vector<16x1xf32>
    %9 = arith.divf %7, %8 : vector<16x1xf32>
    %10 = vector.broadcast %9 : vector<16x1xf32> to vector<16x256xf32>
    %11 = arith.subf %1, %10 : vector<16x256xf32>
    %12 = arith.mulf %11, %11 : vector<16x256xf32>
    %cst_7 = arith.constant dense<0.000000e+00> : vector<16xf32>
    %13 = vector.multi_reduction <add>, %12, %cst_7 [1] : vector<16x256xf32> to vector<16xf32>
    %14 = vector.shape_cast %13 : vector<16xf32> to vector<16x1xf32>
    %cst_8 = arith.constant 2.560000e+02 : f32
    %15 = vector.broadcast %cst_8 : f32 to vector<16x1xf32>
    %16 = arith.divf %14, %15 : vector<16x1xf32>
    %17 = vector.broadcast %9 : vector<16x1xf32> to vector<16x256xf32>
    %18 = arith.subf %1, %17 : vector<16x256xf32>
    %cst_9 = arith.constant 9.99999974E-6 : f32
    %19 = vector.broadcast %cst_9 : f32 to vector<16x1xf32>
    %20 = arith.addf %16, %19 : vector<16x1xf32>
    %21 = math.rsqrt %20 : vector<16x1xf32>
    %22 = vector.broadcast %21 : vector<16x1xf32> to vector<16x256xf32>
    %23 = arith.mulf %18, %22 : vector<16x256xf32>
    %24 = vector.shape_cast %3 : vector<256xf32> to vector<1x256xf32>
    %25 = vector.broadcast %24 : vector<1x256xf32> to vector<16x256xf32>
    %26 = arith.mulf %23, %25 : vector<16x256xf32>
    %27 = vector.shape_cast %5 : vector<256xf32> to vector<1x256xf32>
    %28 = vector.broadcast %27 : vector<1x256xf32> to vector<16x256xf32>
    %29 = arith.addf %26, %28 : vector<16x256xf32>
    %30 = arith.truncf %29 : vector<16x256xf32> to vector<16x256xbf16>
    %c0_10 = arith.constant 0 : index
    %c0_11 = arith.constant 0 : index
    %31 = vector.load %arg4[%c0_10, %c0_11] : memref<256x768xbf16, #tpu.memory_space<vmem>>, vector<256x768xbf16>
    %cst_12 = arith.constant dense<0.000000e+00> : vector<16x768xf32>
    %32 = tpu.matmul %30, %31, %cst_12 {dimension_numbers = #tpu.dot_dimension_numbers<[1], [0], [0], [1], [0, 0, 1, 1], [], []>} : vector<16x256xbf16>, vector<256x768xbf16>, vector<16x768xf32> -> vector<16x768xf32>
    %c0_13 = arith.constant 0 : index
    %c0_14 = arith.constant 0 : index
    %33 = vector.load %arg5[%c0_13, %c0_14] : memref<1x768xf32, #tpu.memory_space<vmem>>, vector<1x768xf32>
    %34 = vector.shape_cast %33 : vector<1x768xf32> to vector<768xf32>
    %35 = vector.shape_cast %34 : vector<768xf32> to vector<1x768xf32>
    %36 = vector.broadcast %35 : vector<1x768xf32> to vector<16x768xf32>
    %37 = arith.addf %32, %36 : vector<16x768xf32>
    %38 = vector.extract_strided_slice %37 {offsets = [0, 0], sizes = [16, 256], strides = [1, 1]} : vector<16x768xf32> to vector<16x256xf32>
    %39 = arith.truncf %38 : vector<16x256xf32> to vector<16x256xbf16>
    %40 = vector.extract_strided_slice %39 {offsets = [0, 0], sizes = [8, 128], strides = [1, 1]} : vector<16x256xbf16> to vector<8x128xbf16>
    %41 = vector.extract_strided_slice %39 {offsets = [0, 128], sizes = [8, 128], strides = [1, 1]} : vector<16x256xbf16> to vector<8x128xbf16>
    %42 = vector.extract_strided_slice %39 {offsets = [8, 0], sizes = [8, 128], strides = [1, 1]} : vector<16x256xbf16> to vector<8x128xbf16>
    %43 = vector.extract_strided_slice %39 {offsets = [8, 128], sizes = [8, 128], strides = [1, 1]} : vector<16x256xbf16> to vector<8x128xbf16>
    %44 = vector.shape_cast %40 : vector<8x128xbf16> to vector<1x8x128xbf16>
    %45 = vector.shape_cast %41 : vector<8x128xbf16> to vector<1x8x128xbf16>
    %46 = vector.shape_cast %42 : vector<8x128xbf16> to vector<1x8x128xbf16>
    %47 = vector.shape_cast %43 : vector<8x128xbf16> to vector<1x8x128xbf16>
    %48 = tpu.concatenate %44, %45, %46, %47 in 0 : vector<1x8x128xbf16>, vector<1x8x128xbf16>, vector<1x8x128xbf16>, vector<1x8x128xbf16> -> vector<4x8x128xbf16>
    %49 = vector.extract_strided_slice %37 {offsets = [0, 256], sizes = [16, 256], strides = [1, 1]} : vector<16x768xf32> to vector<16x256xf32>
    %50 = arith.truncf %49 : vector<16x256xf32> to vector<16x256xbf16>
    %51 = vector.extract_strided_slice %50 {offsets = [0, 0], sizes = [8, 128], strides = [1, 1]} : vector<16x256xbf16> to vector<8x128xbf16>
    %52 = vector.extract_strided_slice %50 {offsets = [0, 128], sizes = [8, 128], strides = [1, 1]} : vector<16x256xbf16> to vector<8x128xbf16>
    %53 = vector.extract_strided_slice %50 {offsets = [8, 0], sizes = [8, 128], strides = [1, 1]} : vector<16x256xbf16> to vector<8x128xbf16>
    %54 = vector.extract_strided_slice %50 {offsets = [8, 128], sizes = [8, 128], strides = [1, 1]} : vector<16x256xbf16> to vector<8x128xbf16>
    %55 = vector.shape_cast %51 : vector<8x128xbf16> to vector<1x8x128xbf16>
    %56 = vector.shape_cast %52 : vector<8x128xbf16> to vector<1x8x128xbf16>
    %57 = vector.shape_cast %53 : vector<8x128xbf16> to vector<1x8x128xbf16>
    %58 = vector.shape_cast %54 : vector<8x128xbf16> to vector<1x8x128xbf16>
    %59 = tpu.concatenate %55, %56, %57, %58 in 0 : vector<1x8x128xbf16>, vector<1x8x128xbf16>, vector<1x8x128xbf16>, vector<1x8x128xbf16> -> vector<4x8x128xbf16>
    %60 = vector.extract_strided_slice %37 {offsets = [0, 512], sizes = [16, 256], strides = [1, 1]} : vector<16x768xf32> to vector<16x256xf32>
    %61 = arith.truncf %60 : vector<16x256xf32> to vector<16x256xbf16>
    %62 = vector.extract_strided_slice %61 {offsets = [0, 0], sizes = [8, 128], strides = [1, 1]} : vector<16x256xbf16> to vector<8x128xbf16>
    %63 = vector.extract_strided_slice %61 {offsets = [0, 128], sizes = [8, 128], strides = [1, 1]} : vector<16x256xbf16> to vector<8x128xbf16>
    %64 = vector.extract_strided_slice %61 {offsets = [8, 0], sizes = [8, 128], strides = [1, 1]} : vector<16x256xbf16> to vector<8x128xbf16>
    %65 = vector.extract_strided_slice %61 {offsets = [8, 128], sizes = [8, 128], strides = [1, 1]} : vector<16x256xbf16> to vector<8x128xbf16>
    %66 = vector.shape_cast %62 : vector<8x128xbf16> to vector<1x8x128xbf16>
    %67 = vector.shape_cast %63 : vector<8x128xbf16> to vector<1x8x128xbf16>
    %68 = vector.shape_cast %64 : vector<8x128xbf16> to vector<1x8x128xbf16>
    %69 = vector.shape_cast %65 : vector<8x128xbf16> to vector<1x8x128xbf16>
    %70 = tpu.concatenate %66, %67, %68, %69 in 0 : vector<1x8x128xbf16>, vector<1x8x128xbf16>, vector<1x8x128xbf16>, vector<1x8x128xbf16> -> vector<4x8x128xbf16>
    "tpu.trace_start"() <{level = 10 : i32, message = "bqd,bkd->bqk"}> : () -> ()
    %cst_15 = arith.constant dense<0.000000e+00> : vector<4x8x8xf32>
    %71 = tpu.matmul %48, %59, %cst_15 {dimension_numbers = #tpu.dot_dimension_numbers<[2], [2], [1], [1], [0, 0, 0, 1, 1, 1], [0], [0]>} : vector<4x8x128xbf16>, vector<4x8x128xbf16>, vector<4x8x8xf32> -> vector<4x8x8xf32>
    "tpu.trace_stop"() : () -> ()
    %cst_16 = arith.constant dense<0xFF800000> : vector<4x8xf32>
    %72 = vector.multi_reduction <maximumf>, %71, %cst_16 [2] : vector<4x8x8xf32> to vector<4x8xf32>
    %73 = vector.shape_cast %72 : vector<4x8xf32> to vector<4x8x1xf32>
    %74 = vector.broadcast %73 : vector<4x8x1xf32> to vector<4x8x8xf32>
    %75 = arith.subf %71, %74 : vector<4x8x8xf32>
    %76 = math.exp %75 : vector<4x8x8xf32>
    %cst_17 = arith.constant dense<0.000000e+00> : vector<4x8xf32>
    %77 = vector.multi_reduction <add>, %76, %cst_17 [2] : vector<4x8x8xf32> to vector<4x8xf32>
    %78 = vector.shape_cast %77 : vector<4x8xf32> to vector<4x8x1xf32>
    %79 = tpu.reciprocal %78 {approx = true} : vector<4x8x1xf32> -> vector<4x8x1xf32>
    %80 = arith.truncf %76 : vector<4x8x8xf32> to vector<4x8x8xbf16>
    "tpu.trace_start"() <{level = 10 : i32, message = "bqk,bkd->bqd"}> : () -> ()
    %cst_18 = arith.constant dense<0.000000e+00> : vector<4x8x128xf32>
    %81 = tpu.matmul %80, %70, %cst_18 {dimension_numbers = #tpu.dot_dimension_numbers<[2], [1], [1], [2], [0, 0, 0, 1, 1, 2], [0], [0]>} : vector<4x8x8xbf16>, vector<4x8x128xbf16>, vector<4x8x128xf32> -> vector<4x8x128xf32>
    "tpu.trace_stop"() : () -> ()
    %82 = vector.broadcast %79 : vector<4x8x1xf32> to vector<4x8x128xf32>
    %83 = arith.mulf %81, %82 : vector<4x8x128xf32>
    %84 = arith.truncf %83 : vector<4x8x128xf32> to vector<4x8x128xbf16>
    %85 = vector.extract_strided_slice %84 {offsets = [0, 0, 0], sizes = [1, 8, 128], strides = [1, 1, 1]} : vector<4x8x128xbf16> to vector<1x8x128xbf16>
    %86 = vector.shape_cast %85 : vector<1x8x128xbf16> to vector<8x128xbf16>
    %87 = vector.extract_strided_slice %84 {offsets = [1, 0, 0], sizes = [1, 8, 128], strides = [1, 1, 1]} : vector<4x8x128xbf16> to vector<1x8x128xbf16>
    %88 = vector.shape_cast %87 : vector<1x8x128xbf16> to vector<8x128xbf16>
    %89 = tpu.concatenate %86, %88 in 1 : vector<8x128xbf16>, vector<8x128xbf16> -> vector<8x256xbf16>
    %90 = vector.extract_strided_slice %84 {offsets = [2, 0, 0], sizes = [1, 8, 128], strides = [1, 1, 1]} : vector<4x8x128xbf16> to vector<1x8x128xbf16>
    %91 = vector.shape_cast %90 : vector<1x8x128xbf16> to vector<8x128xbf16>
    %92 = vector.extract_strided_slice %84 {offsets = [3, 0, 0], sizes = [1, 8, 128], strides = [1, 1, 1]} : vector<4x8x128xbf16> to vector<1x8x128xbf16>
    %93 = vector.shape_cast %92 : vector<1x8x128xbf16> to vector<8x128xbf16>
    %94 = tpu.concatenate %91, %93 in 1 : vector<8x128xbf16>, vector<8x128xbf16> -> vector<8x256xbf16>
    %95 = tpu.concatenate %89, %94 in 0 : vector<8x256xbf16>, vector<8x256xbf16> -> vector<16x256xbf16>
    %c0_19 = arith.constant 0 : index
    %c0_20 = arith.constant 0 : index
    %96 = vector.load %arg6[%c0_19, %c0_20] : memref<256x256xbf16, #tpu.memory_space<vmem>>, vector<256x256xbf16>
    %cst_21 = arith.constant dense<0.000000e+00> : vector<16x256xf32>
    %97 = tpu.matmul %95, %96, %cst_21 {dimension_numbers = #tpu.dot_dimension_numbers<[1], [0], [0], [1], [0, 0, 1, 1], [], []>} : vector<16x256xbf16>, vector<256x256xbf16>, vector<16x256xf32> -> vector<16x256xf32>
    %c0_22 = arith.constant 0 : index
    %c0_23 = arith.constant 0 : index
    %98 = vector.load %arg7[%c0_22, %c0_23] : memref<1x256xf32, #tpu.memory_space<vmem>>, vector<1x256xf32>
    %99 = vector.shape_cast %98 : vector<1x256xf32> to vector<256xf32>
    %100 = vector.shape_cast %99 : vector<256xf32> to vector<1x256xf32>
    %101 = vector.broadcast %100 : vector<1x256xf32> to vector<16x256xf32>
    %102 = arith.addf %97, %101 : vector<16x256xf32>
    %103 = arith.addf %1, %102 : vector<16x256xf32>
    %c0_24 = arith.constant 0 : index
    %c0_25 = arith.constant 0 : index
    %104 = vector.load %arg8[%c0_24, %c0_25] : memref<1x256xf32, #tpu.memory_space<vmem>>, vector<1x256xf32>
    %105 = vector.shape_cast %104 : vector<1x256xf32> to vector<256xf32>
    %c0_26 = arith.constant 0 : index
    %c0_27 = arith.constant 0 : index
    %106 = vector.load %arg9[%c0_26, %c0_27] : memref<1x256xf32, #tpu.memory_space<vmem>>, vector<1x256xf32>
    %107 = vector.shape_cast %106 : vector<1x256xf32> to vector<256xf32>
    %cst_28 = arith.constant dense<0.000000e+00> : vector<16xf32>
    %108 = vector.multi_reduction <add>, %103, %cst_28 [1] : vector<16x256xf32> to vector<16xf32>
    %109 = vector.shape_cast %108 : vector<16xf32> to vector<16x1xf32>
    %cst_29 = arith.constant 2.560000e+02 : f32
    %110 = vector.broadcast %cst_29 : f32 to vector<16x1xf32>
    %111 = arith.divf %109, %110 : vector<16x1xf32>
    %112 = vector.broadcast %111 : vector<16x1xf32> to vector<16x256xf32>
    %113 = arith.subf %103, %112 : vector<16x256xf32>
    %114 = arith.mulf %113, %113 : vector<16x256xf32>
    %cst_30 = arith.constant dense<0.000000e+00> : vector<16xf32>
    %115 = vector.multi_reduction <add>, %114, %cst_30 [1] : vector<16x256xf32> to vector<16xf32>
    %116 = vector.shape_cast %115 : vector<16xf32> to vector<16x1xf32>
    %cst_31 = arith.constant 2.560000e+02 : f32
    %117 = vector.broadcast %cst_31 : f32 to vector<16x1xf32>
    %118 = arith.divf %116, %117 : vector<16x1xf32>
    %119 = vector.broadcast %111 : vector<16x1xf32> to vector<16x256xf32>
    %120 = arith.subf %103, %119 : vector<16x256xf32>
    %cst_32 = arith.constant 9.99999974E-6 : f32
    %121 = vector.broadcast %cst_32 : f32 to vector<16x1xf32>
    %122 = arith.addf %118, %121 : vector<16x1xf32>
    %123 = math.rsqrt %122 : vector<16x1xf32>
    %124 = vector.broadcast %123 : vector<16x1xf32> to vector<16x256xf32>
    %125 = arith.mulf %120, %124 : vector<16x256xf32>
    %126 = vector.shape_cast %105 : vector<256xf32> to vector<1x256xf32>
    %127 = vector.broadcast %126 : vector<1x256xf32> to vector<16x256xf32>
    %128 = arith.mulf %125, %127 : vector<16x256xf32>
    %129 = vector.shape_cast %107 : vector<256xf32> to vector<1x256xf32>
    %130 = vector.broadcast %129 : vector<1x256xf32> to vector<16x256xf32>
    %131 = arith.addf %128, %130 : vector<16x256xf32>
    %132 = arith.truncf %131 : vector<16x256xf32> to vector<16x256xbf16>
    %c0_33 = arith.constant 0 : index
    %c0_34 = arith.constant 0 : index
    %133 = vector.load %arg10[%c0_33, %c0_34] : memref<256x1024xbf16, #tpu.memory_space<vmem>>, vector<256x1024xbf16>
    %cst_35 = arith.constant dense<0.000000e+00> : vector<16x1024xf32>
    %134 = tpu.matmul %132, %133, %cst_35 {dimension_numbers = #tpu.dot_dimension_numbers<[1], [0], [0], [1], [0, 0, 1, 1], [], []>} : vector<16x256xbf16>, vector<256x1024xbf16>, vector<16x1024xf32> -> vector<16x1024xf32>
    %c0_36 = arith.constant 0 : index
    %c0_37 = arith.constant 0 : index
    %135 = vector.load %arg11[%c0_36, %c0_37] : memref<1x1024xf32, #tpu.memory_space<vmem>>, vector<1x1024xf32>
    %136 = vector.shape_cast %135 : vector<1x1024xf32> to vector<1024xf32>
    %137 = vector.shape_cast %136 : vector<1024xf32> to vector<1x1024xf32>
    %138 = vector.broadcast %137 : vector<1x1024xf32> to vector<16x1024xf32>
    %139 = arith.addf %134, %138 : vector<16x1024xf32>
    %cst_38 = arith.constant 1.702000e+00 : f32
    %140 = vector.broadcast %cst_38 : f32 to vector<16x1024xf32>
    %141 = arith.mulf %140, %139 : vector<16x1024xf32>
    %142 = arith.negf %141 : vector<16x1024xf32>
    %143 = math.exp %142 : vector<16x1024xf32>
    %cst_39 = arith.constant 1.000000e+00 : f32
    %144 = vector.broadcast %cst_39 : f32 to vector<16x1024xf32>
    %145 = arith.addf %144, %143 : vector<16x1024xf32>
    %146 = arith.divf %144, %145 : vector<16x1024xf32>
    %147 = arith.mulf %139, %146 : vector<16x1024xf32>
    %148 = arith.truncf %147 : vector<16x1024xf32> to vector<16x1024xbf16>
    %c0_40 = arith.constant 0 : index
    %c0_41 = arith.constant 0 : index
    %149 = vector.load %arg12[%c0_40, %c0_41] : memref<1024x256xbf16, #tpu.memory_space<vmem>>, vector<1024x256xbf16>
    %cst_42 = arith.constant dense<0.000000e+00> : vector<16x256xf32>
    %150 = tpu.matmul %148, %149, %cst_42 {dimension_numbers = #tpu.dot_dimension_numbers<[1], [0], [0], [1], [0, 0, 1, 1], [], []>} : vector<16x1024xbf16>, vector<1024x256xbf16>, vector<16x256xf32> -> vector<16x256xf32>
    %c0_43 = arith.constant 0 : index
    %c0_44 = arith.constant 0 : index
    %151 = vector.load %arg13[%c0_43, %c0_44] : memref<1x256xf32, #tpu.memory_space<vmem>>, vector<1x256xf32>
    %152 = vector.shape_cast %151 : vector<1x256xf32> to vector<256xf32>
    %153 = vector.shape_cast %152 : vector<256xf32> to vector<1x256xf32>
    %154 = vector.broadcast %153 : vector<1x256xf32> to vector<16x256xf32>
    %155 = arith.addf %150, %154 : vector<16x256xf32>
    %156 = arith.addf %103, %155 : vector<16x256xf32>
    %157 = vector.shape_cast %156 : vector<16x256xf32> to vector<2x8x256xf32>
    %c0_45 = arith.constant 0 : index
    %c0_46 = arith.constant 0 : index
    %c0_47 = arith.constant 0 : index
    %158 = vector.load %arg14[%c0_45, %c0_46, %c0_47] : memref<2x8x256xf32, #tpu.memory_space<vmem>>, vector<2x8x256xf32>
    tpu.vector_store %arg14[%c0_45, %c0_46, %c0_47], %157 {strides = array<i32>} : memref<2x8x256xf32, #tpu.memory_space<vmem>>, vector<2x8x256xf32>,
    return
  }
  func.func @transform_0(%arg0: i32) -> (i32, i32, i32) {
    %c0_i32 = arith.constant 0 : i32
    %c0_i32_0 = arith.constant 0 : i32
    %c0_i32_1 = arith.constant 0 : i32
    return %arg0, %c0_i32, %c0_i32_0 : i32, i32, i32
  }
  func.func @transform_1(%arg0: i32) -> (i32, i32) {
    %c0_i32 = arith.constant 0 : i32
    %c0_i32_0 = arith.constant 0 : i32
    %c0_i32_1 = arith.constant 0 : i32
    return %c0_i32, %c0_i32_0 : i32, i32
  }
  func.func @transform_2(%arg0: i32) -> (i32, i32) {
    %c0_i32 = arith.constant 0 : i32
    %c0_i32_0 = arith.constant 0 : i32
    %c0_i32_1 = arith.constant 0 : i32
    return %c0_i32, %c0_i32_0 : i32, i32
  }
  func.func @transform_3(%arg0: i32) -> (i32, i32) {
    %c0_i32 = arith.constant 0 : i32
    %c0_i32_0 = arith.constant 0 : i32
    %c0_i32_1 = arith.constant 0 : i32
    return %c0_i32, %c0_i32_0 : i32, i32
  }
  func.func @transform_4(%arg0: i32) -> (i32, i32) {
    %c0_i32 = arith.constant 0 : i32
    %c0_i32_0 = arith.constant 0 : i32
    %c0_i32_1 = arith.constant 0 : i32
    return %c0_i32, %c0_i32_0 : i32, i32
  }
  func.func @transform_5(%arg0: i32) -> (i32, i32) {
    %c0_i32 = arith.constant 0 : i32
    %c0_i32_0 = arith.constant 0 : i32
    %c0_i32_1 = arith.constant 0 : i32
    return %c0_i32, %c0_i32_0 : i32, i32
  }
  func.func @transform_6(%arg0: i32) -> (i32, i32) {
    %c0_i32 = arith.constant 0 : i32
    %c0_i32_0 = arith.constant 0 : i32
    %c0_i32_1 = arith.constant 0 : i32
    return %c0_i32, %c0_i32_0 : i32, i32
  }
  func.func @transform_7(%arg0: i32) -> (i32, i32) {
    %c0_i32 = arith.constant 0 : i32
    %c0_i32_0 = arith.constant 0 : i32
    %c0_i32_1 = arith.constant 0 : i32
    return %c0_i32, %c0_i32_0 : i32, i32
  }
  func.func @transform_8(%arg0: i32) -> (i32, i32) {
    %c0_i32 = arith.constant 0 : i32
    %c0_i32_0 = arith.constant 0 : i32
    %c0_i32_1 = arith.constant 0 : i32
    return %c0_i32, %c0_i32_0 : i32, i32
  }
  func.func @transform_9(%arg0: i32) -> (i32, i32) {
    %c0_i32 = arith.constant 0 : i32
    %c0_i32_0 = arith.constant 0 : i32
    %c0_i32_1 = arith.constant 0 : i32
    return %c0_i32, %c0_i32_0 : i32, i32
  }
  func.func @transform_10(%arg0: i32) -> (i32, i32) {
    %c0_i32 = arith.constant 0 : i32
    %c0_i32_0 = arith.constant 0 : i32
    %c0_i32_1 = arith.constant 0 : i32
    return %c0_i32, %c0_i32_0 : i32, i32
  }
  func.func @transform_11(%arg0: i32) -> (i32, i32) {
    %c0_i32 = arith.constant 0 : i32
    %c0_i32_0 = arith.constant 0 : i32
    %c0_i32_1 = arith.constant 0 : i32
    return %c0_i32, %c0_i32_0 : i32, i32
  }
  func.func @transform_12(%arg0: i32) -> (i32, i32) {
    %c0_i32 = arith.constant 0 : i32
    %c0_i32_0 = arith.constant 0 : i32
    %c0_i32_1 = arith.constant 0 : i32
    return %c0_i32, %c0_i32_0 : i32, i32
  }
  func.func @transform_13(%arg0: i32) -> (i32, i32, i32) {
    %c0_i32 = arith.constant 0 : i32
    %c0_i32_0 = arith.constant 0 : i32
    %c0_i32_1 = arith.constant 0 : i32
    return %arg0, %c0_i32, %c0_i32_0 : i32, i32, i32
  }
}

module attributes {stable_mosaic.version = 11 : i64} {
  func.func @_block_kernel(%arg0: i32, %arg1: memref<2x8x256xf32, #tpu.memory_space<vmem>>, %arg2: memref<1x256xf32, #tpu.memory_space<vmem>>, %arg3: memref<1x256xf32, #tpu.memory_space<vmem>>, %arg4: memref<256x768xbf16, #tpu.memory_space<vmem>>, %arg5: memref<1x768xf32, #tpu.memory_space<vmem>>, %arg6: memref<256x256xbf16, #tpu.memory_space<vmem>>, %arg7: memref<1x256xf32, #tpu.memory_space<vmem>>, %arg8: memref<1x256xf32, #tpu.memory_space<vmem>>, %arg9: memref<1x256xf32, #tpu.memory_space<vmem>>, %arg10: memref<256x1024xbf16, #tpu.memory_space<vmem>>, %arg11: memref<1x1024xf32, #tpu.memory_space<vmem>>, %arg12: memref<1024x256xbf16, #tpu.memory_space<vmem>>, %arg13: memref<1x256xf32, #tpu.memory_space<vmem>>, %arg14: memref<2x8x256xf32, #tpu.memory_space<vmem>>) attributes {dimension_semantics = [#tpu.dimension_semantics<parallel>], iteration_bounds = array<i64: 2>, scalar_prefetch = 0 : i64, scratch_operands = 0 : i64, tpu.core_type = #tpu.core_type<tc>, window_params = [{transform_indices = @transform_0, window_bounds = array<i64: 2, 8, 256>}, {pipeline_mode = #tpu.pipeline_mode<synchronous>, transform_indices = @transform_1, window_bounds = array<i64: 1, 256>}, {pipeline_mode = #tpu.pipeline_mode<synchronous>, transform_indices = @transform_2, window_bounds = array<i64: 1, 256>}, {pipeline_mode = #tpu.pipeline_mode<synchronous>, transform_indices = @transform_3, window_bounds = array<i64: 256, 768>}, {pipeline_mode = #tpu.pipeline_mode<synchronous>, transform_indices = @transform_4, window_bounds = array<i64: 1, 768>}, {pipeline_mode = #tpu.pipeline_mode<synchronous>, transform_indices = @transform_5, window_bounds = array<i64: 256, 256>}, {pipeline_mode = #tpu.pipeline_mode<synchronous>, transform_indices = @transform_6, window_bounds = array<i64: 1, 256>}, {pipeline_mode = #tpu.pipeline_mode<synchronous>, transform_indices = @transform_7, window_bounds = array<i64: 1, 256>}, {pipeline_mode = #tpu.pipeline_mode<synchronous>, transform_indices = @transform_8, window_bounds = array<i64: 1, 256>}, {pipeline_mode = #tpu.pipeline_mode<synchronous>, transform_indices = @transform_9, window_bounds = array<i64: 256, 1024>}, {pipeline_mode = #tpu.pipeline_mode<synchronous>, transform_indices = @transform_10, window_bounds = array<i64: 1, 1024>}, {pipeline_mode = #tpu.pipeline_mode<synchronous>, transform_indices = @transform_11, window_bounds = array<i64: 1024, 256>}, {pipeline_mode = #tpu.pipeline_mode<synchronous>, transform_indices = @transform_12, window_bounds = array<i64: 1, 256>}, {transform_indices = @transform_13, window_bounds = array<i64: 2, 8, 256>}]} {
    %c0 = arith.constant 0 : index
    %c0_0 = arith.constant 0 : index
    %c0_1 = arith.constant 0 : index
    %0 = vector.load %arg1[%c0, %c0_0, %c0_1] : memref<2x8x256xf32, #tpu.memory_space<vmem>>, vector<2x8x256xf32>
    %1 = vector.shape_cast %0 : vector<2x8x256xf32> to vector<16x256xf32>
    %c0_2 = arith.constant 0 : index
    %c0_3 = arith.constant 0 : index
    %2 = vector.load %arg2[%c0_2, %c0_3] : memref<1x256xf32, #tpu.memory_space<vmem>>, vector<1x256xf32>
    %3 = vector.shape_cast %2 : vector<1x256xf32> to vector<256xf32>
    %c0_4 = arith.constant 0 : index
    %c0_5 = arith.constant 0 : index
    %4 = vector.load %arg3[%c0_4, %c0_5] : memref<1x256xf32, #tpu.memory_space<vmem>>, vector<1x256xf32>
    %5 = vector.shape_cast %4 : vector<1x256xf32> to vector<256xf32>
    %cst = arith.constant dense<0.000000e+00> : vector<16xf32>
    %6 = vector.multi_reduction <add>, %1, %cst [1] : vector<16x256xf32> to vector<16xf32>
    %7 = vector.shape_cast %6 : vector<16xf32> to vector<16x1xf32>
    %cst_6 = arith.constant 2.560000e+02 : f32
    %8 = vector.broadcast %cst_6 : f32 to vector<16x1xf32>
    %9 = arith.divf %7, %8 : vector<16x1xf32>
    %10 = vector.broadcast %9 : vector<16x1xf32> to vector<16x256xf32>
    %11 = arith.subf %1, %10 : vector<16x256xf32>
    %12 = arith.mulf %11, %11 : vector<16x256xf32>
    %cst_7 = arith.constant dense<0.000000e+00> : vector<16xf32>
    %13 = vector.multi_reduction <add>, %12, %cst_7 [1] : vector<16x256xf32> to vector<16xf32>
    %14 = vector.shape_cast %13 : vector<16xf32> to vector<16x1xf32>
    %cst_8 = arith.constant 2.560000e+02 : f32
    %15 = vector.broadcast %cst_8 : f32 to vector<16x1xf32>
    %16 = arith.divf %14, %15 : vector<16x1xf32>
    %17 = vector.broadcast %9 : vector<16x1xf32> to vector<16x256xf32>
    %18 = arith.subf %1, %17 : vector<16x256xf32>
    %cst_9 = arith.constant 9.99999974E-6 : f32
    %19 = vector.broadcast %cst_9 : f32 to vector<16x1xf32>
    %20 = arith.addf %16, %19 : vector<16x1xf32>
    %21 = math.rsqrt %20 : vector<16x1xf32>
    %22 = vector.broadcast %21 : vector<16x1xf32> to vector<16x256xf32>
    %23 = arith.mulf %18, %22 : vector<16x256xf32>
    %24 = vector.shape_cast %3 : vector<256xf32> to vector<1x256xf32>
    %25 = vector.broadcast %24 : vector<1x256xf32> to vector<16x256xf32>
    %26 = arith.mulf %23, %25 : vector<16x256xf32>
    %27 = vector.shape_cast %5 : vector<256xf32> to vector<1x256xf32>
    %28 = vector.broadcast %27 : vector<1x256xf32> to vector<16x256xf32>
    %29 = arith.addf %26, %28 : vector<16x256xf32>
    %30 = arith.truncf %29 : vector<16x256xf32> to vector<16x256xbf16>
    %c0_10 = arith.constant 0 : index
    %c0_11 = arith.constant 0 : index
    %31 = vector.load %arg4[%c0_10, %c0_11] : memref<256x768xbf16, #tpu.memory_space<vmem>>, vector<256x768xbf16>
    %cst_12 = arith.constant dense<0.000000e+00> : vector<16x768xf32>
    %32 = tpu.matmul %30, %31, %cst_12 {dimension_numbers = #tpu.dot_dimension_numbers<[1], [0], [0], [1], [0, 0, 1, 1], [], []>} : vector<16x256xbf16>, vector<256x768xbf16>, vector<16x768xf32> -> vector<16x768xf32>
    %c0_13 = arith.constant 0 : index
    %c0_14 = arith.constant 0 : index
    %33 = vector.load %arg5[%c0_13, %c0_14] : memref<1x768xf32, #tpu.memory_space<vmem>>, vector<1x768xf32>
    %34 = vector.shape_cast %33 : vector<1x768xf32> to vector<768xf32>
    %35 = vector.shape_cast %34 : vector<768xf32> to vector<1x768xf32>
    %36 = vector.broadcast %35 : vector<1x768xf32> to vector<16x768xf32>
    %37 = arith.addf %32, %36 : vector<16x768xf32>
    %38 = vector.extract_strided_slice %37 {offsets = [0, 0], sizes = [16, 256], strides = [1, 1]} : vector<16x768xf32> to vector<16x256xf32>
    %39 = arith.truncf %38 : vector<16x256xf32> to vector<16x256xbf16>
    %40 = vector.extract_strided_slice %39 {offsets = [0, 0], sizes = [8, 128], strides = [1, 1]} : vector<16x256xbf16> to vector<8x128xbf16>
    %41 = vector.extract_strided_slice %39 {offsets = [0, 128], sizes = [8, 128], strides = [1, 1]} : vector<16x256xbf16> to vector<8x128xbf16>
    %42 = vector.extract_strided_slice %39 {offsets = [8, 0], sizes = [8, 128], strides = [1, 1]} : vector<16x256xbf16> to vector<8x128xbf16>
    %43 = vector.extract_strided_slice %39 {offsets = [8, 128], sizes = [8, 128], strides = [1, 1]} : vector<16x256xbf16> to vector<8x128xbf16>
    %44 = vector.shape_cast %40 : vector<8x128xbf16> to vector<1x8x128xbf16>
    %45 = vector.shape_cast %41 : vector<8x128xbf16> to vector<1x8x128xbf16>
    %46 = vector.shape_cast %42 : vector<8x128xbf16> to vector<1x8x128xbf16>
    %47 = vector.shape_cast %43 : vector<8x128xbf16> to vector<1x8x128xbf16>
    %48 = tpu.concatenate %44, %45, %46, %47 in 0 : vector<1x8x128xbf16>, vector<1x8x128xbf16>, vector<1x8x128xbf16>, vector<1x8x128xbf16> -> vector<4x8x128xbf16>
    %49 = vector.extract_strided_slice %37 {offsets = [0, 256], sizes = [16, 256], strides = [1, 1]} : vector<16x768xf32> to vector<16x256xf32>
    %50 = arith.truncf %49 : vector<16x256xf32> to vector<16x256xbf16>
    %51 = vector.extract_strided_slice %50 {offsets = [0, 0], sizes = [8, 128], strides = [1, 1]} : vector<16x256xbf16> to vector<8x128xbf16>
    %52 = vector.extract_strided_slice %50 {offsets = [0, 128], sizes = [8, 128], strides = [1, 1]} : vector<16x256xbf16> to vector<8x128xbf16>
    %53 = vector.extract_strided_slice %50 {offsets = [8, 0], sizes = [8, 128], strides = [1, 1]} : vector<16x256xbf16> to vector<8x128xbf16>
    %54 = vector.extract_strided_slice %50 {offsets = [8, 128], sizes = [8, 128], strides = [1, 1]} : vector<16x256xbf16> to vector<8x128xbf16>
    %55 = vector.shape_cast %51 : vector<8x128xbf16> to vector<1x8x128xbf16>
    %56 = vector.shape_cast %52 : vector<8x128xbf16> to vector<1x8x128xbf16>
    %57 = vector.shape_cast %53 : vector<8x128xbf16> to vector<1x8x128xbf16>
    %58 = vector.shape_cast %54 : vector<8x128xbf16> to vector<1x8x128xbf16>
    %59 = tpu.concatenate %55, %56, %57, %58 in 0 : vector<1x8x128xbf16>, vector<1x8x128xbf16>, vector<1x8x128xbf16>, vector<1x8x128xbf16> -> vector<4x8x128xbf16>
    %60 = vector.extract_strided_slice %37 {offsets = [0, 512], sizes = [16, 256], strides = [1, 1]} : vector<16x768xf32> to vector<16x256xf32>
    %61 = arith.truncf %60 : vector<16x256xf32> to vector<16x256xbf16>
    %62 = vector.extract_strided_slice %61 {offsets = [0, 0], sizes = [8, 128], strides = [1, 1]} : vector<16x256xbf16> to vector<8x128xbf16>
    %63 = vector.extract_strided_slice %61 {offsets = [0, 128], sizes = [8, 128], strides = [1, 1]} : vector<16x256xbf16> to vector<8x128xbf16>
    %64 = vector.extract_strided_slice %61 {offsets = [8, 0], sizes = [8, 128], strides = [1, 1]} : vector<16x256xbf16> to vector<8x128xbf16>
    %65 = vector.extract_strided_slice %61 {offsets = [8, 128], sizes = [8, 128], strides = [1, 1]} : vector<16x256xbf16> to vector<8x128xbf16>
    %66 = vector.shape_cast %62 : vector<8x128xbf16> to vector<1x8x128xbf16>
    %67 = vector.shape_cast %63 : vector<8x128xbf16> to vector<1x8x128xbf16>
    %68 = vector.shape_cast %64 : vector<8x128xbf16> to vector<1x8x128xbf16>
    %69 = vector.shape_cast %65 : vector<8x128xbf16> to vector<1x8x128xbf16>
    %70 = tpu.concatenate %66, %67, %68, %69 in 0 : vector<1x8x128xbf16>, vector<1x8x128xbf16>, vector<1x8x128xbf16>, vector<1x8x128xbf16> -> vector<4x8x128xbf16>
    "tpu.trace_start"() <{level = 10 : i32, message = "bqd,bkd->bqk"}> : () -> ()
    %cst_15 = arith.constant dense<0.000000e+00> : vector<4x8x8xf32>
    %71 = tpu.matmul %48, %59, %cst_15 {dimension_numbers = #tpu.dot_dimension_numbers<[2], [2], [1], [1], [0, 0, 0, 1, 1, 1], [0], [0]>} : vector<4x8x128xbf16>, vector<4x8x128xbf16>, vector<4x8x8xf32> -> vector<4x8x8xf32>
    "tpu.trace_stop"() : () -> ()
    %cst_16 = arith.constant dense<0xFF800000> : vector<4x8xf32>
    %72 = vector.multi_reduction <maximumf>, %71, %cst_16 [2] : vector<4x8x8xf32> to vector<4x8xf32>
    %73 = vector.shape_cast %72 : vector<4x8xf32> to vector<4x8x1xf32>
    %74 = vector.broadcast %73 : vector<4x8x1xf32> to vector<4x8x8xf32>
    %75 = arith.subf %71, %74 : vector<4x8x8xf32>
    %76 = math.exp %75 : vector<4x8x8xf32>
    %cst_17 = arith.constant dense<0.000000e+00> : vector<4x8xf32>
    %77 = vector.multi_reduction <add>, %76, %cst_17 [2] : vector<4x8x8xf32> to vector<4x8xf32>
    %78 = vector.shape_cast %77 : vector<4x8xf32> to vector<4x8x1xf32>
    %79 = tpu.reciprocal %78 {approx = true} : vector<4x8x1xf32> -> vector<4x8x1xf32>
    %80 = arith.truncf %76 : vector<4x8x8xf32> to vector<4x8x8xbf16>
    "tpu.trace_start"() <{level = 10 : i32, message = "bqk,bkd->bqd"}> : () -> ()
    %cst_18 = arith.constant dense<0.000000e+00> : vector<4x8x128xf32>
    %81 = tpu.matmul %80, %70, %cst_18 {dimension_numbers = #tpu.dot_dimension_numbers<[2], [1], [1], [2], [0, 0, 0, 1, 1, 2], [0], [0]>} : vector<4x8x8xbf16>, vector<4x8x128xbf16>, vector<4x8x128xf32> -> vector<4x8x128xf32>
    "tpu.trace_stop"() : () -> ()
    %82 = vector.broadcast %79 : vector<4x8x1xf32> to vector<4x8x128xf32>
    %83 = arith.mulf %81, %82 : vector<4x8x128xf32>
    %84 = arith.truncf %83 : vector<4x8x128xf32> to vector<4x8x128xbf16>
    %85 = vector.extract_strided_slice %84 {offsets = [0, 0, 0], sizes = [1, 8, 128], strides = [1, 1, 1]} : vector<4x8x128xbf16> to vector<1x8x128xbf16>
    %86 = vector.shape_cast %85 : vector<1x8x128xbf16> to vector<8x128xbf16>
    %87 = vector.extract_strided_slice %84 {offsets = [1, 0, 0], sizes = [1, 8, 128], strides = [1, 1, 1]} : vector<4x8x128xbf16> to vector<1x8x128xbf16>
    %88 = vector.shape_cast %87 : vector<1x8x128xbf16> to vector<8x128xbf16>
    %89 = tpu.concatenate %86, %88 in 1 : vector<8x128xbf16>, vector<8x128xbf16> -> vector<8x256xbf16>
    %90 = vector.extract_strided_slice %84 {offsets = [2, 0, 0], sizes = [1, 8, 128], strides = [1, 1, 1]} : vector<4x8x128xbf16> to vector<1x8x128xbf16>
    %91 = vector.shape_cast %90 : vector<1x8x128xbf16> to vector<8x128xbf16>
    %92 = vector.extract_strided_slice %84 {offsets = [3, 0, 0], sizes = [1, 8, 128], strides = [1, 1, 1]} : vector<4x8x128xbf16> to vector<1x8x128xbf16>
    %93 = vector.shape_cast %92 : vector<1x8x128xbf16> to vector<8x128xbf16>
    %94 = tpu.concatenate %91, %93 in 1 : vector<8x128xbf16>, vector<8x128xbf16> -> vector<8x256xbf16>
    %95 = tpu.concatenate %89, %94 in 0 : vector<8x256xbf16>, vector<8x256xbf16> -> vector<16x256xbf16>
    %c0_19 = arith.constant 0 : index
    %c0_20 = arith.constant 0 : index
    %96 = vector.load %arg6[%c0_19, %c0_20] : memref<256x256xbf16, #tpu.memory_space<vmem>>, vector<256x256xbf16>
    %cst_21 = arith.constant dense<0.000000e+00> : vector<16x256xf32>
    %97 = tpu.matmul %95, %96, %cst_21 {dimension_numbers = #tpu.dot_dimension_numbers<[1], [0], [0], [1], [0, 0, 1, 1], [], []>} : vector<16x256xbf16>, vector<256x256xbf16>, vector<16x256xf32> -> vector<16x256xf32>
    %c0_22 = arith.constant 0 : index
    %c0_23 = arith.constant 0 : index
    %98 = vector.load %arg7[%c0_22, %c0_23] : memref<1x256xf32, #tpu.memory_space<vmem>>, vector<1x256xf32>
    %99 = vector.shape_cast %98 : vector<1x256xf32> to vector<256xf32>
    %100 = vector.shape_cast %99 : vector<256xf32> to vector<1x256xf32>
    %101 = vector.broadcast %100 : vector<1x256xf32> to vector<16x256xf32>
    %102 = arith.addf %97, %101 : vector<16x256xf32>
    %103 = arith.addf %1, %102 : vector<16x256xf32>
    %c0_24 = arith.constant 0 : index
    %c0_25 = arith.constant 0 : index
    %104 = vector.load %arg8[%c0_24, %c0_25] : memref<1x256xf32, #tpu.memory_space<vmem>>, vector<1x256xf32>
    %105 = vector.shape_cast %104 : vector<1x256xf32> to vector<256xf32>
    %c0_26 = arith.constant 0 : index
    %c0_27 = arith.constant 0 : index
    %106 = vector.load %arg9[%c0_26, %c0_27] : memref<1x256xf32, #tpu.memory_space<vmem>>, vector<1x256xf32>
    %107 = vector.shape_cast %106 : vector<1x256xf32> to vector<256xf32>
    %cst_28 = arith.constant dense<0.000000e+00> : vector<16xf32>
    %108 = vector.multi_reduction <add>, %103, %cst_28 [1] : vector<16x256xf32> to vector<16xf32>
    %109 = vector.shape_cast %108 : vector<16xf32> to vector<16x1xf32>
    %cst_29 = arith.constant 2.560000e+02 : f32
    %110 = vector.broadcast %cst_29 : f32 to vector<16x1xf32>
    %111 = arith.divf %109, %110 : vector<16x1xf32>
    %112 = vector.broadcast %111 : vector<16x1xf32> to vector<16x256xf32>
    %113 = arith.subf %103, %112 : vector<16x256xf32>
    %114 = arith.mulf %113, %113 : vector<16x256xf32>
    %cst_30 = arith.constant dense<0.000000e+00> : vector<16xf32>
    %115 = vector.multi_reduction <add>, %114, %cst_30 [1] : vector<16x256xf32> to vector<16xf32>
    %116 = vector.shape_cast %115 : vector<16xf32> to vector<16x1xf32>
    %cst_31 = arith.constant 2.560000e+02 : f32
    %117 = vector.broadcast %cst_31 : f32 to vector<16x1xf32>
    %118 = arith.divf %116, %117 : vector<16x1xf32>
    %119 = vector.broadcast %111 : vector<16x1xf32> to vector<16x256xf32>
    %120 = arith.subf %103, %119 : vector<16x256xf32>
    %cst_32 = arith.constant 9.99999974E-6 : f32
    %121 = vector.broadcast %cst_32 : f32 to vector<16x1xf32>
    %122 = arith.addf %118, %121 : vector<16x1xf32>
    %123 = math.rsqrt %122 : vector<16x1xf32>
    %124 = vector.broadcast %123 : vector<16x1xf32> to vector<16x256xf32>
    %125 = arith.mulf %120, %124 : vector<16x256xf32>
    %126 = vector.shape_cast %105 : vector<256xf32> to vector<1x256xf32>
    %127 = vector.broadcast %126 : vector<1x256xf32> to vector<16x256xf32>
    %128 = arith.mulf %125, %127 : vector<16x256xf32>
    %129 = vector.shape_cast %107 : vector<256xf32> to vector<1x256xf32>
    %130 = vector.broadcast %129 : vector<1x256xf32> to vector<16x256xf32>
    %131 = arith.addf %128, %130 : vector<16x256xf32>
    %132 = arith.truncf %131 : vector<16x256xf32> to vector<16x256xbf16>
    %c0_33 = arith.constant 0 : index
    %c0_34 = arith.constant 0 : index
    %133 = vector.load %arg10[%c0_33, %c0_34] : memref<256x1024xbf16, #tpu.memory_space<vmem>>, vector<256x1024xbf16>
    %cst_35 = arith.constant dense<0.000000e+00> : vector<16x1024xf32>
    %134 = tpu.matmul %132, %133, %cst_35 {dimension_numbers = #tpu.dot_dimension_numbers<[1], [0], [0], [1], [0, 0, 1, 1], [], []>} : vector<16x256xbf16>, vector<256x1024xbf16>, vector<16x1024xf32> -> vector<16x1024xf32>
    %c0_36 = arith.constant 0 : index
    %c0_37 = arith.constant 0 : index
    %135 = vector.load %arg11[%c0_36, %c0_37] : memref<1x1024xf32, #tpu.memory_space<vmem>>, vector<1x1024xf32>
    %136 = vector.shape_cast %135 : vector<1x1024xf32> to vector<1024xf32>
    %137 = vector.shape_cast %136 : vector<1024xf32> to vector<1x1024xf32>
    %138 = vector.broadcast %137 : vector<1x1024xf32> to vector<16x1024xf32>
    %139 = arith.addf %134, %138 : vector<16x1024xf32>
    %cst_38 = arith.constant 1.702000e+00 : f32
    %140 = vector.broadcast %cst_38 : f32 to vector<16x1024xf32>
    %141 = arith.mulf %140, %139 : vector<16x1024xf32>
    %142 = arith.negf %141 : vector<16x1024xf32>
    %143 = math.exp %142 : vector<16x1024xf32>
    %cst_39 = arith.constant 1.000000e+00 : f32
    %144 = vector.broadcast %cst_39 : f32 to vector<16x1024xf32>
    %145 = arith.addf %144, %143 : vector<16x1024xf32>
    %146 = arith.divf %144, %145 : vector<16x1024xf32>
    %147 = arith.mulf %139, %146 : vector<16x1024xf32>
    %148 = arith.truncf %147 : vector<16x1024xf32> to vector<16x1024xbf16>
    %c0_40 = arith.constant 0 : index
    %c0_41 = arith.constant 0 : index
    %149 = vector.load %arg12[%c0_40, %c0_41] : memref<1024x256xbf16, #tpu.memory_space<vmem>>, vector<1024x256xbf16>
    %cst_42 = arith.constant dense<0.000000e+00> : vector<16x256xf32>
    %150 = tpu.matmul %148, %149, %cst_42 {dimension_numbers = #tpu.dot_dimension_numbers<[1], [0], [0], [1], [0, 0, 1, 1], [], []>} : vector<16x1024xbf16>, vector<1024x256xbf16>, vector<16x256xf32> -> vector<16x256xf32>
    %c0_43 = arith.constant 0 : index
    %c0_44 = arith.constant 0 : index
    %151 = vector.load %arg13[%c0_43, %c0_44] : memref<1x256xf32, #tpu.memory_space<vmem>>, vector<1x256xf32>
    %152 = vector.shape_cast %151 : vector<1x256xf32> to vector<256xf32>
    %153 = vector.shape_cast %152 : vector<256xf32> to vector<1x256xf32>
    %154 = vector.broadcast %153 : vector<1x256xf32> to vector<16x256xf32>
    %155 = arith.addf %150, %154 : vector<16x256xf32>
    %156 = arith.addf %103, %155 : vector<16x256xf32>
    %157 = vector.shape_cast %156 : vector<16x256xf32> to vector<2x8x256xf32>
    %c0_45 = arith.constant 0 : index
    %c0_46 = arith.constant 0 : index
    %c0_47 = arith.constant 0 : index
    %158 = vector.load %arg14[%c0_45, %c0_46, %c0_47] : memref<2x8x256xf32, #tpu.memory_space<vmem>>, vector<2x8x256xf32>
    tpu.vector_store %arg14[%c0_45, %c0_46, %c0_47], %157 {strides = array<i32>} : memref<2x8x256xf32, #tpu.memory_space<vmem>>, vector<2x8x256xf32>,
    return
  }
  func.func @transform_0(%arg0: i32) -> (i32, i32, i32) {
    %c0_i32 = arith.constant 0 : i32
    %c0_i32_0 = arith.constant 0 : i32
    %c0_i32_1 = arith.constant 0 : i32
    return %arg0, %c0_i32, %c0_i32_0 : i32, i32, i32
  }
  func.func @transform_1(%arg0: i32) -> (i32, i32) {
    %c0_i32 = arith.constant 0 : i32
    %c0_i32_0 = arith.constant 0 : i32
    %c0_i32_1 = arith.constant 0 : i32
    return %c0_i32, %c0_i32_0 : i32, i32
  }
  func.func @transform_2(%arg0: i32) -> (i32, i32) {
    %c0_i32 = arith.constant 0 : i32
    %c0_i32_0 = arith.constant 0 : i32
    %c0_i32_1 = arith.constant 0 : i32
    return %c0_i32, %c0_i32_0 : i32, i32
  }
  func.func @transform_3(%arg0: i32) -> (i32, i32) {
    %c0_i32 = arith.constant 0 : i32
    %c0_i32_0 = arith.constant 0 : i32
    %c0_i32_1 = arith.constant 0 : i32
    return %c0_i32, %c0_i32_0 : i32, i32
  }
  func.func @transform_4(%arg0: i32) -> (i32, i32) {
    %c0_i32 = arith.constant 0 : i32
    %c0_i32_0 = arith.constant 0 : i32
    %c0_i32_1 = arith.constant 0 : i32
    return %c0_i32, %c0_i32_0 : i32, i32
  }
  func.func @transform_5(%arg0: i32) -> (i32, i32) {
    %c0_i32 = arith.constant 0 : i32
    %c0_i32_0 = arith.constant 0 : i32
    %c0_i32_1 = arith.constant 0 : i32
    return %c0_i32, %c0_i32_0 : i32, i32
  }
  func.func @transform_6(%arg0: i32) -> (i32, i32) {
    %c0_i32 = arith.constant 0 : i32
    %c0_i32_0 = arith.constant 0 : i32
    %c0_i32_1 = arith.constant 0 : i32
    return %c0_i32, %c0_i32_0 : i32, i32
  }
  func.func @transform_7(%arg0: i32) -> (i32, i32) {
    %c0_i32 = arith.constant 0 : i32
    %c0_i32_0 = arith.constant 0 : i32
    %c0_i32_1 = arith.constant 0 : i32
    return %c0_i32, %c0_i32_0 : i32, i32
  }
  func.func @transform_8(%arg0: i32) -> (i32, i32) {
    %c0_i32 = arith.constant 0 : i32
    %c0_i32_0 = arith.constant 0 : i32
    %c0_i32_1 = arith.constant 0 : i32
    return %c0_i32, %c0_i32_0 : i32, i32
  }
  func.func @transform_9(%arg0: i32) -> (i32, i32) {
    %c0_i32 = arith.constant 0 : i32
    %c0_i32_0 = arith.constant 0 : i32
    %c0_i32_1 = arith.constant 0 : i32
    return %c0_i32, %c0_i32_0 : i32, i32
  }
  func.func @transform_10(%arg0: i32) -> (i32, i32) {
    %c0_i32 = arith.constant 0 : i32
    %c0_i32_0 = arith.constant 0 : i32
    %c0_i32_1 = arith.constant 0 : i32
    return %c0_i32, %c0_i32_0 : i32, i32
  }
  func.func @transform_11(%arg0: i32) -> (i32, i32) {
    %c0_i32 = arith.constant 0 : i32
    %c0_i32_0 = arith.constant 0 : i32
    %c0_i32_1 = arith.constant 0 : i32
    return %c0_i32, %c0_i32_0 : i32, i32
  }
  func.func @transform_12(%arg0: i32) -> (i32, i32) {
    %c0_i32 = arith.constant 0 : i32
    %c0_i32_0 = arith.constant 0 : i32
    %c0_i32_1 = arith.constant 0 : i32
    return %c0_i32, %c0_i32_0 : i32, i32
  }
  func.func @transform_13(%arg0: i32) -> (i32, i32, i32) {
    %c0_i32 = arith.constant 0 : i32
    %c0_i32_0 = arith.constant 0 : i32
    %c0_i32_1 = arith.constant 0 : i32
    return %arg0, %c0_i32, %c0_i32_0 : i32, i32, i32
  }
}

</mosaic_0001>

<llo_original>
// kernel: tpu_custom_call.1
$region0: #{tpu_custom_call.1}
  #allocation0 [shape = 'u32[]', space=smem, size = 0x4, offset = 0x4, fixed_abs, tag = 'smem constant byte address 0x4 - core index']
  #allocation1 [shape = 'u32[72,128]{1,0:T(1,128)}', space=vmem, size = 0x9000, scoped, tag = 'internal scratch']
  %s0 = inlined_call_operand.hbm [shape: f32[4,8,256], index: 0, kind: input, shape index: {}]
  %s1 = inlined_call_operand.hbm [shape: f32[1,256], index: 1, kind: input, shape index: {}]
  %s2 = inlined_call_operand.hbm [shape: f32[1,256], index: 2, kind: input, shape index: {}]
  %s3 = inlined_call_operand.hbm [shape: bf16[256,768], index: 3, kind: input, shape index: {}]
  %s4 = inlined_call_operand.hbm [shape: f32[1,768], index: 4, kind: input, shape index: {}]
  %s5 = inlined_call_operand.hbm [shape: bf16[256,256], index: 5, kind: input, shape index: {}]
  %s6 = inlined_call_operand.hbm [shape: f32[1,256], index: 6, kind: input, shape index: {}]
  %s7 = inlined_call_operand.hbm [shape: f32[1,256], index: 7, kind: input, shape index: {}]
  %s8 = inlined_call_operand.hbm [shape: f32[1,256], index: 8, kind: input, shape index: {}]
  %s9 = inlined_call_operand.hbm [shape: bf16[256,1024], index: 9, kind: input, shape index: {}]
  %s10 = inlined_call_operand.vmem [shape: f32[1,1024], index: 10, kind: input, shape index: {}]
  %s11 = inlined_call_operand.hbm [shape: bf16[1024,256], index: 11, kind: input, shape index: {}]
  %s12 = inlined_call_operand.vmem [shape: f32[1,256], index: 12, kind: input, shape index: {}]
  %s13 = inlined_call_operand.hbm [shape: f32[4,8,256], index: 13, kind: output, shape index: {}]
  %s14 = sld [smem:[#allocation0]]
  $region129: #{tpu_custom_call.1} parent=0
    _
  %s16 = ssub.s32 1, %s14
  %s17 = scalar_select 0, %s16, %s14
  $region1: #{tpu_custom_call.1} parent=0
    #allocation2 [shape = 'u8[32768]{0}', space=vmem, size = 0x8000, scoped, tag = 'input window, operand 0']
    #allocation3 [shape = 's32[2]{0}', space=sflag, size = 0x8, scoped, tag = 'scoped memory for tpu_custom_call.1']
    #allocation4 [shape = 's32[2]{0}', space=sflag, size = 0x8, scoped, tag = 'scoped memory for tpu_custom_call.1']
    #allocation5 [shape = 'u8[1024]{0}', space=vmem, size = 0x400, scoped, tag = 'input window, operand 1, single buffered']
    #allocation6 [shape = 's32[1]{0}', space=sflag, size = 0x4, scoped, tag = 'scoped memory for tpu_custom_call.1']
    #allocation7 [shape = 'u8[1024]{0}', space=vmem, size = 0x400, scoped, tag = 'input window, operand 2, single buffered']
    #allocation8 [shape = 'u8[393216]{0}', space=vmem, size = 0x60000, scoped, tag = 'input window, operand 3, single buffered']
    #allocation9 [shape = 's32[1]{0}', space=sflag, size = 0x4, scoped, tag = 'scoped memory for tpu_custom_call.1']
    #allocation10 [shape = 'u8[3072]{0}', space=vmem, size = 0xc00, scoped, tag = 'input window, operand 4, single buffered']
    #allocation11 [shape = 'u8[131072]{0}', space=vmem, size = 0x20000, scoped, tag = 'input window, operand 5, single buffered']
    #allocation12 [shape = 's32[1]{0}', space=sflag, size = 0x4, scoped, tag = 'scoped memory for tpu_custom_call.1']
    #allocation13 [shape = 'u8[1024]{0}', space=vmem, size = 0x400, scoped, tag = 'input window, operand 6, single buffered']
    #allocation14 [shape = 'u8[1024]{0}', space=vmem, size = 0x400, scoped, tag = 'input window, operand 7, single buffered']
    #allocation15 [shape = 's32[1]{0}', space=sflag, size = 0x4, scoped, tag = 'scoped memory for tpu_custom_call.1']
    #allocation16 [shape = 'u8[1024]{0}', space=vmem, size = 0x400, scoped, tag = 'input window, operand 8, single buffered']
    #allocation17 [shape = 'u8[524288]{0}', space=vmem, size = 0x80000, scoped, tag = 'input window, operand 9, single buffered']
    #allocation18 [shape = 's32[1]{0}', space=sflag, size = 0x4, scoped, tag = 'scoped memory for tpu_custom_call.1']
    #allocation19 [shape = 'u8[524288]{0}', space=vmem, size = 0x80000, scoped, tag = 'input window, operand 11, single buffered']
    #allocation20 [shape = 'u8[32768]{0}', space=vmem, size = 0x8000, scoped, tag = 'output window, operand 0']
    %18 = vsyncpa [#allocation3], 0
    %s19 = scalar_lea.sflag [#allocation3], 1
    %20 = vsyncpa %s19, 0
    %21 = vsyncpa [#allocation6], 0
    %22 = vsyncpa [#allocation9], 0
    %23 = vsyncpa [#allocation12], 0
    %24 = vsyncpa [#allocation15], 0
    %25 = vsyncpa [#allocation18], 0
    %26 = vsyncpa [#allocation4], 0
    %s27 = scalar_lea.sflag [#allocation4], 1
    %28 = vsyncpa %s27, 0
    loop: start=0, step=1, limit=4
    $region2: #{tpu_custom_call.1} parent=1 // loop_pre_header
      _
    $region3: #{tpu_custom_call.1} parent=1 // loop_header
      %s30 = sphi 0, %s34
      %p31 = scmp.ge.s32.totalorder %s30, 4
      %s40 = sphi 0, %s42
      %s43 = sphi 0, %s40
      %s44 = sphi 0, %s43
      %s60 = sphi 0, %s44
      %s64 = sphi 0, %s64
      %s66 = sphi 0, %s64
      %s67 = sphi 0, %s66
      %s81 = sphi 0, %s67
      %s85 = sphi 0, %s85
      %s87 = sphi 0, %s85
      %s88 = sphi 0, %s87
      %s102 = sphi 0, %s88
      %s106 = sphi 0, %s106
      %s108 = sphi 0, %s106
      %s109 = sphi 0, %s108
      %s123 = sphi 0, %s109
      %s127 = sphi 0, %s127
      %s129 = sphi 0, %s127
      %s130 = sphi 0, %s129
      %s144 = sphi 0, %s130
      %s148 = sphi 0, %s148
      %s150 = sphi 0, %s148
      %s151 = sphi 0, %s150
      %s165 = sphi 0, %s151
      %s169 = sphi 0, %s169
      %s171 = sphi 0, %s169
      %s172 = sphi 0, %s171
      %s186 = sphi 0, %s172
      %s190 = sphi 0, %s190
      %s192 = sphi 0, %s190
      %s193 = sphi 0, %s192
      %s207 = sphi 0, %s193
      %s211 = sphi 0, %s211
      %s213 = sphi 0, %s211
      %s214 = sphi 0, %s213
      %s228 = sphi 0, %s214
      %s232 = sphi 0, %s232
      %s234 = sphi 0, %s232
      %s235 = sphi 0, %s234
      %s249 = sphi 0, %s235
      %s253 = sphi 0, %s253
      %s255 = sphi 0, %s253
      %s256 = sphi 0, %s255
      %s270 = sphi 0, %s256
      %s274 = sphi 0, %s274
      %s276 = sphi 0, %s274
      %s277 = sphi 0, %s276
      %s291 = sphi 0, %s277
      %s295 = sphi 0, %s295
      %s297 = sphi 0, %s295
      %s298 = sphi 0, %s297
      %s312 = sphi 0, %s298
      %s318 = sphi 0, %s320
      %s321 = sphi 0, %s318
      %s322 = sphi 0, %s321
      %s338 = sphi 0, %s322
    $region4: #{tpu_custom_call.1} parent=1 // loop_header_branch
      %33 = sbr.rel (%p31) target = $region8
    $region5: #{tpu_custom_call.1} parent=1 // loop_body
      %s35 = ssub.s32 %s30, 1
      %s36 = ssub.s32 %s30, 2
      %s37 = sadd.s32 %s30, 1
      %s38 = ssub.s32 %s30, %s37
      %p39 = scmp.eq.s32.totalorder %s38, 0
      %s41 = sadd.s32 %s40, 1
      %s42 = scalar_select %p39, %s40, %s41
      %p45 = pneg %p39
      %p46 = scmp.eq.s32.totalorder %s30, 1
      %p47 = por %p45, %p46
      %p48 = scmp.ne.s32.totalorder %s40, %s43
      %p49 = scmp.eq.s32.totalorder %s30, 0
      %p50 = por %p48, %p49
      %p51 = scmp.ne.s32.totalorder %s40, %s43
      %p52 = scmp.eq.s32.totalorder %s35, 1
      %p53 = por %p51, %p52
      %p54 = scmp.ne.s32.totalorder %s43, %s44
      %p55 = scmp.eq.s32.totalorder %s35, 0
      %p56 = por %p54, %p55
      %p57 = scmp.ne.s32.totalorder %s43, %s44
      %p58 = scmp.eq.s32.totalorder %s36, 1
      %p59 = por %p57, %p58
      %p61 = scmp.ne.s32.totalorder %s44, %s60
      %p62 = scmp.eq.s32.totalorder %s36, 0
      %p63 = por %p61, %p62
      %s65 = sadd.s32 %s64, 1
      %p68 = scmp.eq.s32.totalorder %s30, 1
      %p69 = scmp.ne.s32.totalorder %s64, %s66
      %p70 = scmp.eq.s32.totalorder %s30, 0
      %p71 = por %p69, %p70
      %p72 = scmp.ne.s32.totalorder %s64, %s66
      %p73 = scmp.eq.s32.totalorder %s35, 1
      %p74 = por %p72, %p73
      %p75 = scmp.ne.s32.totalorder %s66, %s67
      %p76 = scmp.eq.s32.totalorder %s35, 0
      %p77 = por %p75, %p76
      %p78 = scmp.ne.s32.totalorder %s66, %s67
      %p79 = scmp.eq.s32.totalorder %s36, 1
      %p80 = por %p78, %p79
      %p82 = scmp.ne.s32.totalorder %s67, %s81
      %p83 = scmp.eq.s32.totalorder %s36, 0
      %p84 = por %p82, %p83
      %s86 = sadd.s32 %s85, 1
      %p89 = scmp.eq.s32.totalorder %s30, 1
      %p90 = scmp.ne.s32.totalorder %s85, %s87
      %p91 = scmp.eq.s32.totalorder %s30, 0
      %p92 = por %p90, %p91
      %p93 = scmp.ne.s32.totalorder %s85, %s87
      %p94 = scmp.eq.s32.totalorder %s35, 1
      %p95 = por %p93, %p94
      %p96 = scmp.ne.s32.totalorder %s87, %s88
      %p97 = scmp.eq.s32.totalorder %s35, 0
      %p98 = por %p96, %p97
      %p99 = scmp.ne.s32.totalorder %s87, %s88
      %p100 = scmp.eq.s32.totalorder %s36, 1
      %p101 = por %p99, %p100
      %p103 = scmp.ne.s32.totalorder %s88, %s102
      %p104 = scmp.eq.s32.totalorder %s36, 0
      %p105 = por %p103, %p104
      %s107 = sadd.s32 %s106, 1
      %p110 = scmp.eq.s32.totalorder %s30, 1
      %p111 = scmp.ne.s32.totalorder %s106, %s108
      %p112 = scmp.eq.s32.totalorder %s30, 0
      %p113 = por %p111, %p112
      %p114 = scmp.ne.s32.totalorder %s106, %s108
      %p115 = scmp.eq.s32.totalorder %s35, 1
      %p116 = por %p114, %p115
      %p117 = scmp.ne.s32.totalorder %s108, %s109
      %p118 = scmp.eq.s32.totalorder %s35, 0
      %p119 = por %p117, %p118
      %p120 = scmp.ne.s32.totalorder %s108, %s109
      %p121 = scmp.eq.s32.totalorder %s36, 1
      %p122 = por %p120, %p121
      %p124 = scmp.ne.s32.totalorder %s109, %s123
      %p125 = scmp.eq.s32.totalorder %s36, 0
      %p126 = por %p124, %p125
      %s128 = sadd.s32 %s127, 1
      %p131 = scmp.eq.s32.totalorder %s30, 1
      %p132 = scmp.ne.s32.totalorder %s127, %s129
      %p133 = scmp.eq.s32.totalorder %s30, 0
      %p134 = por %p132, %p133
      %p135 = scmp.ne.s32.totalorder %s127, %s129
      %p136 = scmp.eq.s32.totalorder %s35, 1
      %p137 = por %p135, %p136
      %p138 = scmp.ne.s32.totalorder %s129, %s130
      %p139 = scmp.eq.s32.totalorder %s35, 0
      %p140 = por %p138, %p139
      %p141 = scmp.ne.s32.totalorder %s129, %s130
      %p142 = scmp.eq.s32.totalorder %s36, 1
      %p143 = por %p141, %p142
      %p145 = scmp.ne.s32.totalorder %s130, %s144
      %p146 = scmp.eq.s32.totalorder %s36, 0
      %p147 = por %p145, %p146
      %s149 = sadd.s32 %s148, 1
      %p152 = scmp.eq.s32.totalorder %s30, 1
      %p153 = scmp.ne.s32.totalorder %s148, %s150
      %p154 = scmp.eq.s32.totalorder %s30, 0
      %p155 = por %p153, %p154
      %p156 = scmp.ne.s32.totalorder %s148, %s150
      %p157 = scmp.eq.s32.totalorder %s35, 1
      %p158 = por %p156, %p157
      %p159 = scmp.ne.s32.totalorder %s150, %s151
      %p160 = scmp.eq.s32.totalorder %s35, 0
      %p161 = por %p159, %p160
      %p162 = scmp.ne.s32.totalorder %s150, %s151
      %p163 = scmp.eq.s32.totalorder %s36, 1
      %p164 = por %p162, %p163
      %p166 = scmp.ne.s32.totalorder %s151, %s165
      %p167 = scmp.eq.s32.totalorder %s36, 0
      %p168 = por %p166, %p167
      %s170 = sadd.s32 %s169, 1
      %p173 = scmp.eq.s32.totalorder %s30, 1
      %p174 = scmp.ne.s32.totalorder %s169, %s171
      %p175 = scmp.eq.s32.totalorder %s30, 0
      %p176 = por %p174, %p175
      %p177 = scmp.ne.s32.totalorder %s169, %s171
      %p178 = scmp.eq.s32.totalorder %s35, 1
      %p179 = por %p177, %p178
      %p180 = scmp.ne.s32.totalorder %s171, %s172
      %p181 = scmp.eq.s32.totalorder %s35, 0
      %p182 = por %p180, %p181
      %p183 = scmp.ne.s32.totalorder %s171, %s172
      %p184 = scmp.eq.s32.totalorder %s36, 1
      %p185 = por %p183, %p184
      %p187 = scmp.ne.s32.totalorder %s172, %s186
      %p188 = scmp.eq.s32.totalorder %s36, 0
      %p189 = por %p187, %p188
      %s191 = sadd.s32 %s190, 1
      %p194 = scmp.eq.s32.totalorder %s30, 1
      %p195 = scmp.ne.s32.totalorder %s190, %s192
      %p196 = scmp.eq.s32.totalorder %s30, 0
      %p197 = por %p195, %p196
      %p198 = scmp.ne.s32.totalorder %s190, %s192
      %p199 = scmp.eq.s32.totalorder %s35, 1
      %p200 = por %p198, %p199
      %p201 = scmp.ne.s32.totalorder %s192, %s193
      %p202 = scmp.eq.s32.totalorder %s35, 0
      %p203 = por %p201, %p202
      %p204 = scmp.ne.s32.totalorder %s192, %s193
      %p205 = scmp.eq.s32.totalorder %s36, 1
      %p206 = por %p204, %p205
      %p208 = scmp.ne.s32.totalorder %s193, %s207
      %p209 = scmp.eq.s32.totalorder %s36, 0
      %p210 = por %p208, %p209
      %s212 = sadd.s32 %s211, 1
      %p215 = scmp.eq.s32.totalorder %s30, 1
      %p216 = scmp.ne.s32.totalorder %s211, %s213
      %p217 = scmp.eq.s32.totalorder %s30, 0
      %p218 = por %p216, %p217
      %p219 = scmp.ne.s32.totalorder %s211, %s213
      %p220 = scmp.eq.s32.totalorder %s35, 1
      %p221 = por %p219, %p220
      %p222 = scmp.ne.s32.totalorder %s213, %s214
      %p223 = scmp.eq.s32.totalorder %s35, 0
      %p224 = por %p222, %p223
      %p225 = scmp.ne.s32.totalorder %s213, %s214
      %p226 = scmp.eq.s32.totalorder %s36, 1
      %p227 = por %p225, %p226
      %p229 = scmp.ne.s32.totalorder %s214, %s228
      %p230 = scmp.eq.s32.totalorder %s36, 0
      %p231 = por %p229, %p230
      %s233 = sadd.s32 %s232, 1
      %p236 = scmp.eq.s32.totalorder %s30, 1
      %p237 = scmp.ne.s32.totalorder %s232, %s234
      %p238 = scmp.eq.s32.totalorder %s30, 0
      %p239 = por %p237, %p238
      %p240 = scmp.ne.s32.totalorder %s232, %s234
      %p241 = scmp.eq.s32.totalorder %s35, 1
      %p242 = por %p240, %p241
      %p243 = scmp.ne.s32.totalorder %s234, %s235
      %p244 = scmp.eq.s32.totalorder %s35, 0
      %p245 = por %p243, %p244
      %p246 = scmp.ne.s32.totalorder %s234, %s235
      %p247 = scmp.eq.s32.totalorder %s36, 1
      %p248 = por %p246, %p247
      %p250 = scmp.ne.s32.totalorder %s235, %s249
      %p251 = scmp.eq.s32.totalorder %s36, 0
      %p252 = por %p250, %p251
      %s254 = sadd.s32 %s253, 1
      %p257 = scmp.eq.s32.totalorder %s30, 1
      %p258 = scmp.ne.s32.totalorder %s253, %s255
      %p259 = scmp.eq.s32.totalorder %s30, 0
      %p260 = por %p258, %p259
      %p261 = scmp.ne.s32.totalorder %s253, %s255
      %p262 = scmp.eq.s32.totalorder %s35, 1
      %p263 = por %p261, %p262
      %p264 = scmp.ne.s32.totalorder %s255, %s256
      %p265 = scmp.eq.s32.totalorder %s35, 0
      %p266 = por %p264, %p265
      %p267 = scmp.ne.s32.totalorder %s255, %s256
      %p268 = scmp.eq.s32.totalorder %s36, 1
      %p269 = por %p267, %p268
      %p271 = scmp.ne.s32.totalorder %s256, %s270
      %p272 = scmp.eq.s32.totalorder %s36, 0
      %p273 = por %p271, %p272
      %s275 = sadd.s32 %s274, 1
      %p278 = scmp.eq.s32.totalorder %s30, 1
      %p279 = scmp.ne.s32.totalorder %s274, %s276
      %p280 = scmp.eq.s32.totalorder %s30, 0
      %p281 = por %p279, %p280
      %p282 = scmp.ne.s32.totalorder %s274, %s276
      %p283 = scmp.eq.s32.totalorder %s35, 1
      %p284 = por %p282, %p283
      %p285 = scmp.ne.s32.totalorder %s276, %s277
      %p286 = scmp.eq.s32.totalorder %s35, 0
      %p287 = por %p285, %p286
      %p288 = scmp.ne.s32.totalorder %s276, %s277
      %p289 = scmp.eq.s32.totalorder %s36, 1
      %p290 = por %p288, %p289
      %p292 = scmp.ne.s32.totalorder %s277, %s291
      %p293 = scmp.eq.s32.totalorder %s36, 0
      %p294 = por %p292, %p293
      %s296 = sadd.s32 %s295, 1
      %p299 = scmp.eq.s32.totalorder %s30, 1
      %p300 = scmp.ne.s32.totalorder %s295, %s297
      %p301 = scmp.eq.s32.totalorder %s30, 0
      %p302 = por %p300, %p301
      %p303 = scmp.ne.s32.totalorder %s295, %s297
      %p304 = scmp.eq.s32.totalorder %s35, 1
      %p305 = por %p303, %p304
      %p306 = scmp.ne.s32.totalorder %s297, %s298
      %p307 = scmp.eq.s32.totalorder %s35, 0
      %p308 = por %p306, %p307
      %p309 = scmp.ne.s32.totalorder %s297, %s298
      %p310 = scmp.eq.s32.totalorder %s36, 1
      %p311 = por %p309, %p310
      %p313 = scmp.ne.s32.totalorder %s298, %s312
      %p314 = scmp.eq.s32.totalorder %s36, 0
      %p315 = por %p313, %p314
      %s316 = ssub.s32 %s30, %s37
      %p317 = scmp.eq.s32.totalorder %s316, 0
      %s319 = sadd.s32 %s318, 1
      %s320 = scalar_select %p317, %s318, %s319
      %p323 = pneg %p317
      %p324 = scmp.eq.s32.totalorder %s30, 1
      %p325 = por %p323, %p324
      %p326 = scmp.ne.s32.totalorder %s318, %s321
      %p327 = scmp.eq.s32.totalorder %s30, 0
      %p328 = por %p326, %p327
      %p329 = scmp.ne.s32.totalorder %s318, %s321
      %p330 = scmp.eq.s32.totalorder %s35, 1
      %p331 = por %p329, %p330
      %p332 = scmp.ne.s32.totalorder %s321, %s322
      %p333 = scmp.eq.s32.totalorder %s35, 0
      %p334 = por %p332, %p333
      %p335 = scmp.ne.s32.totalorder %s321, %s322
      %p336 = scmp.eq.s32.totalorder %s36, 1
      %p337 = por %p335, %p336
      %p339 = scmp.ne.s32.totalorder %s322, %s338
      %p340 = scmp.eq.s32.totalorder %s36, 0
      %p341 = por %p339, %p340
      %p342 = scmp.le.s32.totalorder 1, %s30
      %p343 = scmp.lt.s32.totalorder %s30, 3
      %p344 = pnand %p342, %p343
      %p345 = pneg %p344
      // Predicated region
      $region9: #{tpu_custom_call.1} parent=5 // pred_check
        _
      $region10: #{tpu_custom_call.1} parent=5 // pred_check_branch
        %347 = sbr.rel (%p344) target = $region12
      $region11: #{tpu_custom_call.1} parent=5 // pred_region
        %s348 = ssub.s32 %s30, 1
        // Predicated region
        $region13: #{tpu_custom_call.1} parent=11 // pred_check
          %p349 = pneg %p77
        $region14: #{tpu_custom_call.1} parent=11 // pred_check_branch
          %351 = sbr.rel (%p349) target = $region16
        $region15: #{tpu_custom_call.1} parent=11 // pred_region
          %353 = vsyncadd [#allocation6], 0
          %s355 = sshll.u32 %s1, 4
          %s356 = int_to_ptr.hbm [resolvable:$true] %s355
          %s357 = sshll.u32 [#allocation5], 4
          %s358 = int_to_ptr.vmem [resolvable:$true] %s357
          %360 = dma.hbm_to_vmem [thread:$0]  %s356, 32, %s358, [#allocation6]
        $region16: #{tpu_custom_call.1} parent=11 // pred_fallthru
          _
        // Predicated region
        $region17: #{tpu_custom_call.1} parent=11 // pred_check
          %p361 = pneg %p98
        $region18: #{tpu_custom_call.1} parent=11 // pred_check_branch
          %363 = sbr.rel (%p361) target = $region20
        $region19: #{tpu_custom_call.1} parent=11 // pred_region
          %365 = vsyncadd [#allocation6], 0
          %s367 = sshll.u32 %s2, 4
          %s368 = int_to_ptr.hbm [resolvable:$true] %s367
          %s369 = sshll.u32 [#allocation7], 4
          %s370 = int_to_ptr.vmem [resolvable:$true] %s369
          %372 = dma.hbm_to_vmem [thread:$0]  %s368, 32, %s370, [#allocation6]
        $region20: #{tpu_custom_call.1} parent=11 // pred_fallthru
          _
        // Predicated region
        $region21: #{tpu_custom_call.1} parent=11 // pred_check
          %p373 = pneg %p119
        $region22: #{tpu_custom_call.1} parent=11 // pred_check_branch
          %375 = sbr.rel (%p373) target = $region24
        $region23: #{tpu_custom_call.1} parent=11 // pred_region
          %377 = vsyncadd [#allocation9], 0
          %s378 = sshll.u32 %s3, 4
          %s379 = int_to_ptr.hbm [resolvable:$true] %s378
          %s380 = sshll.u32 [#allocation8], 4
          %s381 = int_to_ptr.vmem [resolvable:$true] %s380
          %386 = dma.hbm_to_vmem [thread:$0]  %s379, 12288, %s381, [#allocation9], 384, 384, 24
        $region24: #{tpu_custom_call.1} parent=11 // pred_fallthru
          _
        // Predicated region
        $region25: #{tpu_custom_call.1} parent=11 // pred_check
          %p387 = pneg %p140
        $region26: #{tpu_custom_call.1} parent=11 // pred_check_branch
          %389 = sbr.rel (%p387) target = $region28
        $region27: #{tpu_custom_call.1} parent=11 // pred_region
          %391 = vsyncadd [#allocation9], 0
          %s393 = sshll.u32 %s4, 4
          %s394 = int_to_ptr.hbm [resolvable:$true] %s393
          %s395 = sshll.u32 [#allocation10], 4
          %s396 = int_to_ptr.vmem [resolvable:$true] %s395
          %398 = dma.hbm_to_vmem [thread:$0]  %s394, 96, %s396, [#allocation9]
        $region28: #{tpu_custom_call.1} parent=11 // pred_fallthru
          _
        // Predicated region
        $region29: #{tpu_custom_call.1} parent=11 // pred_check
          %p399 = pneg %p161
        $region30: #{tpu_custom_call.1} parent=11 // pred_check_branch
          %401 = sbr.rel (%p399) target = $region32
        $region31: #{tpu_custom_call.1} parent=11 // pred_region
          %403 = vsyncadd [#allocation12], 0
          %s404 = sshll.u32 %s5, 4
          %s405 = int_to_ptr.hbm [resolvable:$true] %s404
          %s406 = sshll.u32 [#allocation11], 4
          %s407 = int_to_ptr.vmem [resolvable:$true] %s406
          %412 = dma.hbm_to_vmem [thread:$0]  %s405, 4096, %s407, [#allocation12], 128, 128, 8
        $region32: #{tpu_custom_call.1} parent=11 // pred_fallthru
          _
        // Predicated region
        $region33: #{tpu_custom_call.1} parent=11 // pred_check
          %p413 = pneg %p182
        $region34: #{tpu_custom_call.1} parent=11 // pred_check_branch
          %415 = sbr.rel (%p413) target = $region36
        $region35: #{tpu_custom_call.1} parent=11 // pred_region
          %417 = vsyncadd [#allocation12], 0
          %s419 = sshll.u32 %s6, 4
          %s420 = int_to_ptr.hbm [resolvable:$true] %s419
          %s421 = sshll.u32 [#allocation13], 4
          %s422 = int_to_ptr.vmem [resolvable:$true] %s421
          %424 = dma.hbm_to_vmem [thread:$0]  %s420, 32, %s422, [#allocation12]
        $region36: #{tpu_custom_call.1} parent=11 // pred_fallthru
          _
        // Predicated region
        $region37: #{tpu_custom_call.1} parent=11 // pred_check
          %p425 = pneg %p203
        $region38: #{tpu_custom_call.1} parent=11 // pred_check_branch
          %427 = sbr.rel (%p425) target = $region40
        $region39: #{tpu_custom_call.1} parent=11 // pred_region
          %429 = vsyncadd [#allocation15], 0
          %s431 = sshll.u32 %s7, 4
          %s432 = int_to_ptr.hbm [resolvable:$true] %s431
          %s433 = sshll.u32 [#allocation14], 4
          %s434 = int_to_ptr.vmem [resolvable:$true] %s433
          %436 = dma.hbm_to_vmem [thread:$0]  %s432, 32, %s434, [#allocation15]
        $region40: #{tpu_custom_call.1} parent=11 // pred_fallthru
          _
        // Predicated region
        $region41: #{tpu_custom_call.1} parent=11 // pred_check
          %p437 = pneg %p224
        $region42: #{tpu_custom_call.1} parent=11 // pred_check_branch
          %439 = sbr.rel (%p437) target = $region44
        $region43: #{tpu_custom_call.1} parent=11 // pred_region
          %441 = vsyncadd [#allocation15], 0
          %s443 = sshll.u32 %s8, 4
          %s444 = int_to_ptr.hbm [resolvable:$true] %s443
          %s445 = sshll.u32 [#allocation16], 4
          %s446 = int_to_ptr.vmem [resolvable:$true] %s445
          %448 = dma.hbm_to_vmem [thread:$0]  %s444, 32, %s446, [#allocation15]
        $region44: #{tpu_custom_call.1} parent=11 // pred_fallthru
          _
        // Predicated region
        $region45: #{tpu_custom_call.1} parent=11 // pred_check
          %p449 = pneg %p245
        $region46: #{tpu_custom_call.1} parent=11 // pred_check_branch
          %451 = sbr.rel (%p449) target = $region48
        $region47: #{tpu_custom_call.1} parent=11 // pred_region
          %453 = vsyncadd [#allocation18], 0
          %s454 = sshll.u32 %s9, 4
          %s455 = int_to_ptr.hbm [resolvable:$true] %s454
          %s456 = sshll.u32 [#allocation17], 4
          %s457 = int_to_ptr.vmem [resolvable:$true] %s456
          %462 = dma.hbm_to_vmem [thread:$0]  %s455, 16384, %s457, [#allocation18], 512, 512, 32
        $region48: #{tpu_custom_call.1} parent=11 // pred_fallthru
          _
        // Predicated region
        $region49: #{tpu_custom_call.1} parent=11 // pred_check
          %p463 = pneg %p266
        $region50: #{tpu_custom_call.1} parent=11 // pred_check_branch
          %465 = sbr.rel (%p463) target = $region52
        $region51: #{tpu_custom_call.1} parent=11 // pred_region
          _
        $region52: #{tpu_custom_call.1} parent=11 // pred_fallthru
          _
        // Predicated region
        $region53: #{tpu_custom_call.1} parent=11 // pred_check
          %p466 = pneg %p287
        $region54: #{tpu_custom_call.1} parent=11 // pred_check_branch
          %468 = sbr.rel (%p466) target = $region56
        $region55: #{tpu_custom_call.1} parent=11 // pred_region
          %470 = vsyncadd [#allocation18], 0
          %s471 = sshll.u32 %s11, 4
          %s472 = int_to_ptr.hbm [resolvable:$true] %s471
          %s473 = sshll.u32 [#allocation19], 4
          %s474 = int_to_ptr.vmem [resolvable:$true] %s473
          %479 = dma.hbm_to_vmem [thread:$0]  %s472, 16384, %s474, [#allocation18], 128, 128, 8
        $region56: #{tpu_custom_call.1} parent=11 // pred_fallthru
          _
        // Predicated region
        $region57: #{tpu_custom_call.1} parent=11 // pred_check
          %p480 = pneg %p308
        $region58: #{tpu_custom_call.1} parent=11 // pred_check_branch
          %482 = sbr.rel (%p480) target = $region60
        $region59: #{tpu_custom_call.1} parent=11 // pred_region
          _
        $region60: #{tpu_custom_call.1} parent=11 // pred_fallthru
          _
      $region12: #{tpu_custom_call.1} parent=5 // pred_fallthru
        _
      %p483 = scmp.lt.s32.totalorder %s30, 2
      // Predicated region
      $region61: #{tpu_custom_call.1} parent=5 // pred_check
        %p484 = pneg %p483
      $region62: #{tpu_custom_call.1} parent=5 // pred_check_branch
        %486 = sbr.rel (%p484) target = $region64
      $region63: #{tpu_custom_call.1} parent=5 // pred_region
        // Predicated region
        $region65: #{tpu_custom_call.1} parent=63 // pred_check
          %p487 = pneg %p50
        $region66: #{tpu_custom_call.1} parent=63 // pred_check_branch
          %489 = sbr.rel (%p487) target = $region68
        $region67: #{tpu_custom_call.1} parent=63 // pred_region
          %s490 = sand.u32 %s40, 1
          %s491 = scalar_lea.sflag [#allocation3], %s490
          %s492 = sand.u32 %s40, 1
          %s493 = smul.addr %s492, 32
          %s494 = scalar_lea.vmem [#allocation2], %s493
          %s495 = smul.u32 2, %s30
          %497 = vsyncadd %s491, 0
          %s498 = smul.addr %s495, 2
          %s499 = smul.addr %s498, 8
          %s500 = scalar_lea.hbm %s0, %s499
          %s501 = sshll.u32 %s500, 4
          %s502 = int_to_ptr.hbm [resolvable:$true] %s501
          %s503 = sshll.u32 %s494, 4
          %s504 = int_to_ptr.vmem [resolvable:$true] %s503
          %509 = dma.hbm_to_vmem [thread:$0]  %s502, 512, %s504, %s491, 256, 256, 16
        $region68: #{tpu_custom_call.1} parent=63 // pred_fallthru
          _
      $region64: #{tpu_custom_call.1} parent=5 // pred_fallthru
        _
      %p510 = scmp.le.s32.totalorder 1, %s30
      %p511 = scmp.lt.s32.totalorder %s30, 3
      %p512 = pnand %p510, %p511
      %p513 = pneg %p512
      // Predicated region
      $region69: #{tpu_custom_call.1} parent=5 // pred_check
        _
      $region70: #{tpu_custom_call.1} parent=5 // pred_check_branch
        %515 = sbr.rel (%p512) target = $region72
      $region71: #{tpu_custom_call.1} parent=5 // pred_region
        %s516 = ssub.s32 %s30, 1
        %s517 = sand.u32 %s43, 1
        %s518 = scalar_lea.sflag [#allocation3], %s517
        %s519 = sand.u32 %s43, 1
        %s520 = smul.addr %s519, 32
        %s521 = scalar_lea.vmem [#allocation2], %s520
        // Predicated region
        $region73: #{tpu_custom_call.1} parent=71 // pred_check
          %p522 = pneg %p56
        $region74: #{tpu_custom_call.1} parent=71 // pred_check_branch
          %524 = sbr.rel (%p522) target = $region76
        $region75: #{tpu_custom_call.1} parent=71 // pred_region
          %526 = dma.done %s518, 512
        $region76: #{tpu_custom_call.1} parent=71 // pred_fallthru
          _
        // Predicated region
        $region77: #{tpu_custom_call.1} parent=71 // pred_check
          %p527 = pneg %p77
        $region78: #{tpu_custom_call.1} parent=71 // pred_check_branch
          %529 = sbr.rel (%p527) target = $region80
        $region79: #{tpu_custom_call.1} parent=71 // pred_region
          %531 = dma.done [#allocation6], 32
        $region80: #{tpu_custom_call.1} parent=71 // pred_fallthru
          _
        // Predicated region
        $region81: #{tpu_custom_call.1} parent=71 // pred_check
          %p532 = pneg %p98
        $region82: #{tpu_custom_call.1} parent=71 // pred_check_branch
          %534 = sbr.rel (%p532) target = $region84
        $region83: #{tpu_custom_call.1} parent=71 // pred_region
          %536 = dma.done [#allocation6], 32
        $region84: #{tpu_custom_call.1} parent=71 // pred_fallthru
          _
        // Predicated region
        $region85: #{tpu_custom_call.1} parent=71 // pred_check
          %p537 = pneg %p119
        $region86: #{tpu_custom_call.1} parent=71 // pred_check_branch
          %539 = sbr.rel (%p537) target = $region88
        $region87: #{tpu_custom_call.1} parent=71 // pred_region
          %541 = dma.done [#allocation9], 12288
        $region88: #{tpu_custom_call.1} parent=71 // pred_fallthru
          _
        // Predicated region
        $region89: #{tpu_custom_call.1} parent=71 // pred_check
          %p542 = pneg %p140
        $region90: #{tpu_custom_call.1} parent=71 // pred_check_branch
          %544 = sbr.rel (%p542) target = $region92
        $region91: #{tpu_custom_call.1} parent=71 // pred_region
          %546 = dma.done [#allocation9], 96
        $region92: #{tpu_custom_call.1} parent=71 // pred_fallthru
          _
        // Predicated region
        $region93: #{tpu_custom_call.1} parent=71 // pred_check
          %p547 = pneg %p161
        $region94: #{tpu_custom_call.1} parent=71 // pred_check_branch
          %549 = sbr.rel (%p547) target = $region96
        $region95: #{tpu_custom_call.1} parent=71 // pred_region
          %551 = dma.done [#allocation12], 4096
        $region96: #{tpu_custom_call.1} parent=71 // pred_fallthru
          _
        // Predicated region
        $region97: #{tpu_custom_call.1} parent=71 // pred_check
          %p552 = pneg %p182
        $region98: #{tpu_custom_call.1} parent=71 // pred_check_branch
          %554 = sbr.rel (%p552) target = $region100
        $region99: #{tpu_custom_call.1} parent=71 // pred_region
          %556 = dma.done [#allocation12], 32
        $region100: #{tpu_custom_call.1} parent=71 // pred_fallthru
          _
        // Predicated region
        $region101: #{tpu_custom_call.1} parent=71 // pred_check
          %p557 = pneg %p203
        $region102: #{tpu_custom_call.1} parent=71 // pred_check_branch
          %559 = sbr.rel (%p557) target = $region104
        $region103: #{tpu_custom_call.1} parent=71 // pred_region
          %561 = dma.done [#allocation15], 32
        $region104: #{tpu_custom_call.1} parent=71 // pred_fallthru
          _
        // Predicated region
        $region105: #{tpu_custom_call.1} parent=71 // pred_check
          %p562 = pneg %p224
        $region106: #{tpu_custom_call.1} parent=71 // pred_check_branch
          %564 = sbr.rel (%p562) target = $region108
        $region107: #{tpu_custom_call.1} parent=71 // pred_region
          %566 = dma.done [#allocation15], 32
        $region108: #{tpu_custom_call.1} parent=71 // pred_fallthru
          _
        // Predicated region
        $region109: #{tpu_custom_call.1} parent=71 // pred_check
          %p567 = pneg %p245
        $region110: #{tpu_custom_call.1} parent=71 // pred_check_branch
          %569 = sbr.rel (%p567) target = $region112
        $region111: #{tpu_custom_call.1} parent=71 // pred_region
          %571 = dma.done [#allocation18], 16384
        $region112: #{tpu_custom_call.1} parent=71 // pred_fallthru
          _
        // Predicated region
        $region113: #{tpu_custom_call.1} parent=71 // pred_check
          %p572 = pneg %p287
        $region114: #{tpu_custom_call.1} parent=71 // pred_check_branch
          %574 = sbr.rel (%p572) target = $region116
        $region115: #{tpu_custom_call.1} parent=71 // pred_region
          %576 = dma.done [#allocation18], 16384
        $region116: #{tpu_custom_call.1} parent=71 // pred_fallthru
          _
        %s577 = sand.u32 %s43, 1
        %s578 = scalar_lea.sflag [#allocation3], %s577
        %s579 = sand.u32 %s43, 1
        %s580 = smul.addr %s579, 32
        %s581 = scalar_lea.vmem [#allocation2], %s580
        %p582 = pneg %p56
        %p583 = pneg %p53
        %p584 = pneg %p77
        %p585 = pneg %p74
        %p586 = pneg %p98
        %p587 = pneg %p95
        %p588 = pneg %p119
        %p589 = pneg %p116
        %p590 = pneg %p140
        %p591 = pneg %p137
        %p592 = pneg %p161
        %p593 = pneg %p158
        %p594 = pneg %p182
        %p595 = pneg %p179
        %p596 = pneg %p203
        %p597 = pneg %p200
        %p598 = pneg %p224
        %p599 = pneg %p221
        %p600 = pneg %p245
        %p601 = pneg %p242
        %p602 = pneg %p266
        %p603 = pneg %p263
        %p604 = pneg %p287
        %p605 = pneg %p284
        %p606 = pneg %p308
        %p607 = pneg %p305
        %p608 = pneg %p334
        %p609 = pneg %p331
        %s610 = sand.u32 %s321, 1
        %s611 = scalar_lea.sflag [#allocation4], %s610
        %s612 = sand.u32 %s321, 1
        %s613 = smul.addr %s612, 32
        %s614 = scalar_lea.vmem [#allocation20], %s613
        %s615 = smul.u32 2, %s35
        %s616 = smul.u32 2, %s35
        %v618 = vld [vmem:[%s521] sm:$0xff]
        %v619 = vld [vmem:[%s521 + $0x8] sm:$0xff]
        %v620 = vld [vmem:[%s521 + $0x10] sm:$0xff]
        %v621 = vld [vmem:[%s521 + $0x18] sm:$0xff]
        %v622 = vld [vmem:[#allocation5] sm:$0x3]
        %v623 = vld [vmem:[#allocation7] sm:$0x3]
        %v624 = vadd.f32 %v618, %v619
        %625 = vadd.xlane.f32.xlu0 %v624
        %v626 = vpop.xlane.xlu0 %625
        %v627 = vadd.f32 %v620, %v621
        %628 = vadd.xlane.f32.xlu0 %v627
        %v629 = vpop.xlane.xlu0 %628
        %v630 = vrcp.pop 256.0
        %v631 = vmul.f32 256.0, %v630
        %v632 = vsub.f32 1.0, %v631
        %v633 = vmul.f32 %v630, %v632
        %v634 = vadd.f32 %v630, %v633
        %vm635 = vweird.f32 %v630
        %v636 = vsel %vm635, %v630, %v634
        %v637 = vmul.f32 %v626, %v636
        %v638 = vmul.f32 %v629, %v636
        %v639 = vsub.f32 %v618, %v637
        %v640 = vsub.f32 %v619, %v637
        %v641 = vsub.f32 %v620, %v638
        %v642 = vsub.f32 %v621, %v638
        %v643 = vmul.f32 %v639, %v639
        %v644 = vmul.f32 %v640, %v640
        %v645 = vmul.f32 %v641, %v641
        %v646 = vmul.f32 %v642, %v642
        %v647 = vadd.f32 %v643, %v644
        %648 = vadd.xlane.f32.xlu0 %v647
        %v649 = vpop.xlane.xlu0 %648
        %v650 = vadd.f32 %v645, %v646
        %651 = vadd.xlane.f32.xlu0 %v650
        %v652 = vpop.xlane.xlu0 %651
        %v653 = vmul.f32 %v649, %v636
        %v654 = vmul.f32 %v652, %v636
        %v655 = vadd.f32 %v653, 1e-05
        %v656 = vadd.f32 %v654, 1e-05
        %v657 = vrsqrt.pop %v655
        %v658 = vmul.f32 %v657, %v655
        %v659 = vmul.f32 %v658, %v657
        %v660 = vmul.f32 0.5, %v659
        %v661 = vsub.f32 1.5, %v660
        %v662 = vmul.f32 %v657, %v661
        %vm663 = vweird.f32 %v655
        %vm664 = vweird.f32 %v657
        %vm665 = vmor %vm663, %vm664
        %v666 = vsel %vm665, %v657, %v662
        %v667 = vrsqrt.pop %v656
        %v668 = vmul.f32 %v667, %v656
        %v669 = vmul.f32 %v668, %v667
        %v670 = vmul.f32 0.5, %v669
        %v671 = vsub.f32 1.5, %v670
        %v672 = vmul.f32 %v667, %v671
        %vm673 = vweird.f32 %v656
        %vm674 = vweird.f32 %v667
        %vm675 = vmor %vm673, %vm674
        %v676 = vsel %vm675, %v667, %v672
        %v677 = vmul.f32 %v639, %v666
        %v678 = vmul.f32 %v640, %v666
        %v679 = vmul.f32 %v641, %v676
        %v680 = vmul.f32 %v642, %v676
        %v682 = vperm.slane %v622, 0
        %v683 = vperm.slane %v622, 1
        %v686 = vmul.f32 %v677, %v682
        %v687 = vmul.f32 %v678, %v683
        %v688 = vmul.f32 %v679, %v682
        %v689 = vmul.f32 %v680, %v683
        %v691 = vperm.slane %v623, 0
        %v692 = vperm.slane %v623, 1
        %v695 = vadd.f32 %v686, %v691
        %v696 = vadd.f32 %v687, %v692
        %v697 = vadd.f32 %v688, %v691
        %v698 = vadd.f32 %v689, %v692
        %v699 = vpack.c.bf16 %v697, %v695
        %v700 = vpack.c.bf16 %v698, %v696
        %v701 = vld [vmem:[#allocation8] sm:$0xff]
        %v702 = vld [vmem:[#allocation8 + $0x8] sm:$0xff]
        %v703 = vld [vmem:[#allocation8 + $0x10] sm:$0xff]
        %v704 = vld [vmem:[#allocation8 + $0x18] sm:$0xff]
        %v705 = vld [vmem:[#allocation8 + $0x20] sm:$0xff]
        %v706 = vld [vmem:[#allocation8 + $0x28] sm:$0xff]
        %v707 = vld [vmem:[#allocation8 + $0x30] sm:$0xff]
        %v708 = vld [vmem:[#allocation8 + $0x38] sm:$0xff]
        %v709 = vld [vmem:[#allocation8 + $0x40] sm:$0xff]
        %v710 = vld [vmem:[#allocation8 + $0x48] sm:$0xff]
        %v711 = vld [vmem:[#allocation8 + $0x50] sm:$0xff]
        %v712 = vld [vmem:[#allocation8 + $0x58] sm:$0xff]
        %v713 = vld [vmem:[#allocation8 + $0x60] sm:$0xff]
        %v714 = vld [vmem:[#allocation8 + $0x68] sm:$0xff]
        %v715 = vld [vmem:[#allocation8 + $0x70] sm:$0xff]
        %v716 = vld [vmem:[#allocation8 + $0x78] sm:$0xff]
        %v717 = vld [vmem:[#allocation8 + $0x80] sm:$0xff]
        %v718 = vld [vmem:[#allocation8 + $0x88] sm:$0xff]
        %v719 = vld [vmem:[#allocation8 + $0x90] sm:$0xff]
        %v720 = vld [vmem:[#allocation8 + $0x98] sm:$0xff]
        %v721 = vld [vmem:[#allocation8 + $0xa0] sm:$0xff]
        %v722 = vld [vmem:[#allocation8 + $0xa8] sm:$0xff]
        %v723 = vld [vmem:[#allocation8 + $0xb0] sm:$0xff]
        %v724 = vld [vmem:[#allocation8 + $0xb8] sm:$0xff]
        %v725 = vld [vmem:[#allocation8 + $0xc0] sm:$0xff]
        %v726 = vld [vmem:[#allocation8 + $0xc8] sm:$0xff]
        %v727 = vld [vmem:[#allocation8 + $0xd0] sm:$0xff]
        %v728 = vld [vmem:[#allocation8 + $0xd8] sm:$0xff]
        %v729 = vld [vmem:[#allocation8 + $0xe0] sm:$0xff]
        %v730 = vld [vmem:[#allocation8 + $0xe8] sm:$0xff]
        %v731 = vld [vmem:[#allocation8 + $0xf0] sm:$0xff]
        %v732 = vld [vmem:[#allocation8 + $0xf8] sm:$0xff]
        %v733 = vld [vmem:[#allocation8 + $0x100] sm:$0xff]
        %v734 = vld [vmem:[#allocation8 + $0x108] sm:$0xff]
        %v735 = vld [vmem:[#allocation8 + $0x110] sm:$0xff]
        %v736 = vld [vmem:[#allocation8 + $0x118] sm:$0xff]
        %v737 = vld [vmem:[#allocation8 + $0x120] sm:$0xff]
        %v738 = vld [vmem:[#allocation8 + $0x128] sm:$0xff]
        %v739 = vld [vmem:[#allocation8 + $0x130] sm:$0xff]
        %v740 = vld [vmem:[#allocation8 + $0x138] sm:$0xff]
        %v741 = vld [vmem:[#allocation8 + $0x140] sm:$0xff]
        %v742 = vld [vmem:[#allocation8 + $0x148] sm:$0xff]
        %v743 = vld [vmem:[#allocation8 + $0x150] sm:$0xff]
        %v744 = vld [vmem:[#allocation8 + $0x158] sm:$0xff]
        %v745 = vld [vmem:[#allocation8 + $0x160] sm:$0xff]
        %v746 = vld [vmem:[#allocation8 + $0x168] sm:$0xff]
        %v747 = vld [vmem:[#allocation8 + $0x170] sm:$0xff]
        %v748 = vld [vmem:[#allocation8 + $0x178] sm:$0xff]
        %v749 = vld [vmem:[#allocation8 + $0x180] sm:$0xff]
        %v750 = vld [vmem:[#allocation8 + $0x188] sm:$0xff]
        %v751 = vld [vmem:[#allocation8 + $0x190] sm:$0xff]
        %v752 = vld [vmem:[#allocation8 + $0x198] sm:$0xff]
        %v753 = vld [vmem:[#allocation8 + $0x1a0] sm:$0xff]
        %v754 = vld [vmem:[#allocation8 + $0x1a8] sm:$0xff]
        %v755 = vld [vmem:[#allocation8 + $0x1b0] sm:$0xff]
        %v756 = vld [vmem:[#allocation8 + $0x1b8] sm:$0xff]
        %v757 = vld [vmem:[#allocation8 + $0x1c0] sm:$0xff]
        %v758 = vld [vmem:[#allocation8 + $0x1c8] sm:$0xff]
        %v759 = vld [vmem:[#allocation8 + $0x1d0] sm:$0xff]
        %v760 = vld [vmem:[#allocation8 + $0x1d8] sm:$0xff]
        %v761 = vld [vmem:[#allocation8 + $0x1e0] sm:$0xff]
        %v762 = vld [vmem:[#allocation8 + $0x1e8] sm:$0xff]
        %v763 = vld [vmem:[#allocation8 + $0x1f0] sm:$0xff]
        %v764 = vld [vmem:[#allocation8 + $0x1f8] sm:$0xff]
        %v765 = vld [vmem:[#allocation8 + $0x200] sm:$0xff]
        %v766 = vld [vmem:[#allocation8 + $0x208] sm:$0xff]
        %v767 = vld [vmem:[#allocation8 + $0x210] sm:$0xff]
        %v768 = vld [vmem:[#allocation8 + $0x218] sm:$0xff]
        %v769 = vld [vmem:[#allocation8 + $0x220] sm:$0xff]
        %v770 = vld [vmem:[#allocation8 + $0x228] sm:$0xff]
        %v771 = vld [vmem:[#allocation8 + $0x230] sm:$0xff]
        %v772 = vld [vmem:[#allocation8 + $0x238] sm:$0xff]
        %v773 = vld [vmem:[#allocation8 + $0x240] sm:$0xff]
        %v774 = vld [vmem:[#allocation8 + $0x248] sm:$0xff]
        %v775 = vld [vmem:[#allocation8 + $0x250] sm:$0xff]
        %v776 = vld [vmem:[#allocation8 + $0x258] sm:$0xff]
        %v777 = vld [vmem:[#allocation8 + $0x260] sm:$0xff]
        %v778 = vld [vmem:[#allocation8 + $0x268] sm:$0xff]
        %v779 = vld [vmem:[#allocation8 + $0x270] sm:$0xff]
        %v780 = vld [vmem:[#allocation8 + $0x278] sm:$0xff]
        %v781 = vld [vmem:[#allocation8 + $0x280] sm:$0xff]
        %v782 = vld [vmem:[#allocation8 + $0x288] sm:$0xff]
        %v783 = vld [vmem:[#allocation8 + $0x290] sm:$0xff]
        %v784 = vld [vmem:[#allocation8 + $0x298] sm:$0xff]
        %v785 = vld [vmem:[#allocation8 + $0x2a0] sm:$0xff]
        %v786 = vld [vmem:[#allocation8 + $0x2a8] sm:$0xff]
        %v787 = vld [vmem:[#allocation8 + $0x2b0] sm:$0xff]
        %v788 = vld [vmem:[#allocation8 + $0x2b8] sm:$0xff]
        %v789 = vld [vmem:[#allocation8 + $0x2c0] sm:$0xff]
        %v790 = vld [vmem:[#allocation8 + $0x2c8] sm:$0xff]
        %v791 = vld [vmem:[#allocation8 + $0x2d0] sm:$0xff]
        %v792 = vld [vmem:[#allocation8 + $0x2d8] sm:$0xff]
        %v793 = vld [vmem:[#allocation8 + $0x2e0] sm:$0xff]
        %v794 = vld [vmem:[#allocation8 + $0x2e8] sm:$0xff]
        %v795 = vld [vmem:[#allocation8 + $0x2f0] sm:$0xff]
        %v796 = vld [vmem:[#allocation8 + $0x2f8] sm:$0xff]
        %v797 = vld [vmem:[#allocation10] sm:$0x3f]
        %v799 = vperm.slane %v797, 0
        %v800 = vperm.slane %v797, 1
        %v801 = vperm.slane %v797, 2
        %v802 = vperm.slane %v797, 3
        %v803 = vperm.slane %v797, 4
        %v804 = vperm.slane %v797, 5
        %v907 = vunpack.c.l.b16 %v701
        %v908 = vunpack.c.h.b16 %v701
        %v909 = vunpack.c.l.b16 %v702
        %v910 = vunpack.c.h.b16 %v702
        %v911 = vunpack.c.l.b16 %v703
        %v912 = vunpack.c.h.b16 %v703
        %v913 = vunpack.c.l.b16 %v704
        %v914 = vunpack.c.h.b16 %v704
        %v915 = vunpack.c.l.b16 %v705
        %v916 = vunpack.c.h.b16 %v705
        %v917 = vunpack.c.l.b16 %v706
        %v918 = vunpack.c.h.b16 %v706
        %v919 = vunpack.c.l.b16 %v707
        %v920 = vunpack.c.h.b16 %v707
        %v921 = vunpack.c.l.b16 %v708
        %v922 = vunpack.c.h.b16 %v708
        %v923 = vunpack.c.l.b16 %v709
        %v924 = vunpack.c.h.b16 %v709
        %v925 = vunpack.c.l.b16 %v710
        %v926 = vunpack.c.h.b16 %v710
        %v927 = vunpack.c.l.b16 %v711
        %v928 = vunpack.c.h.b16 %v711
        %v929 = vunpack.c.l.b16 %v712
        %v930 = vunpack.c.h.b16 %v712
        %v931 = vunpack.c.l.b16 %v713
        %v932 = vunpack.c.h.b16 %v713
        %v933 = vunpack.c.l.b16 %v714
        %v934 = vunpack.c.h.b16 %v714
        %v935 = vunpack.c.l.b16 %v715
        %v936 = vunpack.c.h.b16 %v715
        %v937 = vunpack.c.l.b16 %v716
        %v938 = vunpack.c.h.b16 %v716
        %v939 = vunpack.c.l.b16 %v717
        %v940 = vunpack.c.h.b16 %v717
        %v941 = vunpack.c.l.b16 %v718
        %v942 = vunpack.c.h.b16 %v718
        %v943 = vunpack.c.l.b16 %v719
        %v944 = vunpack.c.h.b16 %v719
        %v945 = vunpack.c.l.b16 %v720
        %v946 = vunpack.c.h.b16 %v720
        %v947 = vunpack.c.l.b16 %v721
        %v948 = vunpack.c.h.b16 %v721
        %v949 = vunpack.c.l.b16 %v722
        %v950 = vunpack.c.h.b16 %v722
        %v951 = vunpack.c.l.b16 %v723
        %v952 = vunpack.c.h.b16 %v723
        %v953 = vunpack.c.l.b16 %v724
        %v954 = vunpack.c.h.b16 %v724
        %v955 = vunpack.c.l.b16 %v725
        %v956 = vunpack.c.h.b16 %v725
        %v957 = vunpack.c.l.b16 %v726
        %v958 = vunpack.c.h.b16 %v726
        %v959 = vunpack.c.l.b16 %v727
        %v960 = vunpack.c.h.b16 %v727
        %v961 = vunpack.c.l.b16 %v728
        %v962 = vunpack.c.h.b16 %v728
        %v963 = vunpack.c.l.b16 %v729
        %v964 = vunpack.c.h.b16 %v729
        %v965 = vunpack.c.l.b16 %v730
        %v966 = vunpack.c.h.b16 %v730
        %v967 = vunpack.c.l.b16 %v731
        %v968 = vunpack.c.h.b16 %v731
        %v969 = vunpack.c.l.b16 %v732
        %v970 = vunpack.c.h.b16 %v732
        %v971 = vunpack.c.l.b16 %v733
        %v972 = vunpack.c.h.b16 %v733
        %v973 = vunpack.c.l.b16 %v734
        %v974 = vunpack.c.h.b16 %v734
        %v975 = vunpack.c.l.b16 %v735
        %v976 = vunpack.c.h.b16 %v735
        %v977 = vunpack.c.l.b16 %v736
        %v978 = vunpack.c.h.b16 %v736
        %v979 = vunpack.c.l.b16 %v737
        %v980 = vunpack.c.h.b16 %v737
        %v981 = vunpack.c.l.b16 %v738
        %v982 = vunpack.c.h.b16 %v738
        %v983 = vunpack.c.l.b16 %v739
        %v984 = vunpack.c.h.b16 %v739
        %v985 = vunpack.c.l.b16 %v740
        %v986 = vunpack.c.h.b16 %v740
        %v987 = vunpack.c.l.b16 %v741
        %v988 = vunpack.c.h.b16 %v741
        %v989 = vunpack.c.l.b16 %v742
        %v990 = vunpack.c.h.b16 %v742
        %v991 = vunpack.c.l.b16 %v743
        %v992 = vunpack.c.h.b16 %v743
        %v993 = vunpack.c.l.b16 %v744
        %v994 = vunpack.c.h.b16 %v744
        %v995 = vunpack.c.l.b16 %v745
        %v996 = vunpack.c.h.b16 %v745
        %v997 = vunpack.c.l.b16 %v746
        %v998 = vunpack.c.h.b16 %v746
        %v999 = vunpack.c.l.b16 %v747
        %v1000 = vunpack.c.h.b16 %v747
        %v1001 = vunpack.c.l.b16 %v748
        %v1002 = vunpack.c.h.b16 %v748
        %v1003 = vunpack.c.l.b16 %v749
        %v1004 = vunpack.c.h.b16 %v749
        %v1005 = vunpack.c.l.b16 %v750
        %v1006 = vunpack.c.h.b16 %v750
        %v1007 = vunpack.c.l.b16 %v751
        %v1008 = vunpack.c.h.b16 %v751
        %v1009 = vunpack.c.l.b16 %v752
        %v1010 = vunpack.c.h.b16 %v752
        %v1011 = vunpack.c.l.b16 %v753
        %v1012 = vunpack.c.h.b16 %v753
        %v1013 = vunpack.c.l.b16 %v754
        %v1014 = vunpack.c.h.b16 %v754
        %v1015 = vunpack.c.l.b16 %v755
        %v1016 = vunpack.c.h.b16 %v755
        %v1017 = vunpack.c.l.b16 %v756
        %v1018 = vunpack.c.h.b16 %v756
        %v1019 = vunpack.c.l.b16 %v757
        %v1020 = vunpack.c.h.b16 %v757
        %v1021 = vunpack.c.l.b16 %v758
        %v1022 = vunpack.c.h.b16 %v758
        %v1023 = vunpack.c.l.b16 %v759
        %v1024 = vunpack.c.h.b16 %v759
        %v1025 = vunpack.c.l.b16 %v760
        %v1026 = vunpack.c.h.b16 %v760
        %v1027 = vunpack.c.l.b16 %v761
        %v1028 = vunpack.c.h.b16 %v761
        %v1029 = vunpack.c.l.b16 %v762
        %v1030 = vunpack.c.h.b16 %v762
        %v1031 = vunpack.c.l.b16 %v763
        %v1032 = vunpack.c.h.b16 %v763
        %v1033 = vunpack.c.l.b16 %v764
        %v1034 = vunpack.c.h.b16 %v764
        %v1035 = vunpack.c.l.b16 %v765
        %v1036 = vunpack.c.h.b16 %v765
        %v1037 = vunpack.c.l.b16 %v766
        %v1038 = vunpack.c.h.b16 %v766
        %v1039 = vunpack.c.l.b16 %v767
        %v1040 = vunpack.c.h.b16 %v767
        %v1041 = vunpack.c.l.b16 %v768
        %v1042 = vunpack.c.h.b16 %v768
        %v1043 = vunpack.c.l.b16 %v769
        %v1044 = vunpack.c.h.b16 %v769
        %v1045 = vunpack.c.l.b16 %v770
        %v1046 = vunpack.c.h.b16 %v770
        %v1047 = vunpack.c.l.b16 %v771
        %v1048 = vunpack.c.h.b16 %v771
        %v1049 = vunpack.c.l.b16 %v772
        %v1050 = vunpack.c.h.b16 %v772
        %v1051 = vunpack.c.l.b16 %v773
        %v1052 = vunpack.c.h.b16 %v773
        %v1053 = vunpack.c.l.b16 %v774
        %v1054 = vunpack.c.h.b16 %v774
        %v1055 = vunpack.c.l.b16 %v775
        %v1056 = vunpack.c.h.b16 %v775
        %v1057 = vunpack.c.l.b16 %v776
        %v1058 = vunpack.c.h.b16 %v776
        %v1059 = vunpack.c.l.b16 %v777
        %v1060 = vunpack.c.h.b16 %v777
        %v1061 = vunpack.c.l.b16 %v778
        %v1062 = vunpack.c.h.b16 %v778
        %v1063 = vunpack.c.l.b16 %v779
        %v1064 = vunpack.c.h.b16 %v779
        %v1065 = vunpack.c.l.b16 %v780
        %v1066 = vunpack.c.h.b16 %v780
        %v1067 = vunpack.c.l.b16 %v781
        %v1068 = vunpack.c.h.b16 %v781
        %v1069 = vunpack.c.l.b16 %v782
        %v1070 = vunpack.c.h.b16 %v782
        %v1071 = vunpack.c.l.b16 %v783
        %v1072 = vunpack.c.h.b16 %v783
        %v1073 = vunpack.c.l.b16 %v784
        %v1074 = vunpack.c.h.b16 %v784
        %v1075 = vunpack.c.l.b16 %v785
        %v1076 = vunpack.c.h.b16 %v785
        %v1077 = vunpack.c.l.b16 %v786
        %v1078 = vunpack.c.h.b16 %v786
        %v1079 = vunpack.c.l.b16 %v787
        %v1080 = vunpack.c.h.b16 %v787
        %v1081 = vunpack.c.l.b16 %v788
        %v1082 = vunpack.c.h.b16 %v788
        %v1083 = vunpack.c.l.b16 %v789
        %v1084 = vunpack.c.h.b16 %v789
        %v1085 = vunpack.c.l.b16 %v790
        %v1086 = vunpack.c.h.b16 %v790
        %v1087 = vunpack.c.l.b16 %v791
        %v1088 = vunpack.c.h.b16 %v791
        %v1089 = vunpack.c.l.b16 %v792
        %v1090 = vunpack.c.h.b16 %v792
        %v1091 = vunpack.c.l.b16 %v793
        %v1092 = vunpack.c.h.b16 %v793
        %v1093 = vunpack.c.l.b16 %v794
        %v1094 = vunpack.c.h.b16 %v794
        %v1095 = vunpack.c.l.b16 %v795
        %v1096 = vunpack.c.h.b16 %v795
        %v1097 = vunpack.c.l.b16 %v796
        %v1098 = vunpack.c.h.b16 %v796
        %v1099 = vpack.c.b16 %v913, %v907
        %v1100 = vpack.c.b16 %v914, %v908
        %v1101 = vpack.c.b16 %v915, %v909
        %v1102 = vpack.c.b16 %v916, %v910
        %v1103 = vpack.c.b16 %v917, %v911
        %v1104 = vpack.c.b16 %v918, %v912
        %v1105 = vpack.c.b16 %v925, %v919
        %v1106 = vpack.c.b16 %v926, %v920
        %v1107 = vpack.c.b16 %v927, %v921
        %v1108 = vpack.c.b16 %v928, %v922
        %v1109 = vpack.c.b16 %v929, %v923
        %v1110 = vpack.c.b16 %v930, %v924
        %v1111 = vpack.c.b16 %v937, %v931
        %v1112 = vpack.c.b16 %v938, %v932
        %v1113 = vpack.c.b16 %v939, %v933
        %v1114 = vpack.c.b16 %v940, %v934
        %v1115 = vpack.c.b16 %v941, %v935
        %v1116 = vpack.c.b16 %v942, %v936
        %v1117 = vpack.c.b16 %v949, %v943
        %v1118 = vpack.c.b16 %v950, %v944
        %v1119 = vpack.c.b16 %v951, %v945
        %v1120 = vpack.c.b16 %v952, %v946
        %v1121 = vpack.c.b16 %v953, %v947
        %v1122 = vpack.c.b16 %v954, %v948
        %v1123 = vpack.c.b16 %v961, %v955
        %v1124 = vpack.c.b16 %v962, %v956
        %v1125 = vpack.c.b16 %v963, %v957
        %v1126 = vpack.c.b16 %v964, %v958
        %v1127 = vpack.c.b16 %v965, %v959
        %v1128 = vpack.c.b16 %v966, %v960
        %v1129 = vpack.c.b16 %v973, %v967
        %v1130 = vpack.c.b16 %v974, %v968
        %v1131 = vpack.c.b16 %v975, %v969
        %v1132 = vpack.c.b16 %v976, %v970
        %v1133 = vpack.c.b16 %v977, %v971
        %v1134 = vpack.c.b16 %v978, %v972
        %v1135 = vpack.c.b16 %v985, %v979
        %v1136 = vpack.c.b16 %v986, %v980
        %v1137 = vpack.c.b16 %v987, %v981
        %v1138 = vpack.c.b16 %v988, %v982
        %v1139 = vpack.c.b16 %v989, %v983
        %v1140 = vpack.c.b16 %v990, %v984
        %v1141 = vpack.c.b16 %v997, %v991
        %v1142 = vpack.c.b16 %v998, %v992
        %v1143 = vpack.c.b16 %v999, %v993
        %v1144 = vpack.c.b16 %v1000, %v994
        %v1145 = vpack.c.b16 %v1001, %v995
        %v1146 = vpack.c.b16 %v1002, %v996
        %v1147 = vpack.c.b16 %v1009, %v1003
        %v1148 = vpack.c.b16 %v1010, %v1004
        %v1149 = vpack.c.b16 %v1011, %v1005
        %v1150 = vpack.c.b16 %v1012, %v1006
        %v1151 = vpack.c.b16 %v1013, %v1007
        %v1152 = vpack.c.b16 %v1014, %v1008
        %v1153 = vpack.c.b16 %v1021, %v1015
        %v1154 = vpack.c.b16 %v1022, %v1016
        %v1155 = vpack.c.b16 %v1023, %v1017
        %v1156 = vpack.c.b16 %v1024, %v1018
        %v1157 = vpack.c.b16 %v1025, %v1019
        %v1158 = vpack.c.b16 %v1026, %v1020
        %v1159 = vpack.c.b16 %v1033, %v1027
        %v1160 = vpack.c.b16 %v1034, %v1028
        %v1161 = vpack.c.b16 %v1035, %v1029
        %v1162 = vpack.c.b16 %v1036, %v1030
        %v1163 = vpack.c.b16 %v1037, %v1031
        %v1164 = vpack.c.b16 %v1038, %v1032
        %v1165 = vpack.c.b16 %v1045, %v1039
        %v1166 = vpack.c.b16 %v1046, %v1040
        %v1167 = vpack.c.b16 %v1047, %v1041
        %v1168 = vpack.c.b16 %v1048, %v1042
        %v1169 = vpack.c.b16 %v1049, %v1043
        %v1170 = vpack.c.b16 %v1050, %v1044
        %v1171 = vpack.c.b16 %v1057, %v1051
        %v1172 = vpack.c.b16 %v1058, %v1052
        %v1173 = vpack.c.b16 %v1059, %v1053
        %v1174 = vpack.c.b16 %v1060, %v1054
        %v1175 = vpack.c.b16 %v1061, %v1055
        %v1176 = vpack.c.b16 %v1062, %v1056
        %v1177 = vpack.c.b16 %v1069, %v1063
        %v1178 = vpack.c.b16 %v1070, %v1064
        %v1179 = vpack.c.b16 %v1071, %v1065
        %v1180 = vpack.c.b16 %v1072, %v1066
        %v1181 = vpack.c.b16 %v1073, %v1067
        %v1182 = vpack.c.b16 %v1074, %v1068
        %v1183 = vpack.c.b16 %v1081, %v1075
        %v1184 = vpack.c.b16 %v1082, %v1076
        %v1185 = vpack.c.b16 %v1083, %v1077
        %v1186 = vpack.c.b16 %v1084, %v1078
        %v1187 = vpack.c.b16 %v1085, %v1079
        %v1188 = vpack.c.b16 %v1086, %v1080
        %v1189 = vpack.c.b16 %v1093, %v1087
        %v1190 = vpack.c.b16 %v1094, %v1088
        %v1191 = vpack.c.b16 %v1095, %v1089
        %v1192 = vpack.c.b16 %v1096, %v1090
        %v1193 = vpack.c.b16 %v1097, %v1091
        %v1194 = vpack.c.b16 %v1098, %v1092
        %1291 = vmatpush.bf16.msra.mxu0 %v1141
        %1292 = vmatpush.bf16.msra.mxu0 %v1135
        %1293 = vmatpush.bf16.msra.mxu0 %v1129
        %1294 = vmatpush.bf16.msra.mxu0 %v1123
        %1295 = vmatpush.bf16.msra.mxu0 %v1117
        %1296 = vmatpush.bf16.msra.mxu0 %v1111
        %1297 = vmatpush.bf16.msra.mxu0 %v1105
        %1298 = vmatpush.bf16.msra.mxu0 %v1099
        %1299 = vmatmul.bf16.gmra.mxu0 %v699
        %v1300 = vpop.f32.mrf.mxu0
        %v1301 = vadd.f32 %v799, %v1300
        %v1302 = vpop.f32.mrf.mxu0
        %v1303 = vadd.f32 %v799, %v1302
        %1304 = vdwg.mxu0
        %1305 = vmatpush.bf16.msra.mxu0 %v1189
        %1306 = vmatpush.bf16.msra.mxu0 %v1183
        %1307 = vmatpush.bf16.msra.mxu0 %v1177
        %1308 = vmatpush.bf16.msra.mxu0 %v1171
        %1309 = vmatpush.bf16.msra.mxu0 %v1165
        %1310 = vmatpush.bf16.msra.mxu0 %v1159
        %1311 = vmatpush.bf16.msra.mxu0 %v1153
        %1312 = vmatpush.bf16.msra.mxu0 %v1147
        %1313 = vmatmul.bf16.gmra.mxu0 %v700
        %v1314 = vpop.f32.mrf.mxu0
        %v1315 = vadd.f32 %v1301, %v1314
        %v1316 = vpop.f32.mrf.mxu0
        %v1317 = vadd.f32 %v1303, %v1316
        %1318 = vdwg.mxu0
        %1319 = vmatpush.bf16.msra.mxu0 %v1142
        %1320 = vmatpush.bf16.msra.mxu0 %v1136
        %1321 = vmatpush.bf16.msra.mxu0 %v1130
        %1322 = vmatpush.bf16.msra.mxu0 %v1124
        %1323 = vmatpush.bf16.msra.mxu0 %v1118
        %1324 = vmatpush.bf16.msra.mxu0 %v1112
        %1325 = vmatpush.bf16.msra.mxu0 %v1106
        %1326 = vmatpush.bf16.msra.mxu0 %v1100
        %1327 = vmatmul.bf16.gmra.mxu0 %v699
        %v1328 = vpop.f32.mrf.mxu0
        %v1329 = vadd.f32 %v800, %v1328
        %v1330 = vpop.f32.mrf.mxu0
        %v1331 = vadd.f32 %v800, %v1330
        %1332 = vdwg.mxu0
        %1333 = vmatpush.bf16.msra.mxu0 %v1190
        %1334 = vmatpush.bf16.msra.mxu0 %v1184
        %1335 = vmatpush.bf16.msra.mxu0 %v1178
        %1336 = vmatpush.bf16.msra.mxu0 %v1172
        %1337 = vmatpush.bf16.msra.mxu0 %v1166
        %1338 = vmatpush.bf16.msra.mxu0 %v1160
        %1339 = vmatpush.bf16.msra.mxu0 %v1154
        %1340 = vmatpush.bf16.msra.mxu0 %v1148
        %1341 = vmatmul.bf16.gmra.mxu0 %v700
        %v1342 = vpop.f32.mrf.mxu0
        %v1343 = vadd.f32 %v1329, %v1342
        %v1344 = vpop.f32.mrf.mxu0
        %v1345 = vadd.f32 %v1331, %v1344
        %1346 = vdwg.mxu0
        %1347 = vmatpush.bf16.msra.mxu0 %v1143
        %1348 = vmatpush.bf16.msra.mxu0 %v1137
        %1349 = vmatpush.bf16.msra.mxu0 %v1131
        %1350 = vmatpush.bf16.msra.mxu0 %v1125
        %1351 = vmatpush.bf16.msra.mxu0 %v1119
        %1352 = vmatpush.bf16.msra.mxu0 %v1113
        %1353 = vmatpush.bf16.msra.mxu0 %v1107
        %1354 = vmatpush.bf16.msra.mxu0 %v1101
        %1355 = vmatmul.bf16.gmra.mxu0 %v699
        %v1356 = vpop.f32.mrf.mxu0
        %v1357 = vadd.f32 %v801, %v1356
        %v1358 = vpop.f32.mrf.mxu0
        %v1359 = vadd.f32 %v801, %v1358
        %1360 = vdwg.mxu0
        %1361 = vmatpush.bf16.msra.mxu0 %v1191
        %1362 = vmatpush.bf16.msra.mxu0 %v1185
        %1363 = vmatpush.bf16.msra.mxu0 %v1179
        %1364 = vmatpush.bf16.msra.mxu0 %v1173
        %1365 = vmatpush.bf16.msra.mxu0 %v1167
        %1366 = vmatpush.bf16.msra.mxu0 %v1161
        %1367 = vmatpush.bf16.msra.mxu0 %v1155
        %1368 = vmatpush.bf16.msra.mxu0 %v1149
        %1369 = vmatmul.bf16.gmra.mxu0 %v700
        %v1370 = vpop.f32.mrf.mxu0
        %v1371 = vadd.f32 %v1357, %v1370
        %v1372 = vpop.f32.mrf.mxu0
        %v1373 = vadd.f32 %v1359, %v1372
        %1374 = vdwg.mxu0
        %1375 = vmatpush.bf16.msra.mxu0 %v1144
        %1376 = vmatpush.bf16.msra.mxu0 %v1138
        %1377 = vmatpush.bf16.msra.mxu0 %v1132
        %1378 = vmatpush.bf16.msra.mxu0 %v1126
        %1379 = vmatpush.bf16.msra.mxu0 %v1120
        %1380 = vmatpush.bf16.msra.mxu0 %v1114
        %1381 = vmatpush.bf16.msra.mxu0 %v1108
        %1382 = vmatpush.bf16.msra.mxu0 %v1102
        %1383 = vmatmul.bf16.gmra.mxu0 %v699
        %v1384 = vpop.f32.mrf.mxu0
        %v1385 = vadd.f32 %v802, %v1384
        %v1386 = vpop.f32.mrf.mxu0
        %v1387 = vadd.f32 %v802, %v1386
        %1388 = vdwg.mxu0
        %1389 = vmatpush.bf16.msra.mxu0 %v1192
        %1390 = vmatpush.bf16.msra.mxu0 %v1186
        %1391 = vmatpush.bf16.msra.mxu0 %v1180
        %1392 = vmatpush.bf16.msra.mxu0 %v1174
        %1393 = vmatpush.bf16.msra.mxu0 %v1168
        %1394 = vmatpush.bf16.msra.mxu0 %v1162
        %1395 = vmatpush.bf16.msra.mxu0 %v1156
        %1396 = vmatpush.bf16.msra.mxu0 %v1150
        %1397 = vmatmul.bf16.gmra.mxu0 %v700
        %v1398 = vpop.f32.mrf.mxu0
        %v1399 = vadd.f32 %v1385, %v1398
        %v1400 = vpop.f32.mrf.mxu0
        %v1401 = vadd.f32 %v1387, %v1400
        %1402 = vdwg.mxu0
        %1403 = vmatpush.bf16.msra.mxu0 %v1145
        %1404 = vmatpush.bf16.msra.mxu0 %v1139
        %1405 = vmatpush.bf16.msra.mxu0 %v1133
        %1406 = vmatpush.bf16.msra.mxu0 %v1127
        %1407 = vmatpush.bf16.msra.mxu0 %v1121
        %1408 = vmatpush.bf16.msra.mxu0 %v1115
        %1409 = vmatpush.bf16.msra.mxu0 %v1109
        %1410 = vmatpush.bf16.msra.mxu0 %v1103
        %1411 = vmatmul.bf16.gmra.mxu0 %v699
        %v1412 = vpop.f32.mrf.mxu0
        %v1413 = vadd.f32 %v803, %v1412
        %v1414 = vpop.f32.mrf.mxu0
        %v1415 = vadd.f32 %v803, %v1414
        %1416 = vdwg.mxu0
        %1417 = vmatpush.bf16.msra.mxu0 %v1193
        %1418 = vmatpush.bf16.msra.mxu0 %v1187
        %1419 = vmatpush.bf16.msra.mxu0 %v1181
        %1420 = vmatpush.bf16.msra.mxu0 %v1175
        %1421 = vmatpush.bf16.msra.mxu0 %v1169
        %1422 = vmatpush.bf16.msra.mxu0 %v1163
        %1423 = vmatpush.bf16.msra.mxu0 %v1157
        %1424 = vmatpush.bf16.msra.mxu0 %v1151
        %1425 = vmatmul.bf16.gmra.mxu0 %v700
        %v1426 = vpop.f32.mrf.mxu0
        %v1427 = vadd.f32 %v1413, %v1426
        %v1428 = vpop.f32.mrf.mxu0
        %v1429 = vadd.f32 %v1415, %v1428
        %1430 = vdwg.mxu0
        %1431 = vmatpush.bf16.msra.mxu0 %v1146
        %1432 = vmatpush.bf16.msra.mxu0 %v1140
        %1433 = vmatpush.bf16.msra.mxu0 %v1134
        %1434 = vmatpush.bf16.msra.mxu0 %v1128
        %1435 = vmatpush.bf16.msra.mxu0 %v1122
        %1436 = vmatpush.bf16.msra.mxu0 %v1116
        %1437 = vmatpush.bf16.msra.mxu0 %v1110
        %1438 = vmatpush.bf16.msra.mxu0 %v1104
        %1439 = vmatmul.bf16.gmra.mxu0 %v699
        %v1440 = vpop.f32.mrf.mxu0
        %v1441 = vadd.f32 %v804, %v1440
        %v1442 = vpop.f32.mrf.mxu0
        %v1443 = vadd.f32 %v804, %v1442
        %1444 = vdwg.mxu0
        %1445 = vmatpush.bf16.msra.mxu0 %v1194
        %1446 = vmatpush.bf16.msra.mxu0 %v1188
        %1447 = vmatpush.bf16.msra.mxu0 %v1182
        %1448 = vmatpush.bf16.msra.mxu0 %v1176
        %1449 = vmatpush.bf16.msra.mxu0 %v1170
        %1450 = vmatpush.bf16.msra.mxu0 %v1164
        %1451 = vmatpush.bf16.msra.mxu0 %v1158
        %1452 = vmatpush.bf16.msra.mxu0 %v1152
        %1453 = vmatmul.bf16.gmra.mxu0 %v700
        %v1454 = vpop.f32.mrf.mxu0
        %v1455 = vadd.f32 %v1441, %v1454
        %v1456 = vpop.f32.mrf.mxu0
        %v1457 = vadd.f32 %v1443, %v1456
        %1458 = vdwg.mxu0
        %v1459 = vpack.c.bf16 %v1343, %v1315
        %v1460 = vpack.c.bf16 %v1345, %v1317
        %v1462 = vrot.slane %v1459, 4
        %v1465 = vrot.slane %v1460, 4
        %v1467 = vpack.c.bf16 %v1399, %v1371
        %v1468 = vpack.c.bf16 %v1401, %v1373
        %v1470 = vrot.slane %v1467, 4
        %v1473 = vrot.slane %v1468, 4
        %v1475 = vpack.c.bf16 %v1455, %v1427
        %v1476 = vpack.c.bf16 %v1457, %v1429
        %v1478 = vrot.slane %v1475, 4
        %v1480 = vrot.slane %v1476, 4
        %1481 = vmatpush.bf16.xpose.msra.mxu0 0
        %1482 = vmatpush.bf16.xpose.msra.mxu0 0
        %1483 = vmatpush.bf16.xpose.msra.mxu0 0
        %1484 = vmatpush.bf16.xpose.msra.mxu0 0
        %1485 = vmatpush.bf16.xpose.msra.mxu0 0
        %1486 = vmatpush.bf16.xpose.msra.mxu0 0
        %1487 = vmatpush.bf16.xpose.msra.mxu0 0
        %1488 = vmatpush.bf16.xpose.msra.mxu0 %v1467
        %1489 = vmatmul.bf16.gmra.mxu0 %v1459
        %v1490 = vpop.f32.mrf.mxu0
        %v1491 = vadd.f32 0.0, %v1490
        %v1492 = vpop.f32.mrf.mxu0
        %1493 = vdwg.mxu0
        %1494 = vmatpush.bf16.xpose.msra.mxu0 0
        %1495 = vmatpush.bf16.xpose.msra.mxu0 0
        %1496 = vmatpush.bf16.xpose.msra.mxu0 0
        %1497 = vmatpush.bf16.xpose.msra.mxu0 0
        %1498 = vmatpush.bf16.xpose.msra.mxu0 0
        %1499 = vmatpush.bf16.xpose.msra.mxu0 0
        %1500 = vmatpush.bf16.xpose.msra.mxu0 0
        %1501 = vmatpush.bf16.xpose.msra.mxu0 %v1470
        %1502 = vmatmul.bf16.gmra.mxu0 %v1462
        %v1503 = vpop.f32.mrf.mxu0
        %v1504 = vadd.f32 0.0, %v1503
        %v1505 = vpop.f32.mrf.mxu0
        %1506 = vdwg.mxu0
        %1507 = vmatpush.bf16.xpose.msra.mxu0 0
        %1508 = vmatpush.bf16.xpose.msra.mxu0 0
        %1509 = vmatpush.bf16.xpose.msra.mxu0 0
        %1510 = vmatpush.bf16.xpose.msra.mxu0 0
        %1511 = vmatpush.bf16.xpose.msra.mxu0 0
        %1512 = vmatpush.bf16.xpose.msra.mxu0 0
        %1513 = vmatpush.bf16.xpose.msra.mxu0 0
        %1514 = vmatpush.bf16.xpose.msra.mxu0 %v1468
        %1515 = vmatmul.bf16.gmra.mxu0 %v1460
        %v1516 = vpop.f32.mrf.mxu0
        %v1517 = vadd.f32 0.0, %v1516
        %v1518 = vpop.f32.mrf.mxu0
        %1519 = vdwg.mxu0
        %1520 = vmatpush.bf16.xpose.msra.mxu0 0
        %1521 = vmatpush.bf16.xpose.msra.mxu0 0
        %1522 = vmatpush.bf16.xpose.msra.mxu0 0
        %1523 = vmatpush.bf16.xpose.msra.mxu0 0
        %1524 = vmatpush.bf16.xpose.msra.mxu0 0
        %1525 = vmatpush.bf16.xpose.msra.mxu0 0
        %1526 = vmatpush.bf16.xpose.msra.mxu0 0
        %1527 = vmatpush.bf16.xpose.msra.mxu0 %v1473
        %1528 = vmatmul.bf16.gmra.mxu0 %v1465
        %v1529 = vpop.f32.mrf.mxu0
        %v1530 = vadd.f32 0.0, %v1529
        %v1531 = vpop.f32.mrf.mxu0
        %1532 = vdwg.mxu0
        %vm1533 = vcmask 64512
        %v1534 = vsel %vm1533, %v1491, -inf
        %1535 = vmax.xlane.f32.xlu0 %v1534
        %v1536 = vpop.xlane.xlu0 %1535
        %v1537 = vsel %vm1533, %v1504, -inf
        %1538 = vmax.xlane.f32.xlu0 %v1537
        %v1539 = vpop.xlane.xlu0 %1538
        %v1540 = vsel %vm1533, %v1517, -inf
        %1541 = vmax.xlane.f32.xlu0 %v1540
        %v1542 = vpop.xlane.xlu0 %1541
        %v1543 = vsel %vm1533, %v1530, -inf
        %1544 = vmax.xlane.f32.xlu0 %v1543
        %v1545 = vpop.xlane.xlu0 %1544
        %v1546 = vsub.f32 %v1491, %v1536
        %v1547 = vsub.f32 %v1504, %v1539
        %v1548 = vsub.f32 %v1517, %v1542
        %v1549 = vsub.f32 %v1530, %v1545
        %v1550 = vmul.f32 %v1546, 1.442695
        %v1551 = vpow.pop %v1550
        %v1552 = vmul.f32 %v1547, 1.442695
        %v1553 = vpow.pop %v1552
        %v1554 = vmul.f32 %v1548, 1.442695
        %v1555 = vpow.pop %v1554
        %v1556 = vmul.f32 %v1549, 1.442695
        %v1557 = vpow.pop %v1556
        %v1558 = vsel %vm1533, %v1551, 0.0
        %1559 = vadd.xlane.f32.xlu0 %v1558
        %v1560 = vpop.xlane.xlu0 %1559
        %v1561 = vsel %vm1533, %v1553, 0.0
        %1562 = vadd.xlane.f32.xlu0 %v1561
        %v1563 = vpop.xlane.xlu0 %1562
        %v1564 = vsel %vm1533, %v1555, 0.0
        %1565 = vadd.xlane.f32.xlu0 %v1564
        %v1566 = vpop.xlane.xlu0 %1565
        %v1567 = vsel %vm1533, %v1557, 0.0
        %1568 = vadd.xlane.f32.xlu0 %v1567
        %v1569 = vpop.xlane.xlu0 %1568
        %v1570 = vrcp.pop %v1560
        %v1571 = vrcp.pop %v1563
        %v1572 = vrcp.pop %v1566
        %v1573 = vrcp.pop %v1569
        %v1574 = vpack.c.bf16 %v1551, %v1551
        %v1575 = vpack.c.bf16 %v1553, %v1553
        %v1576 = vpack.c.bf16 %v1555, %v1555
        %v1577 = vpack.c.bf16 %v1557, %v1557
        %v1579 = vsel %vm1533, %v1574, 0
        %vm1581 = vcmask 1043456
        %v1583 = vsel %vm1581, %v1475, 0
        %1585 = vmatpush.bf16.msra.mxu0 0
        %1586 = vmatpush.bf16.msra.mxu0 0
        %1587 = vmatpush.bf16.msra.mxu0 0
        %1588 = vmatpush.bf16.msra.mxu0 0
        %1589 = vmatpush.bf16.msra.mxu0 0
        %1590 = vmatpush.bf16.msra.mxu0 0
        %1591 = vmatpush.bf16.msra.mxu0 0
        %1592 = vmatpush.bf16.msra.mxu0 %v1583
        %1593 = vmatmul.bf16.gmra.mxu0 %v1579
        %v1594 = vpop.f32.mrf.mxu0
        %v1595 = vadd.f32 0.0, %v1594
        %v1596 = vpop.f32.mrf.mxu0
        %1597 = vdwg.mxu0
        %v1599 = vsel %vm1533, %v1575, 0
        %v1602 = vsel %vm1581, %v1478, 0
        %1604 = vmatpush.bf16.msra.mxu0 0
        %1605 = vmatpush.bf16.msra.mxu0 0
        %1606 = vmatpush.bf16.msra.mxu0 0
        %1607 = vmatpush.bf16.msra.mxu0 0
        %1608 = vmatpush.bf16.msra.mxu0 0
        %1609 = vmatpush.bf16.msra.mxu0 0
        %1610 = vmatpush.bf16.msra.mxu0 0
        %1611 = vmatpush.bf16.msra.mxu0 %v1602
        %1612 = vmatmul.bf16.gmra.mxu0 %v1599
        %v1613 = vpop.f32.mrf.mxu0
        %v1614 = vadd.f32 0.0, %v1613
        %v1615 = vpop.f32.mrf.mxu0
        %1616 = vdwg.mxu0
        %v1618 = vsel %vm1533, %v1576, 0
        %v1621 = vsel %vm1581, %v1476, 0
        %1623 = vmatpush.bf16.msra.mxu0 0
        %1624 = vmatpush.bf16.msra.mxu0 0
        %1625 = vmatpush.bf16.msra.mxu0 0
        %1626 = vmatpush.bf16.msra.mxu0 0
        %1627 = vmatpush.bf16.msra.mxu0 0
        %1628 = vmatpush.bf16.msra.mxu0 0
        %1629 = vmatpush.bf16.msra.mxu0 0
        %1630 = vmatpush.bf16.msra.mxu0 %v1621
        %1631 = vmatmul.bf16.gmra.mxu0 %v1618
        %v1632 = vpop.f32.mrf.mxu0
        %v1633 = vadd.f32 0.0, %v1632
        %v1634 = vpop.f32.mrf.mxu0
        %1635 = vdwg.mxu0
        %v1637 = vsel %vm1533, %v1577, 0
        %v1640 = vsel %vm1581, %v1480, 0
        %1642 = vmatpush.bf16.msra.mxu0 0
        %1643 = vmatpush.bf16.msra.mxu0 0
        %1644 = vmatpush.bf16.msra.mxu0 0
        %1645 = vmatpush.bf16.msra.mxu0 0
        %1646 = vmatpush.bf16.msra.mxu0 0
        %1647 = vmatpush.bf16.msra.mxu0 0
        %1648 = vmatpush.bf16.msra.mxu0 0
        %1649 = vmatpush.bf16.msra.mxu0 %v1640
        %1650 = vmatmul.bf16.gmra.mxu0 %v1637
        %v1651 = vpop.f32.mrf.mxu0
        %v1652 = vadd.f32 0.0, %v1651
        %v1653 = vpop.f32.mrf.mxu0
        %1654 = vdwg.mxu0
        %v1655 = vmul.f32 %v1595, %v1570
        %v1656 = vmul.f32 %v1614, %v1571
        %v1657 = vmul.f32 %v1633, %v1572
        %v1658 = vmul.f32 %v1652, %v1573
        %v1659 = vpack.c.bf16 %v1655, %v1655
        %v1660 = vpack.c.bf16 %v1656, %v1656
        %v1661 = vpack.c.bf16 %v1657, %v1657
        %v1662 = vpack.c.bf16 %v1658, %v1658
        %v1665 = vrot.slane %v1661, 4
        %v1666 = vrot.slane %v1662, 4
        %v1669 = vsel %vm1581, %v1659, %v1665
        %v1673 = vsel %vm1581, %v1660, %v1666
        %v1675 = vld [vmem:[#allocation11] sm:$0xff]
        %v1676 = vld [vmem:[#allocation11 + $0x8] sm:$0xff]
        %v1677 = vld [vmem:[#allocation11 + $0x10] sm:$0xff]
        %v1678 = vld [vmem:[#allocation11 + $0x18] sm:$0xff]
        %v1679 = vld [vmem:[#allocation11 + $0x20] sm:$0xff]
        %v1680 = vld [vmem:[#allocation11 + $0x28] sm:$0xff]
        %v1681 = vld [vmem:[#allocation11 + $0x30] sm:$0xff]
        %v1682 = vld [vmem:[#allocation11 + $0x38] sm:$0xff]
        %v1683 = vld [vmem:[#allocation11 + $0x40] sm:$0xff]
        %v1684 = vld [vmem:[#allocation11 + $0x48] sm:$0xff]
        %v1685 = vld [vmem:[#allocation11 + $0x50] sm:$0xff]
        %v1686 = vld [vmem:[#allocation11 + $0x58] sm:$0xff]
        %v1687 = vld [vmem:[#allocation11 + $0x60] sm:$0xff]
        %v1688 = vld [vmem:[#allocation11 + $0x68] sm:$0xff]
        %v1689 = vld [vmem:[#allocation11 + $0x70] sm:$0xff]
        %v1690 = vld [vmem:[#allocation11 + $0x78] sm:$0xff]
        %v1691 = vld [vmem:[#allocation11 + $0x80] sm:$0xff]
        %v1692 = vld [vmem:[#allocation11 + $0x88] sm:$0xff]
        %v1693 = vld [vmem:[#allocation11 + $0x90] sm:$0xff]
        %v1694 = vld [vmem:[#allocation11 + $0x98] sm:$0xff]
        %v1695 = vld [vmem:[#allocation11 + $0xa0] sm:$0xff]
        %v1696 = vld [vmem:[#allocation11 + $0xa8] sm:$0xff]
        %v1697 = vld [vmem:[#allocation11 + $0xb0] sm:$0xff]
        %v1698 = vld [vmem:[#allocation11 + $0xb8] sm:$0xff]
        %v1699 = vld [vmem:[#allocation11 + $0xc0] sm:$0xff]
        %v1700 = vld [vmem:[#allocation11 + $0xc8] sm:$0xff]
        %v1701 = vld [vmem:[#allocation11 + $0xd0] sm:$0xff]
        %v1702 = vld [vmem:[#allocation11 + $0xd8] sm:$0xff]
        %v1703 = vld [vmem:[#allocation11 + $0xe0] sm:$0xff]
        %v1704 = vld [vmem:[#allocation11 + $0xe8] sm:$0xff]
        %v1705 = vld [vmem:[#allocation11 + $0xf0] sm:$0xff]
        %v1706 = vld [vmem:[#allocation11 + $0xf8] sm:$0xff]
        %v1707 = vld [vmem:[#allocation13] sm:$0x3]
        %v1709 = vperm.slane %v1707, 0
        %v1710 = vperm.slane %v1707, 1
        %v1745 = vunpack.c.l.b16 %v1675
        %v1746 = vunpack.c.h.b16 %v1675
        %v1747 = vunpack.c.l.b16 %v1676
        %v1748 = vunpack.c.h.b16 %v1676
        %v1749 = vunpack.c.l.b16 %v1677
        %v1750 = vunpack.c.h.b16 %v1677
        %v1751 = vunpack.c.l.b16 %v1678
        %v1752 = vunpack.c.h.b16 %v1678
        %v1753 = vunpack.c.l.b16 %v1679
        %v1754 = vunpack.c.h.b16 %v1679
        %v1755 = vunpack.c.l.b16 %v1680
        %v1756 = vunpack.c.h.b16 %v1680
        %v1757 = vunpack.c.l.b16 %v1681
        %v1758 = vunpack.c.h.b16 %v1681
        %v1759 = vunpack.c.l.b16 %v1682
        %v1760 = vunpack.c.h.b16 %v1682
        %v1761 = vunpack.c.l.b16 %v1683
        %v1762 = vunpack.c.h.b16 %v1683
        %v1763 = vunpack.c.l.b16 %v1684
        %v1764 = vunpack.c.h.b16 %v1684
        %v1765 = vunpack.c.l.b16 %v1685
        %v1766 = vunpack.c.h.b16 %v1685
        %v1767 = vunpack.c.l.b16 %v1686
        %v1768 = vunpack.c.h.b16 %v1686
        %v1769 = vunpack.c.l.b16 %v1687
        %v1770 = vunpack.c.h.b16 %v1687
        %v1771 = vunpack.c.l.b16 %v1688
        %v1772 = vunpack.c.h.b16 %v1688
        %v1773 = vunpack.c.l.b16 %v1689
        %v1774 = vunpack.c.h.b16 %v1689
        %v1775 = vunpack.c.l.b16 %v1690
        %v1776 = vunpack.c.h.b16 %v1690
        %v1777 = vunpack.c.l.b16 %v1691
        %v1778 = vunpack.c.h.b16 %v1691
        %v1779 = vunpack.c.l.b16 %v1692
        %v1780 = vunpack.c.h.b16 %v1692
        %v1781 = vunpack.c.l.b16 %v1693
        %v1782 = vunpack.c.h.b16 %v1693
        %v1783 = vunpack.c.l.b16 %v1694
        %v1784 = vunpack.c.h.b16 %v1694
        %v1785 = vunpack.c.l.b16 %v1695
        %v1786 = vunpack.c.h.b16 %v1695
        %v1787 = vunpack.c.l.b16 %v1696
        %v1788 = vunpack.c.h.b16 %v1696
        %v1789 = vunpack.c.l.b16 %v1697
        %v1790 = vunpack.c.h.b16 %v1697
        %v1791 = vunpack.c.l.b16 %v1698
        %v1792 = vunpack.c.h.b16 %v1698
        %v1793 = vunpack.c.l.b16 %v1699
        %v1794 = vunpack.c.h.b16 %v1699
        %v1795 = vunpack.c.l.b16 %v1700
        %v1796 = vunpack.c.h.b16 %v1700
        %v1797 = vunpack.c.l.b16 %v1701
        %v1798 = vunpack.c.h.b16 %v1701
        %v1799 = vunpack.c.l.b16 %v1702
        %v1800 = vunpack.c.h.b16 %v1702
        %v1801 = vunpack.c.l.b16 %v1703
        %v1802 = vunpack.c.h.b16 %v1703
        %v1803 = vunpack.c.l.b16 %v1704
        %v1804 = vunpack.c.h.b16 %v1704
        %v1805 = vunpack.c.l.b16 %v1705
        %v1806 = vunpack.c.h.b16 %v1705
        %v1807 = vunpack.c.l.b16 %v1706
        %v1808 = vunpack.c.h.b16 %v1706
        %v1809 = vpack.c.b16 %v1747, %v1745
        %v1810 = vpack.c.b16 %v1748, %v1746
        %v1811 = vpack.c.b16 %v1751, %v1749
        %v1812 = vpack.c.b16 %v1752, %v1750
        %v1813 = vpack.c.b16 %v1755, %v1753
        %v1814 = vpack.c.b16 %v1756, %v1754
        %v1815 = vpack.c.b16 %v1759, %v1757
        %v1816 = vpack.c.b16 %v1760, %v1758
        %v1817 = vpack.c.b16 %v1763, %v1761
        %v1818 = vpack.c.b16 %v1764, %v1762
        %v1819 = vpack.c.b16 %v1767, %v1765
        %v1820 = vpack.c.b16 %v1768, %v1766
        %v1821 = vpack.c.b16 %v1771, %v1769
        %v1822 = vpack.c.b16 %v1772, %v1770
        %v1823 = vpack.c.b16 %v1775, %v1773
        %v1824 = vpack.c.b16 %v1776, %v1774
        %v1825 = vpack.c.b16 %v1779, %v1777
        %v1826 = vpack.c.b16 %v1780, %v1778
        %v1827 = vpack.c.b16 %v1783, %v1781
        %v1828 = vpack.c.b16 %v1784, %v1782
        %v1829 = vpack.c.b16 %v1787, %v1785
        %v1830 = vpack.c.b16 %v1788, %v1786
        %v1831 = vpack.c.b16 %v1791, %v1789
        %v1832 = vpack.c.b16 %v1792, %v1790
        %v1833 = vpack.c.b16 %v1795, %v1793
        %v1834 = vpack.c.b16 %v1796, %v1794
        %v1835 = vpack.c.b16 %v1799, %v1797
        %v1836 = vpack.c.b16 %v1800, %v1798
        %v1837 = vpack.c.b16 %v1803, %v1801
        %v1838 = vpack.c.b16 %v1804, %v1802
        %v1839 = vpack.c.b16 %v1807, %v1805
        %v1840 = vpack.c.b16 %v1808, %v1806
        %1873 = vmatpush.bf16.msra.mxu0 %v1823
        %1874 = vmatpush.bf16.msra.mxu0 %v1821
        %1875 = vmatpush.bf16.msra.mxu0 %v1819
        %1876 = vmatpush.bf16.msra.mxu0 %v1817
        %1877 = vmatpush.bf16.msra.mxu0 %v1815
        %1878 = vmatpush.bf16.msra.mxu0 %v1813
        %1879 = vmatpush.bf16.msra.mxu0 %v1811
        %1880 = vmatpush.bf16.msra.mxu0 %v1809
        %1881 = vmatmul.bf16.gmra.mxu0 %v1669
        %v1882 = vpop.f32.mrf.mxu0
        %v1883 = vadd.f32 %v1709, %v1882
        %v1884 = vpop.f32.mrf.mxu0
        %v1885 = vadd.f32 %v1709, %v1884
        %1886 = vdwg.mxu0
        %1887 = vmatpush.bf16.msra.mxu0 %v1839
        %1888 = vmatpush.bf16.msra.mxu0 %v1837
        %1889 = vmatpush.bf16.msra.mxu0 %v1835
        %1890 = vmatpush.bf16.msra.mxu0 %v1833
        %1891 = vmatpush.bf16.msra.mxu0 %v1831
        %1892 = vmatpush.bf16.msra.mxu0 %v1829
        %1893 = vmatpush.bf16.msra.mxu0 %v1827
        %1894 = vmatpush.bf16.msra.mxu0 %v1825
        %1895 = vmatmul.bf16.gmra.mxu0 %v1673
        %v1896 = vpop.f32.mrf.mxu0
        %v1897 = vadd.f32 %v1883, %v1896
        %v1898 = vpop.f32.mrf.mxu0
        %v1899 = vadd.f32 %v1885, %v1898
        %1900 = vdwg.mxu0
        %1901 = vmatpush.bf16.msra.mxu0 %v1824
        %1902 = vmatpush.bf16.msra.mxu0 %v1822
        %1903 = vmatpush.bf16.msra.mxu0 %v1820
        %1904 = vmatpush.bf16.msra.mxu0 %v1818
        %1905 = vmatpush.bf16.msra.mxu0 %v1816
        %1906 = vmatpush.bf16.msra.mxu0 %v1814
        %1907 = vmatpush.bf16.msra.mxu0 %v1812
        %1908 = vmatpush.bf16.msra.mxu0 %v1810
        %1909 = vmatmul.bf16.gmra.mxu0 %v1669
        %v1910 = vpop.f32.mrf.mxu0
        %v1911 = vadd.f32 %v1710, %v1910
        %v1912 = vpop.f32.mrf.mxu0
        %v1913 = vadd.f32 %v1710, %v1912
        %1914 = vdwg.mxu0
        %1915 = vmatpush.bf16.msra.mxu0 %v1840
        %1916 = vmatpush.bf16.msra.mxu0 %v1838
        %1917 = vmatpush.bf16.msra.mxu0 %v1836
        %1918 = vmatpush.bf16.msra.mxu0 %v1834
        %1919 = vmatpush.bf16.msra.mxu0 %v1832
        %1920 = vmatpush.bf16.msra.mxu0 %v1830
        %1921 = vmatpush.bf16.msra.mxu0 %v1828
        %1922 = vmatpush.bf16.msra.mxu0 %v1826
        %1923 = vmatmul.bf16.gmra.mxu0 %v1673
        %v1924 = vpop.f32.mrf.mxu0
        %v1925 = vadd.f32 %v1911, %v1924
        %v1926 = vpop.f32.mrf.mxu0
        %v1927 = vadd.f32 %v1913, %v1926
        %1928 = vdwg.mxu0
        %v1929 = vadd.f32 %v618, %v1897
        %v1930 = vadd.f32 %v619, %v1925
        %v1931 = vadd.f32 %v620, %v1899
        %v1932 = vadd.f32 %v621, %v1927
        %v1933 = vld [vmem:[#allocation14] sm:$0x3]
        %v1934 = vld [vmem:[#allocation16] sm:$0x3]
        %v1935 = vadd.f32 %v1929, %v1930
        %1936 = vadd.xlane.f32.xlu0 %v1935
        %v1937 = vpop.xlane.xlu0 %1936
        %v1938 = vadd.f32 %v1931, %v1932
        %1939 = vadd.xlane.f32.xlu0 %v1938
        %v1940 = vpop.xlane.xlu0 %1939
        %v1941 = vmul.f32 %v1937, %v636
        %v1942 = vmul.f32 %v1940, %v636
        %v1943 = vsub.f32 %v1929, %v1941
        %v1944 = vsub.f32 %v1930, %v1941
        %v1945 = vsub.f32 %v1931, %v1942
        %v1946 = vsub.f32 %v1932, %v1942
        %v1947 = vmul.f32 %v1943, %v1943
        %v1948 = vmul.f32 %v1944, %v1944
        %v1949 = vmul.f32 %v1945, %v1945
        %v1950 = vmul.f32 %v1946, %v1946
        %v1951 = vadd.f32 %v1947, %v1948
        %1952 = vadd.xlane.f32.xlu0 %v1951
        %v1953 = vpop.xlane.xlu0 %1952
        %v1954 = vadd.f32 %v1949, %v1950
        %1955 = vadd.xlane.f32.xlu0 %v1954
        %v1956 = vpop.xlane.xlu0 %1955
        %v1957 = vmul.f32 %v1953, %v636
        %v1958 = vmul.f32 %v1956, %v636
        %v1959 = vadd.f32 %v1957, 1e-05
        %v1960 = vadd.f32 %v1958, 1e-05
        %v1961 = vrsqrt.pop %v1959
        %v1962 = vmul.f32 %v1961, %v1959
        %v1963 = vmul.f32 %v1962, %v1961
        %v1964 = vmul.f32 0.5, %v1963
        %v1965 = vsub.f32 1.5, %v1964
        %v1966 = vmul.f32 %v1961, %v1965
        %vm1967 = vweird.f32 %v1959
        %vm1968 = vweird.f32 %v1961
        %vm1969 = vmor %vm1967, %vm1968
        %v1970 = vsel %vm1969, %v1961, %v1966
        %v1971 = vrsqrt.pop %v1960
        %v1972 = vmul.f32 %v1971, %v1960
        %v1973 = vmul.f32 %v1972, %v1971
        %v1974 = vmul.f32 0.5, %v1973
        %v1975 = vsub.f32 1.5, %v1974
        %v1976 = vmul.f32 %v1971, %v1975
        %vm1977 = vweird.f32 %v1960
        %vm1978 = vweird.f32 %v1971
        %vm1979 = vmor %vm1977, %vm1978
        %v1980 = vsel %vm1979, %v1971, %v1976
        %v1981 = vmul.f32 %v1943, %v1970
        %v1982 = vmul.f32 %v1944, %v1970
        %v1983 = vmul.f32 %v1945, %v1980
        %v1984 = vmul.f32 %v1946, %v1980
        %v1986 = vperm.slane %v1933, 0
        %v1987 = vperm.slane %v1933, 1
        %v1990 = vmul.f32 %v1981, %v1986
        %v1991 = vmul.f32 %v1982, %v1987
        %v1992 = vmul.f32 %v1983, %v1986
        %v1993 = vmul.f32 %v1984, %v1987
        %v1995 = vperm.slane %v1934, 0
        %v1996 = vperm.slane %v1934, 1
        %v1999 = vadd.f32 %v1990, %v1995
        %v2000 = vadd.f32 %v1991, %v1996
        %v2001 = vadd.f32 %v1992, %v1995
        %v2002 = vadd.f32 %v1993, %v1996
        %v2003 = vpack.c.bf16 %v2001, %v1999
        %v2004 = vpack.c.bf16 %v2002, %v2000
        %v2005 = vld [vmem:[#allocation17] sm:$0xff]
        %v2006 = vld [vmem:[#allocation17 + $0x8] sm:$0xff]
        %v2007 = vld [vmem:[#allocation17 + $0x10] sm:$0xff]
        %v2008 = vld [vmem:[#allocation17 + $0x18] sm:$0xff]
        %v2009 = vld [vmem:[#allocation17 + $0x20] sm:$0xff]
        %v2010 = vld [vmem:[#allocation17 + $0x28] sm:$0xff]
        %v2011 = vld [vmem:[#allocation17 + $0x30] sm:$0xff]
        %v2012 = vld [vmem:[#allocation17 + $0x38] sm:$0xff]
        %v2013 = vld [vmem:[#allocation17 + $0x40] sm:$0xff]
        %v2014 = vld [vmem:[#allocation17 + $0x48] sm:$0xff]
        %v2015 = vld [vmem:[#allocation17 + $0x50] sm:$0xff]
        %v2016 = vld [vmem:[#allocation17 + $0x58] sm:$0xff]
        %v2017 = vld [vmem:[#allocation17 + $0x60] sm:$0xff]
        %v2018 = vld [vmem:[#allocation17 + $0x68] sm:$0xff]
        %v2019 = vld [vmem:[#allocation17 + $0x70] sm:$0xff]
        %v2020 = vld [vmem:[#allocation17 + $0x78] sm:$0xff]
        %v2021 = vld [vmem:[#allocation17 + $0x80] sm:$0xff]
        %v2022 = vld [vmem:[#allocation17 + $0x88] sm:$0xff]
        %v2023 = vld [vmem:[#allocation17 + $0x90] sm:$0xff]
        %v2024 = vld [vmem:[#allocation17 + $0x98] sm:$0xff]
        %v2025 = vld [vmem:[#allocation17 + $0xa0] sm:$0xff]
        %v2026 = vld [vmem:[#allocation17 + $0xa8] sm:$0xff]
        %v2027 = vld [vmem:[#allocation17 + $0xb0] sm:$0xff]
        %v2028 = vld [vmem:[#allocation17 + $0xb8] sm:$0xff]
        %v2029 = vld [vmem:[#allocation17 + $0xc0] sm:$0xff]
        %v2030 = vld [vmem:[#allocation17 + $0xc8] sm:$0xff]
        %v2031 = vld [vmem:[#allocation17 + $0xd0] sm:$0xff]
        %v2032 = vld [vmem:[#allocation17 + $0xd8] sm:$0xff]
        %v2033 = vld [vmem:[#allocation17 + $0xe0] sm:$0xff]
        %v2034 = vld [vmem:[#allocation17 + $0xe8] sm:$0xff]
        %v2035 = vld [vmem:[#allocation17 + $0xf0] sm:$0xff]
        %v2036 = vld [vmem:[#allocation17 + $0xf8] sm:$0xff]
        %v2037 = vld [vmem:[#allocation17 + $0x100] sm:$0xff]
        %v2038 = vld [vmem:[#allocation17 + $0x108] sm:$0xff]
        %v2039 = vld [vmem:[#allocation17 + $0x110] sm:$0xff]
        %v2040 = vld [vmem:[#allocation17 + $0x118] sm:$0xff]
        %v2041 = vld [vmem:[#allocation17 + $0x120] sm:$0xff]
        %v2042 = vld [vmem:[#allocation17 + $0x128] sm:$0xff]
        %v2043 = vld [vmem:[#allocation17 + $0x130] sm:$0xff]
        %v2044 = vld [vmem:[#allocation17 + $0x138] sm:$0xff]
        %v2045 = vld [vmem:[#allocation17 + $0x140] sm:$0xff]
        %v2046 = vld [vmem:[#allocation17 + $0x148] sm:$0xff]
        %v2047 = vld [vmem:[#allocation17 + $0x150] sm:$0xff]
        %v2048 = vld [vmem:[#allocation17 + $0x158] sm:$0xff]
        %v2049 = vld [vmem:[#allocation17 + $0x160] sm:$0xff]
        %v2050 = vld [vmem:[#allocation17 + $0x168] sm:$0xff]
        %v2051 = vld [vmem:[#allocation17 + $0x170] sm:$0xff]
        %v2052 = vld [vmem:[#allocation17 + $0x178] sm:$0xff]
        %v2053 = vld [vmem:[#allocation17 + $0x180] sm:$0xff]
        %v2054 = vld [vmem:[#allocation17 + $0x188] sm:$0xff]
        %v2055 = vld [vmem:[#allocation17 + $0x190] sm:$0xff]
        %v2056 = vld [vmem:[#allocation17 + $0x198] sm:$0xff]
        %v2057 = vld [vmem:[#allocation17 + $0x1a0] sm:$0xff]
        %v2058 = vld [vmem:[#allocation17 + $0x1a8] sm:$0xff]
        %v2059 = vld [vmem:[#allocation17 + $0x1b0] sm:$0xff]
        %v2060 = vld [vmem:[#allocation17 + $0x1b8] sm:$0xff]
        %v2061 = vld [vmem:[#allocation17 + $0x1c0] sm:$0xff]
        %v2062 = vld [vmem:[#allocation17 + $0x1c8] sm:$0xff]
        %v2063 = vld [vmem:[#allocation17 + $0x1d0] sm:$0xff]
        %v2064 = vld [vmem:[#allocation17 + $0x1d8] sm:$0xff]
        %v2065 = vld [vmem:[#allocation17 + $0x1e0] sm:$0xff]
        %v2066 = vld [vmem:[#allocation17 + $0x1e8] sm:$0xff]
        %v2067 = vld [vmem:[#allocation17 + $0x1f0] sm:$0xff]
        %v2068 = vld [vmem:[#allocation17 + $0x1f8] sm:$0xff]
        %v2069 = vld [vmem:[#allocation17 + $0x200] sm:$0xff]
        %v2070 = vld [vmem:[#allocation17 + $0x208] sm:$0xff]
        %v2071 = vld [vmem:[#allocation17 + $0x210] sm:$0xff]
        %v2072 = vld [vmem:[#allocation17 + $0x218] sm:$0xff]
        %v2073 = vld [vmem:[#allocation17 + $0x220] sm:$0xff]
        %v2074 = vld [vmem:[#allocation17 + $0x228] sm:$0xff]
        %v2075 = vld [vmem:[#allocation17 + $0x230] sm:$0xff]
        %v2076 = vld [vmem:[#allocation17 + $0x238] sm:$0xff]
        %v2077 = vld [vmem:[#allocation17 + $0x240] sm:$0xff]
        %v2078 = vld [vmem:[#allocation17 + $0x248] sm:$0xff]
        %v2079 = vld [vmem:[#allocation17 + $0x250] sm:$0xff]
        %v2080 = vld [vmem:[#allocation17 + $0x258] sm:$0xff]
        %v2081 = vld [vmem:[#allocation17 + $0x260] sm:$0xff]
        %v2082 = vld [vmem:[#allocation17 + $0x268] sm:$0xff]
        %v2083 = vld [vmem:[#allocation17 + $0x270] sm:$0xff]
        %v2084 = vld [vmem:[#allocation17 + $0x278] sm:$0xff]
        %v2085 = vld [vmem:[#allocation17 + $0x280] sm:$0xff]
        %v2086 = vld [vmem:[#allocation17 + $0x288] sm:$0xff]
        %v2087 = vld [vmem:[#allocation17 + $0x290] sm:$0xff]
        %v2088 = vld [vmem:[#allocation17 + $0x298] sm:$0xff]
        %v2089 = vld [vmem:[#allocation17 + $0x2a0] sm:$0xff]
        %v2090 = vld [vmem:[#allocation17 + $0x2a8] sm:$0xff]
        %v2091 = vld [vmem:[#allocation17 + $0x2b0] sm:$0xff]
        %v2092 = vld [vmem:[#allocation17 + $0x2b8] sm:$0xff]
        %v2093 = vld [vmem:[#allocation17 + $0x2c0] sm:$0xff]
        %v2094 = vld [vmem:[#allocation17 + $0x2c8] sm:$0xff]
        %v2095 = vld [vmem:[#allocation17 + $0x2d0] sm:$0xff]
        %v2096 = vld [vmem:[#allocation17 + $0x2d8] sm:$0xff]
        %v2097 = vld [vmem:[#allocation17 + $0x2e0] sm:$0xff]
        %v2098 = vld [vmem:[#allocation17 + $0x2e8] sm:$0xff]
        %v2099 = vld [vmem:[#allocation17 + $0x2f0] sm:$0xff]
        %v2100 = vld [vmem:[#allocation17 + $0x2f8] sm:$0xff]
        %v2101 = vld [vmem:[#allocation17 + $0x300] sm:$0xff]
        %v2102 = vld [vmem:[#allocation17 + $0x308] sm:$0xff]
        %v2103 = vld [vmem:[#allocation17 + $0x310] sm:$0xff]
        %v2104 = vld [vmem:[#allocation17 + $0x318] sm:$0xff]
        %v2105 = vld [vmem:[#allocation17 + $0x320] sm:$0xff]
        %v2106 = vld [vmem:[#allocation17 + $0x328] sm:$0xff]
        %v2107 = vld [vmem:[#allocation17 + $0x330] sm:$0xff]
        %v2108 = vld [vmem:[#allocation17 + $0x338] sm:$0xff]
        %v2109 = vld [vmem:[#allocation17 + $0x340] sm:$0xff]
        %v2110 = vld [vmem:[#allocation17 + $0x348] sm:$0xff]
        %v2111 = vld [vmem:[#allocation17 + $0x350] sm:$0xff]
        %v2112 = vld [vmem:[#allocation17 + $0x358] sm:$0xff]
        %v2113 = vld [vmem:[#allocation17 + $0x360] sm:$0xff]
        %v2114 = vld [vmem:[#allocation17 + $0x368] sm:$0xff]
        %v2115 = vld [vmem:[#allocation17 + $0x370] sm:$0xff]
        %v2116 = vld [vmem:[#allocation17 + $0x378] sm:$0xff]
        %v2117 = vld [vmem:[#allocation17 + $0x380] sm:$0xff]
        %v2118 = vld [vmem:[#allocation17 + $0x388] sm:$0xff]
        %v2119 = vld [vmem:[#allocation17 + $0x390] sm:$0xff]
        %v2120 = vld [vmem:[#allocation17 + $0x398] sm:$0xff]
        %v2121 = vld [vmem:[#allocation17 + $0x3a0] sm:$0xff]
        %v2122 = vld [vmem:[#allocation17 + $0x3a8] sm:$0xff]
        %v2123 = vld [vmem:[#allocation17 + $0x3b0] sm:$0xff]
        %v2124 = vld [vmem:[#allocation17 + $0x3b8] sm:$0xff]
        %v2125 = vld [vmem:[#allocation17 + $0x3c0] sm:$0xff]
        %v2126 = vld [vmem:[#allocation17 + $0x3c8] sm:$0xff]
        %v2127 = vld [vmem:[#allocation17 + $0x3d0] sm:$0xff]
        %v2128 = vld [vmem:[#allocation17 + $0x3d8] sm:$0xff]
        %v2129 = vld [vmem:[#allocation17 + $0x3e0] sm:$0xff]
        %v2130 = vld [vmem:[#allocation17 + $0x3e8] sm:$0xff]
        %v2131 = vld [vmem:[#allocation17 + $0x3f0] sm:$0xff]
        %v2132 = vld [vmem:[#allocation17 + $0x3f8] sm:$0xff]
        %v2133 = vld [vmem:[%s10] sm:$0xff]
        %v2135 = vperm.slane %v2133, 0
        %v2136 = vperm.slane %v2133, 1
        %v2137 = vperm.slane %v2133, 2
        %v2138 = vperm.slane %v2133, 3
        %v2139 = vperm.slane %v2133, 4
        %v2140 = vperm.slane %v2133, 5
        %v2141 = vperm.slane %v2133, 6
        %v2142 = vperm.slane %v2133, 7
        %v2279 = vunpack.c.l.b16 %v2005
        %v2280 = vunpack.c.h.b16 %v2005
        %v2281 = vunpack.c.l.b16 %v2006
        %v2282 = vunpack.c.h.b16 %v2006
        %v2283 = vunpack.c.l.b16 %v2007
        %v2284 = vunpack.c.h.b16 %v2007
        %v2285 = vunpack.c.l.b16 %v2008
        %v2286 = vunpack.c.h.b16 %v2008
        %v2287 = vunpack.c.l.b16 %v2009
        %v2288 = vunpack.c.h.b16 %v2009
        %v2289 = vunpack.c.l.b16 %v2010
        %v2290 = vunpack.c.h.b16 %v2010
        %v2291 = vunpack.c.l.b16 %v2011
        %v2292 = vunpack.c.h.b16 %v2011
        %v2293 = vunpack.c.l.b16 %v2012
        %v2294 = vunpack.c.h.b16 %v2012
        %v2295 = vunpack.c.l.b16 %v2013
        %v2296 = vunpack.c.h.b16 %v2013
        %v2297 = vunpack.c.l.b16 %v2014
        %v2298 = vunpack.c.h.b16 %v2014
        %v2299 = vunpack.c.l.b16 %v2015
        %v2300 = vunpack.c.h.b16 %v2015
        %v2301 = vunpack.c.l.b16 %v2016
        %v2302 = vunpack.c.h.b16 %v2016
        %v2303 = vunpack.c.l.b16 %v2017
        %v2304 = vunpack.c.h.b16 %v2017
        %v2305 = vunpack.c.l.b16 %v2018
        %v2306 = vunpack.c.h.b16 %v2018
        %v2307 = vunpack.c.l.b16 %v2019
        %v2308 = vunpack.c.h.b16 %v2019
        %v2309 = vunpack.c.l.b16 %v2020
        %v2310 = vunpack.c.h.b16 %v2020
        %v2311 = vunpack.c.l.b16 %v2021
        %v2312 = vunpack.c.h.b16 %v2021
        %v2313 = vunpack.c.l.b16 %v2022
        %v2314 = vunpack.c.h.b16 %v2022
        %v2315 = vunpack.c.l.b16 %v2023
        %v2316 = vunpack.c.h.b16 %v2023
        %v2317 = vunpack.c.l.b16 %v2024
        %v2318 = vunpack.c.h.b16 %v2024
        %v2319 = vunpack.c.l.b16 %v2025
        %v2320 = vunpack.c.h.b16 %v2025
        %v2321 = vunpack.c.l.b16 %v2026
        %v2322 = vunpack.c.h.b16 %v2026
        %v2323 = vunpack.c.l.b16 %v2027
        %v2324 = vunpack.c.h.b16 %v2027
        %v2325 = vunpack.c.l.b16 %v2028
        %v2326 = vunpack.c.h.b16 %v2028
        %v2327 = vunpack.c.l.b16 %v2029
        %v2328 = vunpack.c.h.b16 %v2029
        %v2329 = vunpack.c.l.b16 %v2030
        %v2330 = vunpack.c.h.b16 %v2030
        %v2331 = vunpack.c.l.b16 %v2031
        %v2332 = vunpack.c.h.b16 %v2031
        %v2333 = vunpack.c.l.b16 %v2032
        %v2334 = vunpack.c.h.b16 %v2032
        %v2335 = vunpack.c.l.b16 %v2033
        %v2336 = vunpack.c.h.b16 %v2033
        %v2337 = vunpack.c.l.b16 %v2034
        %v2338 = vunpack.c.h.b16 %v2034
        %v2339 = vunpack.c.l.b16 %v2035
        %v2340 = vunpack.c.h.b16 %v2035
        %v2341 = vunpack.c.l.b16 %v2036
        %v2342 = vunpack.c.h.b16 %v2036
        %v2343 = vunpack.c.l.b16 %v2037
        %v2344 = vunpack.c.h.b16 %v2037
        %v2345 = vunpack.c.l.b16 %v2038
        %v2346 = vunpack.c.h.b16 %v2038
        %v2347 = vunpack.c.l.b16 %v2039
        %v2348 = vunpack.c.h.b16 %v2039
        %v2349 = vunpack.c.l.b16 %v2040
        %v2350 = vunpack.c.h.b16 %v2040
        %v2351 = vunpack.c.l.b16 %v2041
        %v2352 = vunpack.c.h.b16 %v2041
        %v2353 = vunpack.c.l.b16 %v2042
        %v2354 = vunpack.c.h.b16 %v2042
        %v2355 = vunpack.c.l.b16 %v2043
        %v2356 = vunpack.c.h.b16 %v2043
        %v2357 = vunpack.c.l.b16 %v2044
        %v2358 = vunpack.c.h.b16 %v2044
        %v2359 = vunpack.c.l.b16 %v2045
        %v2360 = vunpack.c.h.b16 %v2045
        %v2361 = vunpack.c.l.b16 %v2046
        %v2362 = vunpack.c.h.b16 %v2046
        %v2363 = vunpack.c.l.b16 %v2047
        %v2364 = vunpack.c.h.b16 %v2047
        %v2365 = vunpack.c.l.b16 %v2048
        %v2366 = vunpack.c.h.b16 %v2048
        %v2367 = vunpack.c.l.b16 %v2049
        %v2368 = vunpack.c.h.b16 %v2049
        %v2369 = vunpack.c.l.b16 %v2050
        %v2370 = vunpack.c.h.b16 %v2050
        %v2371 = vunpack.c.l.b16 %v2051
        %v2372 = vunpack.c.h.b16 %v2051
        %v2373 = vunpack.c.l.b16 %v2052
        %v2374 = vunpack.c.h.b16 %v2052
        %v2375 = vunpack.c.l.b16 %v2053
        %v2376 = vunpack.c.h.b16 %v2053
        %v2377 = vunpack.c.l.b16 %v2054
        %v2378 = vunpack.c.h.b16 %v2054
        %v2379 = vunpack.c.l.b16 %v2055
        %v2380 = vunpack.c.h.b16 %v2055
        %v2381 = vunpack.c.l.b16 %v2056
        %v2382 = vunpack.c.h.b16 %v2056
        %v2383 = vunpack.c.l.b16 %v2057
        %v2384 = vunpack.c.h.b16 %v2057
        %v2385 = vunpack.c.l.b16 %v2058
        %v2386 = vunpack.c.h.b16 %v2058
        %v2387 = vunpack.c.l.b16 %v2059
        %v2388 = vunpack.c.h.b16 %v2059
        %v2389 = vunpack.c.l.b16 %v2060
        %v2390 = vunpack.c.h.b16 %v2060
        %v2391 = vunpack.c.l.b16 %v2061
        %v2392 = vunpack.c.h.b16 %v2061
        %v2393 = vunpack.c.l.b16 %v2062
        %v2394 = vunpack.c.h.b16 %v2062
        %v2395 = vunpack.c.l.b16 %v2063
        %v2396 = vunpack.c.h.b16 %v2063
        %v2397 = vunpack.c.l.b16 %v2064
        %v2398 = vunpack.c.h.b16 %v2064
        %v2399 = vunpack.c.l.b16 %v2065
        %v2400 = vunpack.c.h.b16 %v2065
        %v2401 = vunpack.c.l.b16 %v2066
        %v2402 = vunpack.c.h.b16 %v2066
        %v2403 = vunpack.c.l.b16 %v2067
        %v2404 = vunpack.c.h.b16 %v2067
        %v2405 = vunpack.c.l.b16 %v2068
        %v2406 = vunpack.c.h.b16 %v2068
        %v2407 = vunpack.c.l.b16 %v2069
        %v2408 = vunpack.c.h.b16 %v2069
        %v2409 = vunpack.c.l.b16 %v2070
        %v2410 = vunpack.c.h.b16 %v2070
        %v2411 = vunpack.c.l.b16 %v2071
        %v2412 = vunpack.c.h.b16 %v2071
        %v2413 = vunpack.c.l.b16 %v2072
        %v2414 = vunpack.c.h.b16 %v2072
        %v2415 = vunpack.c.l.b16 %v2073
        %v2416 = vunpack.c.h.b16 %v2073
        %v2417 = vunpack.c.l.b16 %v2074
        %v2418 = vunpack.c.h.b16 %v2074
        %v2419 = vunpack.c.l.b16 %v2075
        %v2420 = vunpack.c.h.b16 %v2075
        %v2421 = vunpack.c.l.b16 %v2076
        %v2422 = vunpack.c.h.b16 %v2076
        %v2423 = vunpack.c.l.b16 %v2077
        %v2424 = vunpack.c.h.b16 %v2077
        %v2425 = vunpack.c.l.b16 %v2078
        %v2426 = vunpack.c.h.b16 %v2078
        %v2427 = vunpack.c.l.b16 %v2079
        %v2428 = vunpack.c.h.b16 %v2079
        %v2429 = vunpack.c.l.b16 %v2080
        %v2430 = vunpack.c.h.b16 %v2080
        %v2431 = vunpack.c.l.b16 %v2081
        %v2432 = vunpack.c.h.b16 %v2081
        %v2433 = vunpack.c.l.b16 %v2082
        %v2434 = vunpack.c.h.b16 %v2082
        %v2435 = vunpack.c.l.b16 %v2083
        %v2436 = vunpack.c.h.b16 %v2083
        %v2437 = vunpack.c.l.b16 %v2084
        %v2438 = vunpack.c.h.b16 %v2084
        %v2439 = vunpack.c.l.b16 %v2085
        %v2440 = vunpack.c.h.b16 %v2085
        %v2441 = vunpack.c.l.b16 %v2086
        %v2442 = vunpack.c.h.b16 %v2086
        %v2443 = vunpack.c.l.b16 %v2087
        %v2444 = vunpack.c.h.b16 %v2087
        %v2445 = vunpack.c.l.b16 %v2088
        %v2446 = vunpack.c.h.b16 %v2088
        %v2447 = vunpack.c.l.b16 %v2089
        %v2448 = vunpack.c.h.b16 %v2089
        %v2449 = vunpack.c.l.b16 %v2090
        %v2450 = vunpack.c.h.b16 %v2090
        %v2451 = vunpack.c.l.b16 %v2091
        %v2452 = vunpack.c.h.b16 %v2091
        %v2453 = vunpack.c.l.b16 %v2092
        %v2454 = vunpack.c.h.b16 %v2092
        %v2455 = vunpack.c.l.b16 %v2093
        %v2456 = vunpack.c.h.b16 %v2093
        %v2457 = vunpack.c.l.b16 %v2094
        %v2458 = vunpack.c.h.b16 %v2094
        %v2459 = vunpack.c.l.b16 %v2095
        %v2460 = vunpack.c.h.b16 %v2095
        %v2461 = vunpack.c.l.b16 %v2096
        %v2462 = vunpack.c.h.b16 %v2096
        %v2463 = vunpack.c.l.b16 %v2097
        %v2464 = vunpack.c.h.b16 %v2097
        %v2465 = vunpack.c.l.b16 %v2098
        %v2466 = vunpack.c.h.b16 %v2098
        %v2467 = vunpack.c.l.b16 %v2099
        %v2468 = vunpack.c.h.b16 %v2099
        %v2469 = vunpack.c.l.b16 %v2100
        %v2470 = vunpack.c.h.b16 %v2100
        %v2471 = vunpack.c.l.b16 %v2101
        %v2472 = vunpack.c.h.b16 %v2101
        %v2473 = vunpack.c.l.b16 %v2102
        %v2474 = vunpack.c.h.b16 %v2102
        %v2475 = vunpack.c.l.b16 %v2103
        %v2476 = vunpack.c.h.b16 %v2103
        %v2477 = vunpack.c.l.b16 %v2104
        %v2478 = vunpack.c.h.b16 %v2104
        %v2479 = vunpack.c.l.b16 %v2105
        %v2480 = vunpack.c.h.b16 %v2105
        %v2481 = vunpack.c.l.b16 %v2106
        %v2482 = vunpack.c.h.b16 %v2106
        %v2483 = vunpack.c.l.b16 %v2107
        %v2484 = vunpack.c.h.b16 %v2107
        %v2485 = vunpack.c.l.b16 %v2108
        %v2486 = vunpack.c.h.b16 %v2108
        %v2487 = vunpack.c.l.b16 %v2109
        %v2488 = vunpack.c.h.b16 %v2109
        %v2489 = vunpack.c.l.b16 %v2110
        %v2490 = vunpack.c.h.b16 %v2110
        %v2491 = vunpack.c.l.b16 %v2111
        %v2492 = vunpack.c.h.b16 %v2111
        %v2493 = vunpack.c.l.b16 %v2112
        %v2494 = vunpack.c.h.b16 %v2112
        %v2495 = vunpack.c.l.b16 %v2113
        %v2496 = vunpack.c.h.b16 %v2113
        %v2497 = vunpack.c.l.b16 %v2114
        %v2498 = vunpack.c.h.b16 %v2114
        %v2499 = vunpack.c.l.b16 %v2115
        %v2500 = vunpack.c.h.b16 %v2115
        %v2501 = vunpack.c.l.b16 %v2116
        %v2502 = vunpack.c.h.b16 %v2116
        %v2503 = vunpack.c.l.b16 %v2117
        %v2504 = vunpack.c.h.b16 %v2117
        %v2505 = vunpack.c.l.b16 %v2118
        %v2506 = vunpack.c.h.b16 %v2118
        %v2507 = vunpack.c.l.b16 %v2119
        %v2508 = vunpack.c.h.b16 %v2119
        %v2509 = vunpack.c.l.b16 %v2120
        %v2510 = vunpack.c.h.b16 %v2120
        %v2511 = vunpack.c.l.b16 %v2121
        %v2512 = vunpack.c.h.b16 %v2121
        %v2513 = vunpack.c.l.b16 %v2122
        %v2514 = vunpack.c.h.b16 %v2122
        %v2515 = vunpack.c.l.b16 %v2123
        %v2516 = vunpack.c.h.b16 %v2123
        %v2517 = vunpack.c.l.b16 %v2124
        %v2518 = vunpack.c.h.b16 %v2124
        %v2519 = vunpack.c.l.b16 %v2125
        %v2520 = vunpack.c.h.b16 %v2125
        %v2521 = vunpack.c.l.b16 %v2126
        %v2522 = vunpack.c.h.b16 %v2126
        %v2523 = vunpack.c.l.b16 %v2127
        %v2524 = vunpack.c.h.b16 %v2127
        %v2525 = vunpack.c.l.b16 %v2128
        %v2526 = vunpack.c.h.b16 %v2128
        %v2527 = vunpack.c.l.b16 %v2129
        %v2528 = vunpack.c.h.b16 %v2129
        %v2529 = vunpack.c.l.b16 %v2130
        %v2530 = vunpack.c.h.b16 %v2130
        %v2531 = vunpack.c.l.b16 %v2131
        %v2532 = vunpack.c.h.b16 %v2131
        %v2533 = vunpack.c.l.b16 %v2132
        %v2534 = vunpack.c.h.b16 %v2132
        %v2535 = vpack.c.b16 %v2287, %v2279
        %v2536 = vpack.c.b16 %v2288, %v2280
        %v2537 = vpack.c.b16 %v2289, %v2281
        %v2538 = vpack.c.b16 %v2290, %v2282
        %v2539 = vpack.c.b16 %v2291, %v2283
        %v2540 = vpack.c.b16 %v2292, %v2284
        %v2541 = vpack.c.b16 %v2293, %v2285
        %v2542 = vpack.c.b16 %v2294, %v2286
        %v2543 = vpack.c.b16 %v2303, %v2295
        %v2544 = vpack.c.b16 %v2304, %v2296
        %v2545 = vpack.c.b16 %v2305, %v2297
        %v2546 = vpack.c.b16 %v2306, %v2298
        %v2547 = vpack.c.b16 %v2307, %v2299
        %v2548 = vpack.c.b16 %v2308, %v2300
        %v2549 = vpack.c.b16 %v2309, %v2301
        %v2550 = vpack.c.b16 %v2310, %v2302
        %v2551 = vpack.c.b16 %v2319, %v2311
        %v2552 = vpack.c.b16 %v2320, %v2312
        %v2553 = vpack.c.b16 %v2321, %v2313
        %v2554 = vpack.c.b16 %v2322, %v2314
        %v2555 = vpack.c.b16 %v2323, %v2315
        %v2556 = vpack.c.b16 %v2324, %v2316
        %v2557 = vpack.c.b16 %v2325, %v2317
        %v2558 = vpack.c.b16 %v2326, %v2318
        %v2559 = vpack.c.b16 %v2335, %v2327
        %v2560 = vpack.c.b16 %v2336, %v2328
        %v2561 = vpack.c.b16 %v2337, %v2329
        %v2562 = vpack.c.b16 %v2338, %v2330
        %v2563 = vpack.c.b16 %v2339, %v2331
        %v2564 = vpack.c.b16 %v2340, %v2332
        %v2565 = vpack.c.b16 %v2341, %v2333
        %v2566 = vpack.c.b16 %v2342, %v2334
        %v2567 = vpack.c.b16 %v2351, %v2343
        %v2568 = vpack.c.b16 %v2352, %v2344
        %v2569 = vpack.c.b16 %v2353, %v2345
        %v2570 = vpack.c.b16 %v2354, %v2346
        %v2571 = vpack.c.b16 %v2355, %v2347
        %v2572 = vpack.c.b16 %v2356, %v2348
        %v2573 = vpack.c.b16 %v2357, %v2349
        %v2574 = vpack.c.b16 %v2358, %v2350
        %v2575 = vpack.c.b16 %v2367, %v2359
        %v2576 = vpack.c.b16 %v2368, %v2360
        %v2577 = vpack.c.b16 %v2369, %v2361
        %v2578 = vpack.c.b16 %v2370, %v2362
        %v2579 = vpack.c.b16 %v2371, %v2363
        %v2580 = vpack.c.b16 %v2372, %v2364
        %v2581 = vpack.c.b16 %v2373, %v2365
        %v2582 = vpack.c.b16 %v2374, %v2366
        %v2583 = vpack.c.b16 %v2383, %v2375
        %v2584 = vpack.c.b16 %v2384, %v2376
        %v2585 = vpack.c.b16 %v2385, %v2377
        %v2586 = vpack.c.b16 %v2386, %v2378
        %v2587 = vpack.c.b16 %v2387, %v2379
        %v2588 = vpack.c.b16 %v2388, %v2380
        %v2589 = vpack.c.b16 %v2389, %v2381
        %v2590 = vpack.c.b16 %v2390, %v2382
        %v2591 = vpack.c.b16 %v2399, %v2391
        %v2592 = vpack.c.b16 %v2400, %v2392
        %v2593 = vpack.c.b16 %v2401, %v2393
        %v2594 = vpack.c.b16 %v2402, %v2394
        %v2595 = vpack.c.b16 %v2403, %v2395
        %v2596 = vpack.c.b16 %v2404, %v2396
        %v2597 = vpack.c.b16 %v2405, %v2397
        %v2598 = vpack.c.b16 %v2406, %v2398
        %v2599 = vpack.c.b16 %v2415, %v2407
        %v2600 = vpack.c.b16 %v2416, %v2408
        %v2601 = vpack.c.b16 %v2417, %v2409
        %v2602 = vpack.c.b16 %v2418, %v2410
        %v2603 = vpack.c.b16 %v2419, %v2411
        %v2604 = vpack.c.b16 %v2420, %v2412
        %v2605 = vpack.c.b16 %v2421, %v2413
        %v2606 = vpack.c.b16 %v2422, %v2414
        %v2607 = vpack.c.b16 %v2431, %v2423
        %v2608 = vpack.c.b16 %v2432, %v2424
        %v2609 = vpack.c.b16 %v2433, %v2425
        %v2610 = vpack.c.b16 %v2434, %v2426
        %v2611 = vpack.c.b16 %v2435, %v2427
        %v2612 = vpack.c.b16 %v2436, %v2428
        %v2613 = vpack.c.b16 %v2437, %v2429
        %v2614 = vpack.c.b16 %v2438, %v2430
        %v2615 = vpack.c.b16 %v2447, %v2439
        %v2616 = vpack.c.b16 %v2448, %v2440
        %v2617 = vpack.c.b16 %v2449, %v2441
        %v2618 = vpack.c.b16 %v2450, %v2442
        %v2619 = vpack.c.b16 %v2451, %v2443
        %v2620 = vpack.c.b16 %v2452, %v2444
        %v2621 = vpack.c.b16 %v2453, %v2445
        %v2622 = vpack.c.b16 %v2454, %v2446
        %v2623 = vpack.c.b16 %v2463, %v2455
        %v2624 = vpack.c.b16 %v2464, %v2456
        %v2625 = vpack.c.b16 %v2465, %v2457
        %v2626 = vpack.c.b16 %v2466, %v2458
        %v2627 = vpack.c.b16 %v2467, %v2459
        %v2628 = vpack.c.b16 %v2468, %v2460
        %v2629 = vpack.c.b16 %v2469, %v2461
        %v2630 = vpack.c.b16 %v2470, %v2462
        %v2631 = vpack.c.b16 %v2479, %v2471
        %v2632 = vpack.c.b16 %v2480, %v2472
        %v2633 = vpack.c.b16 %v2481, %v2473
        %v2634 = vpack.c.b16 %v2482, %v2474
        %v2635 = vpack.c.b16 %v2483, %v2475
        %v2636 = vpack.c.b16 %v2484, %v2476
        %v2637 = vpack.c.b16 %v2485, %v2477
        %v2638 = vpack.c.b16 %v2486, %v2478
        %v2639 = vpack.c.b16 %v2495, %v2487
        %v2640 = vpack.c.b16 %v2496, %v2488
        %v2641 = vpack.c.b16 %v2497, %v2489
        %v2642 = vpack.c.b16 %v2498, %v2490
        %v2643 = vpack.c.b16 %v2499, %v2491
        %v2644 = vpack.c.b16 %v2500, %v2492
        %v2645 = vpack.c.b16 %v2501, %v2493
        %v2646 = vpack.c.b16 %v2502, %v2494
        %v2647 = vpack.c.b16 %v2511, %v2503
        %v2648 = vpack.c.b16 %v2512, %v2504
        %v2649 = vpack.c.b16 %v2513, %v2505
        %v2650 = vpack.c.b16 %v2514, %v2506
        %v2651 = vpack.c.b16 %v2515, %v2507
        %v2652 = vpack.c.b16 %v2516, %v2508
        %v2653 = vpack.c.b16 %v2517, %v2509
        %v2654 = vpack.c.b16 %v2518, %v2510
        %v2655 = vpack.c.b16 %v2527, %v2519
        %v2656 = vpack.c.b16 %v2528, %v2520
        %v2657 = vpack.c.b16 %v2529, %v2521
        %v2658 = vpack.c.b16 %v2530, %v2522
        %v2659 = vpack.c.b16 %v2531, %v2523
        %v2660 = vpack.c.b16 %v2532, %v2524
        %v2661 = vpack.c.b16 %v2533, %v2525
        %v2662 = vpack.c.b16 %v2534, %v2526
        %2791 = vmatpush.bf16.msra.mxu0 %v2591
        %2792 = vmatpush.bf16.msra.mxu0 %v2583
        %2793 = vmatpush.bf16.msra.mxu0 %v2575
        %2794 = vmatpush.bf16.msra.mxu0 %v2567
        %2795 = vmatpush.bf16.msra.mxu0 %v2559
        %2796 = vmatpush.bf16.msra.mxu0 %v2551
        %2797 = vmatpush.bf16.msra.mxu0 %v2543
        %2798 = vmatpush.bf16.msra.mxu0 %v2535
        %2799 = vmatmul.bf16.gmra.mxu0 %v2003
        %v2800 = vpop.f32.mrf.mxu0
        %v2801 = vadd.f32 %v2135, %v2800
        %v2802 = vpop.f32.mrf.mxu0
        %v2803 = vadd.f32 %v2135, %v2802
        %2804 = vdwg.mxu0
        %2805 = vmatpush.bf16.msra.mxu0 %v2655
        %2806 = vmatpush.bf16.msra.mxu0 %v2647
        %2807 = vmatpush.bf16.msra.mxu0 %v2639
        %2808 = vmatpush.bf16.msra.mxu0 %v2631
        %2809 = vmatpush.bf16.msra.mxu0 %v2623
        %2810 = vmatpush.bf16.msra.mxu0 %v2615
        %2811 = vmatpush.bf16.msra.mxu0 %v2607
        %2812 = vmatpush.bf16.msra.mxu0 %v2599
        %2813 = vmatmul.bf16.gmra.mxu0 %v2004
        %v2814 = vpop.f32.mrf.mxu0
        %v2815 = vadd.f32 %v2801, %v2814
        %v2816 = vpop.f32.mrf.mxu0
        %v2817 = vadd.f32 %v2803, %v2816
        %2818 = vdwg.mxu0
        %2819 = vmatpush.bf16.msra.mxu0 %v2592
        %2820 = vmatpush.bf16.msra.mxu0 %v2584
        %2821 = vmatpush.bf16.msra.mxu0 %v2576
        %2822 = vmatpush.bf16.msra.mxu0 %v2568
        %2823 = vmatpush.bf16.msra.mxu0 %v2560
        %2824 = vmatpush.bf16.msra.mxu0 %v2552
        %2825 = vmatpush.bf16.msra.mxu0 %v2544
        %2826 = vmatpush.bf16.msra.mxu0 %v2536
        %2827 = vmatmul.bf16.gmra.mxu0 %v2003
        %v2828 = vpop.f32.mrf.mxu0
        %v2829 = vadd.f32 %v2136, %v2828
        %v2830 = vpop.f32.mrf.mxu0
        %v2831 = vadd.f32 %v2136, %v2830
        %2832 = vdwg.mxu0
        %2833 = vmatpush.bf16.msra.mxu0 %v2656
        %2834 = vmatpush.bf16.msra.mxu0 %v2648
        %2835 = vmatpush.bf16.msra.mxu0 %v2640
        %2836 = vmatpush.bf16.msra.mxu0 %v2632
        %2837 = vmatpush.bf16.msra.mxu0 %v2624
        %2838 = vmatpush.bf16.msra.mxu0 %v2616
        %2839 = vmatpush.bf16.msra.mxu0 %v2608
        %2840 = vmatpush.bf16.msra.mxu0 %v2600
        %2841 = vmatmul.bf16.gmra.mxu0 %v2004
        %v2842 = vpop.f32.mrf.mxu0
        %v2843 = vadd.f32 %v2829, %v2842
        %v2844 = vpop.f32.mrf.mxu0
        %v2845 = vadd.f32 %v2831, %v2844
        %2846 = vdwg.mxu0
        %2847 = vmatpush.bf16.msra.mxu0 %v2593
        %2848 = vmatpush.bf16.msra.mxu0 %v2585
        %2849 = vmatpush.bf16.msra.mxu0 %v2577
        %2850 = vmatpush.bf16.msra.mxu0 %v2569
        %2851 = vmatpush.bf16.msra.mxu0 %v2561
        %2852 = vmatpush.bf16.msra.mxu0 %v2553
        %2853 = vmatpush.bf16.msra.mxu0 %v2545
        %2854 = vmatpush.bf16.msra.mxu0 %v2537
        %2855 = vmatmul.bf16.gmra.mxu0 %v2003
        %v2856 = vpop.f32.mrf.mxu0
        %v2857 = vadd.f32 %v2137, %v2856
        %v2858 = vpop.f32.mrf.mxu0
        %v2859 = vadd.f32 %v2137, %v2858
        %2860 = vdwg.mxu0
        %2861 = vmatpush.bf16.msra.mxu0 %v2657
        %2862 = vmatpush.bf16.msra.mxu0 %v2649
        %2863 = vmatpush.bf16.msra.mxu0 %v2641
        %2864 = vmatpush.bf16.msra.mxu0 %v2633
        %2865 = vmatpush.bf16.msra.mxu0 %v2625
        %2866 = vmatpush.bf16.msra.mxu0 %v2617
        %2867 = vmatpush.bf16.msra.mxu0 %v2609
        %2868 = vmatpush.bf16.msra.mxu0 %v2601
        %2869 = vmatmul.bf16.gmra.mxu0 %v2004
        %v2870 = vpop.f32.mrf.mxu0
        %v2871 = vadd.f32 %v2857, %v2870
        %v2872 = vpop.f32.mrf.mxu0
        %v2873 = vadd.f32 %v2859, %v2872
        %2874 = vdwg.mxu0
        %2875 = vmatpush.bf16.msra.mxu0 %v2594
        %2876 = vmatpush.bf16.msra.mxu0 %v2586
        %2877 = vmatpush.bf16.msra.mxu0 %v2578
        %2878 = vmatpush.bf16.msra.mxu0 %v2570
        %2879 = vmatpush.bf16.msra.mxu0 %v2562
        %2880 = vmatpush.bf16.msra.mxu0 %v2554
        %2881 = vmatpush.bf16.msra.mxu0 %v2546
        %2882 = vmatpush.bf16.msra.mxu0 %v2538
        %2883 = vmatmul.bf16.gmra.mxu0 %v2003
        %v2884 = vpop.f32.mrf.mxu0
        %v2885 = vadd.f32 %v2138, %v2884
        %v2886 = vpop.f32.mrf.mxu0
        %v2887 = vadd.f32 %v2138, %v2886
        %2888 = vdwg.mxu0
        %2889 = vmatpush.bf16.msra.mxu0 %v2658
        %2890 = vmatpush.bf16.msra.mxu0 %v2650
        %2891 = vmatpush.bf16.msra.mxu0 %v2642
        %2892 = vmatpush.bf16.msra.mxu0 %v2634
        %2893 = vmatpush.bf16.msra.mxu0 %v2626
        %2894 = vmatpush.bf16.msra.mxu0 %v2618
        %2895 = vmatpush.bf16.msra.mxu0 %v2610
        %2896 = vmatpush.bf16.msra.mxu0 %v2602
        %2897 = vmatmul.bf16.gmra.mxu0 %v2004
        %v2898 = vpop.f32.mrf.mxu0
        %v2899 = vadd.f32 %v2885, %v2898
        %v2900 = vpop.f32.mrf.mxu0
        %v2901 = vadd.f32 %v2887, %v2900
        %2902 = vdwg.mxu0
        %2903 = vmatpush.bf16.msra.mxu0 %v2595
        %2904 = vmatpush.bf16.msra.mxu0 %v2587
        %2905 = vmatpush.bf16.msra.mxu0 %v2579
        %2906 = vmatpush.bf16.msra.mxu0 %v2571
        %2907 = vmatpush.bf16.msra.mxu0 %v2563
        %2908 = vmatpush.bf16.msra.mxu0 %v2555
        %2909 = vmatpush.bf16.msra.mxu0 %v2547
        %2910 = vmatpush.bf16.msra.mxu0 %v2539
        %2911 = vmatmul.bf16.gmra.mxu0 %v2003
        %v2912 = vpop.f32.mrf.mxu0
        %v2913 = vadd.f32 %v2139, %v2912
        %v2914 = vpop.f32.mrf.mxu0
        %v2915 = vadd.f32 %v2139, %v2914
        %2916 = vdwg.mxu0
        %2917 = vmatpush.bf16.msra.mxu0 %v2659
        %2918 = vmatpush.bf16.msra.mxu0 %v2651
        %2919 = vmatpush.bf16.msra.mxu0 %v2643
        %2920 = vmatpush.bf16.msra.mxu0 %v2635
        %2921 = vmatpush.bf16.msra.mxu0 %v2627
        %2922 = vmatpush.bf16.msra.mxu0 %v2619
        %2923 = vmatpush.bf16.msra.mxu0 %v2611
        %2924 = vmatpush.bf16.msra.mxu0 %v2603
        %2925 = vmatmul.bf16.gmra.mxu0 %v2004
        %v2926 = vpop.f32.mrf.mxu0
        %v2927 = vadd.f32 %v2913, %v2926
        %v2928 = vpop.f32.mrf.mxu0
        %v2929 = vadd.f32 %v2915, %v2928
        %2930 = vdwg.mxu0
        %2931 = vmatpush.bf16.msra.mxu0 %v2596
        %2932 = vmatpush.bf16.msra.mxu0 %v2588
        %2933 = vmatpush.bf16.msra.mxu0 %v2580
        %2934 = vmatpush.bf16.msra.mxu0 %v2572
        %2935 = vmatpush.bf16.msra.mxu0 %v2564
        %2936 = vmatpush.bf16.msra.mxu0 %v2556
        %2937 = vmatpush.bf16.msra.mxu0 %v2548
        %2938 = vmatpush.bf16.msra.mxu0 %v2540
        %2939 = vmatmul.bf16.gmra.mxu0 %v2003
        %v2940 = vpop.f32.mrf.mxu0
        %v2941 = vadd.f32 %v2140, %v2940
        %v2942 = vpop.f32.mrf.mxu0
        %v2943 = vadd.f32 %v2140, %v2942
        %2944 = vdwg.mxu0
        %2945 = vmatpush.bf16.msra.mxu0 %v2660
        %2946 = vmatpush.bf16.msra.mxu0 %v2652
        %2947 = vmatpush.bf16.msra.mxu0 %v2644
        %2948 = vmatpush.bf16.msra.mxu0 %v2636
        %2949 = vmatpush.bf16.msra.mxu0 %v2628
        %2950 = vmatpush.bf16.msra.mxu0 %v2620
        %2951 = vmatpush.bf16.msra.mxu0 %v2612
        %2952 = vmatpush.bf16.msra.mxu0 %v2604
        %2953 = vmatmul.bf16.gmra.mxu0 %v2004
        %v2954 = vpop.f32.mrf.mxu0
        %v2955 = vadd.f32 %v2941, %v2954
        %v2956 = vpop.f32.mrf.mxu0
        %v2957 = vadd.f32 %v2943, %v2956
        %2958 = vdwg.mxu0
        %2959 = vmatpush.bf16.msra.mxu0 %v2597
        %2960 = vmatpush.bf16.msra.mxu0 %v2589
        %2961 = vmatpush.bf16.msra.mxu0 %v2581
        %2962 = vmatpush.bf16.msra.mxu0 %v2573
        %2963 = vmatpush.bf16.msra.mxu0 %v2565
        %2964 = vmatpush.bf16.msra.mxu0 %v2557
        %2965 = vmatpush.bf16.msra.mxu0 %v2549
        %2966 = vmatpush.bf16.msra.mxu0 %v2541
        %2967 = vmatmul.bf16.gmra.mxu0 %v2003
        %v2968 = vpop.f32.mrf.mxu0
        %v2969 = vadd.f32 %v2141, %v2968
        %v2970 = vpop.f32.mrf.mxu0
        %v2971 = vadd.f32 %v2141, %v2970
        %2972 = vdwg.mxu0
        %2973 = vmatpush.bf16.msra.mxu0 %v2661
        %2974 = vmatpush.bf16.msra.mxu0 %v2653
        %2975 = vmatpush.bf16.msra.mxu0 %v2645
        %2976 = vmatpush.bf16.msra.mxu0 %v2637
        %2977 = vmatpush.bf16.msra.mxu0 %v2629
        %2978 = vmatpush.bf16.msra.mxu0 %v2621
        %2979 = vmatpush.bf16.msra.mxu0 %v2613
        %2980 = vmatpush.bf16.msra.mxu0 %v2605
        %2981 = vmatmul.bf16.gmra.mxu0 %v2004
        %v2982 = vpop.f32.mrf.mxu0
        %v2983 = vadd.f32 %v2969, %v2982
        %v2984 = vpop.f32.mrf.mxu0
        %v2985 = vadd.f32 %v2971, %v2984
        %2986 = vdwg.mxu0
        %2987 = vmatpush.bf16.msra.mxu0 %v2598
        %2988 = vmatpush.bf16.msra.mxu0 %v2590
        %2989 = vmatpush.bf16.msra.mxu0 %v2582
        %2990 = vmatpush.bf16.msra.mxu0 %v2574
        %2991 = vmatpush.bf16.msra.mxu0 %v2566
        %2992 = vmatpush.bf16.msra.mxu0 %v2558
        %2993 = vmatpush.bf16.msra.mxu0 %v2550
        %2994 = vmatpush.bf16.msra.mxu0 %v2542
        %2995 = vmatmul.bf16.gmra.mxu0 %v2003
        %v2996 = vpop.f32.mrf.mxu0
        %v2997 = vadd.f32 %v2142, %v2996
        %v2998 = vpop.f32.mrf.mxu0
        %v2999 = vadd.f32 %v2142, %v2998
        %3000 = vdwg.mxu0
        %3001 = vmatpush.bf16.msra.mxu0 %v2662
        %3002 = vmatpush.bf16.msra.mxu0 %v2654
        %3003 = vmatpush.bf16.msra.mxu0 %v2646
        %3004 = vmatpush.bf16.msra.mxu0 %v2638
        %3005 = vmatpush.bf16.msra.mxu0 %v2630
        %3006 = vmatpush.bf16.msra.mxu0 %v2622
        %3007 = vmatpush.bf16.msra.mxu0 %v2614
        %3008 = vmatpush.bf16.msra.mxu0 %v2606
        %3009 = vmatmul.bf16.gmra.mxu0 %v2004
        %v3010 = vpop.f32.mrf.mxu0
        %v3011 = vadd.f32 %v2997, %v3010
        %v3012 = vpop.f32.mrf.mxu0
        %v3013 = vadd.f32 %v2999, %v3012
        %3014 = vdwg.mxu0
        %v3015 = vmul.f32 %v2815, 1.702
        %v3016 = vmul.f32 %v2843, 1.702
        %v3017 = vmul.f32 %v2871, 1.702
        %v3018 = vmul.f32 %v2899, 1.702
        %v3019 = vmul.f32 %v2927, 1.702
        %v3020 = vmul.f32 %v2955, 1.702
        %v3021 = vmul.f32 %v2983, 1.702
        %v3022 = vmul.f32 %v3011, 1.702
        %v3023 = vmul.f32 %v2817, 1.702
        %v3024 = vmul.f32 %v2845, 1.702
        %v3025 = vmul.f32 %v2873, 1.702
        %v3026 = vmul.f32 %v2901, 1.702
        %v3027 = vmul.f32 %v2929, 1.702
        %v3028 = vmul.f32 %v2957, 1.702
        %v3029 = vmul.f32 %v2985, 1.702
        %v3030 = vmul.f32 %v3013, 1.702
        %v3031 = vxor.u32 %v3015, 2147483648
        %v3032 = vxor.u32 %v3016, 2147483648
        %v3033 = vxor.u32 %v3017, 2147483648
        %v3034 = vxor.u32 %v3018, 2147483648
        %v3035 = vxor.u32 %v3019, 2147483648
        %v3036 = vxor.u32 %v3020, 2147483648
        %v3037 = vxor.u32 %v3021, 2147483648
        %v3038 = vxor.u32 %v3022, 2147483648
        %v3039 = vxor.u32 %v3023, 2147483648
        %v3040 = vxor.u32 %v3024, 2147483648
        %v3041 = vxor.u32 %v3025, 2147483648
        %v3042 = vxor.u32 %v3026, 2147483648
        %v3043 = vxor.u32 %v3027, 2147483648
        %v3044 = vxor.u32 %v3028, 2147483648
        %v3045 = vxor.u32 %v3029, 2147483648
        %v3046 = vxor.u32 %v3030, 2147483648
        %v3047 = vmul.f32 %v3031, 1.442695
        %v3048 = vpow.pop %v3047
        %v3049 = vmul.f32 %v3032, 1.442695
        %v3050 = vpow.pop %v3049
        %v3051 = vmul.f32 %v3033, 1.442695
        %v3052 = vpow.pop %v3051
        %v3053 = vmul.f32 %v3034, 1.442695
        %v3054 = vpow.pop %v3053
        %v3055 = vmul.f32 %v3035, 1.442695
        %v3056 = vpow.pop %v3055
        %v3057 = vmul.f32 %v3036, 1.442695
        %v3058 = vpow.pop %v3057
        %v3059 = vmul.f32 %v3037, 1.442695
        %v3060 = vpow.pop %v3059
        %v3061 = vmul.f32 %v3038, 1.442695
        %v3062 = vpow.pop %v3061
        %v3063 = vmul.f32 %v3039, 1.442695
        %v3064 = vpow.pop %v3063
        %v3065 = vmul.f32 %v3040, 1.442695
        %v3066 = vpow.pop %v3065
        %v3067 = vmul.f32 %v3041, 1.442695
        %v3068 = vpow.pop %v3067
        %v3069 = vmul.f32 %v3042, 1.442695
        %v3070 = vpow.pop %v3069
        %v3071 = vmul.f32 %v3043, 1.442695
        %v3072 = vpow.pop %v3071
        %v3073 = vmul.f32 %v3044, 1.442695
        %v3074 = vpow.pop %v3073
        %v3075 = vmul.f32 %v3045, 1.442695
        %v3076 = vpow.pop %v3075
        %v3077 = vmul.f32 %v3046, 1.442695
        %v3078 = vpow.pop %v3077
        %v3079 = vadd.f32 %v3048, 1.0
        %v3080 = vadd.f32 %v3050, 1.0
        %v3081 = vadd.f32 %v3052, 1.0
        %v3082 = vadd.f32 %v3054, 1.0
        %v3083 = vadd.f32 %v3056, 1.0
        %v3084 = vadd.f32 %v3058, 1.0
        %v3085 = vadd.f32 %v3060, 1.0
        %v3086 = vadd.f32 %v3062, 1.0
        %v3087 = vadd.f32 %v3064, 1.0
        %v3088 = vadd.f32 %v3066, 1.0
        %v3089 = vadd.f32 %v3068, 1.0
        %v3090 = vadd.f32 %v3070, 1.0
        %v3091 = vadd.f32 %v3072, 1.0
        %v3092 = vadd.f32 %v3074, 1.0
        %v3093 = vadd.f32 %v3076, 1.0
        %v3094 = vadd.f32 %v3078, 1.0
        %v3095 = vrcp.pop %v3079
        %v3096 = vmul.f32 %v3079, %v3095
        %v3097 = vsub.f32 1.0, %v3096
        %v3098 = vmul.f32 %v3095, %v3097
        %v3099 = vadd.f32 %v3095, %v3098
        %vm3100 = vweird.f32 %v3079
        %vm3101 = vweird.f32 %v3095
        %vm3102 = vmor %vm3100, %vm3101
        %v3103 = vsel %vm3102, %v3095, %v3099
        %v3104 = vand.u32 2147483647, %v3079
        %vm3105 = vcmp.eq.f32.partialorder %v3104, 8.507059e+37
        %v3106 = vand.u32 %v3079, 2147483648
        %v3107 = vor.u32 1.1754944e-38, %v3106
        %v3108 = vsel %vm3105, %v3107, %v3103
        %v3109 = vmul.f32 1.0, %v3108
        %v3110 = vrcp.pop %v3080
        %v3111 = vmul.f32 %v3080, %v3110
        %v3112 = vsub.f32 1.0, %v3111
        %v3113 = vmul.f32 %v3110, %v3112
        %v3114 = vadd.f32 %v3110, %v3113
        %vm3115 = vweird.f32 %v3080
        %vm3116 = vweird.f32 %v3110
        %vm3117 = vmor %vm3115, %vm3116
        %v3118 = vsel %vm3117, %v3110, %v3114
        %v3119 = vand.u32 2147483647, %v3080
        %vm3120 = vcmp.eq.f32.partialorder %v3119, 8.507059e+37
        %v3121 = vand.u32 %v3080, 2147483648
        %v3122 = vor.u32 1.1754944e-38, %v3121
        %v3123 = vsel %vm3120, %v3122, %v3118
        %v3124 = vmul.f32 1.0, %v3123
        %v3125 = vrcp.pop %v3081
        %v3126 = vmul.f32 %v3081, %v3125
        %v3127 = vsub.f32 1.0, %v3126
        %v3128 = vmul.f32 %v3125, %v3127
        %v3129 = vadd.f32 %v3125, %v3128
        %vm3130 = vweird.f32 %v3081
        %vm3131 = vweird.f32 %v3125
        %vm3132 = vmor %vm3130, %vm3131
        %v3133 = vsel %vm3132, %v3125, %v3129
        %v3134 = vand.u32 2147483647, %v3081
        %vm3135 = vcmp.eq.f32.partialorder %v3134, 8.507059e+37
        %v3136 = vand.u32 %v3081, 2147483648
        %v3137 = vor.u32 1.1754944e-38, %v3136
        %v3138 = vsel %vm3135, %v3137, %v3133
        %v3139 = vmul.f32 1.0, %v3138
        %v3140 = vrcp.pop %v3082
        %v3141 = vmul.f32 %v3082, %v3140
        %v3142 = vsub.f32 1.0, %v3141
        %v3143 = vmul.f32 %v3140, %v3142
        %v3144 = vadd.f32 %v3140, %v3143
        %vm3145 = vweird.f32 %v3082
        %vm3146 = vweird.f32 %v3140
        %vm3147 = vmor %vm3145, %vm3146
        %v3148 = vsel %vm3147, %v3140, %v3144
        %v3149 = vand.u32 2147483647, %v3082
        %vm3150 = vcmp.eq.f32.partialorder %v3149, 8.507059e+37
        %v3151 = vand.u32 %v3082, 2147483648
        %v3152 = vor.u32 1.1754944e-38, %v3151
        %v3153 = vsel %vm3150, %v3152, %v3148
        %v3154 = vmul.f32 1.0, %v3153
        %v3155 = vrcp.pop %v3083
        %v3156 = vmul.f32 %v3083, %v3155
        %v3157 = vsub.f32 1.0, %v3156
        %v3158 = vmul.f32 %v3155, %v3157
        %v3159 = vadd.f32 %v3155, %v3158
        %vm3160 = vweird.f32 %v3083
        %vm3161 = vweird.f32 %v3155
        %vm3162 = vmor %vm3160, %vm3161
        %v3163 = vsel %vm3162, %v3155, %v3159
        %v3164 = vand.u32 2147483647, %v3083
        %vm3165 = vcmp.eq.f32.partialorder %v3164, 8.507059e+37
        %v3166 = vand.u32 %v3083, 2147483648
        %v3167 = vor.u32 1.1754944e-38, %v3166
        %v3168 = vsel %vm3165, %v3167, %v3163
        %v3169 = vmul.f32 1.0, %v3168
        %v3170 = vrcp.pop %v3084
        %v3171 = vmul.f32 %v3084, %v3170
        %v3172 = vsub.f32 1.0, %v3171
        %v3173 = vmul.f32 %v3170, %v3172
        %v3174 = vadd.f32 %v3170, %v3173
        %vm3175 = vweird.f32 %v3084
        %vm3176 = vweird.f32 %v3170
        %vm3177 = vmor %vm3175, %vm3176
        %v3178 = vsel %vm3177, %v3170, %v3174
        %v3179 = vand.u32 2147483647, %v3084
        %vm3180 = vcmp.eq.f32.partialorder %v3179, 8.507059e+37
        %v3181 = vand.u32 %v3084, 2147483648
        %v3182 = vor.u32 1.1754944e-38, %v3181
        %v3183 = vsel %vm3180, %v3182, %v3178
        %v3184 = vmul.f32 1.0, %v3183
        %v3185 = vrcp.pop %v3085
        %v3186 = vmul.f32 %v3085, %v3185
        %v3187 = vsub.f32 1.0, %v3186
        %v3188 = vmul.f32 %v3185, %v3187
        %v3189 = vadd.f32 %v3185, %v3188
        %vm3190 = vweird.f32 %v3085
        %vm3191 = vweird.f32 %v3185
        %vm3192 = vmor %vm3190, %vm3191
        %v3193 = vsel %vm3192, %v3185, %v3189
        %v3194 = vand.u32 2147483647, %v3085
        %vm3195 = vcmp.eq.f32.partialorder %v3194, 8.507059e+37
        %v3196 = vand.u32 %v3085, 2147483648
        %v3197 = vor.u32 1.1754944e-38, %v3196
        %v3198 = vsel %vm3195, %v3197, %v3193
        %v3199 = vmul.f32 1.0, %v3198
        %v3200 = vrcp.pop %v3086
        %v3201 = vmul.f32 %v3086, %v3200
        %v3202 = vsub.f32 1.0, %v3201
        %v3203 = vmul.f32 %v3200, %v3202
        %v3204 = vadd.f32 %v3200, %v3203
        %vm3205 = vweird.f32 %v3086
        %vm3206 = vweird.f32 %v3200
        %vm3207 = vmor %vm3205, %vm3206
        %v3208 = vsel %vm3207, %v3200, %v3204
        %v3209 = vand.u32 2147483647, %v3086
        %vm3210 = vcmp.eq.f32.partialorder %v3209, 8.507059e+37
        %v3211 = vand.u32 %v3086, 2147483648
        %v3212 = vor.u32 1.1754944e-38, %v3211
        %v3213 = vsel %vm3210, %v3212, %v3208
        %v3214 = vmul.f32 1.0, %v3213
        %v3215 = vrcp.pop %v3087
        %v3216 = vmul.f32 %v3087, %v3215
        %v3217 = vsub.f32 1.0, %v3216
        %v3218 = vmul.f32 %v3215, %v3217
        %v3219 = vadd.f32 %v3215, %v3218
        %vm3220 = vweird.f32 %v3087
        %vm3221 = vweird.f32 %v3215
        %vm3222 = vmor %vm3220, %vm3221
        %v3223 = vsel %vm3222, %v3215, %v3219
        %v3224 = vand.u32 2147483647, %v3087
        %vm3225 = vcmp.eq.f32.partialorder %v3224, 8.507059e+37
        %v3226 = vand.u32 %v3087, 2147483648
        %v3227 = vor.u32 1.1754944e-38, %v3226
        %v3228 = vsel %vm3225, %v3227, %v3223
        %v3229 = vmul.f32 1.0, %v3228
        %v3230 = vrcp.pop %v3088
        %v3231 = vmul.f32 %v3088, %v3230
        %v3232 = vsub.f32 1.0, %v3231
        %v3233 = vmul.f32 %v3230, %v3232
        %v3234 = vadd.f32 %v3230, %v3233
        %vm3235 = vweird.f32 %v3088
        %vm3236 = vweird.f32 %v3230
        %vm3237 = vmor %vm3235, %vm3236
        %v3238 = vsel %vm3237, %v3230, %v3234
        %v3239 = vand.u32 2147483647, %v3088
        %vm3240 = vcmp.eq.f32.partialorder %v3239, 8.507059e+37
        %v3241 = vand.u32 %v3088, 2147483648
        %v3242 = vor.u32 1.1754944e-38, %v3241
        %v3243 = vsel %vm3240, %v3242, %v3238
        %v3244 = vmul.f32 1.0, %v3243
        %v3245 = vrcp.pop %v3089
        %v3246 = vmul.f32 %v3089, %v3245
        %v3247 = vsub.f32 1.0, %v3246
        %v3248 = vmul.f32 %v3245, %v3247
        %v3249 = vadd.f32 %v3245, %v3248
        %vm3250 = vweird.f32 %v3089
        %vm3251 = vweird.f32 %v3245
        %vm3252 = vmor %vm3250, %vm3251
        %v3253 = vsel %vm3252, %v3245, %v3249
        %v3254 = vand.u32 2147483647, %v3089
        %vm3255 = vcmp.eq.f32.partialorder %v3254, 8.507059e+37
        %v3256 = vand.u32 %v3089, 2147483648
        %v3257 = vor.u32 1.1754944e-38, %v3256
        %v3258 = vsel %vm3255, %v3257, %v3253
        %v3259 = vmul.f32 1.0, %v3258
        %v3260 = vrcp.pop %v3090
        %v3261 = vmul.f32 %v3090, %v3260
        %v3262 = vsub.f32 1.0, %v3261
        %v3263 = vmul.f32 %v3260, %v3262
        %v3264 = vadd.f32 %v3260, %v3263
        %vm3265 = vweird.f32 %v3090
        %vm3266 = vweird.f32 %v3260
        %vm3267 = vmor %vm3265, %vm3266
        %v3268 = vsel %vm3267, %v3260, %v3264
        %v3269 = vand.u32 2147483647, %v3090
        %vm3270 = vcmp.eq.f32.partialorder %v3269, 8.507059e+37
        %v3271 = vand.u32 %v3090, 2147483648
        %v3272 = vor.u32 1.1754944e-38, %v3271
        %v3273 = vsel %vm3270, %v3272, %v3268
        %v3274 = vmul.f32 1.0, %v3273
        %v3275 = vrcp.pop %v3091
        %v3276 = vmul.f32 %v3091, %v3275
        %v3277 = vsub.f32 1.0, %v3276
        %v3278 = vmul.f32 %v3275, %v3277
        %v3279 = vadd.f32 %v3275, %v3278
        %vm3280 = vweird.f32 %v3091
        %vm3281 = vweird.f32 %v3275
        %vm3282 = vmor %vm3280, %vm3281
        %v3283 = vsel %vm3282, %v3275, %v3279
        %v3284 = vand.u32 2147483647, %v3091
        %vm3285 = vcmp.eq.f32.partialorder %v3284, 8.507059e+37
        %v3286 = vand.u32 %v3091, 2147483648
        %v3287 = vor.u32 1.1754944e-38, %v3286
        %v3288 = vsel %vm3285, %v3287, %v3283
        %v3289 = vmul.f32 1.0, %v3288
        %v3290 = vrcp.pop %v3092
        %v3291 = vmul.f32 %v3092, %v3290
        %v3292 = vsub.f32 1.0, %v3291
        %v3293 = vmul.f32 %v3290, %v3292
        %v3294 = vadd.f32 %v3290, %v3293
        %vm3295 = vweird.f32 %v3092
        %vm3296 = vweird.f32 %v3290
        %vm3297 = vmor %vm3295, %vm3296
        %v3298 = vsel %vm3297, %v3290, %v3294
        %v3299 = vand.u32 2147483647, %v3092
        %vm3300 = vcmp.eq.f32.partialorder %v3299, 8.507059e+37
        %v3301 = vand.u32 %v3092, 2147483648
        %v3302 = vor.u32 1.1754944e-38, %v3301
        %v3303 = vsel %vm3300, %v3302, %v3298
        %v3304 = vmul.f32 1.0, %v3303
        %v3305 = vrcp.pop %v3093
        %v3306 = vmul.f32 %v3093, %v3305
        %v3307 = vsub.f32 1.0, %v3306
        %v3308 = vmul.f32 %v3305, %v3307
        %v3309 = vadd.f32 %v3305, %v3308
        %vm3310 = vweird.f32 %v3093
        %vm3311 = vweird.f32 %v3305
        %vm3312 = vmor %vm3310, %vm3311
        %v3313 = vsel %vm3312, %v3305, %v3309
        %v3314 = vand.u32 2147483647, %v3093
        %vm3315 = vcmp.eq.f32.partialorder %v3314, 8.507059e+37
        %v3316 = vand.u32 %v3093, 2147483648
        %v3317 = vor.u32 1.1754944e-38, %v3316
        %v3318 = vsel %vm3315, %v3317, %v3313
        %v3319 = vmul.f32 1.0, %v3318
        %v3320 = vrcp.pop %v3094
        %v3321 = vmul.f32 %v3094, %v3320
        %v3322 = vsub.f32 1.0, %v3321
        %v3323 = vmul.f32 %v3320, %v3322
        %v3324 = vadd.f32 %v3320, %v3323
        %vm3325 = vweird.f32 %v3094
        %vm3326 = vweird.f32 %v3320
        %vm3327 = vmor %vm3325, %vm3326
        %v3328 = vsel %vm3327, %v3320, %v3324
        %v3329 = vand.u32 2147483647, %v3094
        %vm3330 = vcmp.eq.f32.partialorder %v3329, 8.507059e+37
        %v3331 = vand.u32 %v3094, 2147483648
        %v3332 = vor.u32 1.1754944e-38, %v3331
        %v3333 = vsel %vm3330, %v3332, %v3328
        %v3334 = vmul.f32 1.0, %v3333
        %v3335 = vmul.f32 %v2815, %v3109
        %v3336 = vmul.f32 %v2843, %v3124
        %v3337 = vmul.f32 %v2871, %v3139
        %v3338 = vmul.f32 %v2899, %v3154
        %v3339 = vmul.f32 %v2927, %v3169
        %v3340 = vmul.f32 %v2955, %v3184
        %v3341 = vmul.f32 %v2983, %v3199
        %v3342 = vmul.f32 %v3011, %v3214
        %v3343 = vmul.f32 %v2817, %v3229
        %v3344 = vmul.f32 %v2845, %v3244
        %v3345 = vmul.f32 %v2873, %v3259
        %v3346 = vmul.f32 %v2901, %v3274
        %v3347 = vmul.f32 %v2929, %v3289
        %v3348 = vmul.f32 %v2957, %v3304
        %v3349 = vmul.f32 %v2985, %v3319
        %v3350 = vmul.f32 %v3013, %v3334
        %v3351 = vpack.c.bf16 %v3343, %v3335
        %v3352 = vpack.c.bf16 %v3344, %v3336
        %v3353 = vpack.c.bf16 %v3345, %v3337
        %v3354 = vpack.c.bf16 %v3346, %v3338
        %v3355 = vpack.c.bf16 %v3347, %v3339
        %v3356 = vpack.c.bf16 %v3348, %v3340
        %v3357 = vpack.c.bf16 %v3349, %v3341
        %v3358 = vpack.c.bf16 %v3350, %v3342
        %v3359 = vld [vmem:[#allocation19] sm:$0xff]
        %v3360 = vld [vmem:[#allocation19 + $0x8] sm:$0xff]
        %v3361 = vld [vmem:[#allocation19 + $0x10] sm:$0xff]
        %v3362 = vld [vmem:[#allocation19 + $0x18] sm:$0xff]
        %v3363 = vld [vmem:[#allocation19 + $0x20] sm:$0xff]
        %v3364 = vld [vmem:[#allocation19 + $0x28] sm:$0xff]
        %v3365 = vld [vmem:[#allocation19 + $0x30] sm:$0xff]
        %v3366 = vld [vmem:[#allocation19 + $0x38] sm:$0xff]
        %v3367 = vld [vmem:[#allocation19 + $0x40] sm:$0xff]
        %v3368 = vld [vmem:[#allocation19 + $0x48] sm:$0xff]
        %v3369 = vld [vmem:[#allocation19 + $0x50] sm:$0xff]
        %v3370 = vld [vmem:[#allocation19 + $0x58] sm:$0xff]
        %v3371 = vld [vmem:[#allocation19 + $0x60] sm:$0xff]
        %v3372 = vld [vmem:[#allocation19 + $0x68] sm:$0xff]
        %v3373 = vld [vmem:[#allocation19 + $0x70] sm:$0xff]
        %v3374 = vld [vmem:[#allocation19 + $0x78] sm:$0xff]
        %v3375 = vld [vmem:[#allocation19 + $0x80] sm:$0xff]
        %v3376 = vld [vmem:[#allocation19 + $0x88] sm:$0xff]
        %v3377 = vld [vmem:[#allocation19 + $0x90] sm:$0xff]
        %v3378 = vld [vmem:[#allocation19 + $0x98] sm:$0xff]
        %v3379 = vld [vmem:[#allocation19 + $0xa0] sm:$0xff]
        %v3380 = vld [vmem:[#allocation19 + $0xa8] sm:$0xff]
        %v3381 = vld [vmem:[#allocation19 + $0xb0] sm:$0xff]
        %v3382 = vld [vmem:[#allocation19 + $0xb8] sm:$0xff]
        %v3383 = vld [vmem:[#allocation19 + $0xc0] sm:$0xff]
        %v3384 = vld [vmem:[#allocation19 + $0xc8] sm:$0xff]
        %v3385 = vld [vmem:[#allocation19 + $0xd0] sm:$0xff]
        %v3386 = vld [vmem:[#allocation19 + $0xd8] sm:$0xff]
        %v3387 = vld [vmem:[#allocation19 + $0xe0] sm:$0xff]
        %v3388 = vld [vmem:[#allocation19 + $0xe8] sm:$0xff]
        %v3389 = vld [vmem:[#allocation19 + $0xf0] sm:$0xff]
        %v3390 = vld [vmem:[#allocation19 + $0xf8] sm:$0xff]
        %v3391 = vld [vmem:[#allocation19 + $0x100] sm:$0xff]
        %v3392 = vld [vmem:[#allocation19 + $0x108] sm:$0xff]
        %v3393 = vld [vmem:[#allocation19 + $0x110] sm:$0xff]
        %v3394 = vld [vmem:[#allocation19 + $0x118] sm:$0xff]
        %v3395 = vld [vmem:[#allocation19 + $0x120] sm:$0xff]
        %v3396 = vld [vmem:[#allocation19 + $0x128] sm:$0xff]
        %v3397 = vld [vmem:[#allocation19 + $0x130] sm:$0xff]
        %v3398 = vld [vmem:[#allocation19 + $0x138] sm:$0xff]
        %v3399 = vld [vmem:[#allocation19 + $0x140] sm:$0xff]
        %v3400 = vld [vmem:[#allocation19 + $0x148] sm:$0xff]
        %v3401 = vld [vmem:[#allocation19 + $0x150] sm:$0xff]
        %v3402 = vld [vmem:[#allocation19 + $0x158] sm:$0xff]
        %v3403 = vld [vmem:[#allocation19 + $0x160] sm:$0xff]
        %v3404 = vld [vmem:[#allocation19 + $0x168] sm:$0xff]
        %v3405 = vld [vmem:[#allocation19 + $0x170] sm:$0xff]
        %v3406 = vld [vmem:[#allocation19 + $0x178] sm:$0xff]
        %v3407 = vld [vmem:[#allocation19 + $0x180] sm:$0xff]
        %v3408 = vld [vmem:[#allocation19 + $0x188] sm:$0xff]
        %v3409 = vld [vmem:[#allocation19 + $0x190] sm:$0xff]
        %v3410 = vld [vmem:[#allocation19 + $0x198] sm:$0xff]
        %v3411 = vld [vmem:[#allocation19 + $0x1a0] sm:$0xff]
        %v3412 = vld [vmem:[#allocation19 + $0x1a8] sm:$0xff]
        %v3413 = vld [vmem:[#allocation19 + $0x1b0] sm:$0xff]
        %v3414 = vld [vmem:[#allocation19 + $0x1b8] sm:$0xff]
        %v3415 = vld [vmem:[#allocation19 + $0x1c0] sm:$0xff]
        %v3416 = vld [vmem:[#allocation19 + $0x1c8] sm:$0xff]
        %v3417 = vld [vmem:[#allocation19 + $0x1d0] sm:$0xff]
        %v3418 = vld [vmem:[#allocation19 + $0x1d8] sm:$0xff]
        %v3419 = vld [vmem:[#allocation19 + $0x1e0] sm:$0xff]
        %v3420 = vld [vmem:[#allocation19 + $0x1e8] sm:$0xff]
        %v3421 = vld [vmem:[#allocation19 + $0x1f0] sm:$0xff]
        %v3422 = vld [vmem:[#allocation19 + $0x1f8] sm:$0xff]
        %v3423 = vld [vmem:[#allocation19 + $0x200] sm:$0xff]
        %v3424 = vld [vmem:[#allocation19 + $0x208] sm:$0xff]
        %v3425 = vld [vmem:[#allocation19 + $0x210] sm:$0xff]
        %v3426 = vld [vmem:[#allocation19 + $0x218] sm:$0xff]
        %v3427 = vld [vmem:[#allocation19 + $0x220] sm:$0xff]
        %v3428 = vld [vmem:[#allocation19 + $0x228] sm:$0xff]
        %v3429 = vld [vmem:[#allocation19 + $0x230] sm:$0xff]
        %v3430 = vld [vmem:[#allocation19 + $0x238] sm:$0xff]
        %v3431 = vld [vmem:[#allocation19 + $0x240] sm:$0xff]
        %v3432 = vld [vmem:[#allocation19 + $0x248] sm:$0xff]
        %v3433 = vld [vmem:[#allocation19 + $0x250] sm:$0xff]
        %v3434 = vld [vmem:[#allocation19 + $0x258] sm:$0xff]
        %v3435 = vld [vmem:[#allocation19 + $0x260] sm:$0xff]
        %v3436 = vld [vmem:[#allocation19 + $0x268] sm:$0xff]
        %v3437 = vld [vmem:[#allocation19 + $0x270] sm:$0xff]
        %v3438 = vld [vmem:[#allocation19 + $0x278] sm:$0xff]
        %v3439 = vld [vmem:[#allocation19 + $0x280] sm:$0xff]
        %v3440 = vld [vmem:[#allocation19 + $0x288] sm:$0xff]
        %v3441 = vld [vmem:[#allocation19 + $0x290] sm:$0xff]
        %v3442 = vld [vmem:[#allocation19 + $0x298] sm:$0xff]
        %v3443 = vld [vmem:[#allocation19 + $0x2a0] sm:$0xff]
        %v3444 = vld [vmem:[#allocation19 + $0x2a8] sm:$0xff]
        %v3445 = vld [vmem:[#allocation19 + $0x2b0] sm:$0xff]
        %v3446 = vld [vmem:[#allocation19 + $0x2b8] sm:$0xff]
        %v3447 = vld [vmem:[#allocation19 + $0x2c0] sm:$0xff]
        %v3448 = vld [vmem:[#allocation19 + $0x2c8] sm:$0xff]
        %v3449 = vld [vmem:[#allocation19 + $0x2d0] sm:$0xff]
        %v3450 = vld [vmem:[#allocation19 + $0x2d8] sm:$0xff]
        %v3451 = vld [vmem:[#allocation19 + $0x2e0] sm:$0xff]
        %v3452 = vld [vmem:[#allocation19 + $0x2e8] sm:$0xff]
        %v3453 = vld [vmem:[#allocation19 + $0x2f0] sm:$0xff]
        %v3454 = vld [vmem:[#allocation19 + $0x2f8] sm:$0xff]
        %v3455 = vld [vmem:[#allocation19 + $0x300] sm:$0xff]
        %v3456 = vld [vmem:[#allocation19 + $0x308] sm:$0xff]
        %v3457 = vld [vmem:[#allocation19 + $0x310] sm:$0xff]
        %v3458 = vld [vmem:[#allocation19 + $0x318] sm:$0xff]
        %v3459 = vld [vmem:[#allocation19 + $0x320] sm:$0xff]
        %v3460 = vld [vmem:[#allocation19 + $0x328] sm:$0xff]
        %v3461 = vld [vmem:[#allocation19 + $0x330] sm:$0xff]
        %v3462 = vld [vmem:[#allocation19 + $0x338] sm:$0xff]
        %v3463 = vld [vmem:[#allocation19 + $0x340] sm:$0xff]
        %v3464 = vld [vmem:[#allocation19 + $0x348] sm:$0xff]
        %v3465 = vld [vmem:[#allocation19 + $0x350] sm:$0xff]
        %v3466 = vld [vmem:[#allocation19 + $0x358] sm:$0xff]
        %v3467 = vld [vmem:[#allocation19 + $0x360] sm:$0xff]
        %v3468 = vld [vmem:[#allocation19 + $0x368] sm:$0xff]
        %v3469 = vld [vmem:[#allocation19 + $0x370] sm:$0xff]
        %v3470 = vld [vmem:[#allocation19 + $0x378] sm:$0xff]
        %v3471 = vld [vmem:[#allocation19 + $0x380] sm:$0xff]
        %v3472 = vld [vmem:[#allocation19 + $0x388] sm:$0xff]
        %v3473 = vld [vmem:[#allocation19 + $0x390] sm:$0xff]
        %v3474 = vld [vmem:[#allocation19 + $0x398] sm:$0xff]
        %v3475 = vld [vmem:[#allocation19 + $0x3a0] sm:$0xff]
        %v3476 = vld [vmem:[#allocation19 + $0x3a8] sm:$0xff]
        %v3477 = vld [vmem:[#allocation19 + $0x3b0] sm:$0xff]
        %v3478 = vld [vmem:[#allocation19 + $0x3b8] sm:$0xff]
        %v3479 = vld [vmem:[#allocation19 + $0x3c0] sm:$0xff]
        %v3480 = vld [vmem:[#allocation19 + $0x3c8] sm:$0xff]
        %v3481 = vld [vmem:[#allocation19 + $0x3d0] sm:$0xff]
        %v3482 = vld [vmem:[#allocation19 + $0x3d8] sm:$0xff]
        %v3483 = vld [vmem:[#allocation19 + $0x3e0] sm:$0xff]
        %v3484 = vld [vmem:[#allocation19 + $0x3e8] sm:$0xff]
        %v3485 = vld [vmem:[#allocation19 + $0x3f0] sm:$0xff]
        %v3486 = vld [vmem:[#allocation19 + $0x3f8] sm:$0xff]
        %v3487 = vld [vmem:[%s12] sm:$0x3]
        %v3489 = vperm.slane %v3487, 0
        %v3490 = vperm.slane %v3487, 1
        %v3621 = vunpack.c.l.b16 %v3359
        %v3622 = vunpack.c.h.b16 %v3359
        %v3623 = vunpack.c.l.b16 %v3360
        %v3624 = vunpack.c.h.b16 %v3360
        %v3625 = vunpack.c.l.b16 %v3361
        %v3626 = vunpack.c.h.b16 %v3361
        %v3627 = vunpack.c.l.b16 %v3362
        %v3628 = vunpack.c.h.b16 %v3362
        %v3629 = vunpack.c.l.b16 %v3363
        %v3630 = vunpack.c.h.b16 %v3363
        %v3631 = vunpack.c.l.b16 %v3364
        %v3632 = vunpack.c.h.b16 %v3364
        %v3633 = vunpack.c.l.b16 %v3365
        %v3634 = vunpack.c.h.b16 %v3365
        %v3635 = vunpack.c.l.b16 %v3366
        %v3636 = vunpack.c.h.b16 %v3366
        %v3637 = vunpack.c.l.b16 %v3367
        %v3638 = vunpack.c.h.b16 %v3367
        %v3639 = vunpack.c.l.b16 %v3368
        %v3640 = vunpack.c.h.b16 %v3368
        %v3641 = vunpack.c.l.b16 %v3369
        %v3642 = vunpack.c.h.b16 %v3369
        %v3643 = vunpack.c.l.b16 %v3370
        %v3644 = vunpack.c.h.b16 %v3370
        %v3645 = vunpack.c.l.b16 %v3371
        %v3646 = vunpack.c.h.b16 %v3371
        %v3647 = vunpack.c.l.b16 %v3372
        %v3648 = vunpack.c.h.b16 %v3372
        %v3649 = vunpack.c.l.b16 %v3373
        %v3650 = vunpack.c.h.b16 %v3373
        %v3651 = vunpack.c.l.b16 %v3374
        %v3652 = vunpack.c.h.b16 %v3374
        %v3653 = vunpack.c.l.b16 %v3375
        %v3654 = vunpack.c.h.b16 %v3375
        %v3655 = vunpack.c.l.b16 %v3376
        %v3656 = vunpack.c.h.b16 %v3376
        %v3657 = vunpack.c.l.b16 %v3377
        %v3658 = vunpack.c.h.b16 %v3377
        %v3659 = vunpack.c.l.b16 %v3378
        %v3660 = vunpack.c.h.b16 %v3378
        %v3661 = vunpack.c.l.b16 %v3379
        %v3662 = vunpack.c.h.b16 %v3379
        %v3663 = vunpack.c.l.b16 %v3380
        %v3664 = vunpack.c.h.b16 %v3380
        %v3665 = vunpack.c.l.b16 %v3381
        %v3666 = vunpack.c.h.b16 %v3381
        %v3667 = vunpack.c.l.b16 %v3382
        %v3668 = vunpack.c.h.b16 %v3382
        %v3669 = vunpack.c.l.b16 %v3383
        %v3670 = vunpack.c.h.b16 %v3383
        %v3671 = vunpack.c.l.b16 %v3384
        %v3672 = vunpack.c.h.b16 %v3384
        %v3673 = vunpack.c.l.b16 %v3385
        %v3674 = vunpack.c.h.b16 %v3385
        %v3675 = vunpack.c.l.b16 %v3386
        %v3676 = vunpack.c.h.b16 %v3386
        %v3677 = vunpack.c.l.b16 %v3387
        %v3678 = vunpack.c.h.b16 %v3387
        %v3679 = vunpack.c.l.b16 %v3388
        %v3680 = vunpack.c.h.b16 %v3388
        %v3681 = vunpack.c.l.b16 %v3389
        %v3682 = vunpack.c.h.b16 %v3389
        %v3683 = vunpack.c.l.b16 %v3390
        %v3684 = vunpack.c.h.b16 %v3390
        %v3685 = vunpack.c.l.b16 %v3391
        %v3686 = vunpack.c.h.b16 %v3391
        %v3687 = vunpack.c.l.b16 %v3392
        %v3688 = vunpack.c.h.b16 %v3392
        %v3689 = vunpack.c.l.b16 %v3393
        %v3690 = vunpack.c.h.b16 %v3393
        %v3691 = vunpack.c.l.b16 %v3394
        %v3692 = vunpack.c.h.b16 %v3394
        %v3693 = vunpack.c.l.b16 %v3395
        %v3694 = vunpack.c.h.b16 %v3395
        %v3695 = vunpack.c.l.b16 %v3396
        %v3696 = vunpack.c.h.b16 %v3396
        %v3697 = vunpack.c.l.b16 %v3397
        %v3698 = vunpack.c.h.b16 %v3397
        %v3699 = vunpack.c.l.b16 %v3398
        %v3700 = vunpack.c.h.b16 %v3398
        %v3701 = vunpack.c.l.b16 %v3399
        %v3702 = vunpack.c.h.b16 %v3399
        %v3703 = vunpack.c.l.b16 %v3400
        %v3704 = vunpack.c.h.b16 %v3400
        %v3705 = vunpack.c.l.b16 %v3401
        %v3706 = vunpack.c.h.b16 %v3401
        %v3707 = vunpack.c.l.b16 %v3402
        %v3708 = vunpack.c.h.b16 %v3402
        %v3709 = vunpack.c.l.b16 %v3403
        %v3710 = vunpack.c.h.b16 %v3403
        %v3711 = vunpack.c.l.b16 %v3404
        %v3712 = vunpack.c.h.b16 %v3404
        %v3713 = vunpack.c.l.b16 %v3405
        %v3714 = vunpack.c.h.b16 %v3405
        %v3715 = vunpack.c.l.b16 %v3406
        %v3716 = vunpack.c.h.b16 %v3406
        %v3717 = vunpack.c.l.b16 %v3407
        %v3718 = vunpack.c.h.b16 %v3407
        %v3719 = vunpack.c.l.b16 %v3408
        %v3720 = vunpack.c.h.b16 %v3408
        %v3721 = vunpack.c.l.b16 %v3409
        %v3722 = vunpack.c.h.b16 %v3409
        %v3723 = vunpack.c.l.b16 %v3410
        %v3724 = vunpack.c.h.b16 %v3410
        %v3725 = vunpack.c.l.b16 %v3411
        %v3726 = vunpack.c.h.b16 %v3411
        %v3727 = vunpack.c.l.b16 %v3412
        %v3728 = vunpack.c.h.b16 %v3412
        %v3729 = vunpack.c.l.b16 %v3413
        %v3730 = vunpack.c.h.b16 %v3413
        %v3731 = vunpack.c.l.b16 %v3414
        %v3732 = vunpack.c.h.b16 %v3414
        %v3733 = vunpack.c.l.b16 %v3415
        %v3734 = vunpack.c.h.b16 %v3415
        %v3735 = vunpack.c.l.b16 %v3416
        %v3736 = vunpack.c.h.b16 %v3416
        %v3737 = vunpack.c.l.b16 %v3417
        %v3738 = vunpack.c.h.b16 %v3417
        %v3739 = vunpack.c.l.b16 %v3418
        %v3740 = vunpack.c.h.b16 %v3418
        %v3741 = vunpack.c.l.b16 %v3419
        %v3742 = vunpack.c.h.b16 %v3419
        %v3743 = vunpack.c.l.b16 %v3420
        %v3744 = vunpack.c.h.b16 %v3420
        %v3745 = vunpack.c.l.b16 %v3421
        %v3746 = vunpack.c.h.b16 %v3421
        %v3747 = vunpack.c.l.b16 %v3422
        %v3748 = vunpack.c.h.b16 %v3422
        %v3749 = vunpack.c.l.b16 %v3423
        %v3750 = vunpack.c.h.b16 %v3423
        %v3751 = vunpack.c.l.b16 %v3424
        %v3752 = vunpack.c.h.b16 %v3424
        %v3753 = vunpack.c.l.b16 %v3425
        %v3754 = vunpack.c.h.b16 %v3425
        %v3755 = vunpack.c.l.b16 %v3426
        %v3756 = vunpack.c.h.b16 %v3426
        %v3757 = vunpack.c.l.b16 %v3427
        %v3758 = vunpack.c.h.b16 %v3427
        %v3759 = vunpack.c.l.b16 %v3428
        %v3760 = vunpack.c.h.b16 %v3428
        %v3761 = vunpack.c.l.b16 %v3429
        %v3762 = vunpack.c.h.b16 %v3429
        %v3763 = vunpack.c.l.b16 %v3430
        %v3764 = vunpack.c.h.b16 %v3430
        %v3765 = vunpack.c.l.b16 %v3431
        %v3766 = vunpack.c.h.b16 %v3431
        %v3767 = vunpack.c.l.b16 %v3432
        %v3768 = vunpack.c.h.b16 %v3432
        %v3769 = vunpack.c.l.b16 %v3433
        %v3770 = vunpack.c.h.b16 %v3433
        %v3771 = vunpack.c.l.b16 %v3434
        %v3772 = vunpack.c.h.b16 %v3434
        %v3773 = vunpack.c.l.b16 %v3435
        %v3774 = vunpack.c.h.b16 %v3435
        %v3775 = vunpack.c.l.b16 %v3436
        %v3776 = vunpack.c.h.b16 %v3436
        %v3777 = vunpack.c.l.b16 %v3437
        %v3778 = vunpack.c.h.b16 %v3437
        %v3779 = vunpack.c.l.b16 %v3438
        %v3780 = vunpack.c.h.b16 %v3438
        %v3781 = vunpack.c.l.b16 %v3439
        %v3782 = vunpack.c.h.b16 %v3439
        %v3783 = vunpack.c.l.b16 %v3440
        %v3784 = vunpack.c.h.b16 %v3440
        %v3785 = vunpack.c.l.b16 %v3441
        %v3786 = vunpack.c.h.b16 %v3441
        %v3787 = vunpack.c.l.b16 %v3442
        %v3788 = vunpack.c.h.b16 %v3442
        %v3789 = vunpack.c.l.b16 %v3443
        %v3790 = vunpack.c.h.b16 %v3443
        %v3791 = vunpack.c.l.b16 %v3444
        %v3792 = vunpack.c.h.b16 %v3444
        %v3793 = vunpack.c.l.b16 %v3445
        %v3794 = vunpack.c.h.b16 %v3445
        %v3795 = vunpack.c.l.b16 %v3446
        %v3796 = vunpack.c.h.b16 %v3446
        %v3797 = vunpack.c.l.b16 %v3447
        %v3798 = vunpack.c.h.b16 %v3447
        %v3799 = vunpack.c.l.b16 %v3448
        %v3800 = vunpack.c.h.b16 %v3448
        %v3801 = vunpack.c.l.b16 %v3449
        %v3802 = vunpack.c.h.b16 %v3449
        %v3803 = vunpack.c.l.b16 %v3450
        %v3804 = vunpack.c.h.b16 %v3450
        %v3805 = vunpack.c.l.b16 %v3451
        %v3806 = vunpack.c.h.b16 %v3451
        %v3807 = vunpack.c.l.b16 %v3452
        %v3808 = vunpack.c.h.b16 %v3452
        %v3809 = vunpack.c.l.b16 %v3453
        %v3810 = vunpack.c.h.b16 %v3453
        %v3811 = vunpack.c.l.b16 %v3454
        %v3812 = vunpack.c.h.b16 %v3454
        %v3813 = vunpack.c.l.b16 %v3455
        %v3814 = vunpack.c.h.b16 %v3455
        %v3815 = vunpack.c.l.b16 %v3456
        %v3816 = vunpack.c.h.b16 %v3456
        %v3817 = vunpack.c.l.b16 %v3457
        %v3818 = vunpack.c.h.b16 %v3457
        %v3819 = vunpack.c.l.b16 %v3458
        %v3820 = vunpack.c.h.b16 %v3458
        %v3821 = vunpack.c.l.b16 %v3459
        %v3822 = vunpack.c.h.b16 %v3459
        %v3823 = vunpack.c.l.b16 %v3460
        %v3824 = vunpack.c.h.b16 %v3460
        %v3825 = vunpack.c.l.b16 %v3461
        %v3826 = vunpack.c.h.b16 %v3461
        %v3827 = vunpack.c.l.b16 %v3462
        %v3828 = vunpack.c.h.b16 %v3462
        %v3829 = vunpack.c.l.b16 %v3463
        %v3830 = vunpack.c.h.b16 %v3463
        %v3831 = vunpack.c.l.b16 %v3464
        %v3832 = vunpack.c.h.b16 %v3464
        %v3833 = vunpack.c.l.b16 %v3465
        %v3834 = vunpack.c.h.b16 %v3465
        %v3835 = vunpack.c.l.b16 %v3466
        %v3836 = vunpack.c.h.b16 %v3466
        %v3837 = vunpack.c.l.b16 %v3467
        %v3838 = vunpack.c.h.b16 %v3467
        %v3839 = vunpack.c.l.b16 %v3468
        %v3840 = vunpack.c.h.b16 %v3468
        %v3841 = vunpack.c.l.b16 %v3469
        %v3842 = vunpack.c.h.b16 %v3469
        %v3843 = vunpack.c.l.b16 %v3470
        %v3844 = vunpack.c.h.b16 %v3470
        %v3845 = vunpack.c.l.b16 %v3471
        %v3846 = vunpack.c.h.b16 %v3471
        %v3847 = vunpack.c.l.b16 %v3472
        %v3848 = vunpack.c.h.b16 %v3472
        %v3849 = vunpack.c.l.b16 %v3473
        %v3850 = vunpack.c.h.b16 %v3473
        %v3851 = vunpack.c.l.b16 %v3474
        %v3852 = vunpack.c.h.b16 %v3474
        %v3853 = vunpack.c.l.b16 %v3475
        %v3854 = vunpack.c.h.b16 %v3475
        %v3855 = vunpack.c.l.b16 %v3476
        %v3856 = vunpack.c.h.b16 %v3476
        %v3857 = vunpack.c.l.b16 %v3477
        %v3858 = vunpack.c.h.b16 %v3477
        %v3859 = vunpack.c.l.b16 %v3478
        %v3860 = vunpack.c.h.b16 %v3478
        %v3861 = vunpack.c.l.b16 %v3479
        %v3862 = vunpack.c.h.b16 %v3479
        %v3863 = vunpack.c.l.b16 %v3480
        %v3864 = vunpack.c.h.b16 %v3480
        %v3865 = vunpack.c.l.b16 %v3481
        %v3866 = vunpack.c.h.b16 %v3481
        %v3867 = vunpack.c.l.b16 %v3482
        %v3868 = vunpack.c.h.b16 %v3482
        %v3869 = vunpack.c.l.b16 %v3483
        %v3870 = vunpack.c.h.b16 %v3483
        %v3871 = vunpack.c.l.b16 %v3484
        %v3872 = vunpack.c.h.b16 %v3484
        %v3873 = vunpack.c.l.b16 %v3485
        %v3874 = vunpack.c.h.b16 %v3485
        %v3875 = vunpack.c.l.b16 %v3486
        %v3876 = vunpack.c.h.b16 %v3486
        %v3877 = vpack.c.b16 %v3623, %v3621
        %v3878 = vpack.c.b16 %v3624, %v3622
        %v3879 = vpack.c.b16 %v3627, %v3625
        %v3880 = vpack.c.b16 %v3628, %v3626
        %v3881 = vpack.c.b16 %v3631, %v3629
        %v3882 = vpack.c.b16 %v3632, %v3630
        %v3883 = vpack.c.b16 %v3635, %v3633
        %v3884 = vpack.c.b16 %v3636, %v3634
        %v3885 = vpack.c.b16 %v3639, %v3637
        %v3886 = vpack.c.b16 %v3640, %v3638
        %v3887 = vpack.c.b16 %v3643, %v3641
        %v3888 = vpack.c.b16 %v3644, %v3642
        %v3889 = vpack.c.b16 %v3647, %v3645
        %v3890 = vpack.c.b16 %v3648, %v3646
        %v3891 = vpack.c.b16 %v3651, %v3649
        %v3892 = vpack.c.b16 %v3652, %v3650
        %v3893 = vpack.c.b16 %v3655, %v3653
        %v3894 = vpack.c.b16 %v3656, %v3654
        %v3895 = vpack.c.b16 %v3659, %v3657
        %v3896 = vpack.c.b16 %v3660, %v3658
        %v3897 = vpack.c.b16 %v3663, %v3661
        %v3898 = vpack.c.b16 %v3664, %v3662
        %v3899 = vpack.c.b16 %v3667, %v3665
        %v3900 = vpack.c.b16 %v3668, %v3666
        %v3901 = vpack.c.b16 %v3671, %v3669
        %v3902 = vpack.c.b16 %v3672, %v3670
        %v3903 = vpack.c.b16 %v3675, %v3673
        %v3904 = vpack.c.b16 %v3676, %v3674
        %v3905 = vpack.c.b16 %v3679, %v3677
        %v3906 = vpack.c.b16 %v3680, %v3678
        %v3907 = vpack.c.b16 %v3683, %v3681
        %v3908 = vpack.c.b16 %v3684, %v3682
        %v3909 = vpack.c.b16 %v3687, %v3685
        %v3910 = vpack.c.b16 %v3688, %v3686
        %v3911 = vpack.c.b16 %v3691, %v3689
        %v3912 = vpack.c.b16 %v3692, %v3690
        %v3913 = vpack.c.b16 %v3695, %v3693
        %v3914 = vpack.c.b16 %v3696, %v3694
        %v3915 = vpack.c.b16 %v3699, %v3697
        %v3916 = vpack.c.b16 %v3700, %v3698
        %v3917 = vpack.c.b16 %v3703, %v3701
        %v3918 = vpack.c.b16 %v3704, %v3702
        %v3919 = vpack.c.b16 %v3707, %v3705
        %v3920 = vpack.c.b16 %v3708, %v3706
        %v3921 = vpack.c.b16 %v3711, %v3709
        %v3922 = vpack.c.b16 %v3712, %v3710
        %v3923 = vpack.c.b16 %v3715, %v3713
        %v3924 = vpack.c.b16 %v3716, %v3714
        %v3925 = vpack.c.b16 %v3719, %v3717
        %v3926 = vpack.c.b16 %v3720, %v3718
        %v3927 = vpack.c.b16 %v3723, %v3721
        %v3928 = vpack.c.b16 %v3724, %v3722
        %v3929 = vpack.c.b16 %v3727, %v3725
        %v3930 = vpack.c.b16 %v3728, %v3726
        %v3931 = vpack.c.b16 %v3731, %v3729
        %v3932 = vpack.c.b16 %v3732, %v3730
        %v3933 = vpack.c.b16 %v3735, %v3733
        %v3934 = vpack.c.b16 %v3736, %v3734
        %v3935 = vpack.c.b16 %v3739, %v3737
        %v3936 = vpack.c.b16 %v3740, %v3738
        %v3937 = vpack.c.b16 %v3743, %v3741
        %v3938 = vpack.c.b16 %v3744, %v3742
        %v3939 = vpack.c.b16 %v3747, %v3745
        %v3940 = vpack.c.b16 %v3748, %v3746
        %v3941 = vpack.c.b16 %v3751, %v3749
        %v3942 = vpack.c.b16 %v3752, %v3750
        %v3943 = vpack.c.b16 %v3755, %v3753
        %v3944 = vpack.c.b16 %v3756, %v3754
        %v3945 = vpack.c.b16 %v3759, %v3757
        %v3946 = vpack.c.b16 %v3760, %v3758
        %v3947 = vpack.c.b16 %v3763, %v3761
        %v3948 = vpack.c.b16 %v3764, %v3762
        %v3949 = vpack.c.b16 %v3767, %v3765
        %v3950 = vpack.c.b16 %v3768, %v3766
        %v3951 = vpack.c.b16 %v3771, %v3769
        %v3952 = vpack.c.b16 %v3772, %v3770
        %v3953 = vpack.c.b16 %v3775, %v3773
        %v3954 = vpack.c.b16 %v3776, %v3774
        %v3955 = vpack.c.b16 %v3779, %v3777
        %v3956 = vpack.c.b16 %v3780, %v3778
        %v3957 = vpack.c.b16 %v3783, %v3781
        %v3958 = vpack.c.b16 %v3784, %v3782
        %v3959 = vpack.c.b16 %v3787, %v3785
        %v3960 = vpack.c.b16 %v3788, %v3786
        %v3961 = vpack.c.b16 %v3791, %v3789
        %v3962 = vpack.c.b16 %v3792, %v3790
        %v3963 = vpack.c.b16 %v3795, %v3793
        %v3964 = vpack.c.b16 %v3796, %v3794
        %v3965 = vpack.c.b16 %v3799, %v3797
        %v3966 = vpack.c.b16 %v3800, %v3798
        %v3967 = vpack.c.b16 %v3803, %v3801
        %v3968 = vpack.c.b16 %v3804, %v3802
        %v3969 = vpack.c.b16 %v3807, %v3805
        %v3970 = vpack.c.b16 %v3808, %v3806
        %v3971 = vpack.c.b16 %v3811, %v3809
        %v3972 = vpack.c.b16 %v3812, %v3810
        %v3973 = vpack.c.b16 %v3815, %v3813
        %v3974 = vpack.c.b16 %v3816, %v3814
        %v3975 = vpack.c.b16 %v3819, %v3817
        %v3976 = vpack.c.b16 %v3820, %v3818
        %v3977 = vpack.c.b16 %v3823, %v3821
        %v3978 = vpack.c.b16 %v3824, %v3822
        %v3979 = vpack.c.b16 %v3827, %v3825
        %v3980 = vpack.c.b16 %v3828, %v3826
        %v3981 = vpack.c.b16 %v3831, %v3829
        %v3982 = vpack.c.b16 %v3832, %v3830
        %v3983 = vpack.c.b16 %v3835, %v3833
        %v3984 = vpack.c.b16 %v3836, %v3834
        %v3985 = vpack.c.b16 %v3839, %v3837
        %v3986 = vpack.c.b16 %v3840, %v3838
        %v3987 = vpack.c.b16 %v3843, %v3841
        %v3988 = vpack.c.b16 %v3844, %v3842
        %v3989 = vpack.c.b16 %v3847, %v3845
        %v3990 = vpack.c.b16 %v3848, %v3846
        %v3991 = vpack.c.b16 %v3851, %v3849
        %v3992 = vpack.c.b16 %v3852, %v3850
        %v3993 = vpack.c.b16 %v3855, %v3853
        %v3994 = vpack.c.b16 %v3856, %v3854
        %v3995 = vpack.c.b16 %v3859, %v3857
        %v3996 = vpack.c.b16 %v3860, %v3858
        %v3997 = vpack.c.b16 %v3863, %v3861
        %v3998 = vpack.c.b16 %v3864, %v3862
        %v3999 = vpack.c.b16 %v3867, %v3865
        %v4000 = vpack.c.b16 %v3868, %v3866
        %v4001 = vpack.c.b16 %v3871, %v3869
        %v4002 = vpack.c.b16 %v3872, %v3870
        %v4003 = vpack.c.b16 %v3875, %v3873
        %v4004 = vpack.c.b16 %v3876, %v3874
        %4133 = vmatpush.bf16.msra.mxu0 %v3891
        %4134 = vmatpush.bf16.msra.mxu0 %v3889
        %4135 = vmatpush.bf16.msra.mxu0 %v3887
        %4136 = vmatpush.bf16.msra.mxu0 %v3885
        %4137 = vmatpush.bf16.msra.mxu0 %v3883
        %4138 = vmatpush.bf16.msra.mxu0 %v3881
        %4139 = vmatpush.bf16.msra.mxu0 %v3879
        %4140 = vmatpush.bf16.msra.mxu0 %v3877
        %4141 = vmatmul.bf16.gmra.mxu0 %v3351
        %v4142 = vpop.f32.mrf.mxu0
        %v4143 = vadd.f32 %v3489, %v4142
        %v4144 = vpop.f32.mrf.mxu0
        %v4145 = vadd.f32 %v3489, %v4144
        %4146 = vdwg.mxu0
        %4147 = vmatpush.bf16.msra.mxu0 %v3907
        %4148 = vmatpush.bf16.msra.mxu0 %v3905
        %4149 = vmatpush.bf16.msra.mxu0 %v3903
        %4150 = vmatpush.bf16.msra.mxu0 %v3901
        %4151 = vmatpush.bf16.msra.mxu0 %v3899
        %4152 = vmatpush.bf16.msra.mxu0 %v3897
        %4153 = vmatpush.bf16.msra.mxu0 %v3895
        %4154 = vmatpush.bf16.msra.mxu0 %v3893
        %4155 = vmatmul.bf16.gmra.mxu0 %v3352
        %v4156 = vpop.f32.mrf.mxu0
        %v4157 = vadd.f32 %v4143, %v4156
        %v4158 = vpop.f32.mrf.mxu0
        %v4159 = vadd.f32 %v4145, %v4158
        %4160 = vdwg.mxu0
        %4161 = vmatpush.bf16.msra.mxu0 %v3923
        %4162 = vmatpush.bf16.msra.mxu0 %v3921
        %4163 = vmatpush.bf16.msra.mxu0 %v3919
        %4164 = vmatpush.bf16.msra.mxu0 %v3917
        %4165 = vmatpush.bf16.msra.mxu0 %v3915
        %4166 = vmatpush.bf16.msra.mxu0 %v3913
        %4167 = vmatpush.bf16.msra.mxu0 %v3911
        %4168 = vmatpush.bf16.msra.mxu0 %v3909
        %4169 = vmatmul.bf16.gmra.mxu0 %v3353
        %v4170 = vpop.f32.mrf.mxu0
        %v4171 = vadd.f32 %v4157, %v4170
        %v4172 = vpop.f32.mrf.mxu0
        %v4173 = vadd.f32 %v4159, %v4172
        %4174 = vdwg.mxu0
        %4175 = vmatpush.bf16.msra.mxu0 %v3939
        %4176 = vmatpush.bf16.msra.mxu0 %v3937
        %4177 = vmatpush.bf16.msra.mxu0 %v3935
        %4178 = vmatpush.bf16.msra.mxu0 %v3933
        %4179 = vmatpush.bf16.msra.mxu0 %v3931
        %4180 = vmatpush.bf16.msra.mxu0 %v3929
        %4181 = vmatpush.bf16.msra.mxu0 %v3927
        %4182 = vmatpush.bf16.msra.mxu0 %v3925
        %4183 = vmatmul.bf16.gmra.mxu0 %v3354
        %v4184 = vpop.f32.mrf.mxu0
        %v4185 = vadd.f32 %v4171, %v4184
        %v4186 = vpop.f32.mrf.mxu0
        %v4187 = vadd.f32 %v4173, %v4186
        %4188 = vdwg.mxu0
        %4189 = vmatpush.bf16.msra.mxu0 %v3955
        %4190 = vmatpush.bf16.msra.mxu0 %v3953
        %4191 = vmatpush.bf16.msra.mxu0 %v3951
        %4192 = vmatpush.bf16.msra.mxu0 %v3949
        %4193 = vmatpush.bf16.msra.mxu0 %v3947
        %4194 = vmatpush.bf16.msra.mxu0 %v3945
        %4195 = vmatpush.bf16.msra.mxu0 %v3943
        %4196 = vmatpush.bf16.msra.mxu0 %v3941
        %4197 = vmatmul.bf16.gmra.mxu0 %v3355
        %v4198 = vpop.f32.mrf.mxu0
        %v4199 = vadd.f32 %v4185, %v4198
        %v4200 = vpop.f32.mrf.mxu0
        %v4201 = vadd.f32 %v4187, %v4200
        %4202 = vdwg.mxu0
        %4203 = vmatpush.bf16.msra.mxu0 %v3971
        %4204 = vmatpush.bf16.msra.mxu0 %v3969
        %4205 = vmatpush.bf16.msra.mxu0 %v3967
        %4206 = vmatpush.bf16.msra.mxu0 %v3965
        %4207 = vmatpush.bf16.msra.mxu0 %v3963
        %4208 = vmatpush.bf16.msra.mxu0 %v3961
        %4209 = vmatpush.bf16.msra.mxu0 %v3959
        %4210 = vmatpush.bf16.msra.mxu0 %v3957
        %4211 = vmatmul.bf16.gmra.mxu0 %v3356
        %v4212 = vpop.f32.mrf.mxu0
        %v4213 = vadd.f32 %v4199, %v4212
        %v4214 = vpop.f32.mrf.mxu0
        %v4215 = vadd.f32 %v4201, %v4214
        %4216 = vdwg.mxu0
        %4217 = vmatpush.bf16.msra.mxu0 %v3987
        %4218 = vmatpush.bf16.msra.mxu0 %v3985
        %4219 = vmatpush.bf16.msra.mxu0 %v3983
        %4220 = vmatpush.bf16.msra.mxu0 %v3981
        %4221 = vmatpush.bf16.msra.mxu0 %v3979
        %4222 = vmatpush.bf16.msra.mxu0 %v3977
        %4223 = vmatpush.bf16.msra.mxu0 %v3975
        %4224 = vmatpush.bf16.msra.mxu0 %v3973
        %4225 = vmatmul.bf16.gmra.mxu0 %v3357
        %v4226 = vpop.f32.mrf.mxu0
        %v4227 = vadd.f32 %v4213, %v4226
        %v4228 = vpop.f32.mrf.mxu0
        %v4229 = vadd.f32 %v4215, %v4228
        %4230 = vdwg.mxu0
        %4231 = vmatpush.bf16.msra.mxu0 %v4003
        %4232 = vmatpush.bf16.msra.mxu0 %v4001
        %4233 = vmatpush.bf16.msra.mxu0 %v3999
        %4234 = vmatpush.bf16.msra.mxu0 %v3997
        %4235 = vmatpush.bf16.msra.mxu0 %v3995
        %4236 = vmatpush.bf16.msra.mxu0 %v3993
        %4237 = vmatpush.bf16.msra.mxu0 %v3991
        %4238 = vmatpush.bf16.msra.mxu0 %v3989
        %4239 = vmatmul.bf16.gmra.mxu0 %v3358
        %v4240 = vpop.f32.mrf.mxu0
        %v4241 = vadd.f32 %v4227, %v4240
        %v4242 = vpop.f32.mrf.mxu0
        %v4243 = vadd.f32 %v4229, %v4242
        %4244 = vdwg.mxu0
        %4245 = vmatpush.bf16.msra.mxu0 %v3892
        %4246 = vmatpush.bf16.msra.mxu0 %v3890
        %4247 = vmatpush.bf16.msra.mxu0 %v3888
        %4248 = vmatpush.bf16.msra.mxu0 %v3886
        %4249 = vmatpush.bf16.msra.mxu0 %v3884
        %4250 = vmatpush.bf16.msra.mxu0 %v3882
        %4251 = vmatpush.bf16.msra.mxu0 %v3880
        %4252 = vmatpush.bf16.msra.mxu0 %v3878
        %4253 = vmatmul.bf16.gmra.mxu0 %v3351
        %v4254 = vpop.f32.mrf.mxu0
        %v4255 = vadd.f32 %v3490, %v4254
        %v4256 = vpop.f32.mrf.mxu0
        %v4257 = vadd.f32 %v3490, %v4256
        %4258 = vdwg.mxu0
        %4259 = vmatpush.bf16.msra.mxu0 %v3908
        %4260 = vmatpush.bf16.msra.mxu0 %v3906
        %4261 = vmatpush.bf16.msra.mxu0 %v3904
        %4262 = vmatpush.bf16.msra.mxu0 %v3902
        %4263 = vmatpush.bf16.msra.mxu0 %v3900
        %4264 = vmatpush.bf16.msra.mxu0 %v3898
        %4265 = vmatpush.bf16.msra.mxu0 %v3896
        %4266 = vmatpush.bf16.msra.mxu0 %v3894
        %4267 = vmatmul.bf16.gmra.mxu0 %v3352
        %v4268 = vpop.f32.mrf.mxu0
        %v4269 = vadd.f32 %v4255, %v4268
        %v4270 = vpop.f32.mrf.mxu0
        %v4271 = vadd.f32 %v4257, %v4270
        %4272 = vdwg.mxu0
        %4273 = vmatpush.bf16.msra.mxu0 %v3924
        %4274 = vmatpush.bf16.msra.mxu0 %v3922
        %4275 = vmatpush.bf16.msra.mxu0 %v3920
        %4276 = vmatpush.bf16.msra.mxu0 %v3918
        %4277 = vmatpush.bf16.msra.mxu0 %v3916
        %4278 = vmatpush.bf16.msra.mxu0 %v3914
        %4279 = vmatpush.bf16.msra.mxu0 %v3912
        %4280 = vmatpush.bf16.msra.mxu0 %v3910
        %4281 = vmatmul.bf16.gmra.mxu0 %v3353
        %v4282 = vpop.f32.mrf.mxu0
        %v4283 = vadd.f32 %v4269, %v4282
        %v4284 = vpop.f32.mrf.mxu0
        %v4285 = vadd.f32 %v4271, %v4284
        %4286 = vdwg.mxu0
        %4287 = vmatpush.bf16.msra.mxu0 %v3940
        %4288 = vmatpush.bf16.msra.mxu0 %v3938
        %4289 = vmatpush.bf16.msra.mxu0 %v3936
        %4290 = vmatpush.bf16.msra.mxu0 %v3934
        %4291 = vmatpush.bf16.msra.mxu0 %v3932
        %4292 = vmatpush.bf16.msra.mxu0 %v3930
        %4293 = vmatpush.bf16.msra.mxu0 %v3928
        %4294 = vmatpush.bf16.msra.mxu0 %v3926
        %4295 = vmatmul.bf16.gmra.mxu0 %v3354
        %v4296 = vpop.f32.mrf.mxu0
        %v4297 = vadd.f32 %v4283, %v4296
        %v4298 = vpop.f32.mrf.mxu0
        %v4299 = vadd.f32 %v4285, %v4298
        %4300 = vdwg.mxu0
        %4301 = vmatpush.bf16.msra.mxu0 %v3956
        %4302 = vmatpush.bf16.msra.mxu0 %v3954
        %4303 = vmatpush.bf16.msra.mxu0 %v3952
        %4304 = vmatpush.bf16.msra.mxu0 %v3950
        %4305 = vmatpush.bf16.msra.mxu0 %v3948
        %4306 = vmatpush.bf16.msra.mxu0 %v3946
        %4307 = vmatpush.bf16.msra.mxu0 %v3944
        %4308 = vmatpush.bf16.msra.mxu0 %v3942
        %4309 = vmatmul.bf16.gmra.mxu0 %v3355
        %v4310 = vpop.f32.mrf.mxu0
        %v4311 = vadd.f32 %v4297, %v4310
        %v4312 = vpop.f32.mrf.mxu0
        %v4313 = vadd.f32 %v4299, %v4312
        %4314 = vdwg.mxu0
        %4315 = vmatpush.bf16.msra.mxu0 %v3972
        %4316 = vmatpush.bf16.msra.mxu0 %v3970
        %4317 = vmatpush.bf16.msra.mxu0 %v3968
        %4318 = vmatpush.bf16.msra.mxu0 %v3966
        %4319 = vmatpush.bf16.msra.mxu0 %v3964
        %4320 = vmatpush.bf16.msra.mxu0 %v3962
        %4321 = vmatpush.bf16.msra.mxu0 %v3960
        %4322 = vmatpush.bf16.msra.mxu0 %v3958
        %4323 = vmatmul.bf16.gmra.mxu0 %v3356
        %v4324 = vpop.f32.mrf.mxu0
        %v4325 = vadd.f32 %v4311, %v4324
        %v4326 = vpop.f32.mrf.mxu0
        %v4327 = vadd.f32 %v4313, %v4326
        %4328 = vdwg.mxu0
        %4329 = vmatpush.bf16.msra.mxu0 %v3988
        %4330 = vmatpush.bf16.msra.mxu0 %v3986
        %4331 = vmatpush.bf16.msra.mxu0 %v3984
        %4332 = vmatpush.bf16.msra.mxu0 %v3982
        %4333 = vmatpush.bf16.msra.mxu0 %v3980
        %4334 = vmatpush.bf16.msra.mxu0 %v3978
        %4335 = vmatpush.bf16.msra.mxu0 %v3976
        %4336 = vmatpush.bf16.msra.mxu0 %v3974
        %4337 = vmatmul.bf16.gmra.mxu0 %v3357
        %v4338 = vpop.f32.mrf.mxu0
        %v4339 = vadd.f32 %v4325, %v4338
        %v4340 = vpop.f32.mrf.mxu0
        %v4341 = vadd.f32 %v4327, %v4340
        %4342 = vdwg.mxu0
        %4343 = vmatpush.bf16.msra.mxu0 %v4004
        %4344 = vmatpush.bf16.msra.mxu0 %v4002
        %4345 = vmatpush.bf16.msra.mxu0 %v4000
        %4346 = vmatpush.bf16.msra.mxu0 %v3998
        %4347 = vmatpush.bf16.msra.mxu0 %v3996
        %4348 = vmatpush.bf16.msra.mxu0 %v3994
        %4349 = vmatpush.bf16.msra.mxu0 %v3992
        %4350 = vmatpush.bf16.msra.mxu0 %v3990
        %4351 = vmatmul.bf16.gmra.mxu0 %v3358
        %v4352 = vpop.f32.mrf.mxu0
        %v4353 = vadd.f32 %v4339, %v4352
        %v4354 = vpop.f32.mrf.mxu0
        %v4355 = vadd.f32 %v4341, %v4354
        %4356 = vdwg.mxu0
        %v4357 = vadd.f32 %v1929, %v4241
        %v4358 = vadd.f32 %v1930, %v4353
        %v4359 = vadd.f32 %v1931, %v4243
        %v4360 = vadd.f32 %v1932, %v4355
        %4361 = vst [vmem:[%s614] sm:$0xff] %v4357
        %4362 = vst [vmem:[%s614 + $0x8] sm:$0xff] %v4358
        %4363 = vst [vmem:[%s614 + $0x10] sm:$0xff] %v4359
        %4364 = vst [vmem:[%s614 + $0x18] sm:$0xff] %v4360
        %s4365 = sand.u32 %s321, 1
        %s4366 = scalar_lea.sflag [#allocation4], %s4365
        %s4367 = sand.u32 %s321, 1
        %s4368 = smul.addr %s4367, 32
        %s4369 = scalar_lea.vmem [#allocation20], %s4368
        // Predicated region
        $region117: #{tpu_custom_call.1} parent=71 // pred_check
          %p4370 = pneg %p331
        $region118: #{tpu_custom_call.1} parent=71 // pred_check_branch
          %4372 = sbr.rel (%p4370) target = $region120
        $region119: #{tpu_custom_call.1} parent=71 // pred_region
          %s4373 = smul.u32 2, %s35
          %4375 = vsyncadd %s4366, 0
          %s4376 = smul.addr %s4373, 2
          %s4377 = smul.addr %s4376, 8
          %s4378 = scalar_lea.hbm %s13, %s4377
          %s4379 = sshll.u32 %s4369, 4
          %s4380 = int_to_ptr.vmem [resolvable:$true] %s4379
          %s4381 = sshll.u32 %s4378, 4
          %s4382 = int_to_ptr.hbm [resolvable:$true] %s4381
          %4387 = dma.vmem_to_hbm [thread:$0]  %s4380, 512, %s4382, %s4366, 256, 256, 16
        $region120: #{tpu_custom_call.1} parent=71 // pred_fallthru
          _
      $region72: #{tpu_custom_call.1} parent=5 // pred_fallthru
        _
      %p4388 = scmp.le.s32.totalorder 2, %s30
      // Predicated region
      $region121: #{tpu_custom_call.1} parent=5 // pred_check
        %p4389 = pneg %p4388
      $region122: #{tpu_custom_call.1} parent=5 // pred_check_branch
        %4391 = sbr.rel (%p4389) target = $region124
      $region123: #{tpu_custom_call.1} parent=5 // pred_region
        %s4392 = ssub.s32 %s30, 2
        // Predicated region
        $region125: #{tpu_custom_call.1} parent=123 // pred_check
          %p4393 = pneg %p337
        $region126: #{tpu_custom_call.1} parent=123 // pred_check_branch
          %4395 = sbr.rel (%p4393) target = $region128
        $region127: #{tpu_custom_call.1} parent=123 // pred_region
          %s4396 = sand.u32 %s322, 1
          %s4397 = scalar_lea.sflag [#allocation4], %s4396
          %s4398 = sand.u32 %s322, 1
          %s4399 = smul.addr %s4398, 32
          %s4400 = scalar_lea.vmem [#allocation20], %s4399
          %4402 = dma.done %s4397, 512
        $region128: #{tpu_custom_call.1} parent=123 // pred_fallthru
          _
      $region124: #{tpu_custom_call.1} parent=5 // pred_fallthru
        _
    $region6: #{tpu_custom_call.1} parent=1 // loop_footer
      %s34 = sadd.s32 1, %s30
    $region7: #{tpu_custom_call.1} parent=1 // loop_footer_branch
      %29 = sbr.rel target = $region3
    $region8: #{tpu_custom_call.1} parent=1 // loop_exit
      _
    %4403 = vsyncpa [#allocation3], 1
    %s4404 = scalar_lea.sflag [#allocation3], 1
    %4405 = vsyncpa %s4404, 1
    %4406 = vsyncpa [#allocation6], 1
    %4407 = vsyncpa [#allocation9], 1
    %4408 = vsyncpa [#allocation12], 1
    %4409 = vsyncpa [#allocation15], 1
    %4410 = vsyncpa [#allocation18], 1
    %4411 = vsyncpa [#allocation4], 1
    %s4412 = scalar_lea.sflag [#allocation4], 1
    %4413 = vsyncpa %s4412, 1

// kernel: tpu_custom_call.1
$region0: #{tpu_custom_call.1}
  #allocation0 [shape = 'u32[]', space=smem, size = 0x4, offset = 0x4, fixed_abs, tag = 'smem constant byte address 0x4 - core index']
  #allocation1 [shape = 'u32[72,128]{1,0:T(1,128)}', space=vmem, size = 0x9000, scoped, tag = 'internal scratch']
  %s0 = inlined_call_operand.hbm [shape: f32[4,8,256], index: 0, kind: input, shape index: {}]
  %s1 = inlined_call_operand.hbm [shape: f32[1,256], index: 1, kind: input, shape index: {}]
  %s2 = inlined_call_operand.hbm [shape: f32[1,256], index: 2, kind: input, shape index: {}]
  %s3 = inlined_call_operand.hbm [shape: bf16[256,768], index: 3, kind: input, shape index: {}]
  %s4 = inlined_call_operand.hbm [shape: f32[1,768], index: 4, kind: input, shape index: {}]
  %s5 = inlined_call_operand.hbm [shape: bf16[256,256], index: 5, kind: input, shape index: {}]
  %s6 = inlined_call_operand.hbm [shape: f32[1,256], index: 6, kind: input, shape index: {}]
  %s7 = inlined_call_operand.hbm [shape: f32[1,256], index: 7, kind: input, shape index: {}]
  %s8 = inlined_call_operand.hbm [shape: f32[1,256], index: 8, kind: input, shape index: {}]
  %s9 = inlined_call_operand.hbm [shape: bf16[256,1024], index: 9, kind: input, shape index: {}]
  %s10 = inlined_call_operand.vmem [shape: f32[1,1024], index: 10, kind: input, shape index: {}]
  %s11 = inlined_call_operand.hbm [shape: bf16[1024,256], index: 11, kind: input, shape index: {}]
  %s12 = inlined_call_operand.vmem [shape: f32[1,256], index: 12, kind: input, shape index: {}]
  %s13 = inlined_call_operand.hbm [shape: f32[4,8,256], index: 13, kind: output, shape index: {}]
  %s14 = sld [smem:[#allocation0]]
  $region129: #{tpu_custom_call.1} parent=0
    _
  %s16 = ssub.s32 1, %s14
  %s17 = scalar_select 0, %s16, %s14
  $region1: #{tpu_custom_call.1} parent=0
    #allocation2 [shape = 'u8[32768]{0}', space=vmem, size = 0x8000, scoped, tag = 'input window, operand 0']
    #allocation3 [shape = 's32[2]{0}', space=sflag, size = 0x8, scoped, tag = 'scoped memory for tpu_custom_call.1']
    #allocation4 [shape = 's32[2]{0}', space=sflag, size = 0x8, scoped, tag = 'scoped memory for tpu_custom_call.1']
    #allocation5 [shape = 'u8[1024]{0}', space=vmem, size = 0x400, scoped, tag = 'input window, operand 1, single buffered']
    #allocation6 [shape = 's32[1]{0}', space=sflag, size = 0x4, scoped, tag = 'scoped memory for tpu_custom_call.1']
    #allocation7 [shape = 'u8[1024]{0}', space=vmem, size = 0x400, scoped, tag = 'input window, operand 2, single buffered']
    #allocation8 [shape = 'u8[393216]{0}', space=vmem, size = 0x60000, scoped, tag = 'input window, operand 3, single buffered']
    #allocation9 [shape = 's32[1]{0}', space=sflag, size = 0x4, scoped, tag = 'scoped memory for tpu_custom_call.1']
    #allocation10 [shape = 'u8[3072]{0}', space=vmem, size = 0xc00, scoped, tag = 'input window, operand 4, single buffered']
    #allocation11 [shape = 'u8[131072]{0}', space=vmem, size = 0x20000, scoped, tag = 'input window, operand 5, single buffered']
    #allocation12 [shape = 's32[1]{0}', space=sflag, size = 0x4, scoped, tag = 'scoped memory for tpu_custom_call.1']
    #allocation13 [shape = 'u8[1024]{0}', space=vmem, size = 0x400, scoped, tag = 'input window, operand 6, single buffered']
    #allocation14 [shape = 'u8[1024]{0}', space=vmem, size = 0x400, scoped, tag = 'input window, operand 7, single buffered']
    #allocation15 [shape = 's32[1]{0}', space=sflag, size = 0x4, scoped, tag = 'scoped memory for tpu_custom_call.1']
    #allocation16 [shape = 'u8[1024]{0}', space=vmem, size = 0x400, scoped, tag = 'input window, operand 8, single buffered']
    #allocation17 [shape = 'u8[524288]{0}', space=vmem, size = 0x80000, scoped, tag = 'input window, operand 9, single buffered']
    #allocation18 [shape = 's32[1]{0}', space=sflag, size = 0x4, scoped, tag = 'scoped memory for tpu_custom_call.1']
    #allocation19 [shape = 'u8[524288]{0}', space=vmem, size = 0x80000, scoped, tag = 'input window, operand 11, single buffered']
    #allocation20 [shape = 'u8[32768]{0}', space=vmem, size = 0x8000, scoped, tag = 'output window, operand 0']
    %18 = vsyncpa [#allocation3], 0
    %s19 = scalar_lea.sflag [#allocation3], 1
    %20 = vsyncpa %s19, 0
    %21 = vsyncpa [#allocation6], 0
    %22 = vsyncpa [#allocation9], 0
    %23 = vsyncpa [#allocation12], 0
    %24 = vsyncpa [#allocation15], 0
    %25 = vsyncpa [#allocation18], 0
    %26 = vsyncpa [#allocation4], 0
    %s27 = scalar_lea.sflag [#allocation4], 1
    %28 = vsyncpa %s27, 0
    loop: start=0, step=1, limit=4
    $region2: #{tpu_custom_call.1} parent=1 // loop_pre_header
      _
    $region3: #{tpu_custom_call.1} parent=1 // loop_header
      %s30 = sphi 0, %s34
      %p31 = scmp.ge.s32.totalorder %s30, 4
      %s40 = sphi 0, %s42
      %s43 = sphi 0, %s40
      %s44 = sphi 0, %s43
      %s60 = sphi 0, %s44
      %s64 = sphi 0, %s64
      %s66 = sphi 0, %s64
      %s67 = sphi 0, %s66
      %s81 = sphi 0, %s67
      %s85 = sphi 0, %s85
      %s87 = sphi 0, %s85
      %s88 = sphi 0, %s87
      %s102 = sphi 0, %s88
      %s106 = sphi 0, %s106
      %s108 = sphi 0, %s106
      %s109 = sphi 0, %s108
      %s123 = sphi 0, %s109
      %s127 = sphi 0, %s127
      %s129 = sphi 0, %s127
      %s130 = sphi 0, %s129
      %s144 = sphi 0, %s130
      %s148 = sphi 0, %s148
      %s150 = sphi 0, %s148
      %s151 = sphi 0, %s150
      %s165 = sphi 0, %s151
      %s169 = sphi 0, %s169
      %s171 = sphi 0, %s169
      %s172 = sphi 0, %s171
      %s186 = sphi 0, %s172
      %s190 = sphi 0, %s190
      %s192 = sphi 0, %s190
      %s193 = sphi 0, %s192
      %s207 = sphi 0, %s193
      %s211 = sphi 0, %s211
      %s213 = sphi 0, %s211
      %s214 = sphi 0, %s213
      %s228 = sphi 0, %s214
      %s232 = sphi 0, %s232
      %s234 = sphi 0, %s232
      %s235 = sphi 0, %s234
      %s249 = sphi 0, %s235
      %s253 = sphi 0, %s253
      %s255 = sphi 0, %s253
      %s256 = sphi 0, %s255
      %s270 = sphi 0, %s256
      %s274 = sphi 0, %s274
      %s276 = sphi 0, %s274
      %s277 = sphi 0, %s276
      %s291 = sphi 0, %s277
      %s295 = sphi 0, %s295
      %s297 = sphi 0, %s295
      %s298 = sphi 0, %s297
      %s312 = sphi 0, %s298
      %s318 = sphi 0, %s320
      %s321 = sphi 0, %s318
      %s322 = sphi 0, %s321
      %s338 = sphi 0, %s322
    $region4: #{tpu_custom_call.1} parent=1 // loop_header_branch
      %33 = sbr.rel (%p31) target = $region8
    $region5: #{tpu_custom_call.1} parent=1 // loop_body
      %s35 = ssub.s32 %s30, 1
      %s36 = ssub.s32 %s30, 2
      %s37 = sadd.s32 %s30, 1
      %s38 = ssub.s32 %s30, %s37
      %p39 = scmp.eq.s32.totalorder %s38, 0
      %s41 = sadd.s32 %s40, 1
      %s42 = scalar_select %p39, %s40, %s41
      %p45 = pneg %p39
      %p46 = scmp.eq.s32.totalorder %s30, 1
      %p47 = por %p45, %p46
      %p48 = scmp.ne.s32.totalorder %s40, %s43
      %p49 = scmp.eq.s32.totalorder %s30, 0
      %p50 = por %p48, %p49
      %p51 = scmp.ne.s32.totalorder %s40, %s43
      %p52 = scmp.eq.s32.totalorder %s35, 1
      %p53 = por %p51, %p52
      %p54 = scmp.ne.s32.totalorder %s43, %s44
      %p55 = scmp.eq.s32.totalorder %s35, 0
      %p56 = por %p54, %p55
      %p57 = scmp.ne.s32.totalorder %s43, %s44
      %p58 = scmp.eq.s32.totalorder %s36, 1
      %p59 = por %p57, %p58
      %p61 = scmp.ne.s32.totalorder %s44, %s60
      %p62 = scmp.eq.s32.totalorder %s36, 0
      %p63 = por %p61, %p62
      %s65 = sadd.s32 %s64, 1
      %p68 = scmp.eq.s32.totalorder %s30, 1
      %p69 = scmp.ne.s32.totalorder %s64, %s66
      %p70 = scmp.eq.s32.totalorder %s30, 0
      %p71 = por %p69, %p70
      %p72 = scmp.ne.s32.totalorder %s64, %s66
      %p73 = scmp.eq.s32.totalorder %s35, 1
      %p74 = por %p72, %p73
      %p75 = scmp.ne.s32.totalorder %s66, %s67
      %p76 = scmp.eq.s32.totalorder %s35, 0
      %p77 = por %p75, %p76
      %p78 = scmp.ne.s32.totalorder %s66, %s67
      %p79 = scmp.eq.s32.totalorder %s36, 1
      %p80 = por %p78, %p79
      %p82 = scmp.ne.s32.totalorder %s67, %s81
      %p83 = scmp.eq.s32.totalorder %s36, 0
      %p84 = por %p82, %p83
      %s86 = sadd.s32 %s85, 1
      %p89 = scmp.eq.s32.totalorder %s30, 1
      %p90 = scmp.ne.s32.totalorder %s85, %s87
      %p91 = scmp.eq.s32.totalorder %s30, 0
      %p92 = por %p90, %p91
      %p93 = scmp.ne.s32.totalorder %s85, %s87
      %p94 = scmp.eq.s32.totalorder %s35, 1
      %p95 = por %p93, %p94
      %p96 = scmp.ne.s32.totalorder %s87, %s88
      %p97 = scmp.eq.s32.totalorder %s35, 0
      %p98 = por %p96, %p97
      %p99 = scmp.ne.s32.totalorder %s87, %s88
      %p100 = scmp.eq.s32.totalorder %s36, 1
      %p101 = por %p99, %p100
      %p103 = scmp.ne.s32.totalorder %s88, %s102
      %p104 = scmp.eq.s32.totalorder %s36, 0
      %p105 = por %p103, %p104
      %s107 = sadd.s32 %s106, 1
      %p110 = scmp.eq.s32.totalorder %s30, 1
      %p111 = scmp.ne.s32.totalorder %s106, %s108
      %p112 = scmp.eq.s32.totalorder %s30, 0
      %p113 = por %p111, %p112
      %p114 = scmp.ne.s32.totalorder %s106, %s108
      %p115 = scmp.eq.s32.totalorder %s35, 1
      %p116 = por %p114, %p115
      %p117 = scmp.ne.s32.totalorder %s108, %s109
      %p118 = scmp.eq.s32.totalorder %s35, 0
      %p119 = por %p117, %p118
      %p120 = scmp.ne.s32.totalorder %s108, %s109
      %p121 = scmp.eq.s32.totalorder %s36, 1
      %p122 = por %p120, %p121
      %p124 = scmp.ne.s32.totalorder %s109, %s123
      %p125 = scmp.eq.s32.totalorder %s36, 0
      %p126 = por %p124, %p125
      %s128 = sadd.s32 %s127, 1
      %p131 = scmp.eq.s32.totalorder %s30, 1
      %p132 = scmp.ne.s32.totalorder %s127, %s129
      %p133 = scmp.eq.s32.totalorder %s30, 0
      %p134 = por %p132, %p133
      %p135 = scmp.ne.s32.totalorder %s127, %s129
      %p136 = scmp.eq.s32.totalorder %s35, 1
      %p137 = por %p135, %p136
      %p138 = scmp.ne.s32.totalorder %s129, %s130
      %p139 = scmp.eq.s32.totalorder %s35, 0
      %p140 = por %p138, %p139
      %p141 = scmp.ne.s32.totalorder %s129, %s130
      %p142 = scmp.eq.s32.totalorder %s36, 1
      %p143 = por %p141, %p142
      %p145 = scmp.ne.s32.totalorder %s130, %s144
      %p146 = scmp.eq.s32.totalorder %s36, 0
      %p147 = por %p145, %p146
      %s149 = sadd.s32 %s148, 1
      %p152 = scmp.eq.s32.totalorder %s30, 1
      %p153 = scmp.ne.s32.totalorder %s148, %s150
      %p154 = scmp.eq.s32.totalorder %s30, 0
      %p155 = por %p153, %p154
      %p156 = scmp.ne.s32.totalorder %s148, %s150
      %p157 = scmp.eq.s32.totalorder %s35, 1
      %p158 = por %p156, %p157
      %p159 = scmp.ne.s32.totalorder %s150, %s151
      %p160 = scmp.eq.s32.totalorder %s35, 0
      %p161 = por %p159, %p160
      %p162 = scmp.ne.s32.totalorder %s150, %s151
      %p163 = scmp.eq.s32.totalorder %s36, 1
      %p164 = por %p162, %p163
      %p166 = scmp.ne.s32.totalorder %s151, %s165
      %p167 = scmp.eq.s32.totalorder %s36, 0
      %p168 = por %p166, %p167
      %s170 = sadd.s32 %s169, 1
      %p173 = scmp.eq.s32.totalorder %s30, 1
      %p174 = scmp.ne.s32.totalorder %s169, %s171
      %p175 = scmp.eq.s32.totalorder %s30, 0
      %p176 = por %p174, %p175
      %p177 = scmp.ne.s32.totalorder %s169, %s171
      %p178 = scmp.eq.s32.totalorder %s35, 1
      %p179 = por %p177, %p178
      %p180 = scmp.ne.s32.totalorder %s171, %s172
      %p181 = scmp.eq.s32.totalorder %s35, 0
      %p182 = por %p180, %p181
      %p183 = scmp.ne.s32.totalorder %s171, %s172
      %p184 = scmp.eq.s32.totalorder %s36, 1
      %p185 = por %p183, %p184
      %p187 = scmp.ne.s32.totalorder %s172, %s186
      %p188 = scmp.eq.s32.totalorder %s36, 0
      %p189 = por %p187, %p188
      %s191 = sadd.s32 %s190, 1
      %p194 = scmp.eq.s32.totalorder %s30, 1
      %p195 = scmp.ne.s32.totalorder %s190, %s192
      %p196 = scmp.eq.s32.totalorder %s30, 0
      %p197 = por %p195, %p196
      %p198 = scmp.ne.s32.totalorder %s190, %s192
      %p199 = scmp.eq.s32.totalorder %s35, 1
      %p200 = por %p198, %p199
      %p201 = scmp.ne.s32.totalorder %s192, %s193
      %p202 = scmp.eq.s32.totalorder %s35, 0
      %p203 = por %p201, %p202
      %p204 = scmp.ne.s32.totalorder %s192, %s193
      %p205 = scmp.eq.s32.totalorder %s36, 1
      %p206 = por %p204, %p205
      %p208 = scmp.ne.s32.totalorder %s193, %s207
      %p209 = scmp.eq.s32.totalorder %s36, 0
      %p210 = por %p208, %p209
      %s212 = sadd.s32 %s211, 1
      %p215 = scmp.eq.s32.totalorder %s30, 1
      %p216 = scmp.ne.s32.totalorder %s211, %s213
      %p217 = scmp.eq.s32.totalorder %s30, 0
      %p218 = por %p216, %p217
      %p219 = scmp.ne.s32.totalorder %s211, %s213
      %p220 = scmp.eq.s32.totalorder %s35, 1
      %p221 = por %p219, %p220
      %p222 = scmp.ne.s32.totalorder %s213, %s214
      %p223 = scmp.eq.s32.totalorder %s35, 0
      %p224 = por %p222, %p223
      %p225 = scmp.ne.s32.totalorder %s213, %s214
      %p226 = scmp.eq.s32.totalorder %s36, 1
      %p227 = por %p225, %p226
      %p229 = scmp.ne.s32.totalorder %s214, %s228
      %p230 = scmp.eq.s32.totalorder %s36, 0
      %p231 = por %p229, %p230
      %s233 = sadd.s32 %s232, 1
      %p236 = scmp.eq.s32.totalorder %s30, 1
      %p237 = scmp.ne.s32.totalorder %s232, %s234
      %p238 = scmp.eq.s32.totalorder %s30, 0
      %p239 = por %p237, %p238
      %p240 = scmp.ne.s32.totalorder %s232, %s234
      %p241 = scmp.eq.s32.totalorder %s35, 1
      %p242 = por %p240, %p241
      %p243 = scmp.ne.s32.totalorder %s234, %s235
      %p244 = scmp.eq.s32.totalorder %s35, 0
      %p245 = por %p243, %p244
      %p246 = scmp.ne.s32.totalorder %s234, %s235
      %p247 = scmp.eq.s32.totalorder %s36, 1
      %p248 = por %p246, %p247
      %p250 = scmp.ne.s32.totalorder %s235, %s249
      %p251 = scmp.eq.s32.totalorder %s36, 0
      %p252 = por %p250, %p251
      %s254 = sadd.s32 %s253, 1
      %p257 = scmp.eq.s32.totalorder %s30, 1
      %p258 = scmp.ne.s32.totalorder %s253, %s255
      %p259 = scmp.eq.s32.totalorder %s30, 0
      %p260 = por %p258, %p259
      %p261 = scmp.ne.s32.totalorder %s253, %s255
      %p262 = scmp.eq.s32.totalorder %s35, 1
      %p263 = por %p261, %p262
      %p264 = scmp.ne.s32.totalorder %s255, %s256
      %p265 = scmp.eq.s32.totalorder %s35, 0
      %p266 = por %p264, %p265
      %p267 = scmp.ne.s32.totalorder %s255, %s256
      %p268 = scmp.eq.s32.totalorder %s36, 1
      %p269 = por %p267, %p268
      %p271 = scmp.ne.s32.totalorder %s256, %s270
      %p272 = scmp.eq.s32.totalorder %s36, 0
      %p273 = por %p271, %p272
      %s275 = sadd.s32 %s274, 1
      %p278 = scmp.eq.s32.totalorder %s30, 1
      %p279 = scmp.ne.s32.totalorder %s274, %s276
      %p280 = scmp.eq.s32.totalorder %s30, 0
      %p281 = por %p279, %p280
      %p282 = scmp.ne.s32.totalorder %s274, %s276
      %p283 = scmp.eq.s32.totalorder %s35, 1
      %p284 = por %p282, %p283
      %p285 = scmp.ne.s32.totalorder %s276, %s277
      %p286 = scmp.eq.s32.totalorder %s35, 0
      %p287 = por %p285, %p286
      %p288 = scmp.ne.s32.totalorder %s276, %s277
      %p289 = scmp.eq.s32.totalorder %s36, 1
      %p290 = por %p288, %p289
      %p292 = scmp.ne.s32.totalorder %s277, %s291
      %p293 = scmp.eq.s32.totalorder %s36, 0
      %p294 = por %p292, %p293
      %s296 = sadd.s32 %s295, 1
      %p299 = scmp.eq.s32.totalorder %s30, 1
      %p300 = scmp.ne.s32.totalorder %s295, %s297
      %p301 = scmp.eq.s32.totalorder %s30, 0
      %p302 = por %p300, %p301
      %p303 = scmp.ne.s32.totalorder %s295, %s297
      %p304 = scmp.eq.s32.totalorder %s35, 1
      %p305 = por %p303, %p304
      %p306 = scmp.ne.s32.totalorder %s297, %s298
      %p307 = scmp.eq.s32.totalorder %s35, 0
      %p308 = por %p306, %p307
      %p309 = scmp.ne.s32.totalorder %s297, %s298
      %p310 = scmp.eq.s32.totalorder %s36, 1
      %p311 = por %p309, %p310
      %p313 = scmp.ne.s32.totalorder %s298, %s312
      %p314 = scmp.eq.s32.totalorder %s36, 0
      %p315 = por %p313, %p314
      %s316 = ssub.s32 %s30, %s37
      %p317 = scmp.eq.s32.totalorder %s316, 0
      %s319 = sadd.s32 %s318, 1
      %s320 = scalar_select %p317, %s318, %s319
      %p323 = pneg %p317
      %p324 = scmp.eq.s32.totalorder %s30, 1
      %p325 = por %p323, %p324
      %p326 = scmp.ne.s32.totalorder %s318, %s321
      %p327 = scmp.eq.s32.totalorder %s30, 0
      %p328 = por %p326, %p327
      %p329 = scmp.ne.s32.totalorder %s318, %s321
      %p330 = scmp.eq.s32.totalorder %s35, 1
      %p331 = por %p329, %p330
      %p332 = scmp.ne.s32.totalorder %s321, %s322
      %p333 = scmp.eq.s32.totalorder %s35, 0
      %p334 = por %p332, %p333
      %p335 = scmp.ne.s32.totalorder %s321, %s322
      %p336 = scmp.eq.s32.totalorder %s36, 1
      %p337 = por %p335, %p336
      %p339 = scmp.ne.s32.totalorder %s322, %s338
      %p340 = scmp.eq.s32.totalorder %s36, 0
      %p341 = por %p339, %p340
      %p342 = scmp.le.s32.totalorder 1, %s30
      %p343 = scmp.lt.s32.totalorder %s30, 3
      %p344 = pnand %p342, %p343
      %p345 = pneg %p344
      // Predicated region
      $region9: #{tpu_custom_call.1} parent=5 // pred_check
        _
      $region10: #{tpu_custom_call.1} parent=5 // pred_check_branch
        %347 = sbr.rel (%p344) target = $region12
      $region11: #{tpu_custom_call.1} parent=5 // pred_region
        %s348 = ssub.s32 %s30, 1
        // Predicated region
        $region13: #{tpu_custom_call.1} parent=11 // pred_check
          %p349 = pneg %p77
        $region14: #{tpu_custom_call.1} parent=11 // pred_check_branch
          %351 = sbr.rel (%p349) target = $region16
        $region15: #{tpu_custom_call.1} parent=11 // pred_region
          %353 = vsyncadd [#allocation6], 0
          %s355 = sshll.u32 %s1, 4
          %s356 = int_to_ptr.hbm [resolvable:$true] %s355
          %s357 = sshll.u32 [#allocation5], 4
          %s358 = int_to_ptr.vmem [resolvable:$true] %s357
          %360 = dma.hbm_to_vmem [thread:$0]  %s356, 32, %s358, [#allocation6]
        $region16: #{tpu_custom_call.1} parent=11 // pred_fallthru
          _
        // Predicated region
        $region17: #{tpu_custom_call.1} parent=11 // pred_check
          %p361 = pneg %p98
        $region18: #{tpu_custom_call.1} parent=11 // pred_check_branch
          %363 = sbr.rel (%p361) target = $region20
        $region19: #{tpu_custom_call.1} parent=11 // pred_region
          %365 = vsyncadd [#allocation6], 0
          %s367 = sshll.u32 %s2, 4
          %s368 = int_to_ptr.hbm [resolvable:$true] %s367
          %s369 = sshll.u32 [#allocation7], 4
          %s370 = int_to_ptr.vmem [resolvable:$true] %s369
          %372 = dma.hbm_to_vmem [thread:$0]  %s368, 32, %s370, [#allocation6]
        $region20: #{tpu_custom_call.1} parent=11 // pred_fallthru
          _
        // Predicated region
        $region21: #{tpu_custom_call.1} parent=11 // pred_check
          %p373 = pneg %p119
        $region22: #{tpu_custom_call.1} parent=11 // pred_check_branch
          %375 = sbr.rel (%p373) target = $region24
        $region23: #{tpu_custom_call.1} parent=11 // pred_region
          %377 = vsyncadd [#allocation9], 0
          %s378 = sshll.u32 %s3, 4
          %s379 = int_to_ptr.hbm [resolvable:$true] %s378
          %s380 = sshll.u32 [#allocation8], 4
          %s381 = int_to_ptr.vmem [resolvable:$true] %s380
          %386 = dma.hbm_to_vmem [thread:$0]  %s379, 12288, %s381, [#allocation9], 384, 384, 24
        $region24: #{tpu_custom_call.1} parent=11 // pred_fallthru
          _
        // Predicated region
        $region25: #{tpu_custom_call.1} parent=11 // pred_check
          %p387 = pneg %p140
        $region26: #{tpu_custom_call.1} parent=11 // pred_check_branch
          %389 = sbr.rel (%p387) target = $region28
        $region27: #{tpu_custom_call.1} parent=11 // pred_region
          %391 = vsyncadd [#allocation9], 0
          %s393 = sshll.u32 %s4, 4
          %s394 = int_to_ptr.hbm [resolvable:$true] %s393
          %s395 = sshll.u32 [#allocation10], 4
          %s396 = int_to_ptr.vmem [resolvable:$true] %s395
          %398 = dma.hbm_to_vmem [thread:$0]  %s394, 96, %s396, [#allocation9]
        $region28: #{tpu_custom_call.1} parent=11 // pred_fallthru
          _
        // Predicated region
        $region29: #{tpu_custom_call.1} parent=11 // pred_check
          %p399 = pneg %p161
        $region30: #{tpu_custom_call.1} parent=11 // pred_check_branch
          %401 = sbr.rel (%p399) target = $region32
        $region31: #{tpu_custom_call.1} parent=11 // pred_region
          %403 = vsyncadd [#allocation12], 0
          %s404 = sshll.u32 %s5, 4
          %s405 = int_to_ptr.hbm [resolvable:$true] %s404
          %s406 = sshll.u32 [#allocation11], 4
          %s407 = int_to_ptr.vmem [resolvable:$true] %s406
          %412 = dma.hbm_to_vmem [thread:$0]  %s405, 4096, %s407, [#allocation12], 128, 128, 8
        $region32: #{tpu_custom_call.1} parent=11 // pred_fallthru
          _
        // Predicated region
        $region33: #{tpu_custom_call.1} parent=11 // pred_check
          %p413 = pneg %p182
        $region34: #{tpu_custom_call.1} parent=11 // pred_check_branch
          %415 = sbr.rel (%p413) target = $region36
        $region35: #{tpu_custom_call.1} parent=11 // pred_region
          %417 = vsyncadd [#allocation12], 0
          %s419 = sshll.u32 %s6, 4
          %s420 = int_to_ptr.hbm [resolvable:$true] %s419
          %s421 = sshll.u32 [#allocation13], 4
          %s422 = int_to_ptr.vmem [resolvable:$true] %s421
          %424 = dma.hbm_to_vmem [thread:$0]  %s420, 32, %s422, [#allocation12]
        $region36: #{tpu_custom_call.1} parent=11 // pred_fallthru
          _
        // Predicated region
        $region37: #{tpu_custom_call.1} parent=11 // pred_check
          %p425 = pneg %p203
        $region38: #{tpu_custom_call.1} parent=11 // pred_check_branch
          %427 = sbr.rel (%p425) target = $region40
        $region39: #{tpu_custom_call.1} parent=11 // pred_region
          %429 = vsyncadd [#allocation15], 0
          %s431 = sshll.u32 %s7, 4
          %s432 = int_to_ptr.hbm [resolvable:$true] %s431
          %s433 = sshll.u32 [#allocation14], 4
          %s434 = int_to_ptr.vmem [resolvable:$true] %s433
          %436 = dma.hbm_to_vmem [thread:$0]  %s432, 32, %s434, [#allocation15]
        $region40: #{tpu_custom_call.1} parent=11 // pred_fallthru
          _
        // Predicated region
        $region41: #{tpu_custom_call.1} parent=11 // pred_check
          %p437 = pneg %p224
        $region42: #{tpu_custom_call.1} parent=11 // pred_check_branch
          %439 = sbr.rel (%p437) target = $region44
        $region43: #{tpu_custom_call.1} parent=11 // pred_region
          %441 = vsyncadd [#allocation15], 0
          %s443 = sshll.u32 %s8, 4
          %s444 = int_to_ptr.hbm [resolvable:$true] %s443
          %s445 = sshll.u32 [#allocation16], 4
          %s446 = int_to_ptr.vmem [resolvable:$true] %s445
          %448 = dma.hbm_to_vmem [thread:$0]  %s444, 32, %s446, [#allocation15]
        $region44: #{tpu_custom_call.1} parent=11 // pred_fallthru
          _
        // Predicated region
        $region45: #{tpu_custom_call.1} parent=11 // pred_check
          %p449 = pneg %p245
        $region46: #{tpu_custom_call.1} parent=11 // pred_check_branch
          %451 = sbr.rel (%p449) target = $region48
        $region47: #{tpu_custom_call.1} parent=11 // pred_region
          %453 = vsyncadd [#allocation18], 0
          %s454 = sshll.u32 %s9, 4
          %s455 = int_to_ptr.hbm [resolvable:$true] %s454
          %s456 = sshll.u32 [#allocation17], 4
          %s457 = int_to_ptr.vmem [resolvable:$true] %s456
          %462 = dma.hbm_to_vmem [thread:$0]  %s455, 16384, %s457, [#allocation18], 512, 512, 32
        $region48: #{tpu_custom_call.1} parent=11 // pred_fallthru
          _
        // Predicated region
        $region49: #{tpu_custom_call.1} parent=11 // pred_check
          %p463 = pneg %p266
        $region50: #{tpu_custom_call.1} parent=11 // pred_check_branch
          %465 = sbr.rel (%p463) target = $region52
        $region51: #{tpu_custom_call.1} parent=11 // pred_region
          _
        $region52: #{tpu_custom_call.1} parent=11 // pred_fallthru
          _
        // Predicated region
        $region53: #{tpu_custom_call.1} parent=11 // pred_check
          %p466 = pneg %p287
        $region54: #{tpu_custom_call.1} parent=11 // pred_check_branch
          %468 = sbr.rel (%p466) target = $region56
        $region55: #{tpu_custom_call.1} parent=11 // pred_region
          %470 = vsyncadd [#allocation18], 0
          %s471 = sshll.u32 %s11, 4
          %s472 = int_to_ptr.hbm [resolvable:$true] %s471
          %s473 = sshll.u32 [#allocation19], 4
          %s474 = int_to_ptr.vmem [resolvable:$true] %s473
          %479 = dma.hbm_to_vmem [thread:$0]  %s472, 16384, %s474, [#allocation18], 128, 128, 8
        $region56: #{tpu_custom_call.1} parent=11 // pred_fallthru
          _
        // Predicated region
        $region57: #{tpu_custom_call.1} parent=11 // pred_check
          %p480 = pneg %p308
        $region58: #{tpu_custom_call.1} parent=11 // pred_check_branch
          %482 = sbr.rel (%p480) target = $region60
        $region59: #{tpu_custom_call.1} parent=11 // pred_region
          _
        $region60: #{tpu_custom_call.1} parent=11 // pred_fallthru
          _
      $region12: #{tpu_custom_call.1} parent=5 // pred_fallthru
        _
      %p483 = scmp.lt.s32.totalorder %s30, 2
      // Predicated region
      $region61: #{tpu_custom_call.1} parent=5 // pred_check
        %p484 = pneg %p483
      $region62: #{tpu_custom_call.1} parent=5 // pred_check_branch
        %486 = sbr.rel (%p484) target = $region64
      $region63: #{tpu_custom_call.1} parent=5 // pred_region
        // Predicated region
        $region65: #{tpu_custom_call.1} parent=63 // pred_check
          %p487 = pneg %p50
        $region66: #{tpu_custom_call.1} parent=63 // pred_check_branch
          %489 = sbr.rel (%p487) target = $region68
        $region67: #{tpu_custom_call.1} parent=63 // pred_region
          %s490 = sand.u32 %s40, 1
          %s491 = scalar_lea.sflag [#allocation3], %s490
          %s492 = sand.u32 %s40, 1
          %s493 = smul.addr %s492, 32
          %s494 = scalar_lea.vmem [#allocation2], %s493
          %s495 = smul.u32 2, %s30
          %497 = vsyncadd %s491, 0
          %s498 = smul.addr %s495, 2
          %s499 = smul.addr %s498, 8
          %s500 = scalar_lea.hbm %s0, %s499
          %s501 = sshll.u32 %s500, 4
          %s502 = int_to_ptr.hbm [resolvable:$true] %s501
          %s503 = sshll.u32 %s494, 4
          %s504 = int_to_ptr.vmem [resolvable:$true] %s503
          %509 = dma.hbm_to_vmem [thread:$0]  %s502, 512, %s504, %s491, 256, 256, 16
        $region68: #{tpu_custom_call.1} parent=63 // pred_fallthru
          _
      $region64: #{tpu_custom_call.1} parent=5 // pred_fallthru
        _
      %p510 = scmp.le.s32.totalorder 1, %s30
      %p511 = scmp.lt.s32.totalorder %s30, 3
      %p512 = pnand %p510, %p511
      %p513 = pneg %p512
      // Predicated region
      $region69: #{tpu_custom_call.1} parent=5 // pred_check
        _
      $region70: #{tpu_custom_call.1} parent=5 // pred_check_branch
        %515 = sbr.rel (%p512) target = $region72
      $region71: #{tpu_custom_call.1} parent=5 // pred_region
        %s516 = ssub.s32 %s30, 1
        %s517 = sand.u32 %s43, 1
        %s518 = scalar_lea.sflag [#allocation3], %s517
        %s519 = sand.u32 %s43, 1
        %s520 = smul.addr %s519, 32
        %s521 = scalar_lea.vmem [#allocation2], %s520
        // Predicated region
        $region73: #{tpu_custom_call.1} parent=71 // pred_check
          %p522 = pneg %p56
        $region74: #{tpu_custom_call.1} parent=71 // pred_check_branch
          %524 = sbr.rel (%p522) target = $region76
        $region75: #{tpu_custom_call.1} parent=71 // pred_region
          %526 = dma.done %s518, 512
        $region76: #{tpu_custom_call.1} parent=71 // pred_fallthru
          _
        // Predicated region
        $region77: #{tpu_custom_call.1} parent=71 // pred_check
          %p527 = pneg %p77
        $region78: #{tpu_custom_call.1} parent=71 // pred_check_branch
          %529 = sbr.rel (%p527) target = $region80
        $region79: #{tpu_custom_call.1} parent=71 // pred_region
          %531 = dma.done [#allocation6], 32
        $region80: #{tpu_custom_call.1} parent=71 // pred_fallthru
          _
        // Predicated region
        $region81: #{tpu_custom_call.1} parent=71 // pred_check
          %p532 = pneg %p98
        $region82: #{tpu_custom_call.1} parent=71 // pred_check_branch
          %534 = sbr.rel (%p532) target = $region84
        $region83: #{tpu_custom_call.1} parent=71 // pred_region
          %536 = dma.done [#allocation6], 32
        $region84: #{tpu_custom_call.1} parent=71 // pred_fallthru
          _
        // Predicated region
        $region85: #{tpu_custom_call.1} parent=71 // pred_check
          %p537 = pneg %p119
        $region86: #{tpu_custom_call.1} parent=71 // pred_check_branch
          %539 = sbr.rel (%p537) target = $region88
        $region87: #{tpu_custom_call.1} parent=71 // pred_region
          %541 = dma.done [#allocation9], 12288
        $region88: #{tpu_custom_call.1} parent=71 // pred_fallthru
          _
        // Predicated region
        $region89: #{tpu_custom_call.1} parent=71 // pred_check
          %p542 = pneg %p140
        $region90: #{tpu_custom_call.1} parent=71 // pred_check_branch
          %544 = sbr.rel (%p542) target = $region92
        $region91: #{tpu_custom_call.1} parent=71 // pred_region
          %546 = dma.done [#allocation9], 96
        $region92: #{tpu_custom_call.1} parent=71 // pred_fallthru
          _
        // Predicated region
        $region93: #{tpu_custom_call.1} parent=71 // pred_check
          %p547 = pneg %p161
        $region94: #{tpu_custom_call.1} parent=71 // pred_check_branch
          %549 = sbr.rel (%p547) target = $region96
        $region95: #{tpu_custom_call.1} parent=71 // pred_region
          %551 = dma.done [#allocation12], 4096
        $region96: #{tpu_custom_call.1} parent=71 // pred_fallthru
          _
        // Predicated region
        $region97: #{tpu_custom_call.1} parent=71 // pred_check
          %p552 = pneg %p182
        $region98: #{tpu_custom_call.1} parent=71 // pred_check_branch
          %554 = sbr.rel (%p552) target = $region100
        $region99: #{tpu_custom_call.1} parent=71 // pred_region
          %556 = dma.done [#allocation12], 32
        $region100: #{tpu_custom_call.1} parent=71 // pred_fallthru
          _
        // Predicated region
        $region101: #{tpu_custom_call.1} parent=71 // pred_check
          %p557 = pneg %p203
        $region102: #{tpu_custom_call.1} parent=71 // pred_check_branch
          %559 = sbr.rel (%p557) target = $region104
        $region103: #{tpu_custom_call.1} parent=71 // pred_region
          %561 = dma.done [#allocation15], 32
        $region104: #{tpu_custom_call.1} parent=71 // pred_fallthru
          _
        // Predicated region
        $region105: #{tpu_custom_call.1} parent=71 // pred_check
          %p562 = pneg %p224
        $region106: #{tpu_custom_call.1} parent=71 // pred_check_branch
          %564 = sbr.rel (%p562) target = $region108
        $region107: #{tpu_custom_call.1} parent=71 // pred_region
          %566 = dma.done [#allocation15], 32
        $region108: #{tpu_custom_call.1} parent=71 // pred_fallthru
          _
        // Predicated region
        $region109: #{tpu_custom_call.1} parent=71 // pred_check
          %p567 = pneg %p245
        $region110: #{tpu_custom_call.1} parent=71 // pred_check_branch
          %569 = sbr.rel (%p567) target = $region112
        $region111: #{tpu_custom_call.1} parent=71 // pred_region
          %571 = dma.done [#allocation18], 16384
        $region112: #{tpu_custom_call.1} parent=71 // pred_fallthru
          _
        // Predicated region
        $region113: #{tpu_custom_call.1} parent=71 // pred_check
          %p572 = pneg %p287
        $region114: #{tpu_custom_call.1} parent=71 // pred_check_branch
          %574 = sbr.rel (%p572) target = $region116
        $region115: #{tpu_custom_call.1} parent=71 // pred_region
          %576 = dma.done [#allocation18], 16384
        $region116: #{tpu_custom_call.1} parent=71 // pred_fallthru
          _
        %s577 = sand.u32 %s43, 1
        %s578 = scalar_lea.sflag [#allocation3], %s577
        %s579 = sand.u32 %s43, 1
        %s580 = smul.addr %s579, 32
        %s581 = scalar_lea.vmem [#allocation2], %s580
        %p582 = pneg %p56
        %p583 = pneg %p53
        %p584 = pneg %p77
        %p585 = pneg %p74
        %p586 = pneg %p98
        %p587 = pneg %p95
        %p588 = pneg %p119
        %p589 = pneg %p116
        %p590 = pneg %p140
        %p591 = pneg %p137
        %p592 = pneg %p161
        %p593 = pneg %p158
        %p594 = pneg %p182
        %p595 = pneg %p179
        %p596 = pneg %p203
        %p597 = pneg %p200
        %p598 = pneg %p224
        %p599 = pneg %p221
        %p600 = pneg %p245
        %p601 = pneg %p242
        %p602 = pneg %p266
        %p603 = pneg %p263
        %p604 = pneg %p287
        %p605 = pneg %p284
        %p606 = pneg %p308
        %p607 = pneg %p305
        %p608 = pneg %p334
        %p609 = pneg %p331
        %s610 = sand.u32 %s321, 1
        %s611 = scalar_lea.sflag [#allocation4], %s610
        %s612 = sand.u32 %s321, 1
        %s613 = smul.addr %s612, 32
        %s614 = scalar_lea.vmem [#allocation20], %s613
        %s615 = smul.u32 2, %s35
        %s616 = smul.u32 2, %s35
        %v618 = vld [vmem:[%s521] sm:$0xff]
        %v619 = vld [vmem:[%s521 + $0x8] sm:$0xff]
        %v620 = vld [vmem:[%s521 + $0x10] sm:$0xff]
        %v621 = vld [vmem:[%s521 + $0x18] sm:$0xff]
        %v622 = vld [vmem:[#allocation5] sm:$0x3]
        %v623 = vld [vmem:[#allocation7] sm:$0x3]
        %v624 = vadd.f32 %v618, %v619
        %625 = vadd.xlane.f32.xlu0 %v624
        %v626 = vpop.xlane.xlu0 %625
        %v627 = vadd.f32 %v620, %v621
        %628 = vadd.xlane.f32.xlu0 %v627
        %v629 = vpop.xlane.xlu0 %628
        %v630 = vrcp.pop 256.0
        %v631 = vmul.f32 256.0, %v630
        %v632 = vsub.f32 1.0, %v631
        %v633 = vmul.f32 %v630, %v632
        %v634 = vadd.f32 %v630, %v633
        %vm635 = vweird.f32 %v630
        %v636 = vsel %vm635, %v630, %v634
        %v637 = vmul.f32 %v626, %v636
        %v638 = vmul.f32 %v629, %v636
        %v639 = vsub.f32 %v618, %v637
        %v640 = vsub.f32 %v619, %v637
        %v641 = vsub.f32 %v620, %v638
        %v642 = vsub.f32 %v621, %v638
        %v643 = vmul.f32 %v639, %v639
        %v644 = vmul.f32 %v640, %v640
        %v645 = vmul.f32 %v641, %v641
        %v646 = vmul.f32 %v642, %v642
        %v647 = vadd.f32 %v643, %v644
        %648 = vadd.xlane.f32.xlu0 %v647
        %v649 = vpop.xlane.xlu0 %648
        %v650 = vadd.f32 %v645, %v646
        %651 = vadd.xlane.f32.xlu0 %v650
        %v652 = vpop.xlane.xlu0 %651
        %v653 = vmul.f32 %v649, %v636
        %v654 = vmul.f32 %v652, %v636
        %v655 = vadd.f32 %v653, 1e-05
        %v656 = vadd.f32 %v654, 1e-05
        %v657 = vrsqrt.pop %v655
        %v658 = vmul.f32 %v657, %v655
        %v659 = vmul.f32 %v658, %v657
        %v660 = vmul.f32 0.5, %v659
        %v661 = vsub.f32 1.5, %v660
        %v662 = vmul.f32 %v657, %v661
        %vm663 = vweird.f32 %v655
        %vm664 = vweird.f32 %v657
        %vm665 = vmor %vm663, %vm664
        %v666 = vsel %vm665, %v657, %v662
        %v667 = vrsqrt.pop %v656
        %v668 = vmul.f32 %v667, %v656
        %v669 = vmul.f32 %v668, %v667
        %v670 = vmul.f32 0.5, %v669
        %v671 = vsub.f32 1.5, %v670
        %v672 = vmul.f32 %v667, %v671
        %vm673 = vweird.f32 %v656
        %vm674 = vweird.f32 %v667
        %vm675 = vmor %vm673, %vm674
        %v676 = vsel %vm675, %v667, %v672
        %v677 = vmul.f32 %v639, %v666
        %v678 = vmul.f32 %v640, %v666
        %v679 = vmul.f32 %v641, %v676
        %v680 = vmul.f32 %v642, %v676
        %v682 = vperm.slane %v622, 0
        %v683 = vperm.slane %v622, 1
        %v686 = vmul.f32 %v677, %v682
        %v687 = vmul.f32 %v678, %v683
        %v688 = vmul.f32 %v679, %v682
        %v689 = vmul.f32 %v680, %v683
        %v691 = vperm.slane %v623, 0
        %v692 = vperm.slane %v623, 1
        %v695 = vadd.f32 %v686, %v691
        %v696 = vadd.f32 %v687, %v692
        %v697 = vadd.f32 %v688, %v691
        %v698 = vadd.f32 %v689, %v692
        %v699 = vpack.c.bf16 %v697, %v695
        %v700 = vpack.c.bf16 %v698, %v696
        %v701 = vld [vmem:[#allocation8] sm:$0xff]
        %v702 = vld [vmem:[#allocation8 + $0x8] sm:$0xff]
        %v703 = vld [vmem:[#allocation8 + $0x10] sm:$0xff]
        %v704 = vld [vmem:[#allocation8 + $0x18] sm:$0xff]
        %v705 = vld [vmem:[#allocation8 + $0x20] sm:$0xff]
        %v706 = vld [vmem:[#allocation8 + $0x28] sm:$0xff]
        %v707 = vld [vmem:[#allocation8 + $0x30] sm:$0xff]
        %v708 = vld [vmem:[#allocation8 + $0x38] sm:$0xff]
        %v709 = vld [vmem:[#allocation8 + $0x40] sm:$0xff]
        %v710 = vld [vmem:[#allocation8 + $0x48] sm:$0xff]
        %v711 = vld [vmem:[#allocation8 + $0x50] sm:$0xff]
        %v712 = vld [vmem:[#allocation8 + $0x58] sm:$0xff]
        %v713 = vld [vmem:[#allocation8 + $0x60] sm:$0xff]
        %v714 = vld [vmem:[#allocation8 + $0x68] sm:$0xff]
        %v715 = vld [vmem:[#allocation8 + $0x70] sm:$0xff]
        %v716 = vld [vmem:[#allocation8 + $0x78] sm:$0xff]
        %v717 = vld [vmem:[#allocation8 + $0x80] sm:$0xff]
        %v718 = vld [vmem:[#allocation8 + $0x88] sm:$0xff]
        %v719 = vld [vmem:[#allocation8 + $0x90] sm:$0xff]
        %v720 = vld [vmem:[#allocation8 + $0x98] sm:$0xff]
        %v721 = vld [vmem:[#allocation8 + $0xa0] sm:$0xff]
        %v722 = vld [vmem:[#allocation8 + $0xa8] sm:$0xff]
        %v723 = vld [vmem:[#allocation8 + $0xb0] sm:$0xff]
        %v724 = vld [vmem:[#allocation8 + $0xb8] sm:$0xff]
        %v725 = vld [vmem:[#allocation8 + $0xc0] sm:$0xff]
        %v726 = vld [vmem:[#allocation8 + $0xc8] sm:$0xff]
        %v727 = vld [vmem:[#allocation8 + $0xd0] sm:$0xff]
        %v728 = vld [vmem:[#allocation8 + $0xd8] sm:$0xff]
        %v729 = vld [vmem:[#allocation8 + $0xe0] sm:$0xff]
        %v730 = vld [vmem:[#allocation8 + $0xe8] sm:$0xff]
        %v731 = vld [vmem:[#allocation8 + $0xf0] sm:$0xff]
        %v732 = vld [vmem:[#allocation8 + $0xf8] sm:$0xff]
        %v733 = vld [vmem:[#allocation8 + $0x100] sm:$0xff]
        %v734 = vld [vmem:[#allocation8 + $0x108] sm:$0xff]
        %v735 = vld [vmem:[#allocation8 + $0x110] sm:$0xff]
        %v736 = vld [vmem:[#allocation8 + $0x118] sm:$0xff]
        %v737 = vld [vmem:[#allocation8 + $0x120] sm:$0xff]
        %v738 = vld [vmem:[#allocation8 + $0x128] sm:$0xff]
        %v739 = vld [vmem:[#allocation8 + $0x130] sm:$0xff]
        %v740 = vld [vmem:[#allocation8 + $0x138] sm:$0xff]
        %v741 = vld [vmem:[#allocation8 + $0x140] sm:$0xff]
        %v742 = vld [vmem:[#allocation8 + $0x148] sm:$0xff]
        %v743 = vld [vmem:[#allocation8 + $0x150] sm:$0xff]
        %v744 = vld [vmem:[#allocation8 + $0x158] sm:$0xff]
        %v745 = vld [vmem:[#allocation8 + $0x160] sm:$0xff]
        %v746 = vld [vmem:[#allocation8 + $0x168] sm:$0xff]
        %v747 = vld [vmem:[#allocation8 + $0x170] sm:$0xff]
        %v748 = vld [vmem:[#allocation8 + $0x178] sm:$0xff]
        %v749 = vld [vmem:[#allocation8 + $0x180] sm:$0xff]
        %v750 = vld [vmem:[#allocation8 + $0x188] sm:$0xff]
        %v751 = vld [vmem:[#allocation8 + $0x190] sm:$0xff]
        %v752 = vld [vmem:[#allocation8 + $0x198] sm:$0xff]
        %v753 = vld [vmem:[#allocation8 + $0x1a0] sm:$0xff]
        %v754 = vld [vmem:[#allocation8 + $0x1a8] sm:$0xff]
        %v755 = vld [vmem:[#allocation8 + $0x1b0] sm:$0xff]
        %v756 = vld [vmem:[#allocation8 + $0x1b8] sm:$0xff]
        %v757 = vld [vmem:[#allocation8 + $0x1c0] sm:$0xff]
        %v758 = vld [vmem:[#allocation8 + $0x1c8] sm:$0xff]
        %v759 = vld [vmem:[#allocation8 + $0x1d0] sm:$0xff]
        %v760 = vld [vmem:[#allocation8 + $0x1d8] sm:$0xff]
        %v761 = vld [vmem:[#allocation8 + $0x1e0] sm:$0xff]
        %v762 = vld [vmem:[#allocation8 + $0x1e8] sm:$0xff]
        %v763 = vld [vmem:[#allocation8 + $0x1f0] sm:$0xff]
        %v764 = vld [vmem:[#allocation8 + $0x1f8] sm:$0xff]
        %v765 = vld [vmem:[#allocation8 + $0x200] sm:$0xff]
        %v766 = vld [vmem:[#allocation8 + $0x208] sm:$0xff]
        %v767 = vld [vmem:[#allocation8 + $0x210] sm:$0xff]
        %v768 = vld [vmem:[#allocation8 + $0x218] sm:$0xff]
        %v769 = vld [vmem:[#allocation8 + $0x220] sm:$0xff]
        %v770 = vld [vmem:[#allocation8 + $0x228] sm:$0xff]
        %v771 = vld [vmem:[#allocation8 + $0x230] sm:$0xff]
        %v772 = vld [vmem:[#allocation8 + $0x238] sm:$0xff]
        %v773 = vld [vmem:[#allocation8 + $0x240] sm:$0xff]
        %v774 = vld [vmem:[#allocation8 + $0x248] sm:$0xff]
        %v775 = vld [vmem:[#allocation8 + $0x250] sm:$0xff]
        %v776 = vld [vmem:[#allocation8 + $0x258] sm:$0xff]
        %v777 = vld [vmem:[#allocation8 + $0x260] sm:$0xff]
        %v778 = vld [vmem:[#allocation8 + $0x268] sm:$0xff]
        %v779 = vld [vmem:[#allocation8 + $0x270] sm:$0xff]
        %v780 = vld [vmem:[#allocation8 + $0x278] sm:$0xff]
        %v781 = vld [vmem:[#allocation8 + $0x280] sm:$0xff]
        %v782 = vld [vmem:[#allocation8 + $0x288] sm:$0xff]
        %v783 = vld [vmem:[#allocation8 + $0x290] sm:$0xff]
        %v784 = vld [vmem:[#allocation8 + $0x298] sm:$0xff]
        %v785 = vld [vmem:[#allocation8 + $0x2a0] sm:$0xff]
        %v786 = vld [vmem:[#allocation8 + $0x2a8] sm:$0xff]
        %v787 = vld [vmem:[#allocation8 + $0x2b0] sm:$0xff]
        %v788 = vld [vmem:[#allocation8 + $0x2b8] sm:$0xff]
        %v789 = vld [vmem:[#allocation8 + $0x2c0] sm:$0xff]
        %v790 = vld [vmem:[#allocation8 + $0x2c8] sm:$0xff]
        %v791 = vld [vmem:[#allocation8 + $0x2d0] sm:$0xff]
        %v792 = vld [vmem:[#allocation8 + $0x2d8] sm:$0xff]
        %v793 = vld [vmem:[#allocation8 + $0x2e0] sm:$0xff]
        %v794 = vld [vmem:[#allocation8 + $0x2e8] sm:$0xff]
        %v795 = vld [vmem:[#allocation8 + $0x2f0] sm:$0xff]
        %v796 = vld [vmem:[#allocation8 + $0x2f8] sm:$0xff]
        %v797 = vld [vmem:[#allocation10] sm:$0x3f]
        %v799 = vperm.slane %v797, 0
        %v800 = vperm.slane %v797, 1
        %v801 = vperm.slane %v797, 2
        %v802 = vperm.slane %v797, 3
        %v803 = vperm.slane %v797, 4
        %v804 = vperm.slane %v797, 5
        %v907 = vunpack.c.l.b16 %v701
        %v908 = vunpack.c.h.b16 %v701
        %v909 = vunpack.c.l.b16 %v702
        %v910 = vunpack.c.h.b16 %v702
        %v911 = vunpack.c.l.b16 %v703
        %v912 = vunpack.c.h.b16 %v703
        %v913 = vunpack.c.l.b16 %v704
        %v914 = vunpack.c.h.b16 %v704
        %v915 = vunpack.c.l.b16 %v705
        %v916 = vunpack.c.h.b16 %v705
        %v917 = vunpack.c.l.b16 %v706
        %v918 = vunpack.c.h.b16 %v706
        %v919 = vunpack.c.l.b16 %v707
        %v920 = vunpack.c.h.b16 %v707
        %v921 = vunpack.c.l.b16 %v708
        %v922 = vunpack.c.h.b16 %v708
        %v923 = vunpack.c.l.b16 %v709
        %v924 = vunpack.c.h.b16 %v709
        %v925 = vunpack.c.l.b16 %v710
        %v926 = vunpack.c.h.b16 %v710
        %v927 = vunpack.c.l.b16 %v711
        %v928 = vunpack.c.h.b16 %v711
        %v929 = vunpack.c.l.b16 %v712
        %v930 = vunpack.c.h.b16 %v712
        %v931 = vunpack.c.l.b16 %v713
        %v932 = vunpack.c.h.b16 %v713
        %v933 = vunpack.c.l.b16 %v714
        %v934 = vunpack.c.h.b16 %v714
        %v935 = vunpack.c.l.b16 %v715
        %v936 = vunpack.c.h.b16 %v715
        %v937 = vunpack.c.l.b16 %v716
        %v938 = vunpack.c.h.b16 %v716
        %v939 = vunpack.c.l.b16 %v717
        %v940 = vunpack.c.h.b16 %v717
        %v941 = vunpack.c.l.b16 %v718
        %v942 = vunpack.c.h.b16 %v718
        %v943 = vunpack.c.l.b16 %v719
        %v944 = vunpack.c.h.b16 %v719
        %v945 = vunpack.c.l.b16 %v720
        %v946 = vunpack.c.h.b16 %v720
        %v947 = vunpack.c.l.b16 %v721
        %v948 = vunpack.c.h.b16 %v721
        %v949 = vunpack.c.l.b16 %v722
        %v950 = vunpack.c.h.b16 %v722
        %v951 = vunpack.c.l.b16 %v723
        %v952 = vunpack.c.h.b16 %v723
        %v953 = vunpack.c.l.b16 %v724
        %v954 = vunpack.c.h.b16 %v724
        %v955 = vunpack.c.l.b16 %v725
        %v956 = vunpack.c.h.b16 %v725
        %v957 = vunpack.c.l.b16 %v726
        %v958 = vunpack.c.h.b16 %v726
        %v959 = vunpack.c.l.b16 %v727
        %v960 = vunpack.c.h.b16 %v727
        %v961 = vunpack.c.l.b16 %v728
        %v962 = vunpack.c.h.b16 %v728
        %v963 = vunpack.c.l.b16 %v729
        %v964 = vunpack.c.h.b16 %v729
        %v965 = vunpack.c.l.b16 %v730
        %v966 = vunpack.c.h.b16 %v730
        %v967 = vunpack.c.l.b16 %v731
        %v968 = vunpack.c.h.b16 %v731
        %v969 = vunpack.c.l.b16 %v732
        %v970 = vunpack.c.h.b16 %v732
        %v971 = vunpack.c.l.b16 %v733
        %v972 = vunpack.c.h.b16 %v733
        %v973 = vunpack.c.l.b16 %v734
        %v974 = vunpack.c.h.b16 %v734
        %v975 = vunpack.c.l.b16 %v735
        %v976 = vunpack.c.h.b16 %v735
        %v977 = vunpack.c.l.b16 %v736
        %v978 = vunpack.c.h.b16 %v736
        %v979 = vunpack.c.l.b16 %v737
        %v980 = vunpack.c.h.b16 %v737
        %v981 = vunpack.c.l.b16 %v738
        %v982 = vunpack.c.h.b16 %v738
        %v983 = vunpack.c.l.b16 %v739
        %v984 = vunpack.c.h.b16 %v739
        %v985 = vunpack.c.l.b16 %v740
        %v986 = vunpack.c.h.b16 %v740
        %v987 = vunpack.c.l.b16 %v741
        %v988 = vunpack.c.h.b16 %v741
        %v989 = vunpack.c.l.b16 %v742
        %v990 = vunpack.c.h.b16 %v742
        %v991 = vunpack.c.l.b16 %v743
        %v992 = vunpack.c.h.b16 %v743
        %v993 = vunpack.c.l.b16 %v744
        %v994 = vunpack.c.h.b16 %v744
        %v995 = vunpack.c.l.b16 %v745
        %v996 = vunpack.c.h.b16 %v745
        %v997 = vunpack.c.l.b16 %v746
        %v998 = vunpack.c.h.b16 %v746
        %v999 = vunpack.c.l.b16 %v747
        %v1000 = vunpack.c.h.b16 %v747
        %v1001 = vunpack.c.l.b16 %v748
        %v1002 = vunpack.c.h.b16 %v748
        %v1003 = vunpack.c.l.b16 %v749
        %v1004 = vunpack.c.h.b16 %v749
        %v1005 = vunpack.c.l.b16 %v750
        %v1006 = vunpack.c.h.b16 %v750
        %v1007 = vunpack.c.l.b16 %v751
        %v1008 = vunpack.c.h.b16 %v751
        %v1009 = vunpack.c.l.b16 %v752
        %v1010 = vunpack.c.h.b16 %v752
        %v1011 = vunpack.c.l.b16 %v753
        %v1012 = vunpack.c.h.b16 %v753
        %v1013 = vunpack.c.l.b16 %v754
        %v1014 = vunpack.c.h.b16 %v754
        %v1015 = vunpack.c.l.b16 %v755
        %v1016 = vunpack.c.h.b16 %v755
        %v1017 = vunpack.c.l.b16 %v756
        %v1018 = vunpack.c.h.b16 %v756
        %v1019 = vunpack.c.l.b16 %v757
        %v1020 = vunpack.c.h.b16 %v757
        %v1021 = vunpack.c.l.b16 %v758
        %v1022 = vunpack.c.h.b16 %v758
        %v1023 = vunpack.c.l.b16 %v759
        %v1024 = vunpack.c.h.b16 %v759
        %v1025 = vunpack.c.l.b16 %v760
        %v1026 = vunpack.c.h.b16 %v760
        %v1027 = vunpack.c.l.b16 %v761
        %v1028 = vunpack.c.h.b16 %v761
        %v1029 = vunpack.c.l.b16 %v762
        %v1030 = vunpack.c.h.b16 %v762
        %v1031 = vunpack.c.l.b16 %v763
        %v1032 = vunpack.c.h.b16 %v763
        %v1033 = vunpack.c.l.b16 %v764
        %v1034 = vunpack.c.h.b16 %v764
        %v1035 = vunpack.c.l.b16 %v765
        %v1036 = vunpack.c.h.b16 %v765
        %v1037 = vunpack.c.l.b16 %v766
        %v1038 = vunpack.c.h.b16 %v766
        %v1039 = vunpack.c.l.b16 %v767
        %v1040 = vunpack.c.h.b16 %v767
        %v1041 = vunpack.c.l.b16 %v768
        %v1042 = vunpack.c.h.b16 %v768
        %v1043 = vunpack.c.l.b16 %v769
        %v1044 = vunpack.c.h.b16 %v769
        %v1045 = vunpack.c.l.b16 %v770
        %v1046 = vunpack.c.h.b16 %v770
        %v1047 = vunpack.c.l.b16 %v771
        %v1048 = vunpack.c.h.b16 %v771
        %v1049 = vunpack.c.l.b16 %v772
        %v1050 = vunpack.c.h.b16 %v772
        %v1051 = vunpack.c.l.b16 %v773
        %v1052 = vunpack.c.h.b16 %v773
        %v1053 = vunpack.c.l.b16 %v774
        %v1054 = vunpack.c.h.b16 %v774
        %v1055 = vunpack.c.l.b16 %v775
        %v1056 = vunpack.c.h.b16 %v775
        %v1057 = vunpack.c.l.b16 %v776
        %v1058 = vunpack.c.h.b16 %v776
        %v1059 = vunpack.c.l.b16 %v777
        %v1060 = vunpack.c.h.b16 %v777
        %v1061 = vunpack.c.l.b16 %v778
        %v1062 = vunpack.c.h.b16 %v778
        %v1063 = vunpack.c.l.b16 %v779
        %v1064 = vunpack.c.h.b16 %v779
        %v1065 = vunpack.c.l.b16 %v780
        %v1066 = vunpack.c.h.b16 %v780
        %v1067 = vunpack.c.l.b16 %v781
        %v1068 = vunpack.c.h.b16 %v781
        %v1069 = vunpack.c.l.b16 %v782
        %v1070 = vunpack.c.h.b16 %v782
        %v1071 = vunpack.c.l.b16 %v783
        %v1072 = vunpack.c.h.b16 %v783
        %v1073 = vunpack.c.l.b16 %v784
        %v1074 = vunpack.c.h.b16 %v784
        %v1075 = vunpack.c.l.b16 %v785
        %v1076 = vunpack.c.h.b16 %v785
        %v1077 = vunpack.c.l.b16 %v786
        %v1078 = vunpack.c.h.b16 %v786
        %v1079 = vunpack.c.l.b16 %v787
        %v1080 = vunpack.c.h.b16 %v787
        %v1081 = vunpack.c.l.b16 %v788
        %v1082 = vunpack.c.h.b16 %v788
        %v1083 = vunpack.c.l.b16 %v789
        %v1084 = vunpack.c.h.b16 %v789
        %v1085 = vunpack.c.l.b16 %v790
        %v1086 = vunpack.c.h.b16 %v790
        %v1087 = vunpack.c.l.b16 %v791
        %v1088 = vunpack.c.h.b16 %v791
        %v1089 = vunpack.c.l.b16 %v792
        %v1090 = vunpack.c.h.b16 %v792
        %v1091 = vunpack.c.l.b16 %v793
        %v1092 = vunpack.c.h.b16 %v793
        %v1093 = vunpack.c.l.b16 %v794
        %v1094 = vunpack.c.h.b16 %v794
        %v1095 = vunpack.c.l.b16 %v795
        %v1096 = vunpack.c.h.b16 %v795
        %v1097 = vunpack.c.l.b16 %v796
        %v1098 = vunpack.c.h.b16 %v796
        %v1099 = vpack.c.b16 %v913, %v907
        %v1100 = vpack.c.b16 %v914, %v908
        %v1101 = vpack.c.b16 %v915, %v909
        %v1102 = vpack.c.b16 %v916, %v910
        %v1103 = vpack.c.b16 %v917, %v911
        %v1104 = vpack.c.b16 %v918, %v912
        %v1105 = vpack.c.b16 %v925, %v919
        %v1106 = vpack.c.b16 %v926, %v920
        %v1107 = vpack.c.b16 %v927, %v921
        %v1108 = vpack.c.b16 %v928, %v922
        %v1109 = vpack.c.b16 %v929, %v923
        %v1110 = vpack.c.b16 %v930, %v924
        %v1111 = vpack.c.b16 %v937, %v931
        %v1112 = vpack.c.b16 %v938, %v932
        %v1113 = vpack.c.b16 %v939, %v933
        %v1114 = vpack.c.b16 %v940, %v934
        %v1115 = vpack.c.b16 %v941, %v935
        %v1116 = vpack.c.b16 %v942, %v936
        %v1117 = vpack.c.b16 %v949, %v943
        %v1118 = vpack.c.b16 %v950, %v944
        %v1119 = vpack.c.b16 %v951, %v945
        %v1120 = vpack.c.b16 %v952, %v946
        %v1121 = vpack.c.b16 %v953, %v947
        %v1122 = vpack.c.b16 %v954, %v948
        %v1123 = vpack.c.b16 %v961, %v955
        %v1124 = vpack.c.b16 %v962, %v956
        %v1125 = vpack.c.b16 %v963, %v957
        %v1126 = vpack.c.b16 %v964, %v958
        %v1127 = vpack.c.b16 %v965, %v959
        %v1128 = vpack.c.b16 %v966, %v960
        %v1129 = vpack.c.b16 %v973, %v967
        %v1130 = vpack.c.b16 %v974, %v968
        %v1131 = vpack.c.b16 %v975, %v969
        %v1132 = vpack.c.b16 %v976, %v970
        %v1133 = vpack.c.b16 %v977, %v971
        %v1134 = vpack.c.b16 %v978, %v972
        %v1135 = vpack.c.b16 %v985, %v979
        %v1136 = vpack.c.b16 %v986, %v980
        %v1137 = vpack.c.b16 %v987, %v981
        %v1138 = vpack.c.b16 %v988, %v982
        %v1139 = vpack.c.b16 %v989, %v983
        %v1140 = vpack.c.b16 %v990, %v984
        %v1141 = vpack.c.b16 %v997, %v991
        %v1142 = vpack.c.b16 %v998, %v992
        %v1143 = vpack.c.b16 %v999, %v993
        %v1144 = vpack.c.b16 %v1000, %v994
        %v1145 = vpack.c.b16 %v1001, %v995
        %v1146 = vpack.c.b16 %v1002, %v996
        %v1147 = vpack.c.b16 %v1009, %v1003
        %v1148 = vpack.c.b16 %v1010, %v1004
        %v1149 = vpack.c.b16 %v1011, %v1005
        %v1150 = vpack.c.b16 %v1012, %v1006
        %v1151 = vpack.c.b16 %v1013, %v1007
        %v1152 = vpack.c.b16 %v1014, %v1008
        %v1153 = vpack.c.b16 %v1021, %v1015
        %v1154 = vpack.c.b16 %v1022, %v1016
        %v1155 = vpack.c.b16 %v1023, %v1017
        %v1156 = vpack.c.b16 %v1024, %v1018
        %v1157 = vpack.c.b16 %v1025, %v1019
        %v1158 = vpack.c.b16 %v1026, %v1020
        %v1159 = vpack.c.b16 %v1033, %v1027
        %v1160 = vpack.c.b16 %v1034, %v1028
        %v1161 = vpack.c.b16 %v1035, %v1029
        %v1162 = vpack.c.b16 %v1036, %v1030
        %v1163 = vpack.c.b16 %v1037, %v1031
        %v1164 = vpack.c.b16 %v1038, %v1032
        %v1165 = vpack.c.b16 %v1045, %v1039
        %v1166 = vpack.c.b16 %v1046, %v1040
        %v1167 = vpack.c.b16 %v1047, %v1041
        %v1168 = vpack.c.b16 %v1048, %v1042
        %v1169 = vpack.c.b16 %v1049, %v1043
        %v1170 = vpack.c.b16 %v1050, %v1044
        %v1171 = vpack.c.b16 %v1057, %v1051
        %v1172 = vpack.c.b16 %v1058, %v1052
        %v1173 = vpack.c.b16 %v1059, %v1053
        %v1174 = vpack.c.b16 %v1060, %v1054
        %v1175 = vpack.c.b16 %v1061, %v1055
        %v1176 = vpack.c.b16 %v1062, %v1056
        %v1177 = vpack.c.b16 %v1069, %v1063
        %v1178 = vpack.c.b16 %v1070, %v1064
        %v1179 = vpack.c.b16 %v1071, %v1065
        %v1180 = vpack.c.b16 %v1072, %v1066
        %v1181 = vpack.c.b16 %v1073, %v1067
        %v1182 = vpack.c.b16 %v1074, %v1068
        %v1183 = vpack.c.b16 %v1081, %v1075
        %v1184 = vpack.c.b16 %v1082, %v1076
        %v1185 = vpack.c.b16 %v1083, %v1077
        %v1186 = vpack.c.b16 %v1084, %v1078
        %v1187 = vpack.c.b16 %v1085, %v1079
        %v1188 = vpack.c.b16 %v1086, %v1080
        %v1189 = vpack.c.b16 %v1093, %v1087
        %v1190 = vpack.c.b16 %v1094, %v1088
        %v1191 = vpack.c.b16 %v1095, %v1089
        %v1192 = vpack.c.b16 %v1096, %v1090
        %v1193 = vpack.c.b16 %v1097, %v1091
        %v1194 = vpack.c.b16 %v1098, %v1092
        %1291 = vmatpush.bf16.msra.mxu0 %v1141
        %1292 = vmatpush.bf16.msra.mxu0 %v1135
        %1293 = vmatpush.bf16.msra.mxu0 %v1129
        %1294 = vmatpush.bf16.msra.mxu0 %v1123
        %1295 = vmatpush.bf16.msra.mxu0 %v1117
        %1296 = vmatpush.bf16.msra.mxu0 %v1111
        %1297 = vmatpush.bf16.msra.mxu0 %v1105
        %1298 = vmatpush.bf16.msra.mxu0 %v1099
        %1299 = vmatmul.bf16.gmra.mxu0 %v699
        %v1300 = vpop.f32.mrf.mxu0
        %v1301 = vadd.f32 %v799, %v1300
        %v1302 = vpop.f32.mrf.mxu0
        %v1303 = vadd.f32 %v799, %v1302
        %1304 = vdwg.mxu0
        %1305 = vmatpush.bf16.msra.mxu0 %v1189
        %1306 = vmatpush.bf16.msra.mxu0 %v1183
        %1307 = vmatpush.bf16.msra.mxu0 %v1177
        %1308 = vmatpush.bf16.msra.mxu0 %v1171
        %1309 = vmatpush.bf16.msra.mxu0 %v1165
        %1310 = vmatpush.bf16.msra.mxu0 %v1159
        %1311 = vmatpush.bf16.msra.mxu0 %v1153
        %1312 = vmatpush.bf16.msra.mxu0 %v1147
        %1313 = vmatmul.bf16.gmra.mxu0 %v700
        %v1314 = vpop.f32.mrf.mxu0
        %v1315 = vadd.f32 %v1301, %v1314
        %v1316 = vpop.f32.mrf.mxu0
        %v1317 = vadd.f32 %v1303, %v1316
        %1318 = vdwg.mxu0
        %1319 = vmatpush.bf16.msra.mxu0 %v1142
        %1320 = vmatpush.bf16.msra.mxu0 %v1136
        %1321 = vmatpush.bf16.msra.mxu0 %v1130
        %1322 = vmatpush.bf16.msra.mxu0 %v1124
        %1323 = vmatpush.bf16.msra.mxu0 %v1118
        %1324 = vmatpush.bf16.msra.mxu0 %v1112
        %1325 = vmatpush.bf16.msra.mxu0 %v1106
        %1326 = vmatpush.bf16.msra.mxu0 %v1100
        %1327 = vmatmul.bf16.gmra.mxu0 %v699
        %v1328 = vpop.f32.mrf.mxu0
        %v1329 = vadd.f32 %v800, %v1328
        %v1330 = vpop.f32.mrf.mxu0
        %v1331 = vadd.f32 %v800, %v1330
        %1332 = vdwg.mxu0
        %1333 = vmatpush.bf16.msra.mxu0 %v1190
        %1334 = vmatpush.bf16.msra.mxu0 %v1184
        %1335 = vmatpush.bf16.msra.mxu0 %v1178
        %1336 = vmatpush.bf16.msra.mxu0 %v1172
        %1337 = vmatpush.bf16.msra.mxu0 %v1166
        %1338 = vmatpush.bf16.msra.mxu0 %v1160
        %1339 = vmatpush.bf16.msra.mxu0 %v1154
        %1340 = vmatpush.bf16.msra.mxu0 %v1148
        %1341 = vmatmul.bf16.gmra.mxu0 %v700
        %v1342 = vpop.f32.mrf.mxu0
        %v1343 = vadd.f32 %v1329, %v1342
        %v1344 = vpop.f32.mrf.mxu0
        %v1345 = vadd.f32 %v1331, %v1344
        %1346 = vdwg.mxu0
        %1347 = vmatpush.bf16.msra.mxu0 %v1143
        %1348 = vmatpush.bf16.msra.mxu0 %v1137
        %1349 = vmatpush.bf16.msra.mxu0 %v1131
        %1350 = vmatpush.bf16.msra.mxu0 %v1125
        %1351 = vmatpush.bf16.msra.mxu0 %v1119
        %1352 = vmatpush.bf16.msra.mxu0 %v1113
        %1353 = vmatpush.bf16.msra.mxu0 %v1107
        %1354 = vmatpush.bf16.msra.mxu0 %v1101
        %1355 = vmatmul.bf16.gmra.mxu0 %v699
        %v1356 = vpop.f32.mrf.mxu0
        %v1357 = vadd.f32 %v801, %v1356
        %v1358 = vpop.f32.mrf.mxu0
        %v1359 = vadd.f32 %v801, %v1358
        %1360 = vdwg.mxu0
        %1361 = vmatpush.bf16.msra.mxu0 %v1191
        %1362 = vmatpush.bf16.msra.mxu0 %v1185
        %1363 = vmatpush.bf16.msra.mxu0 %v1179
        %1364 = vmatpush.bf16.msra.mxu0 %v1173
        %1365 = vmatpush.bf16.msra.mxu0 %v1167
        %1366 = vmatpush.bf16.msra.mxu0 %v1161
        %1367 = vmatpush.bf16.msra.mxu0 %v1155
        %1368 = vmatpush.bf16.msra.mxu0 %v1149
        %1369 = vmatmul.bf16.gmra.mxu0 %v700
        %v1370 = vpop.f32.mrf.mxu0
        %v1371 = vadd.f32 %v1357, %v1370
        %v1372 = vpop.f32.mrf.mxu0
        %v1373 = vadd.f32 %v1359, %v1372
        %1374 = vdwg.mxu0
        %1375 = vmatpush.bf16.msra.mxu0 %v1144
        %1376 = vmatpush.bf16.msra.mxu0 %v1138
        %1377 = vmatpush.bf16.msra.mxu0 %v1132
        %1378 = vmatpush.bf16.msra.mxu0 %v1126
        %1379 = vmatpush.bf16.msra.mxu0 %v1120
        %1380 = vmatpush.bf16.msra.mxu0 %v1114
        %1381 = vmatpush.bf16.msra.mxu0 %v1108
        %1382 = vmatpush.bf16.msra.mxu0 %v1102
        %1383 = vmatmul.bf16.gmra.mxu0 %v699
        %v1384 = vpop.f32.mrf.mxu0
        %v1385 = vadd.f32 %v802, %v1384
        %v1386 = vpop.f32.mrf.mxu0
        %v1387 = vadd.f32 %v802, %v1386
        %1388 = vdwg.mxu0
        %1389 = vmatpush.bf16.msra.mxu0 %v1192
        %1390 = vmatpush.bf16.msra.mxu0 %v1186
        %1391 = vmatpush.bf16.msra.mxu0 %v1180
        %1392 = vmatpush.bf16.msra.mxu0 %v1174
        %1393 = vmatpush.bf16.msra.mxu0 %v1168
        %1394 = vmatpush.bf16.msra.mxu0 %v1162
        %1395 = vmatpush.bf16.msra.mxu0 %v1156
        %1396 = vmatpush.bf16.msra.mxu0 %v1150
        %1397 = vmatmul.bf16.gmra.mxu0 %v700
        %v1398 = vpop.f32.mrf.mxu0
        %v1399 = vadd.f32 %v1385, %v1398
        %v1400 = vpop.f32.mrf.mxu0
        %v1401 = vadd.f32 %v1387, %v1400
        %1402 = vdwg.mxu0
        %1403 = vmatpush.bf16.msra.mxu0 %v1145
        %1404 = vmatpush.bf16.msra.mxu0 %v1139
        %1405 = vmatpush.bf16.msra.mxu0 %v1133
        %1406 = vmatpush.bf16.msra.mxu0 %v1127
        %1407 = vmatpush.bf16.msra.mxu0 %v1121
        %1408 = vmatpush.bf16.msra.mxu0 %v1115
        %1409 = vmatpush.bf16.msra.mxu0 %v1109
        %1410 = vmatpush.bf16.msra.mxu0 %v1103
        %1411 = vmatmul.bf16.gmra.mxu0 %v699
        %v1412 = vpop.f32.mrf.mxu0
        %v1413 = vadd.f32 %v803, %v1412
        %v1414 = vpop.f32.mrf.mxu0
        %v1415 = vadd.f32 %v803, %v1414
        %1416 = vdwg.mxu0
        %1417 = vmatpush.bf16.msra.mxu0 %v1193
        %1418 = vmatpush.bf16.msra.mxu0 %v1187
        %1419 = vmatpush.bf16.msra.mxu0 %v1181
        %1420 = vmatpush.bf16.msra.mxu0 %v1175
        %1421 = vmatpush.bf16.msra.mxu0 %v1169
        %1422 = vmatpush.bf16.msra.mxu0 %v1163
        %1423 = vmatpush.bf16.msra.mxu0 %v1157
        %1424 = vmatpush.bf16.msra.mxu0 %v1151
        %1425 = vmatmul.bf16.gmra.mxu0 %v700
        %v1426 = vpop.f32.mrf.mxu0
        %v1427 = vadd.f32 %v1413, %v1426
        %v1428 = vpop.f32.mrf.mxu0
        %v1429 = vadd.f32 %v1415, %v1428
        %1430 = vdwg.mxu0
        %1431 = vmatpush.bf16.msra.mxu0 %v1146
        %1432 = vmatpush.bf16.msra.mxu0 %v1140
        %1433 = vmatpush.bf16.msra.mxu0 %v1134
        %1434 = vmatpush.bf16.msra.mxu0 %v1128
        %1435 = vmatpush.bf16.msra.mxu0 %v1122
        %1436 = vmatpush.bf16.msra.mxu0 %v1116
        %1437 = vmatpush.bf16.msra.mxu0 %v1110
        %1438 = vmatpush.bf16.msra.mxu0 %v1104
        %1439 = vmatmul.bf16.gmra.mxu0 %v699
        %v1440 = vpop.f32.mrf.mxu0
        %v1441 = vadd.f32 %v804, %v1440
        %v1442 = vpop.f32.mrf.mxu0
        %v1443 = vadd.f32 %v804, %v1442
        %1444 = vdwg.mxu0
        %1445 = vmatpush.bf16.msra.mxu0 %v1194
        %1446 = vmatpush.bf16.msra.mxu0 %v1188
        %1447 = vmatpush.bf16.msra.mxu0 %v1182
        %1448 = vmatpush.bf16.msra.mxu0 %v1176
        %1449 = vmatpush.bf16.msra.mxu0 %v1170
        %1450 = vmatpush.bf16.msra.mxu0 %v1164
        %1451 = vmatpush.bf16.msra.mxu0 %v1158
        %1452 = vmatpush.bf16.msra.mxu0 %v1152
        %1453 = vmatmul.bf16.gmra.mxu0 %v700
        %v1454 = vpop.f32.mrf.mxu0
        %v1455 = vadd.f32 %v1441, %v1454
        %v1456 = vpop.f32.mrf.mxu0
        %v1457 = vadd.f32 %v1443, %v1456
        %1458 = vdwg.mxu0
        %v1459 = vpack.c.bf16 %v1343, %v1315
        %v1460 = vpack.c.bf16 %v1345, %v1317
        %v1462 = vrot.slane %v1459, 4
        %v1465 = vrot.slane %v1460, 4
        %v1467 = vpack.c.bf16 %v1399, %v1371
        %v1468 = vpack.c.bf16 %v1401, %v1373
        %v1470 = vrot.slane %v1467, 4
        %v1473 = vrot.slane %v1468, 4
        %v1475 = vpack.c.bf16 %v1455, %v1427
        %v1476 = vpack.c.bf16 %v1457, %v1429
        %v1478 = vrot.slane %v1475, 4
        %v1480 = vrot.slane %v1476, 4
        %1481 = vmatpush.bf16.xpose.msra.mxu0 0
        %1482 = vmatpush.bf16.xpose.msra.mxu0 0
        %1483 = vmatpush.bf16.xpose.msra.mxu0 0
        %1484 = vmatpush.bf16.xpose.msra.mxu0 0
        %1485 = vmatpush.bf16.xpose.msra.mxu0 0
        %1486 = vmatpush.bf16.xpose.msra.mxu0 0
        %1487 = vmatpush.bf16.xpose.msra.mxu0 0
        %1488 = vmatpush.bf16.xpose.msra.mxu0 %v1467
        %1489 = vmatmul.bf16.gmra.mxu0 %v1459
        %v1490 = vpop.f32.mrf.mxu0
        %v1491 = vadd.f32 0.0, %v1490
        %v1492 = vpop.f32.mrf.mxu0
        %1493 = vdwg.mxu0
        %1494 = vmatpush.bf16.xpose.msra.mxu0 0
        %1495 = vmatpush.bf16.xpose.msra.mxu0 0
        %1496 = vmatpush.bf16.xpose.msra.mxu0 0
        %1497 = vmatpush.bf16.xpose.msra.mxu0 0
        %1498 = vmatpush.bf16.xpose.msra.mxu0 0
        %1499 = vmatpush.bf16.xpose.msra.mxu0 0
        %1500 = vmatpush.bf16.xpose.msra.mxu0 0
        %1501 = vmatpush.bf16.xpose.msra.mxu0 %v1470
        %1502 = vmatmul.bf16.gmra.mxu0 %v1462
        %v1503 = vpop.f32.mrf.mxu0
        %v1504 = vadd.f32 0.0, %v1503
        %v1505 = vpop.f32.mrf.mxu0
        %1506 = vdwg.mxu0
        %1507 = vmatpush.bf16.xpose.msra.mxu0 0
        %1508 = vmatpush.bf16.xpose.msra.mxu0 0
        %1509 = vmatpush.bf16.xpose.msra.mxu0 0
        %1510 = vmatpush.bf16.xpose.msra.mxu0 0
        %1511 = vmatpush.bf16.xpose.msra.mxu0 0
        %1512 = vmatpush.bf16.xpose.msra.mxu0 0
        %1513 = vmatpush.bf16.xpose.msra.mxu0 0
        %1514 = vmatpush.bf16.xpose.msra.mxu0 %v1468
        %1515 = vmatmul.bf16.gmra.mxu0 %v1460
        %v1516 = vpop.f32.mrf.mxu0
        %v1517 = vadd.f32 0.0, %v1516
        %v1518 = vpop.f32.mrf.mxu0
        %1519 = vdwg.mxu0
        %1520 = vmatpush.bf16.xpose.msra.mxu0 0
        %1521 = vmatpush.bf16.xpose.msra.mxu0 0
        %1522 = vmatpush.bf16.xpose.msra.mxu0 0
        %1523 = vmatpush.bf16.xpose.msra.mxu0 0
        %1524 = vmatpush.bf16.xpose.msra.mxu0 0
        %1525 = vmatpush.bf16.xpose.msra.mxu0 0
        %1526 = vmatpush.bf16.xpose.msra.mxu0 0
        %1527 = vmatpush.bf16.xpose.msra.mxu0 %v1473
        %1528 = vmatmul.bf16.gmra.mxu0 %v1465
        %v1529 = vpop.f32.mrf.mxu0
        %v1530 = vadd.f32 0.0, %v1529
        %v1531 = vpop.f32.mrf.mxu0
        %1532 = vdwg.mxu0
        %vm1533 = vcmask 64512
        %v1534 = vsel %vm1533, %v1491, -inf
        %1535 = vmax.xlane.f32.xlu0 %v1534
        %v1536 = vpop.xlane.xlu0 %1535
        %v1537 = vsel %vm1533, %v1504, -inf
        %1538 = vmax.xlane.f32.xlu0 %v1537
        %v1539 = vpop.xlane.xlu0 %1538
        %v1540 = vsel %vm1533, %v1517, -inf
        %1541 = vmax.xlane.f32.xlu0 %v1540
        %v1542 = vpop.xlane.xlu0 %1541
        %v1543 = vsel %vm1533, %v1530, -inf
        %1544 = vmax.xlane.f32.xlu0 %v1543
        %v1545 = vpop.xlane.xlu0 %1544
        %v1546 = vsub.f32 %v1491, %v1536
        %v1547 = vsub.f32 %v1504, %v1539
        %v1548 = vsub.f32 %v1517, %v1542
        %v1549 = vsub.f32 %v1530, %v1545
        %v1550 = vmul.f32 %v1546, 1.442695
        %v1551 = vpow.pop %v1550
        %v1552 = vmul.f32 %v1547, 1.442695
        %v1553 = vpow.pop %v1552
        %v1554 = vmul.f32 %v1548, 1.442695
        %v1555 = vpow.pop %v1554
        %v1556 = vmul.f32 %v1549, 1.442695
        %v1557 = vpow.pop %v1556
        %v1558 = vsel %vm1533, %v1551, 0.0
        %1559 = vadd.xlane.f32.xlu0 %v1558
        %v1560 = vpop.xlane.xlu0 %1559
        %v1561 = vsel %vm1533, %v1553, 0.0
        %1562 = vadd.xlane.f32.xlu0 %v1561
        %v1563 = vpop.xlane.xlu0 %1562
        %v1564 = vsel %vm1533, %v1555, 0.0
        %1565 = vadd.xlane.f32.xlu0 %v1564
        %v1566 = vpop.xlane.xlu0 %1565
        %v1567 = vsel %vm1533, %v1557, 0.0
        %1568 = vadd.xlane.f32.xlu0 %v1567
        %v1569 = vpop.xlane.xlu0 %1568
        %v1570 = vrcp.pop %v1560
        %v1571 = vrcp.pop %v1563
        %v1572 = vrcp.pop %v1566
        %v1573 = vrcp.pop %v1569
        %v1574 = vpack.c.bf16 %v1551, %v1551
        %v1575 = vpack.c.bf16 %v1553, %v1553
        %v1576 = vpack.c.bf16 %v1555, %v1555
        %v1577 = vpack.c.bf16 %v1557, %v1557
        %v1579 = vsel %vm1533, %v1574, 0
        %vm1581 = vcmask 1043456
        %v1583 = vsel %vm1581, %v1475, 0
        %1585 = vmatpush.bf16.msra.mxu0 0
        %1586 = vmatpush.bf16.msra.mxu0 0
        %1587 = vmatpush.bf16.msra.mxu0 0
        %1588 = vmatpush.bf16.msra.mxu0 0
        %1589 = vmatpush.bf16.msra.mxu0 0
        %1590 = vmatpush.bf16.msra.mxu0 0
        %1591 = vmatpush.bf16.msra.mxu0 0
        %1592 = vmatpush.bf16.msra.mxu0 %v1583
        %1593 = vmatmul.bf16.gmra.mxu0 %v1579
        %v1594 = vpop.f32.mrf.mxu0
        %v1595 = vadd.f32 0.0, %v1594
        %v1596 = vpop.f32.mrf.mxu0
        %1597 = vdwg.mxu0
        %v1599 = vsel %vm1533, %v1575, 0
        %v1602 = vsel %vm1581, %v1478, 0
        %1604 = vmatpush.bf16.msra.mxu0 0
        %1605 = vmatpush.bf16.msra.mxu0 0
        %1606 = vmatpush.bf16.msra.mxu0 0
        %1607 = vmatpush.bf16.msra.mxu0 0
        %1608 = vmatpush.bf16.msra.mxu0 0
        %1609 = vmatpush.bf16.msra.mxu0 0
        %1610 = vmatpush.bf16.msra.mxu0 0
        %1611 = vmatpush.bf16.msra.mxu0 %v1602
        %1612 = vmatmul.bf16.gmra.mxu0 %v1599
        %v1613 = vpop.f32.mrf.mxu0
        %v1614 = vadd.f32 0.0, %v1613
        %v1615 = vpop.f32.mrf.mxu0
        %1616 = vdwg.mxu0
        %v1618 = vsel %vm1533, %v1576, 0
        %v1621 = vsel %vm1581, %v1476, 0
        %1623 = vmatpush.bf16.msra.mxu0 0
        %1624 = vmatpush.bf16.msra.mxu0 0
        %1625 = vmatpush.bf16.msra.mxu0 0
        %1626 = vmatpush.bf16.msra.mxu0 0
        %1627 = vmatpush.bf16.msra.mxu0 0
        %1628 = vmatpush.bf16.msra.mxu0 0
        %1629 = vmatpush.bf16.msra.mxu0 0
        %1630 = vmatpush.bf16.msra.mxu0 %v1621
        %1631 = vmatmul.bf16.gmra.mxu0 %v1618
        %v1632 = vpop.f32.mrf.mxu0
        %v1633 = vadd.f32 0.0, %v1632
        %v1634 = vpop.f32.mrf.mxu0
        %1635 = vdwg.mxu0
        %v1637 = vsel %vm1533, %v1577, 0
        %v1640 = vsel %vm1581, %v1480, 0
        %1642 = vmatpush.bf16.msra.mxu0 0
        %1643 = vmatpush.bf16.msra.mxu0 0
        %1644 = vmatpush.bf16.msra.mxu0 0
        %1645 = vmatpush.bf16.msra.mxu0 0
        %1646 = vmatpush.bf16.msra.mxu0 0
        %1647 = vmatpush.bf16.msra.mxu0 0
        %1648 = vmatpush.bf16.msra.mxu0 0
        %1649 = vmatpush.bf16.msra.mxu0 %v1640
        %1650 = vmatmul.bf16.gmra.mxu0 %v1637
        %v1651 = vpop.f32.mrf.mxu0
        %v1652 = vadd.f32 0.0, %v1651
        %v1653 = vpop.f32.mrf.mxu0
        %1654 = vdwg.mxu0
        %v1655 = vmul.f32 %v1595, %v1570
        %v1656 = vmul.f32 %v1614, %v1571
        %v1657 = vmul.f32 %v1633, %v1572
        %v1658 = vmul.f32 %v1652, %v1573
        %v1659 = vpack.c.bf16 %v1655, %v1655
        %v1660 = vpack.c.bf16 %v1656, %v1656
        %v1661 = vpack.c.bf16 %v1657, %v1657
        %v1662 = vpack.c.bf16 %v1658, %v1658
        %v1665 = vrot.slane %v1661, 4
        %v1666 = vrot.slane %v1662, 4
        %v1669 = vsel %vm1581, %v1659, %v1665
        %v1673 = vsel %vm1581, %v1660, %v1666
        %v1675 = vld [vmem:[#allocation11] sm:$0xff]
        %v1676 = vld [vmem:[#allocation11 + $0x8] sm:$0xff]
        %v1677 = vld [vmem:[#allocation11 + $0x10] sm:$0xff]
        %v1678 = vld [vmem:[#allocation11 + $0x18] sm:$0xff]
        %v1679 = vld [vmem:[#allocation11 + $0x20] sm:$0xff]
        %v1680 = vld [vmem:[#allocation11 + $0x28] sm:$0xff]
        %v1681 = vld [vmem:[#allocation11 + $0x30] sm:$0xff]
        %v1682 = vld [vmem:[#allocation11 + $0x38] sm:$0xff]
        %v1683 = vld [vmem:[#allocation11 + $0x40] sm:$0xff]
        %v1684 = vld [vmem:[#allocation11 + $0x48] sm:$0xff]
        %v1685 = vld [vmem:[#allocation11 + $0x50] sm:$0xff]
        %v1686 = vld [vmem:[#allocation11 + $0x58] sm:$0xff]
        %v1687 = vld [vmem:[#allocation11 + $0x60] sm:$0xff]
        %v1688 = vld [vmem:[#allocation11 + $0x68] sm:$0xff]
        %v1689 = vld [vmem:[#allocation11 + $0x70] sm:$0xff]
        %v1690 = vld [vmem:[#allocation11 + $0x78] sm:$0xff]
        %v1691 = vld [vmem:[#allocation11 + $0x80] sm:$0xff]
        %v1692 = vld [vmem:[#allocation11 + $0x88] sm:$0xff]
        %v1693 = vld [vmem:[#allocation11 + $0x90] sm:$0xff]
        %v1694 = vld [vmem:[#allocation11 + $0x98] sm:$0xff]
        %v1695 = vld [vmem:[#allocation11 + $0xa0] sm:$0xff]
        %v1696 = vld [vmem:[#allocation11 + $0xa8] sm:$0xff]
        %v1697 = vld [vmem:[#allocation11 + $0xb0] sm:$0xff]
        %v1698 = vld [vmem:[#allocation11 + $0xb8] sm:$0xff]
        %v1699 = vld [vmem:[#allocation11 + $0xc0] sm:$0xff]
        %v1700 = vld [vmem:[#allocation11 + $0xc8] sm:$0xff]
        %v1701 = vld [vmem:[#allocation11 + $0xd0] sm:$0xff]
        %v1702 = vld [vmem:[#allocation11 + $0xd8] sm:$0xff]
        %v1703 = vld [vmem:[#allocation11 + $0xe0] sm:$0xff]
        %v1704 = vld [vmem:[#allocation11 + $0xe8] sm:$0xff]
        %v1705 = vld [vmem:[#allocation11 + $0xf0] sm:$0xff]
        %v1706 = vld [vmem:[#allocation11 + $0xf8] sm:$0xff]
        %v1707 = vld [vmem:[#allocation13] sm:$0x3]
        %v1709 = vperm.slane %v1707, 0
        %v1710 = vperm.slane %v1707, 1
        %v1745 = vunpack.c.l.b16 %v1675
        %v1746 = vunpack.c.h.b16 %v1675
        %v1747 = vunpack.c.l.b16 %v1676
        %v1748 = vunpack.c.h.b16 %v1676
        %v1749 = vunpack.c.l.b16 %v1677
        %v1750 = vunpack.c.h.b16 %v1677
        %v1751 = vunpack.c.l.b16 %v1678
        %v1752 = vunpack.c.h.b16 %v1678
        %v1753 = vunpack.c.l.b16 %v1679
        %v1754 = vunpack.c.h.b16 %v1679
        %v1755 = vunpack.c.l.b16 %v1680
        %v1756 = vunpack.c.h.b16 %v1680
        %v1757 = vunpack.c.l.b16 %v1681
        %v1758 = vunpack.c.h.b16 %v1681
        %v1759 = vunpack.c.l.b16 %v1682
        %v1760 = vunpack.c.h.b16 %v1682
        %v1761 = vunpack.c.l.b16 %v1683
        %v1762 = vunpack.c.h.b16 %v1683
        %v1763 = vunpack.c.l.b16 %v1684
        %v1764 = vunpack.c.h.b16 %v1684
        %v1765 = vunpack.c.l.b16 %v1685
        %v1766 = vunpack.c.h.b16 %v1685
        %v1767 = vunpack.c.l.b16 %v1686
        %v1768 = vunpack.c.h.b16 %v1686
        %v1769 = vunpack.c.l.b16 %v1687
        %v1770 = vunpack.c.h.b16 %v1687
        %v1771 = vunpack.c.l.b16 %v1688
        %v1772 = vunpack.c.h.b16 %v1688
        %v1773 = vunpack.c.l.b16 %v1689
        %v1774 = vunpack.c.h.b16 %v1689
        %v1775 = vunpack.c.l.b16 %v1690
        %v1776 = vunpack.c.h.b16 %v1690
        %v1777 = vunpack.c.l.b16 %v1691
        %v1778 = vunpack.c.h.b16 %v1691
        %v1779 = vunpack.c.l.b16 %v1692
        %v1780 = vunpack.c.h.b16 %v1692
        %v1781 = vunpack.c.l.b16 %v1693
        %v1782 = vunpack.c.h.b16 %v1693
        %v1783 = vunpack.c.l.b16 %v1694
        %v1784 = vunpack.c.h.b16 %v1694
        %v1785 = vunpack.c.l.b16 %v1695
        %v1786 = vunpack.c.h.b16 %v1695
        %v1787 = vunpack.c.l.b16 %v1696
        %v1788 = vunpack.c.h.b16 %v1696
        %v1789 = vunpack.c.l.b16 %v1697
        %v1790 = vunpack.c.h.b16 %v1697
        %v1791 = vunpack.c.l.b16 %v1698
        %v1792 = vunpack.c.h.b16 %v1698
        %v1793 = vunpack.c.l.b16 %v1699
        %v1794 = vunpack.c.h.b16 %v1699
        %v1795 = vunpack.c.l.b16 %v1700
        %v1796 = vunpack.c.h.b16 %v1700
        %v1797 = vunpack.c.l.b16 %v1701
        %v1798 = vunpack.c.h.b16 %v1701
        %v1799 = vunpack.c.l.b16 %v1702
        %v1800 = vunpack.c.h.b16 %v1702
        %v1801 = vunpack.c.l.b16 %v1703
        %v1802 = vunpack.c.h.b16 %v1703
        %v1803 = vunpack.c.l.b16 %v1704
        %v1804 = vunpack.c.h.b16 %v1704
        %v1805 = vunpack.c.l.b16 %v1705
        %v1806 = vunpack.c.h.b16 %v1705
        %v1807 = vunpack.c.l.b16 %v1706
        %v1808 = vunpack.c.h.b16 %v1706
        %v1809 = vpack.c.b16 %v1747, %v1745
        %v1810 = vpack.c.b16 %v1748, %v1746
        %v1811 = vpack.c.b16 %v1751, %v1749
        %v1812 = vpack.c.b16 %v1752, %v1750
        %v1813 = vpack.c.b16 %v1755, %v1753
        %v1814 = vpack.c.b16 %v1756, %v1754
        %v1815 = vpack.c.b16 %v1759, %v1757
        %v1816 = vpack.c.b16 %v1760, %v1758
        %v1817 = vpack.c.b16 %v1763, %v1761
        %v1818 = vpack.c.b16 %v1764, %v1762
        %v1819 = vpack.c.b16 %v1767, %v1765
        %v1820 = vpack.c.b16 %v1768, %v1766
        %v1821 = vpack.c.b16 %v1771, %v1769
        %v1822 = vpack.c.b16 %v1772, %v1770
        %v1823 = vpack.c.b16 %v1775, %v1773
        %v1824 = vpack.c.b16 %v1776, %v1774
        %v1825 = vpack.c.b16 %v1779, %v1777
        %v1826 = vpack.c.b16 %v1780, %v1778
        %v1827 = vpack.c.b16 %v1783, %v1781
        %v1828 = vpack.c.b16 %v1784, %v1782
        %v1829 = vpack.c.b16 %v1787, %v1785
        %v1830 = vpack.c.b16 %v1788, %v1786
        %v1831 = vpack.c.b16 %v1791, %v1789
        %v1832 = vpack.c.b16 %v1792, %v1790
        %v1833 = vpack.c.b16 %v1795, %v1793
        %v1834 = vpack.c.b16 %v1796, %v1794
        %v1835 = vpack.c.b16 %v1799, %v1797
        %v1836 = vpack.c.b16 %v1800, %v1798
        %v1837 = vpack.c.b16 %v1803, %v1801
        %v1838 = vpack.c.b16 %v1804, %v1802
        %v1839 = vpack.c.b16 %v1807, %v1805
        %v1840 = vpack.c.b16 %v1808, %v1806
        %1873 = vmatpush.bf16.msra.mxu0 %v1823
        %1874 = vmatpush.bf16.msra.mxu0 %v1821
        %1875 = vmatpush.bf16.msra.mxu0 %v1819
        %1876 = vmatpush.bf16.msra.mxu0 %v1817
        %1877 = vmatpush.bf16.msra.mxu0 %v1815
        %1878 = vmatpush.bf16.msra.mxu0 %v1813
        %1879 = vmatpush.bf16.msra.mxu0 %v1811
        %1880 = vmatpush.bf16.msra.mxu0 %v1809
        %1881 = vmatmul.bf16.gmra.mxu0 %v1669
        %v1882 = vpop.f32.mrf.mxu0
        %v1883 = vadd.f32 %v1709, %v1882
        %v1884 = vpop.f32.mrf.mxu0
        %v1885 = vadd.f32 %v1709, %v1884
        %1886 = vdwg.mxu0
        %1887 = vmatpush.bf16.msra.mxu0 %v1839
        %1888 = vmatpush.bf16.msra.mxu0 %v1837
        %1889 = vmatpush.bf16.msra.mxu0 %v1835
        %1890 = vmatpush.bf16.msra.mxu0 %v1833
        %1891 = vmatpush.bf16.msra.mxu0 %v1831
        %1892 = vmatpush.bf16.msra.mxu0 %v1829
        %1893 = vmatpush.bf16.msra.mxu0 %v1827
        %1894 = vmatpush.bf16.msra.mxu0 %v1825
        %1895 = vmatmul.bf16.gmra.mxu0 %v1673
        %v1896 = vpop.f32.mrf.mxu0
        %v1897 = vadd.f32 %v1883, %v1896
        %v1898 = vpop.f32.mrf.mxu0
        %v1899 = vadd.f32 %v1885, %v1898
        %1900 = vdwg.mxu0
        %1901 = vmatpush.bf16.msra.mxu0 %v1824
        %1902 = vmatpush.bf16.msra.mxu0 %v1822
        %1903 = vmatpush.bf16.msra.mxu0 %v1820
        %1904 = vmatpush.bf16.msra.mxu0 %v1818
        %1905 = vmatpush.bf16.msra.mxu0 %v1816
        %1906 = vmatpush.bf16.msra.mxu0 %v1814
        %1907 = vmatpush.bf16.msra.mxu0 %v1812
        %1908 = vmatpush.bf16.msra.mxu0 %v1810
        %1909 = vmatmul.bf16.gmra.mxu0 %v1669
        %v1910 = vpop.f32.mrf.mxu0
        %v1911 = vadd.f32 %v1710, %v1910
        %v1912 = vpop.f32.mrf.mxu0
        %v1913 = vadd.f32 %v1710, %v1912
        %1914 = vdwg.mxu0
        %1915 = vmatpush.bf16.msra.mxu0 %v1840
        %1916 = vmatpush.bf16.msra.mxu0 %v1838
        %1917 = vmatpush.bf16.msra.mxu0 %v1836
        %1918 = vmatpush.bf16.msra.mxu0 %v1834
        %1919 = vmatpush.bf16.msra.mxu0 %v1832
        %1920 = vmatpush.bf16.msra.mxu0 %v1830
        %1921 = vmatpush.bf16.msra.mxu0 %v1828
        %1922 = vmatpush.bf16.msra.mxu0 %v1826
        %1923 = vmatmul.bf16.gmra.mxu0 %v1673
        %v1924 = vpop.f32.mrf.mxu0
        %v1925 = vadd.f32 %v1911, %v1924
        %v1926 = vpop.f32.mrf.mxu0
        %v1927 = vadd.f32 %v1913, %v1926
        %1928 = vdwg.mxu0
        %v1929 = vadd.f32 %v618, %v1897
        %v1930 = vadd.f32 %v619, %v1925
        %v1931 = vadd.f32 %v620, %v1899
        %v1932 = vadd.f32 %v621, %v1927
        %v1933 = vld [vmem:[#allocation14] sm:$0x3]
        %v1934 = vld [vmem:[#allocation16] sm:$0x3]
        %v1935 = vadd.f32 %v1929, %v1930
        %1936 = vadd.xlane.f32.xlu0 %v1935
        %v1937 = vpop.xlane.xlu0 %1936
        %v1938 = vadd.f32 %v1931, %v1932
        %1939 = vadd.xlane.f32.xlu0 %v1938
        %v1940 = vpop.xlane.xlu0 %1939
        %v1941 = vmul.f32 %v1937, %v636
        %v1942 = vmul.f32 %v1940, %v636
        %v1943 = vsub.f32 %v1929, %v1941
        %v1944 = vsub.f32 %v1930, %v1941
        %v1945 = vsub.f32 %v1931, %v1942
        %v1946 = vsub.f32 %v1932, %v1942
        %v1947 = vmul.f32 %v1943, %v1943
        %v1948 = vmul.f32 %v1944, %v1944
        %v1949 = vmul.f32 %v1945, %v1945
        %v1950 = vmul.f32 %v1946, %v1946
        %v1951 = vadd.f32 %v1947, %v1948
        %1952 = vadd.xlane.f32.xlu0 %v1951
        %v1953 = vpop.xlane.xlu0 %1952
        %v1954 = vadd.f32 %v1949, %v1950
        %1955 = vadd.xlane.f32.xlu0 %v1954
        %v1956 = vpop.xlane.xlu0 %1955
        %v1957 = vmul.f32 %v1953, %v636
        %v1958 = vmul.f32 %v1956, %v636
        %v1959 = vadd.f32 %v1957, 1e-05
        %v1960 = vadd.f32 %v1958, 1e-05
        %v1961 = vrsqrt.pop %v1959
        %v1962 = vmul.f32 %v1961, %v1959
        %v1963 = vmul.f32 %v1962, %v1961
        %v1964 = vmul.f32 0.5, %v1963
        %v1965 = vsub.f32 1.5, %v1964
        %v1966 = vmul.f32 %v1961, %v1965
        %vm1967 = vweird.f32 %v1959
        %vm1968 = vweird.f32 %v1961
        %vm1969 = vmor %vm1967, %vm1968
        %v1970 = vsel %vm1969, %v1961, %v1966
        %v1971 = vrsqrt.pop %v1960
        %v1972 = vmul.f32 %v1971, %v1960
        %v1973 = vmul.f32 %v1972, %v1971
        %v1974 = vmul.f32 0.5, %v1973
        %v1975 = vsub.f32 1.5, %v1974
        %v1976 = vmul.f32 %v1971, %v1975
        %vm1977 = vweird.f32 %v1960
        %vm1978 = vweird.f32 %v1971
        %vm1979 = vmor %vm1977, %vm1978
        %v1980 = vsel %vm1979, %v1971, %v1976
        %v1981 = vmul.f32 %v1943, %v1970
        %v1982 = vmul.f32 %v1944, %v1970
        %v1983 = vmul.f32 %v1945, %v1980
        %v1984 = vmul.f32 %v1946, %v1980
        %v1986 = vperm.slane %v1933, 0
        %v1987 = vperm.slane %v1933, 1
        %v1990 = vmul.f32 %v1981, %v1986
        %v1991 = vmul.f32 %v1982, %v1987
        %v1992 = vmul.f32 %v1983, %v1986
        %v1993 = vmul.f32 %v1984, %v1987
        %v1995 = vperm.slane %v1934, 0
        %v1996 = vperm.slane %v1934, 1
        %v1999 = vadd.f32 %v1990, %v1995
        %v2000 = vadd.f32 %v1991, %v1996
        %v2001 = vadd.f32 %v1992, %v1995
        %v2002 = vadd.f32 %v1993, %v1996
        %v2003 = vpack.c.bf16 %v2001, %v1999
        %v2004 = vpack.c.bf16 %v2002, %v2000
        %v2005 = vld [vmem:[#allocation17] sm:$0xff]
        %v2006 = vld [vmem:[#allocation17 + $0x8] sm:$0xff]
        %v2007 = vld [vmem:[#allocation17 + $0x10] sm:$0xff]
        %v2008 = vld [vmem:[#allocation17 + $0x18] sm:$0xff]
        %v2009 = vld [vmem:[#allocation17 + $0x20] sm:$0xff]
        %v2010 = vld [vmem:[#allocation17 + $0x28] sm:$0xff]
        %v2011 = vld [vmem:[#allocation17 + $0x30] sm:$0xff]
        %v2012 = vld [vmem:[#allocation17 + $0x38] sm:$0xff]
        %v2013 = vld [vmem:[#allocation17 + $0x40] sm:$0xff]
        %v2014 = vld [vmem:[#allocation17 + $0x48] sm:$0xff]
        %v2015 = vld [vmem:[#allocation17 + $0x50] sm:$0xff]
        %v2016 = vld [vmem:[#allocation17 + $0x58] sm:$0xff]
        %v2017 = vld [vmem:[#allocation17 + $0x60] sm:$0xff]
        %v2018 = vld [vmem:[#allocation17 + $0x68] sm:$0xff]
        %v2019 = vld [vmem:[#allocation17 + $0x70] sm:$0xff]
        %v2020 = vld [vmem:[#allocation17 + $0x78] sm:$0xff]
        %v2021 = vld [vmem:[#allocation17 + $0x80] sm:$0xff]
        %v2022 = vld [vmem:[#allocation17 + $0x88] sm:$0xff]
        %v2023 = vld [vmem:[#allocation17 + $0x90] sm:$0xff]
        %v2024 = vld [vmem:[#allocation17 + $0x98] sm:$0xff]
        %v2025 = vld [vmem:[#allocation17 + $0xa0] sm:$0xff]
        %v2026 = vld [vmem:[#allocation17 + $0xa8] sm:$0xff]
        %v2027 = vld [vmem:[#allocation17 + $0xb0] sm:$0xff]
        %v2028 = vld [vmem:[#allocation17 + $0xb8] sm:$0xff]
        %v2029 = vld [vmem:[#allocation17 + $0xc0] sm:$0xff]
        %v2030 = vld [vmem:[#allocation17 + $0xc8] sm:$0xff]
        %v2031 = vld [vmem:[#allocation17 + $0xd0] sm:$0xff]
        %v2032 = vld [vmem:[#allocation17 + $0xd8] sm:$0xff]
        %v2033 = vld [vmem:[#allocation17 + $0xe0] sm:$0xff]
        %v2034 = vld [vmem:[#allocation17 + $0xe8] sm:$0xff]
        %v2035 = vld [vmem:[#allocation17 + $0xf0] sm:$0xff]
        %v2036 = vld [vmem:[#allocation17 + $0xf8] sm:$0xff]
        %v2037 = vld [vmem:[#allocation17 + $0x100] sm:$0xff]
        %v2038 = vld [vmem:[#allocation17 + $0x108] sm:$0xff]
        %v2039 = vld [vmem:[#allocation17 + $0x110] sm:$0xff]
        %v2040 = vld [vmem:[#allocation17 + $0x118] sm:$0xff]
        %v2041 = vld [vmem:[#allocation17 + $0x120] sm:$0xff]
        %v2042 = vld [vmem:[#allocation17 + $0x128] sm:$0xff]
        %v2043 = vld [vmem:[#allocation17 + $0x130] sm:$0xff]
        %v2044 = vld [vmem:[#allocation17 + $0x138] sm:$0xff]
        %v2045 = vld [vmem:[#allocation17 + $0x140] sm:$0xff]
        %v2046 = vld [vmem:[#allocation17 + $0x148] sm:$0xff]
        %v2047 = vld [vmem:[#allocation17 + $0x150] sm:$0xff]
        %v2048 = vld [vmem:[#allocation17 + $0x158] sm:$0xff]
        %v2049 = vld [vmem:[#allocation17 + $0x160] sm:$0xff]
        %v2050 = vld [vmem:[#allocation17 + $0x168] sm:$0xff]
        %v2051 = vld [vmem:[#allocation17 + $0x170] sm:$0xff]
        %v2052 = vld [vmem:[#allocation17 + $0x178] sm:$0xff]
        %v2053 = vld [vmem:[#allocation17 + $0x180] sm:$0xff]
        %v2054 = vld [vmem:[#allocation17 + $0x188] sm:$0xff]
        %v2055 = vld [vmem:[#allocation17 + $0x190] sm:$0xff]
        %v2056 = vld [vmem:[#allocation17 + $0x198] sm:$0xff]
        %v2057 = vld [vmem:[#allocation17 + $0x1a0] sm:$0xff]
        %v2058 = vld [vmem:[#allocation17 + $0x1a8] sm:$0xff]
        %v2059 = vld [vmem:[#allocation17 + $0x1b0] sm:$0xff]
        %v2060 = vld [vmem:[#allocation17 + $0x1b8] sm:$0xff]
        %v2061 = vld [vmem:[#allocation17 + $0x1c0] sm:$0xff]
        %v2062 = vld [vmem:[#allocation17 + $0x1c8] sm:$0xff]
        %v2063 = vld [vmem:[#allocation17 + $0x1d0] sm:$0xff]
        %v2064 = vld [vmem:[#allocation17 + $0x1d8] sm:$0xff]
        %v2065 = vld [vmem:[#allocation17 + $0x1e0] sm:$0xff]
        %v2066 = vld [vmem:[#allocation17 + $0x1e8] sm:$0xff]
        %v2067 = vld [vmem:[#allocation17 + $0x1f0] sm:$0xff]
        %v2068 = vld [vmem:[#allocation17 + $0x1f8] sm:$0xff]
        %v2069 = vld [vmem:[#allocation17 + $0x200] sm:$0xff]
        %v2070 = vld [vmem:[#allocation17 + $0x208] sm:$0xff]
        %v2071 = vld [vmem:[#allocation17 + $0x210] sm:$0xff]
        %v2072 = vld [vmem:[#allocation17 + $0x218] sm:$0xff]
        %v2073 = vld [vmem:[#allocation17 + $0x220] sm:$0xff]
        %v2074 = vld [vmem:[#allocation17 + $0x228] sm:$0xff]
        %v2075 = vld [vmem:[#allocation17 + $0x230] sm:$0xff]
        %v2076 = vld [vmem:[#allocation17 + $0x238] sm:$0xff]
        %v2077 = vld [vmem:[#allocation17 + $0x240] sm:$0xff]
        %v2078 = vld [vmem:[#allocation17 + $0x248] sm:$0xff]
        %v2079 = vld [vmem:[#allocation17 + $0x250] sm:$0xff]
        %v2080 = vld [vmem:[#allocation17 + $0x258] sm:$0xff]
        %v2081 = vld [vmem:[#allocation17 + $0x260] sm:$0xff]
        %v2082 = vld [vmem:[#allocation17 + $0x268] sm:$0xff]
        %v2083 = vld [vmem:[#allocation17 + $0x270] sm:$0xff]
        %v2084 = vld [vmem:[#allocation17 + $0x278] sm:$0xff]
        %v2085 = vld [vmem:[#allocation17 + $0x280] sm:$0xff]
        %v2086 = vld [vmem:[#allocation17 + $0x288] sm:$0xff]
        %v2087 = vld [vmem:[#allocation17 + $0x290] sm:$0xff]
        %v2088 = vld [vmem:[#allocation17 + $0x298] sm:$0xff]
        %v2089 = vld [vmem:[#allocation17 + $0x2a0] sm:$0xff]
        %v2090 = vld [vmem:[#allocation17 + $0x2a8] sm:$0xff]
        %v2091 = vld [vmem:[#allocation17 + $0x2b0] sm:$0xff]
        %v2092 = vld [vmem:[#allocation17 + $0x2b8] sm:$0xff]
        %v2093 = vld [vmem:[#allocation17 + $0x2c0] sm:$0xff]
        %v2094 = vld [vmem:[#allocation17 + $0x2c8] sm:$0xff]
        %v2095 = vld [vmem:[#allocation17 + $0x2d0] sm:$0xff]
        %v2096 = vld [vmem:[#allocation17 + $0x2d8] sm:$0xff]
        %v2097 = vld [vmem:[#allocation17 + $0x2e0] sm:$0xff]
        %v2098 = vld [vmem:[#allocation17 + $0x2e8] sm:$0xff]
        %v2099 = vld [vmem:[#allocation17 + $0x2f0] sm:$0xff]
        %v2100 = vld [vmem:[#allocation17 + $0x2f8] sm:$0xff]
        %v2101 = vld [vmem:[#allocation17 + $0x300] sm:$0xff]
        %v2102 = vld [vmem:[#allocation17 + $0x308] sm:$0xff]
        %v2103 = vld [vmem:[#allocation17 + $0x310] sm:$0xff]
        %v2104 = vld [vmem:[#allocation17 + $0x318] sm:$0xff]
        %v2105 = vld [vmem:[#allocation17 + $0x320] sm:$0xff]
        %v2106 = vld [vmem:[#allocation17 + $0x328] sm:$0xff]
        %v2107 = vld [vmem:[#allocation17 + $0x330] sm:$0xff]
        %v2108 = vld [vmem:[#allocation17 + $0x338] sm:$0xff]
        %v2109 = vld [vmem:[#allocation17 + $0x340] sm:$0xff]
        %v2110 = vld [vmem:[#allocation17 + $0x348] sm:$0xff]
        %v2111 = vld [vmem:[#allocation17 + $0x350] sm:$0xff]
        %v2112 = vld [vmem:[#allocation17 + $0x358] sm:$0xff]
        %v2113 = vld [vmem:[#allocation17 + $0x360] sm:$0xff]
        %v2114 = vld [vmem:[#allocation17 + $0x368] sm:$0xff]
        %v2115 = vld [vmem:[#allocation17 + $0x370] sm:$0xff]
        %v2116 = vld [vmem:[#allocation17 + $0x378] sm:$0xff]
        %v2117 = vld [vmem:[#allocation17 + $0x380] sm:$0xff]
        %v2118 = vld [vmem:[#allocation17 + $0x388] sm:$0xff]
        %v2119 = vld [vmem:[#allocation17 + $0x390] sm:$0xff]
        %v2120 = vld [vmem:[#allocation17 + $0x398] sm:$0xff]
        %v2121 = vld [vmem:[#allocation17 + $0x3a0] sm:$0xff]
        %v2122 = vld [vmem:[#allocation17 + $0x3a8] sm:$0xff]
        %v2123 = vld [vmem:[#allocation17 + $0x3b0] sm:$0xff]
        %v2124 = vld [vmem:[#allocation17 + $0x3b8] sm:$0xff]
        %v2125 = vld [vmem:[#allocation17 + $0x3c0] sm:$0xff]
        %v2126 = vld [vmem:[#allocation17 + $0x3c8] sm:$0xff]
        %v2127 = vld [vmem:[#allocation17 + $0x3d0] sm:$0xff]
        %v2128 = vld [vmem:[#allocation17 + $0x3d8] sm:$0xff]
        %v2129 = vld [vmem:[#allocation17 + $0x3e0] sm:$0xff]
        %v2130 = vld [vmem:[#allocation17 + $0x3e8] sm:$0xff]
        %v2131 = vld [vmem:[#allocation17 + $0x3f0] sm:$0xff]
        %v2132 = vld [vmem:[#allocation17 + $0x3f8] sm:$0xff]
        %v2133 = vld [vmem:[%s10] sm:$0xff]
        %v2135 = vperm.slane %v2133, 0
        %v2136 = vperm.slane %v2133, 1
        %v2137 = vperm.slane %v2133, 2
        %v2138 = vperm.slane %v2133, 3
        %v2139 = vperm.slane %v2133, 4
        %v2140 = vperm.slane %v2133, 5
        %v2141 = vperm.slane %v2133, 6
        %v2142 = vperm.slane %v2133, 7
        %v2279 = vunpack.c.l.b16 %v2005
        %v2280 = vunpack.c.h.b16 %v2005
        %v2281 = vunpack.c.l.b16 %v2006
        %v2282 = vunpack.c.h.b16 %v2006
        %v2283 = vunpack.c.l.b16 %v2007
        %v2284 = vunpack.c.h.b16 %v2007
        %v2285 = vunpack.c.l.b16 %v2008
        %v2286 = vunpack.c.h.b16 %v2008
        %v2287 = vunpack.c.l.b16 %v2009
        %v2288 = vunpack.c.h.b16 %v2009
        %v2289 = vunpack.c.l.b16 %v2010
        %v2290 = vunpack.c.h.b16 %v2010
        %v2291 = vunpack.c.l.b16 %v2011
        %v2292 = vunpack.c.h.b16 %v2011
        %v2293 = vunpack.c.l.b16 %v2012
        %v2294 = vunpack.c.h.b16 %v2012
        %v2295 = vunpack.c.l.b16 %v2013
        %v2296 = vunpack.c.h.b16 %v2013
        %v2297 = vunpack.c.l.b16 %v2014
        %v2298 = vunpack.c.h.b16 %v2014
        %v2299 = vunpack.c.l.b16 %v2015
        %v2300 = vunpack.c.h.b16 %v2015
        %v2301 = vunpack.c.l.b16 %v2016
        %v2302 = vunpack.c.h.b16 %v2016
        %v2303 = vunpack.c.l.b16 %v2017
        %v2304 = vunpack.c.h.b16 %v2017
        %v2305 = vunpack.c.l.b16 %v2018
        %v2306 = vunpack.c.h.b16 %v2018
        %v2307 = vunpack.c.l.b16 %v2019
        %v2308 = vunpack.c.h.b16 %v2019
        %v2309 = vunpack.c.l.b16 %v2020
        %v2310 = vunpack.c.h.b16 %v2020
        %v2311 = vunpack.c.l.b16 %v2021
        %v2312 = vunpack.c.h.b16 %v2021
        %v2313 = vunpack.c.l.b16 %v2022
        %v2314 = vunpack.c.h.b16 %v2022
        %v2315 = vunpack.c.l.b16 %v2023
        %v2316 = vunpack.c.h.b16 %v2023
        %v2317 = vunpack.c.l.b16 %v2024
        %v2318 = vunpack.c.h.b16 %v2024
        %v2319 = vunpack.c.l.b16 %v2025
        %v2320 = vunpack.c.h.b16 %v2025
        %v2321 = vunpack.c.l.b16 %v2026
        %v2322 = vunpack.c.h.b16 %v2026
        %v2323 = vunpack.c.l.b16 %v2027
        %v2324 = vunpack.c.h.b16 %v2027
        %v2325 = vunpack.c.l.b16 %v2028
        %v2326 = vunpack.c.h.b16 %v2028
        %v2327 = vunpack.c.l.b16 %v2029
        %v2328 = vunpack.c.h.b16 %v2029
        %v2329 = vunpack.c.l.b16 %v2030
        %v2330 = vunpack.c.h.b16 %v2030
        %v2331 = vunpack.c.l.b16 %v2031
        %v2332 = vunpack.c.h.b16 %v2031
        %v2333 = vunpack.c.l.b16 %v2032
        %v2334 = vunpack.c.h.b16 %v2032
        %v2335 = vunpack.c.l.b16 %v2033
        %v2336 = vunpack.c.h.b16 %v2033
        %v2337 = vunpack.c.l.b16 %v2034
        %v2338 = vunpack.c.h.b16 %v2034
        %v2339 = vunpack.c.l.b16 %v2035
        %v2340 = vunpack.c.h.b16 %v2035
        %v2341 = vunpack.c.l.b16 %v2036
        %v2342 = vunpack.c.h.b16 %v2036
        %v2343 = vunpack.c.l.b16 %v2037
        %v2344 = vunpack.c.h.b16 %v2037
        %v2345 = vunpack.c.l.b16 %v2038
        %v2346 = vunpack.c.h.b16 %v2038
        %v2347 = vunpack.c.l.b16 %v2039
        %v2348 = vunpack.c.h.b16 %v2039
        %v2349 = vunpack.c.l.b16 %v2040
        %v2350 = vunpack.c.h.b16 %v2040
        %v2351 = vunpack.c.l.b16 %v2041
        %v2352 = vunpack.c.h.b16 %v2041
        %v2353 = vunpack.c.l.b16 %v2042
        %v2354 = vunpack.c.h.b16 %v2042
        %v2355 = vunpack.c.l.b16 %v2043
        %v2356 = vunpack.c.h.b16 %v2043
        %v2357 = vunpack.c.l.b16 %v2044
        %v2358 = vunpack.c.h.b16 %v2044
        %v2359 = vunpack.c.l.b16 %v2045
        %v2360 = vunpack.c.h.b16 %v2045
        %v2361 = vunpack.c.l.b16 %v2046
        %v2362 = vunpack.c.h.b16 %v2046
        %v2363 = vunpack.c.l.b16 %v2047
        %v2364 = vunpack.c.h.b16 %v2047
        %v2365 = vunpack.c.l.b16 %v2048
        %v2366 = vunpack.c.h.b16 %v2048
        %v2367 = vunpack.c.l.b16 %v2049
        %v2368 = vunpack.c.h.b16 %v2049
        %v2369 = vunpack.c.l.b16 %v2050
        %v2370 = vunpack.c.h.b16 %v2050
        %v2371 = vunpack.c.l.b16 %v2051
        %v2372 = vunpack.c.h.b16 %v2051
        %v2373 = vunpack.c.l.b16 %v2052
        %v2374 = vunpack.c.h.b16 %v2052
        %v2375 = vunpack.c.l.b16 %v2053
        %v2376 = vunpack.c.h.b16 %v2053
        %v2377 = vunpack.c.l.b16 %v2054
        %v2378 = vunpack.c.h.b16 %v2054
        %v2379 = vunpack.c.l.b16 %v2055
        %v2380 = vunpack.c.h.b16 %v2055
        %v2381 = vunpack.c.l.b16 %v2056
        %v2382 = vunpack.c.h.b16 %v2056
        %v2383 = vunpack.c.l.b16 %v2057
        %v2384 = vunpack.c.h.b16 %v2057
        %v2385 = vunpack.c.l.b16 %v2058
        %v2386 = vunpack.c.h.b16 %v2058
        %v2387 = vunpack.c.l.b16 %v2059
        %v2388 = vunpack.c.h.b16 %v2059
        %v2389 = vunpack.c.l.b16 %v2060
        %v2390 = vunpack.c.h.b16 %v2060
        %v2391 = vunpack.c.l.b16 %v2061
        %v2392 = vunpack.c.h.b16 %v2061
        %v2393 = vunpack.c.l.b16 %v2062
        %v2394 = vunpack.c.h.b16 %v2062
        %v2395 = vunpack.c.l.b16 %v2063
        %v2396 = vunpack.c.h.b16 %v2063
        %v2397 = vunpack.c.l.b16 %v2064
        %v2398 = vunpack.c.h.b16 %v2064
        %v2399 = vunpack.c.l.b16 %v2065
        %v2400 = vunpack.c.h.b16 %v2065
        %v2401 = vunpack.c.l.b16 %v2066
        %v2402 = vunpack.c.h.b16 %v2066
        %v2403 = vunpack.c.l.b16 %v2067
        %v2404 = vunpack.c.h.b16 %v2067
        %v2405 = vunpack.c.l.b16 %v2068
        %v2406 = vunpack.c.h.b16 %v2068
        %v2407 = vunpack.c.l.b16 %v2069
        %v2408 = vunpack.c.h.b16 %v2069
        %v2409 = vunpack.c.l.b16 %v2070
        %v2410 = vunpack.c.h.b16 %v2070
        %v2411 = vunpack.c.l.b16 %v2071
        %v2412 = vunpack.c.h.b16 %v2071
        %v2413 = vunpack.c.l.b16 %v2072
        %v2414 = vunpack.c.h.b16 %v2072
        %v2415 = vunpack.c.l.b16 %v2073
        %v2416 = vunpack.c.h.b16 %v2073
        %v2417 = vunpack.c.l.b16 %v2074
        %v2418 = vunpack.c.h.b16 %v2074
        %v2419 = vunpack.c.l.b16 %v2075
        %v2420 = vunpack.c.h.b16 %v2075
        %v2421 = vunpack.c.l.b16 %v2076
        %v2422 = vunpack.c.h.b16 %v2076
        %v2423 = vunpack.c.l.b16 %v2077
        %v2424 = vunpack.c.h.b16 %v2077
        %v2425 = vunpack.c.l.b16 %v2078
        %v2426 = vunpack.c.h.b16 %v2078
        %v2427 = vunpack.c.l.b16 %v2079
        %v2428 = vunpack.c.h.b16 %v2079
        %v2429 = vunpack.c.l.b16 %v2080
        %v2430 = vunpack.c.h.b16 %v2080
        %v2431 = vunpack.c.l.b16 %v2081
        %v2432 = vunpack.c.h.b16 %v2081
        %v2433 = vunpack.c.l.b16 %v2082
        %v2434 = vunpack.c.h.b16 %v2082
        %v2435 = vunpack.c.l.b16 %v2083
        %v2436 = vunpack.c.h.b16 %v2083
        %v2437 = vunpack.c.l.b16 %v2084
        %v2438 = vunpack.c.h.b16 %v2084
        %v2439 = vunpack.c.l.b16 %v2085
        %v2440 = vunpack.c.h.b16 %v2085
        %v2441 = vunpack.c.l.b16 %v2086
        %v2442 = vunpack.c.h.b16 %v2086
        %v2443 = vunpack.c.l.b16 %v2087
        %v2444 = vunpack.c.h.b16 %v2087
        %v2445 = vunpack.c.l.b16 %v2088
        %v2446 = vunpack.c.h.b16 %v2088
        %v2447 = vunpack.c.l.b16 %v2089
        %v2448 = vunpack.c.h.b16 %v2089
        %v2449 = vunpack.c.l.b16 %v2090
        %v2450 = vunpack.c.h.b16 %v2090
        %v2451 = vunpack.c.l.b16 %v2091
        %v2452 = vunpack.c.h.b16 %v2091
        %v2453 = vunpack.c.l.b16 %v2092
        %v2454 = vunpack.c.h.b16 %v2092
        %v2455 = vunpack.c.l.b16 %v2093
        %v2456 = vunpack.c.h.b16 %v2093
        %v2457 = vunpack.c.l.b16 %v2094
        %v2458 = vunpack.c.h.b16 %v2094
        %v2459 = vunpack.c.l.b16 %v2095
        %v2460 = vunpack.c.h.b16 %v2095
        %v2461 = vunpack.c.l.b16 %v2096
        %v2462 = vunpack.c.h.b16 %v2096
        %v2463 = vunpack.c.l.b16 %v2097
        %v2464 = vunpack.c.h.b16 %v2097
        %v2465 = vunpack.c.l.b16 %v2098
        %v2466 = vunpack.c.h.b16 %v2098
        %v2467 = vunpack.c.l.b16 %v2099
        %v2468 = vunpack.c.h.b16 %v2099
        %v2469 = vunpack.c.l.b16 %v2100
        %v2470 = vunpack.c.h.b16 %v2100
        %v2471 = vunpack.c.l.b16 %v2101
        %v2472 = vunpack.c.h.b16 %v2101
        %v2473 = vunpack.c.l.b16 %v2102
        %v2474 = vunpack.c.h.b16 %v2102
        %v2475 = vunpack.c.l.b16 %v2103
        %v2476 = vunpack.c.h.b16 %v2103
        %v2477 = vunpack.c.l.b16 %v2104
        %v2478 = vunpack.c.h.b16 %v2104
        %v2479 = vunpack.c.l.b16 %v2105
        %v2480 = vunpack.c.h.b16 %v2105
        %v2481 = vunpack.c.l.b16 %v2106
        %v2482 = vunpack.c.h.b16 %v2106
        %v2483 = vunpack.c.l.b16 %v2107
        %v2484 = vunpack.c.h.b16 %v2107
        %v2485 = vunpack.c.l.b16 %v2108
        %v2486 = vunpack.c.h.b16 %v2108
        %v2487 = vunpack.c.l.b16 %v2109
        %v2488 = vunpack.c.h.b16 %v2109
        %v2489 = vunpack.c.l.b16 %v2110
        %v2490 = vunpack.c.h.b16 %v2110
        %v2491 = vunpack.c.l.b16 %v2111
        %v2492 = vunpack.c.h.b16 %v2111
        %v2493 = vunpack.c.l.b16 %v2112
        %v2494 = vunpack.c.h.b16 %v2112
        %v2495 = vunpack.c.l.b16 %v2113
        %v2496 = vunpack.c.h.b16 %v2113
        %v2497 = vunpack.c.l.b16 %v2114
        %v2498 = vunpack.c.h.b16 %v2114
        %v2499 = vunpack.c.l.b16 %v2115
        %v2500 = vunpack.c.h.b16 %v2115
        %v2501 = vunpack.c.l.b16 %v2116
        %v2502 = vunpack.c.h.b16 %v2116
        %v2503 = vunpack.c.l.b16 %v2117
        %v2504 = vunpack.c.h.b16 %v2117
        %v2505 = vunpack.c.l.b16 %v2118
        %v2506 = vunpack.c.h.b16 %v2118
        %v2507 = vunpack.c.l.b16 %v2119
        %v2508 = vunpack.c.h.b16 %v2119
        %v2509 = vunpack.c.l.b16 %v2120
        %v2510 = vunpack.c.h.b16 %v2120
        %v2511 = vunpack.c.l.b16 %v2121
        %v2512 = vunpack.c.h.b16 %v2121
        %v2513 = vunpack.c.l.b16 %v2122
        %v2514 = vunpack.c.h.b16 %v2122
        %v2515 = vunpack.c.l.b16 %v2123
        %v2516 = vunpack.c.h.b16 %v2123
        %v2517 = vunpack.c.l.b16 %v2124
        %v2518 = vunpack.c.h.b16 %v2124
        %v2519 = vunpack.c.l.b16 %v2125
        %v2520 = vunpack.c.h.b16 %v2125
        %v2521 = vunpack.c.l.b16 %v2126
        %v2522 = vunpack.c.h.b16 %v2126
        %v2523 = vunpack.c.l.b16 %v2127
        %v2524 = vunpack.c.h.b16 %v2127
        %v2525 = vunpack.c.l.b16 %v2128
        %v2526 = vunpack.c.h.b16 %v2128
        %v2527 = vunpack.c.l.b16 %v2129
        %v2528 = vunpack.c.h.b16 %v2129
        %v2529 = vunpack.c.l.b16 %v2130
        %v2530 = vunpack.c.h.b16 %v2130
        %v2531 = vunpack.c.l.b16 %v2131
        %v2532 = vunpack.c.h.b16 %v2131
        %v2533 = vunpack.c.l.b16 %v2132
        %v2534 = vunpack.c.h.b16 %v2132
        %v2535 = vpack.c.b16 %v2287, %v2279
        %v2536 = vpack.c.b16 %v2288, %v2280
        %v2537 = vpack.c.b16 %v2289, %v2281
        %v2538 = vpack.c.b16 %v2290, %v2282
        %v2539 = vpack.c.b16 %v2291, %v2283
        %v2540 = vpack.c.b16 %v2292, %v2284
        %v2541 = vpack.c.b16 %v2293, %v2285
        %v2542 = vpack.c.b16 %v2294, %v2286
        %v2543 = vpack.c.b16 %v2303, %v2295
        %v2544 = vpack.c.b16 %v2304, %v2296
        %v2545 = vpack.c.b16 %v2305, %v2297
        %v2546 = vpack.c.b16 %v2306, %v2298
        %v2547 = vpack.c.b16 %v2307, %v2299
        %v2548 = vpack.c.b16 %v2308, %v2300
        %v2549 = vpack.c.b16 %v2309, %v2301
        %v2550 = vpack.c.b16 %v2310, %v2302
        %v2551 = vpack.c.b16 %v2319, %v2311
        %v2552 = vpack.c.b16 %v2320, %v2312
        %v2553 = vpack.c.b16 %v2321, %v2313
        %v2554 = vpack.c.b16 %v2322, %v2314
        %v2555 = vpack.c.b16 %v2323, %v2315
        %v2556 = vpack.c.b16 %v2324, %v2316
        %v2557 = vpack.c.b16 %v2325, %v2317
        %v2558 = vpack.c.b16 %v2326, %v2318
        %v2559 = vpack.c.b16 %v2335, %v2327
        %v2560 = vpack.c.b16 %v2336, %v2328
        %v2561 = vpack.c.b16 %v2337, %v2329
        %v2562 = vpack.c.b16 %v2338, %v2330
        %v2563 = vpack.c.b16 %v2339, %v2331
        %v2564 = vpack.c.b16 %v2340, %v2332
        %v2565 = vpack.c.b16 %v2341, %v2333
        %v2566 = vpack.c.b16 %v2342, %v2334
        %v2567 = vpack.c.b16 %v2351, %v2343
        %v2568 = vpack.c.b16 %v2352, %v2344
        %v2569 = vpack.c.b16 %v2353, %v2345
        %v2570 = vpack.c.b16 %v2354, %v2346
        %v2571 = vpack.c.b16 %v2355, %v2347
        %v2572 = vpack.c.b16 %v2356, %v2348
        %v2573 = vpack.c.b16 %v2357, %v2349
        %v2574 = vpack.c.b16 %v2358, %v2350
        %v2575 = vpack.c.b16 %v2367, %v2359
        %v2576 = vpack.c.b16 %v2368, %v2360
        %v2577 = vpack.c.b16 %v2369, %v2361
        %v2578 = vpack.c.b16 %v2370, %v2362
        %v2579 = vpack.c.b16 %v2371, %v2363
        %v2580 = vpack.c.b16 %v2372, %v2364
        %v2581 = vpack.c.b16 %v2373, %v2365
        %v2582 = vpack.c.b16 %v2374, %v2366
        %v2583 = vpack.c.b16 %v2383, %v2375
        %v2584 = vpack.c.b16 %v2384, %v2376
        %v2585 = vpack.c.b16 %v2385, %v2377
        %v2586 = vpack.c.b16 %v2386, %v2378
        %v2587 = vpack.c.b16 %v2387, %v2379
        %v2588 = vpack.c.b16 %v2388, %v2380
        %v2589 = vpack.c.b16 %v2389, %v2381
        %v2590 = vpack.c.b16 %v2390, %v2382
        %v2591 = vpack.c.b16 %v2399, %v2391
        %v2592 = vpack.c.b16 %v2400, %v2392
        %v2593 = vpack.c.b16 %v2401, %v2393
        %v2594 = vpack.c.b16 %v2402, %v2394
        %v2595 = vpack.c.b16 %v2403, %v2395
        %v2596 = vpack.c.b16 %v2404, %v2396
        %v2597 = vpack.c.b16 %v2405, %v2397
        %v2598 = vpack.c.b16 %v2406, %v2398
        %v2599 = vpack.c.b16 %v2415, %v2407
        %v2600 = vpack.c.b16 %v2416, %v2408
        %v2601 = vpack.c.b16 %v2417, %v2409
        %v2602 = vpack.c.b16 %v2418, %v2410
        %v2603 = vpack.c.b16 %v2419, %v2411
        %v2604 = vpack.c.b16 %v2420, %v2412
        %v2605 = vpack.c.b16 %v2421, %v2413
        %v2606 = vpack.c.b16 %v2422, %v2414
        %v2607 = vpack.c.b16 %v2431, %v2423
        %v2608 = vpack.c.b16 %v2432, %v2424
        %v2609 = vpack.c.b16 %v2433, %v2425
        %v2610 = vpack.c.b16 %v2434, %v2426
        %v2611 = vpack.c.b16 %v2435, %v2427
        %v2612 = vpack.c.b16 %v2436, %v2428
        %v2613 = vpack.c.b16 %v2437, %v2429
        %v2614 = vpack.c.b16 %v2438, %v2430
        %v2615 = vpack.c.b16 %v2447, %v2439
        %v2616 = vpack.c.b16 %v2448, %v2440
        %v2617 = vpack.c.b16 %v2449, %v2441
        %v2618 = vpack.c.b16 %v2450, %v2442
        %v2619 = vpack.c.b16 %v2451, %v2443
        %v2620 = vpack.c.b16 %v2452, %v2444
        %v2621 = vpack.c.b16 %v2453, %v2445
        %v2622 = vpack.c.b16 %v2454, %v2446
        %v2623 = vpack.c.b16 %v2463, %v2455
        %v2624 = vpack.c.b16 %v2464, %v2456
        %v2625 = vpack.c.b16 %v2465, %v2457
        %v2626 = vpack.c.b16 %v2466, %v2458
        %v2627 = vpack.c.b16 %v2467, %v2459
        %v2628 = vpack.c.b16 %v2468, %v2460
        %v2629 = vpack.c.b16 %v2469, %v2461
        %v2630 = vpack.c.b16 %v2470, %v2462
        %v2631 = vpack.c.b16 %v2479, %v2471
        %v2632 = vpack.c.b16 %v2480, %v2472
        %v2633 = vpack.c.b16 %v2481, %v2473
        %v2634 = vpack.c.b16 %v2482, %v2474
        %v2635 = vpack.c.b16 %v2483, %v2475
        %v2636 = vpack.c.b16 %v2484, %v2476
        %v2637 = vpack.c.b16 %v2485, %v2477
        %v2638 = vpack.c.b16 %v2486, %v2478
        %v2639 = vpack.c.b16 %v2495, %v2487
        %v2640 = vpack.c.b16 %v2496, %v2488
        %v2641 = vpack.c.b16 %v2497, %v2489
        %v2642 = vpack.c.b16 %v2498, %v2490
        %v2643 = vpack.c.b16 %v2499, %v2491
        %v2644 = vpack.c.b16 %v2500, %v2492
        %v2645 = vpack.c.b16 %v2501, %v2493
        %v2646 = vpack.c.b16 %v2502, %v2494
        %v2647 = vpack.c.b16 %v2511, %v2503
        %v2648 = vpack.c.b16 %v2512, %v2504
        %v2649 = vpack.c.b16 %v2513, %v2505
        %v2650 = vpack.c.b16 %v2514, %v2506
        %v2651 = vpack.c.b16 %v2515, %v2507
        %v2652 = vpack.c.b16 %v2516, %v2508
        %v2653 = vpack.c.b16 %v2517, %v2509
        %v2654 = vpack.c.b16 %v2518, %v2510
        %v2655 = vpack.c.b16 %v2527, %v2519
        %v2656 = vpack.c.b16 %v2528, %v2520
        %v2657 = vpack.c.b16 %v2529, %v2521
        %v2658 = vpack.c.b16 %v2530, %v2522
        %v2659 = vpack.c.b16 %v2531, %v2523
        %v2660 = vpack.c.b16 %v2532, %v2524
        %v2661 = vpack.c.b16 %v2533, %v2525
        %v2662 = vpack.c.b16 %v2534, %v2526
        %2791 = vmatpush.bf16.msra.mxu0 %v2591
        %2792 = vmatpush.bf16.msra.mxu0 %v2583
        %2793 = vmatpush.bf16.msra.mxu0 %v2575
        %2794 = vmatpush.bf16.msra.mxu0 %v2567
        %2795 = vmatpush.bf16.msra.mxu0 %v2559
        %2796 = vmatpush.bf16.msra.mxu0 %v2551
        %2797 = vmatpush.bf16.msra.mxu0 %v2543
        %2798 = vmatpush.bf16.msra.mxu0 %v2535
        %2799 = vmatmul.bf16.gmra.mxu0 %v2003
        %v2800 = vpop.f32.mrf.mxu0
        %v2801 = vadd.f32 %v2135, %v2800
        %v2802 = vpop.f32.mrf.mxu0
        %v2803 = vadd.f32 %v2135, %v2802
        %2804 = vdwg.mxu0
        %2805 = vmatpush.bf16.msra.mxu0 %v2655
        %2806 = vmatpush.bf16.msra.mxu0 %v2647
        %2807 = vmatpush.bf16.msra.mxu0 %v2639
        %2808 = vmatpush.bf16.msra.mxu0 %v2631
        %2809 = vmatpush.bf16.msra.mxu0 %v2623
        %2810 = vmatpush.bf16.msra.mxu0 %v2615
        %2811 = vmatpush.bf16.msra.mxu0 %v2607
        %2812 = vmatpush.bf16.msra.mxu0 %v2599
        %2813 = vmatmul.bf16.gmra.mxu0 %v2004
        %v2814 = vpop.f32.mrf.mxu0
        %v2815 = vadd.f32 %v2801, %v2814
        %v2816 = vpop.f32.mrf.mxu0
        %v2817 = vadd.f32 %v2803, %v2816
        %2818 = vdwg.mxu0
        %2819 = vmatpush.bf16.msra.mxu0 %v2592
        %2820 = vmatpush.bf16.msra.mxu0 %v2584
        %2821 = vmatpush.bf16.msra.mxu0 %v2576
        %2822 = vmatpush.bf16.msra.mxu0 %v2568
        %2823 = vmatpush.bf16.msra.mxu0 %v2560
        %2824 = vmatpush.bf16.msra.mxu0 %v2552
        %2825 = vmatpush.bf16.msra.mxu0 %v2544
        %2826 = vmatpush.bf16.msra.mxu0 %v2536
        %2827 = vmatmul.bf16.gmra.mxu0 %v2003
        %v2828 = vpop.f32.mrf.mxu0
        %v2829 = vadd.f32 %v2136, %v2828
        %v2830 = vpop.f32.mrf.mxu0
        %v2831 = vadd.f32 %v2136, %v2830
        %2832 = vdwg.mxu0
        %2833 = vmatpush.bf16.msra.mxu0 %v2656
        %2834 = vmatpush.bf16.msra.mxu0 %v2648
        %2835 = vmatpush.bf16.msra.mxu0 %v2640
        %2836 = vmatpush.bf16.msra.mxu0 %v2632
        %2837 = vmatpush.bf16.msra.mxu0 %v2624
        %2838 = vmatpush.bf16.msra.mxu0 %v2616
        %2839 = vmatpush.bf16.msra.mxu0 %v2608
        %2840 = vmatpush.bf16.msra.mxu0 %v2600
        %2841 = vmatmul.bf16.gmra.mxu0 %v2004
        %v2842 = vpop.f32.mrf.mxu0
        %v2843 = vadd.f32 %v2829, %v2842
        %v2844 = vpop.f32.mrf.mxu0
        %v2845 = vadd.f32 %v2831, %v2844
        %2846 = vdwg.mxu0
        %2847 = vmatpush.bf16.msra.mxu0 %v2593
        %2848 = vmatpush.bf16.msra.mxu0 %v2585
        %2849 = vmatpush.bf16.msra.mxu0 %v2577
        %2850 = vmatpush.bf16.msra.mxu0 %v2569
        %2851 = vmatpush.bf16.msra.mxu0 %v2561
        %2852 = vmatpush.bf16.msra.mxu0 %v2553
        %2853 = vmatpush.bf16.msra.mxu0 %v2545
        %2854 = vmatpush.bf16.msra.mxu0 %v2537
        %2855 = vmatmul.bf16.gmra.mxu0 %v2003
        %v2856 = vpop.f32.mrf.mxu0
        %v2857 = vadd.f32 %v2137, %v2856
        %v2858 = vpop.f32.mrf.mxu0
        %v2859 = vadd.f32 %v2137, %v2858
        %2860 = vdwg.mxu0
        %2861 = vmatpush.bf16.msra.mxu0 %v2657
        %2862 = vmatpush.bf16.msra.mxu0 %v2649
        %2863 = vmatpush.bf16.msra.mxu0 %v2641
        %2864 = vmatpush.bf16.msra.mxu0 %v2633
        %2865 = vmatpush.bf16.msra.mxu0 %v2625
        %2866 = vmatpush.bf16.msra.mxu0 %v2617
        %2867 = vmatpush.bf16.msra.mxu0 %v2609
        %2868 = vmatpush.bf16.msra.mxu0 %v2601
        %2869 = vmatmul.bf16.gmra.mxu0 %v2004
        %v2870 = vpop.f32.mrf.mxu0
        %v2871 = vadd.f32 %v2857, %v2870
        %v2872 = vpop.f32.mrf.mxu0
        %v2873 = vadd.f32 %v2859, %v2872
        %2874 = vdwg.mxu0
        %2875 = vmatpush.bf16.msra.mxu0 %v2594
        %2876 = vmatpush.bf16.msra.mxu0 %v2586
        %2877 = vmatpush.bf16.msra.mxu0 %v2578
        %2878 = vmatpush.bf16.msra.mxu0 %v2570
        %2879 = vmatpush.bf16.msra.mxu0 %v2562
        %2880 = vmatpush.bf16.msra.mxu0 %v2554
        %2881 = vmatpush.bf16.msra.mxu0 %v2546
        %2882 = vmatpush.bf16.msra.mxu0 %v2538
        %2883 = vmatmul.bf16.gmra.mxu0 %v2003
        %v2884 = vpop.f32.mrf.mxu0
        %v2885 = vadd.f32 %v2138, %v2884
        %v2886 = vpop.f32.mrf.mxu0
        %v2887 = vadd.f32 %v2138, %v2886
        %2888 = vdwg.mxu0
        %2889 = vmatpush.bf16.msra.mxu0 %v2658
        %2890 = vmatpush.bf16.msra.mxu0 %v2650
        %2891 = vmatpush.bf16.msra.mxu0 %v2642
        %2892 = vmatpush.bf16.msra.mxu0 %v2634
        %2893 = vmatpush.bf16.msra.mxu0 %v2626
        %2894 = vmatpush.bf16.msra.mxu0 %v2618
        %2895 = vmatpush.bf16.msra.mxu0 %v2610
        %2896 = vmatpush.bf16.msra.mxu0 %v2602
        %2897 = vmatmul.bf16.gmra.mxu0 %v2004
        %v2898 = vpop.f32.mrf.mxu0
        %v2899 = vadd.f32 %v2885, %v2898
        %v2900 = vpop.f32.mrf.mxu0
        %v2901 = vadd.f32 %v2887, %v2900
        %2902 = vdwg.mxu0
        %2903 = vmatpush.bf16.msra.mxu0 %v2595
        %2904 = vmatpush.bf16.msra.mxu0 %v2587
        %2905 = vmatpush.bf16.msra.mxu0 %v2579
        %2906 = vmatpush.bf16.msra.mxu0 %v2571
        %2907 = vmatpush.bf16.msra.mxu0 %v2563
        %2908 = vmatpush.bf16.msra.mxu0 %v2555
        %2909 = vmatpush.bf16.msra.mxu0 %v2547
        %2910 = vmatpush.bf16.msra.mxu0 %v2539
        %2911 = vmatmul.bf16.gmra.mxu0 %v2003
        %v2912 = vpop.f32.mrf.mxu0
        %v2913 = vadd.f32 %v2139, %v2912
        %v2914 = vpop.f32.mrf.mxu0
        %v2915 = vadd.f32 %v2139, %v2914
        %2916 = vdwg.mxu0
        %2917 = vmatpush.bf16.msra.mxu0 %v2659
        %2918 = vmatpush.bf16.msra.mxu0 %v2651
        %2919 = vmatpush.bf16.msra.mxu0 %v2643
        %2920 = vmatpush.bf16.msra.mxu0 %v2635
        %2921 = vmatpush.bf16.msra.mxu0 %v2627
        %2922 = vmatpush.bf16.msra.mxu0 %v2619
        %2923 = vmatpush.bf16.msra.mxu0 %v2611
        %2924 = vmatpush.bf16.msra.mxu0 %v2603
        %2925 = vmatmul.bf16.gmra.mxu0 %v2004
        %v2926 = vpop.f32.mrf.mxu0
        %v2927 = vadd.f32 %v2913, %v2926
        %v2928 = vpop.f32.mrf.mxu0
        %v2929 = vadd.f32 %v2915, %v2928
        %2930 = vdwg.mxu0
        %2931 = vmatpush.bf16.msra.mxu0 %v2596
        %2932 = vmatpush.bf16.msra.mxu0 %v2588
        %2933 = vmatpush.bf16.msra.mxu0 %v2580
        %2934 = vmatpush.bf16.msra.mxu0 %v2572
        %2935 = vmatpush.bf16.msra.mxu0 %v2564
        %2936 = vmatpush.bf16.msra.mxu0 %v2556
        %2937 = vmatpush.bf16.msra.mxu0 %v2548
        %2938 = vmatpush.bf16.msra.mxu0 %v2540
        %2939 = vmatmul.bf16.gmra.mxu0 %v2003
        %v2940 = vpop.f32.mrf.mxu0
        %v2941 = vadd.f32 %v2140, %v2940
        %v2942 = vpop.f32.mrf.mxu0
        %v2943 = vadd.f32 %v2140, %v2942
        %2944 = vdwg.mxu0
        %2945 = vmatpush.bf16.msra.mxu0 %v2660
        %2946 = vmatpush.bf16.msra.mxu0 %v2652
        %2947 = vmatpush.bf16.msra.mxu0 %v2644
        %2948 = vmatpush.bf16.msra.mxu0 %v2636
        %2949 = vmatpush.bf16.msra.mxu0 %v2628
        %2950 = vmatpush.bf16.msra.mxu0 %v2620
        %2951 = vmatpush.bf16.msra.mxu0 %v2612
        %2952 = vmatpush.bf16.msra.mxu0 %v2604
        %2953 = vmatmul.bf16.gmra.mxu0 %v2004
        %v2954 = vpop.f32.mrf.mxu0
        %v2955 = vadd.f32 %v2941, %v2954
        %v2956 = vpop.f32.mrf.mxu0
        %v2957 = vadd.f32 %v2943, %v2956
        %2958 = vdwg.mxu0
        %2959 = vmatpush.bf16.msra.mxu0 %v2597
        %2960 = vmatpush.bf16.msra.mxu0 %v2589
        %2961 = vmatpush.bf16.msra.mxu0 %v2581
        %2962 = vmatpush.bf16.msra.mxu0 %v2573
        %2963 = vmatpush.bf16.msra.mxu0 %v2565
        %2964 = vmatpush.bf16.msra.mxu0 %v2557
        %2965 = vmatpush.bf16.msra.mxu0 %v2549
        %2966 = vmatpush.bf16.msra.mxu0 %v2541
        %2967 = vmatmul.bf16.gmra.mxu0 %v2003
        %v2968 = vpop.f32.mrf.mxu0
        %v2969 = vadd.f32 %v2141, %v2968
        %v2970 = vpop.f32.mrf.mxu0
        %v2971 = vadd.f32 %v2141, %v2970
        %2972 = vdwg.mxu0
        %2973 = vmatpush.bf16.msra.mxu0 %v2661
        %2974 = vmatpush.bf16.msra.mxu0 %v2653
        %2975 = vmatpush.bf16.msra.mxu0 %v2645
        %2976 = vmatpush.bf16.msra.mxu0 %v2637
        %2977 = vmatpush.bf16.msra.mxu0 %v2629
        %2978 = vmatpush.bf16.msra.mxu0 %v2621
        %2979 = vmatpush.bf16.msra.mxu0 %v2613
        %2980 = vmatpush.bf16.msra.mxu0 %v2605
        %2981 = vmatmul.bf16.gmra.mxu0 %v2004
        %v2982 = vpop.f32.mrf.mxu0
        %v2983 = vadd.f32 %v2969, %v2982
        %v2984 = vpop.f32.mrf.mxu0
        %v2985 = vadd.f32 %v2971, %v2984
        %2986 = vdwg.mxu0
        %2987 = vmatpush.bf16.msra.mxu0 %v2598
        %2988 = vmatpush.bf16.msra.mxu0 %v2590
        %2989 = vmatpush.bf16.msra.mxu0 %v2582
        %2990 = vmatpush.bf16.msra.mxu0 %v2574
        %2991 = vmatpush.bf16.msra.mxu0 %v2566
        %2992 = vmatpush.bf16.msra.mxu0 %v2558
        %2993 = vmatpush.bf16.msra.mxu0 %v2550
        %2994 = vmatpush.bf16.msra.mxu0 %v2542
        %2995 = vmatmul.bf16.gmra.mxu0 %v2003
        %v2996 = vpop.f32.mrf.mxu0
        %v2997 = vadd.f32 %v2142, %v2996
        %v2998 = vpop.f32.mrf.mxu0
        %v2999 = vadd.f32 %v2142, %v2998
        %3000 = vdwg.mxu0
        %3001 = vmatpush.bf16.msra.mxu0 %v2662
        %3002 = vmatpush.bf16.msra.mxu0 %v2654
        %3003 = vmatpush.bf16.msra.mxu0 %v2646
        %3004 = vmatpush.bf16.msra.mxu0 %v2638
        %3005 = vmatpush.bf16.msra.mxu0 %v2630
        %3006 = vmatpush.bf16.msra.mxu0 %v2622
        %3007 = vmatpush.bf16.msra.mxu0 %v2614
        %3008 = vmatpush.bf16.msra.mxu0 %v2606
        %3009 = vmatmul.bf16.gmra.mxu0 %v2004
        %v3010 = vpop.f32.mrf.mxu0
        %v3011 = vadd.f32 %v2997, %v3010
        %v3012 = vpop.f32.mrf.mxu0
        %v3013 = vadd.f32 %v2999, %v3012
        %3014 = vdwg.mxu0
        %v3015 = vmul.f32 %v2815, 1.702
        %v3016 = vmul.f32 %v2843, 1.702
        %v3017 = vmul.f32 %v2871, 1.702
        %v3018 = vmul.f32 %v2899, 1.702
        %v3019 = vmul.f32 %v2927, 1.702
        %v3020 = vmul.f32 %v2955, 1.702
        %v3021 = vmul.f32 %v2983, 1.702
        %v3022 = vmul.f32 %v3011, 1.702
        %v3023 = vmul.f32 %v2817, 1.702
        %v3024 = vmul.f32 %v2845, 1.702
        %v3025 = vmul.f32 %v2873, 1.702
        %v3026 = vmul.f32 %v2901, 1.702
        %v3027 = vmul.f32 %v2929, 1.702
        %v3028 = vmul.f32 %v2957, 1.702
        %v3029 = vmul.f32 %v2985, 1.702
        %v3030 = vmul.f32 %v3013, 1.702
        %v3031 = vxor.u32 %v3015, 2147483648
        %v3032 = vxor.u32 %v3016, 2147483648
        %v3033 = vxor.u32 %v3017, 2147483648
        %v3034 = vxor.u32 %v3018, 2147483648
        %v3035 = vxor.u32 %v3019, 2147483648
        %v3036 = vxor.u32 %v3020, 2147483648
        %v3037 = vxor.u32 %v3021, 2147483648
        %v3038 = vxor.u32 %v3022, 2147483648
        %v3039 = vxor.u32 %v3023, 2147483648
        %v3040 = vxor.u32 %v3024, 2147483648
        %v3041 = vxor.u32 %v3025, 2147483648
        %v3042 = vxor.u32 %v3026, 2147483648
        %v3043 = vxor.u32 %v3027, 2147483648
        %v3044 = vxor.u32 %v3028, 2147483648
        %v3045 = vxor.u32 %v3029, 2147483648
        %v3046 = vxor.u32 %v3030, 2147483648
        %v3047 = vmul.f32 %v3031, 1.442695
        %v3048 = vpow.pop %v3047
        %v3049 = vmul.f32 %v3032, 1.442695
        %v3050 = vpow.pop %v3049
        %v3051 = vmul.f32 %v3033, 1.442695
        %v3052 = vpow.pop %v3051
        %v3053 = vmul.f32 %v3034, 1.442695
        %v3054 = vpow.pop %v3053
        %v3055 = vmul.f32 %v3035, 1.442695
        %v3056 = vpow.pop %v3055
        %v3057 = vmul.f32 %v3036, 1.442695
        %v3058 = vpow.pop %v3057
        %v3059 = vmul.f32 %v3037, 1.442695
        %v3060 = vpow.pop %v3059
        %v3061 = vmul.f32 %v3038, 1.442695
        %v3062 = vpow.pop %v3061
        %v3063 = vmul.f32 %v3039, 1.442695
        %v3064 = vpow.pop %v3063
        %v3065 = vmul.f32 %v3040, 1.442695
        %v3066 = vpow.pop %v3065
        %v3067 = vmul.f32 %v3041, 1.442695
        %v3068 = vpow.pop %v3067
        %v3069 = vmul.f32 %v3042, 1.442695
        %v3070 = vpow.pop %v3069
        %v3071 = vmul.f32 %v3043, 1.442695
        %v3072 = vpow.pop %v3071
        %v3073 = vmul.f32 %v3044, 1.442695
        %v3074 = vpow.pop %v3073
        %v3075 = vmul.f32 %v3045, 1.442695
        %v3076 = vpow.pop %v3075
        %v3077 = vmul.f32 %v3046, 1.442695
        %v3078 = vpow.pop %v3077
        %v3079 = vadd.f32 %v3048, 1.0
        %v3080 = vadd.f32 %v3050, 1.0
        %v3081 = vadd.f32 %v3052, 1.0
        %v3082 = vadd.f32 %v3054, 1.0
        %v3083 = vadd.f32 %v3056, 1.0
        %v3084 = vadd.f32 %v3058, 1.0
        %v3085 = vadd.f32 %v3060, 1.0
        %v3086 = vadd.f32 %v3062, 1.0
        %v3087 = vadd.f32 %v3064, 1.0
        %v3088 = vadd.f32 %v3066, 1.0
        %v3089 = vadd.f32 %v3068, 1.0
        %v3090 = vadd.f32 %v3070, 1.0
        %v3091 = vadd.f32 %v3072, 1.0
        %v3092 = vadd.f32 %v3074, 1.0
        %v3093 = vadd.f32 %v3076, 1.0
        %v3094 = vadd.f32 %v3078, 1.0
        %v3095 = vrcp.pop %v3079
        %v3096 = vmul.f32 %v3079, %v3095
        %v3097 = vsub.f32 1.0, %v3096
        %v3098 = vmul.f32 %v3095, %v3097
        %v3099 = vadd.f32 %v3095, %v3098
        %vm3100 = vweird.f32 %v3079
        %vm3101 = vweird.f32 %v3095
        %vm3102 = vmor %vm3100, %vm3101
        %v3103 = vsel %vm3102, %v3095, %v3099
        %v3104 = vand.u32 2147483647, %v3079
        %vm3105 = vcmp.eq.f32.partialorder %v3104, 8.507059e+37
        %v3106 = vand.u32 %v3079, 2147483648
        %v3107 = vor.u32 1.1754944e-38, %v3106
        %v3108 = vsel %vm3105, %v3107, %v3103
        %v3109 = vmul.f32 1.0, %v3108
        %v3110 = vrcp.pop %v3080
        %v3111 = vmul.f32 %v3080, %v3110
        %v3112 = vsub.f32 1.0, %v3111
        %v3113 = vmul.f32 %v3110, %v3112
        %v3114 = vadd.f32 %v3110, %v3113
        %vm3115 = vweird.f32 %v3080
        %vm3116 = vweird.f32 %v3110
        %vm3117 = vmor %vm3115, %vm3116
        %v3118 = vsel %vm3117, %v3110, %v3114
        %v3119 = vand.u32 2147483647, %v3080
        %vm3120 = vcmp.eq.f32.partialorder %v3119, 8.507059e+37
        %v3121 = vand.u32 %v3080, 2147483648
        %v3122 = vor.u32 1.1754944e-38, %v3121
        %v3123 = vsel %vm3120, %v3122, %v3118
        %v3124 = vmul.f32 1.0, %v3123
        %v3125 = vrcp.pop %v3081
        %v3126 = vmul.f32 %v3081, %v3125
        %v3127 = vsub.f32 1.0, %v3126
        %v3128 = vmul.f32 %v3125, %v3127
        %v3129 = vadd.f32 %v3125, %v3128
        %vm3130 = vweird.f32 %v3081
        %vm3131 = vweird.f32 %v3125
        %vm3132 = vmor %vm3130, %vm3131
        %v3133 = vsel %vm3132, %v3125, %v3129
        %v3134 = vand.u32 2147483647, %v3081
        %vm3135 = vcmp.eq.f32.partialorder %v3134, 8.507059e+37
        %v3136 = vand.u32 %v3081, 2147483648
        %v3137 = vor.u32 1.1754944e-38, %v3136
        %v3138 = vsel %vm3135, %v3137, %v3133
        %v3139 = vmul.f32 1.0, %v3138
        %v3140 = vrcp.pop %v3082
        %v3141 = vmul.f32 %v3082, %v3140
        %v3142 = vsub.f32 1.0, %v3141
        %v3143 = vmul.f32 %v3140, %v3142
        %v3144 = vadd.f32 %v3140, %v3143
        %vm3145 = vweird.f32 %v3082
        %vm3146 = vweird.f32 %v3140
        %vm3147 = vmor %vm3145, %vm3146
        %v3148 = vsel %vm3147, %v3140, %v3144
        %v3149 = vand.u32 2147483647, %v3082
        %vm3150 = vcmp.eq.f32.partialorder %v3149, 8.507059e+37
        %v3151 = vand.u32 %v3082, 2147483648
        %v3152 = vor.u32 1.1754944e-38, %v3151
        %v3153 = vsel %vm3150, %v3152, %v3148
        %v3154 = vmul.f32 1.0, %v3153
        %v3155 = vrcp.pop %v3083
        %v3156 = vmul.f32 %v3083, %v3155
        %v3157 = vsub.f32 1.0, %v3156
        %v3158 = vmul.f32 %v3155, %v3157
        %v3159 = vadd.f32 %v3155, %v3158
        %vm3160 = vweird.f32 %v3083
        %vm3161 = vweird.f32 %v3155
        %vm3162 = vmor %vm3160, %vm3161
        %v3163 = vsel %vm3162, %v3155, %v3159
        %v3164 = vand.u32 2147483647, %v3083
        %vm3165 = vcmp.eq.f32.partialorder %v3164, 8.507059e+37
        %v3166 = vand.u32 %v3083, 2147483648
        %v3167 = vor.u32 1.1754944e-38, %v3166
        %v3168 = vsel %vm3165, %v3167, %v3163
        %v3169 = vmul.f32 1.0, %v3168
        %v3170 = vrcp.pop %v3084
        %v3171 = vmul.f32 %v3084, %v3170
        %v3172 = vsub.f32 1.0, %v3171
        %v3173 = vmul.f32 %v3170, %v3172
        %v3174 = vadd.f32 %v3170, %v3173
        %vm3175 = vweird.f32 %v3084
        %vm3176 = vweird.f32 %v3170
        %vm3177 = vmor %vm3175, %vm3176
        %v3178 = vsel %vm3177, %v3170, %v3174
        %v3179 = vand.u32 2147483647, %v3084
        %vm3180 = vcmp.eq.f32.partialorder %v3179, 8.507059e+37
        %v3181 = vand.u32 %v3084, 2147483648
        %v3182 = vor.u32 1.1754944e-38, %v3181
        %v3183 = vsel %vm3180, %v3182, %v3178
        %v3184 = vmul.f32 1.0, %v3183
        %v3185 = vrcp.pop %v3085
        %v3186 = vmul.f32 %v3085, %v3185
        %v3187 = vsub.f32 1.0, %v3186
        %v3188 = vmul.f32 %v3185, %v3187
        %v3189 = vadd.f32 %v3185, %v3188
        %vm3190 = vweird.f32 %v3085
        %vm3191 = vweird.f32 %v3185
        %vm3192 = vmor %vm3190, %vm3191
        %v3193 = vsel %vm3192, %v3185, %v3189
        %v3194 = vand.u32 2147483647, %v3085
        %vm3195 = vcmp.eq.f32.partialorder %v3194, 8.507059e+37
        %v3196 = vand.u32 %v3085, 2147483648
        %v3197 = vor.u32 1.1754944e-38, %v3196
        %v3198 = vsel %vm3195, %v3197, %v3193
        %v3199 = vmul.f32 1.0, %v3198
        %v3200 = vrcp.pop %v3086
        %v3201 = vmul.f32 %v3086, %v3200
        %v3202 = vsub.f32 1.0, %v3201
        %v3203 = vmul.f32 %v3200, %v3202
        %v3204 = vadd.f32 %v3200, %v3203
        %vm3205 = vweird.f32 %v3086
        %vm3206 = vweird.f32 %v3200
        %vm3207 = vmor %vm3205, %vm3206
        %v3208 = vsel %vm3207, %v3200, %v3204
        %v3209 = vand.u32 2147483647, %v3086
        %vm3210 = vcmp.eq.f32.partialorder %v3209, 8.507059e+37
        %v3211 = vand.u32 %v3086, 2147483648
        %v3212 = vor.u32 1.1754944e-38, %v3211
        %v3213 = vsel %vm3210, %v3212, %v3208
        %v3214 = vmul.f32 1.0, %v3213
        %v3215 = vrcp.pop %v3087
        %v3216 = vmul.f32 %v3087, %v3215
        %v3217 = vsub.f32 1.0, %v3216
        %v3218 = vmul.f32 %v3215, %v3217
        %v3219 = vadd.f32 %v3215, %v3218
        %vm3220 = vweird.f32 %v3087
        %vm3221 = vweird.f32 %v3215
        %vm3222 = vmor %vm3220, %vm3221
        %v3223 = vsel %vm3222, %v3215, %v3219
        %v3224 = vand.u32 2147483647, %v3087
        %vm3225 = vcmp.eq.f32.partialorder %v3224, 8.507059e+37
        %v3226 = vand.u32 %v3087, 2147483648
        %v3227 = vor.u32 1.1754944e-38, %v3226
        %v3228 = vsel %vm3225, %v3227, %v3223
        %v3229 = vmul.f32 1.0, %v3228
        %v3230 = vrcp.pop %v3088
        %v3231 = vmul.f32 %v3088, %v3230
        %v3232 = vsub.f32 1.0, %v3231
        %v3233 = vmul.f32 %v3230, %v3232
        %v3234 = vadd.f32 %v3230, %v3233
        %vm3235 = vweird.f32 %v3088
        %vm3236 = vweird.f32 %v3230
        %vm3237 = vmor %vm3235, %vm3236
        %v3238 = vsel %vm3237, %v3230, %v3234
        %v3239 = vand.u32 2147483647, %v3088
        %vm3240 = vcmp.eq.f32.partialorder %v3239, 8.507059e+37
        %v3241 = vand.u32 %v3088, 2147483648
        %v3242 = vor.u32 1.1754944e-38, %v3241
        %v3243 = vsel %vm3240, %v3242, %v3238
        %v3244 = vmul.f32 1.0, %v3243
        %v3245 = vrcp.pop %v3089
        %v3246 = vmul.f32 %v3089, %v3245
        %v3247 = vsub.f32 1.0, %v3246
        %v3248 = vmul.f32 %v3245, %v3247
        %v3249 = vadd.f32 %v3245, %v3248
        %vm3250 = vweird.f32 %v3089
        %vm3251 = vweird.f32 %v3245
        %vm3252 = vmor %vm3250, %vm3251
        %v3253 = vsel %vm3252, %v3245, %v3249
        %v3254 = vand.u32 2147483647, %v3089
        %vm3255 = vcmp.eq.f32.partialorder %v3254, 8.507059e+37
        %v3256 = vand.u32 %v3089, 2147483648
        %v3257 = vor.u32 1.1754944e-38, %v3256
        %v3258 = vsel %vm3255, %v3257, %v3253
        %v3259 = vmul.f32 1.0, %v3258
        %v3260 = vrcp.pop %v3090
        %v3261 = vmul.f32 %v3090, %v3260
        %v3262 = vsub.f32 1.0, %v3261
        %v3263 = vmul.f32 %v3260, %v3262
        %v3264 = vadd.f32 %v3260, %v3263
        %vm3265 = vweird.f32 %v3090
        %vm3266 = vweird.f32 %v3260
        %vm3267 = vmor %vm3265, %vm3266
        %v3268 = vsel %vm3267, %v3260, %v3264
        %v3269 = vand.u32 2147483647, %v3090
        %vm3270 = vcmp.eq.f32.partialorder %v3269, 8.507059e+37
        %v3271 = vand.u32 %v3090, 2147483648
        %v3272 = vor.u32 1.1754944e-38, %v3271
        %v3273 = vsel %vm3270, %v3272, %v3268
        %v3274 = vmul.f32 1.0, %v3273
        %v3275 = vrcp.pop %v3091
        %v3276 = vmul.f32 %v3091, %v3275
        %v3277 = vsub.f32 1.0, %v3276
        %v3278 = vmul.f32 %v3275, %v3277
        %v3279 = vadd.f32 %v3275, %v3278
        %vm3280 = vweird.f32 %v3091
        %vm3281 = vweird.f32 %v3275
        %vm3282 = vmor %vm3280, %vm3281
        %v3283 = vsel %vm3282, %v3275, %v3279
        %v3284 = vand.u32 2147483647, %v3091
        %vm3285 = vcmp.eq.f32.partialorder %v3284, 8.507059e+37
        %v3286 = vand.u32 %v3091, 2147483648
        %v3287 = vor.u32 1.1754944e-38, %v3286
        %v3288 = vsel %vm3285, %v3287, %v3283
        %v3289 = vmul.f32 1.0, %v3288
        %v3290 = vrcp.pop %v3092
        %v3291 = vmul.f32 %v3092, %v3290
        %v3292 = vsub.f32 1.0, %v3291
        %v3293 = vmul.f32 %v3290, %v3292
        %v3294 = vadd.f32 %v3290, %v3293
        %vm3295 = vweird.f32 %v3092
        %vm3296 = vweird.f32 %v3290
        %vm3297 = vmor %vm3295, %vm3296
        %v3298 = vsel %vm3297, %v3290, %v3294
        %v3299 = vand.u32 2147483647, %v3092
        %vm3300 = vcmp.eq.f32.partialorder %v3299, 8.507059e+37
        %v3301 = vand.u32 %v3092, 2147483648
        %v3302 = vor.u32 1.1754944e-38, %v3301
        %v3303 = vsel %vm3300, %v3302, %v3298
        %v3304 = vmul.f32 1.0, %v3303
        %v3305 = vrcp.pop %v3093
        %v3306 = vmul.f32 %v3093, %v3305
        %v3307 = vsub.f32 1.0, %v3306
        %v3308 = vmul.f32 %v3305, %v3307
        %v3309 = vadd.f32 %v3305, %v3308
        %vm3310 = vweird.f32 %v3093
        %vm3311 = vweird.f32 %v3305
        %vm3312 = vmor %vm3310, %vm3311
        %v3313 = vsel %vm3312, %v3305, %v3309
        %v3314 = vand.u32 2147483647, %v3093
        %vm3315 = vcmp.eq.f32.partialorder %v3314, 8.507059e+37
        %v3316 = vand.u32 %v3093, 2147483648
        %v3317 = vor.u32 1.1754944e-38, %v3316
        %v3318 = vsel %vm3315, %v3317, %v3313
        %v3319 = vmul.f32 1.0, %v3318
        %v3320 = vrcp.pop %v3094
        %v3321 = vmul.f32 %v3094, %v3320
        %v3322 = vsub.f32 1.0, %v3321
        %v3323 = vmul.f32 %v3320, %v3322
        %v3324 = vadd.f32 %v3320, %v3323
        %vm3325 = vweird.f32 %v3094
        %vm3326 = vweird.f32 %v3320
        %vm3327 = vmor %vm3325, %vm3326
        %v3328 = vsel %vm3327, %v3320, %v3324
        %v3329 = vand.u32 2147483647, %v3094
        %vm3330 = vcmp.eq.f32.partialorder %v3329, 8.507059e+37
        %v3331 = vand.u32 %v3094, 2147483648
        %v3332 = vor.u32 1.1754944e-38, %v3331
        %v3333 = vsel %vm3330, %v3332, %v3328
        %v3334 = vmul.f32 1.0, %v3333
        %v3335 = vmul.f32 %v2815, %v3109
        %v3336 = vmul.f32 %v2843, %v3124
        %v3337 = vmul.f32 %v2871, %v3139
        %v3338 = vmul.f32 %v2899, %v3154
        %v3339 = vmul.f32 %v2927, %v3169
        %v3340 = vmul.f32 %v2955, %v3184
        %v3341 = vmul.f32 %v2983, %v3199
        %v3342 = vmul.f32 %v3011, %v3214
        %v3343 = vmul.f32 %v2817, %v3229
        %v3344 = vmul.f32 %v2845, %v3244
        %v3345 = vmul.f32 %v2873, %v3259
        %v3346 = vmul.f32 %v2901, %v3274
        %v3347 = vmul.f32 %v2929, %v3289
        %v3348 = vmul.f32 %v2957, %v3304
        %v3349 = vmul.f32 %v2985, %v3319
        %v3350 = vmul.f32 %v3013, %v3334
        %v3351 = vpack.c.bf16 %v3343, %v3335
        %v3352 = vpack.c.bf16 %v3344, %v3336
        %v3353 = vpack.c.bf16 %v3345, %v3337
        %v3354 = vpack.c.bf16 %v3346, %v3338
        %v3355 = vpack.c.bf16 %v3347, %v3339
        %v3356 = vpack.c.bf16 %v3348, %v3340
        %v3357 = vpack.c.bf16 %v3349, %v3341
        %v3358 = vpack.c.bf16 %v3350, %v3342
        %v3359 = vld [vmem:[#allocation19] sm:$0xff]
        %v3360 = vld [vmem:[#allocation19 + $0x8] sm:$0xff]
        %v3361 = vld [vmem:[#allocation19 + $0x10] sm:$0xff]
        %v3362 = vld [vmem:[#allocation19 + $0x18] sm:$0xff]
        %v3363 = vld [vmem:[#allocation19 + $0x20] sm:$0xff]
        %v3364 = vld [vmem:[#allocation19 + $0x28] sm:$0xff]
        %v3365 = vld [vmem:[#allocation19 + $0x30] sm:$0xff]
        %v3366 = vld [vmem:[#allocation19 + $0x38] sm:$0xff]
        %v3367 = vld [vmem:[#allocation19 + $0x40] sm:$0xff]
        %v3368 = vld [vmem:[#allocation19 + $0x48] sm:$0xff]
        %v3369 = vld [vmem:[#allocation19 + $0x50] sm:$0xff]
        %v3370 = vld [vmem:[#allocation19 + $0x58] sm:$0xff]
        %v3371 = vld [vmem:[#allocation19 + $0x60] sm:$0xff]
        %v3372 = vld [vmem:[#allocation19 + $0x68] sm:$0xff]
        %v3373 = vld [vmem:[#allocation19 + $0x70] sm:$0xff]
        %v3374 = vld [vmem:[#allocation19 + $0x78] sm:$0xff]
        %v3375 = vld [vmem:[#allocation19 + $0x80] sm:$0xff]
        %v3376 = vld [vmem:[#allocation19 + $0x88] sm:$0xff]
        %v3377 = vld [vmem:[#allocation19 + $0x90] sm:$0xff]
        %v3378 = vld [vmem:[#allocation19 + $0x98] sm:$0xff]
        %v3379 = vld [vmem:[#allocation19 + $0xa0] sm:$0xff]
        %v3380 = vld [vmem:[#allocation19 + $0xa8] sm:$0xff]
        %v3381 = vld [vmem:[#allocation19 + $0xb0] sm:$0xff]
        %v3382 = vld [vmem:[#allocation19 + $0xb8] sm:$0xff]
        %v3383 = vld [vmem:[#allocation19 + $0xc0] sm:$0xff]
        %v3384 = vld [vmem:[#allocation19 + $0xc8] sm:$0xff]
        %v3385 = vld [vmem:[#allocation19 + $0xd0] sm:$0xff]
        %v3386 = vld [vmem:[#allocation19 + $0xd8] sm:$0xff]
        %v3387 = vld [vmem:[#allocation19 + $0xe0] sm:$0xff]
        %v3388 = vld [vmem:[#allocation19 + $0xe8] sm:$0xff]
        %v3389 = vld [vmem:[#allocation19 + $0xf0] sm:$0xff]
        %v3390 = vld [vmem:[#allocation19 + $0xf8] sm:$0xff]
        %v3391 = vld [vmem:[#allocation19 + $0x100] sm:$0xff]
        %v3392 = vld [vmem:[#allocation19 + $0x108] sm:$0xff]
        %v3393 = vld [vmem:[#allocation19 + $0x110] sm:$0xff]
        %v3394 = vld [vmem:[#allocation19 + $0x118] sm:$0xff]
        %v3395 = vld [vmem:[#allocation19 + $0x120] sm:$0xff]
        %v3396 = vld [vmem:[#allocation19 + $0x128] sm:$0xff]
        %v3397 = vld [vmem:[#allocation19 + $0x130] sm:$0xff]
        %v3398 = vld [vmem:[#allocation19 + $0x138] sm:$0xff]
        %v3399 = vld [vmem:[#allocation19 + $0x140] sm:$0xff]
        %v3400 = vld [vmem:[#allocation19 + $0x148] sm:$0xff]
        %v3401 = vld [vmem:[#allocation19 + $0x150] sm:$0xff]
        %v3402 = vld [vmem:[#allocation19 + $0x158] sm:$0xff]
        %v3403 = vld [vmem:[#allocation19 + $0x160] sm:$0xff]
        %v3404 = vld [vmem:[#allocation19 + $0x168] sm:$0xff]
        %v3405 = vld [vmem:[#allocation19 + $0x170] sm:$0xff]
        %v3406 = vld [vmem:[#allocation19 + $0x178] sm:$0xff]
        %v3407 = vld [vmem:[#allocation19 + $0x180] sm:$0xff]
        %v3408 = vld [vmem:[#allocation19 + $0x188] sm:$0xff]
        %v3409 = vld [vmem:[#allocation19 + $0x190] sm:$0xff]
        %v3410 = vld [vmem:[#allocation19 + $0x198] sm:$0xff]
        %v3411 = vld [vmem:[#allocation19 + $0x1a0] sm:$0xff]
        %v3412 = vld [vmem:[#allocation19 + $0x1a8] sm:$0xff]
        %v3413 = vld [vmem:[#allocation19 + $0x1b0] sm:$0xff]
        %v3414 = vld [vmem:[#allocation19 + $0x1b8] sm:$0xff]
        %v3415 = vld [vmem:[#allocation19 + $0x1c0] sm:$0xff]
        %v3416 = vld [vmem:[#allocation19 + $0x1c8] sm:$0xff]
        %v3417 = vld [vmem:[#allocation19 + $0x1d0] sm:$0xff]
        %v3418 = vld [vmem:[#allocation19 + $0x1d8] sm:$0xff]
        %v3419 = vld [vmem:[#allocation19 + $0x1e0] sm:$0xff]
        %v3420 = vld [vmem:[#allocation19 + $0x1e8] sm:$0xff]
        %v3421 = vld [vmem:[#allocation19 + $0x1f0] sm:$0xff]
        %v3422 = vld [vmem:[#allocation19 + $0x1f8] sm:$0xff]
        %v3423 = vld [vmem:[#allocation19 + $0x200] sm:$0xff]
        %v3424 = vld [vmem:[#allocation19 + $0x208] sm:$0xff]
        %v3425 = vld [vmem:[#allocation19 + $0x210] sm:$0xff]
        %v3426 = vld [vmem:[#allocation19 + $0x218] sm:$0xff]
        %v3427 = vld [vmem:[#allocation19 + $0x220] sm:$0xff]
        %v3428 = vld [vmem:[#allocation19 + $0x228] sm:$0xff]
        %v3429 = vld [vmem:[#allocation19 + $0x230] sm:$0xff]
        %v3430 = vld [vmem:[#allocation19 + $0x238] sm:$0xff]
        %v3431 = vld [vmem:[#allocation19 + $0x240] sm:$0xff]
        %v3432 = vld [vmem:[#allocation19 + $0x248] sm:$0xff]
        %v3433 = vld [vmem:[#allocation19 + $0x250] sm:$0xff]
        %v3434 = vld [vmem:[#allocation19 + $0x258] sm:$0xff]
        %v3435 = vld [vmem:[#allocation19 + $0x260] sm:$0xff]
        %v3436 = vld [vmem:[#allocation19 + $0x268] sm:$0xff]
        %v3437 = vld [vmem:[#allocation19 + $0x270] sm:$0xff]
        %v3438 = vld [vmem:[#allocation19 + $0x278] sm:$0xff]
        %v3439 = vld [vmem:[#allocation19 + $0x280] sm:$0xff]
        %v3440 = vld [vmem:[#allocation19 + $0x288] sm:$0xff]
        %v3441 = vld [vmem:[#allocation19 + $0x290] sm:$0xff]
        %v3442 = vld [vmem:[#allocation19 + $0x298] sm:$0xff]
        %v3443 = vld [vmem:[#allocation19 + $0x2a0] sm:$0xff]
        %v3444 = vld [vmem:[#allocation19 + $0x2a8] sm:$0xff]
        %v3445 = vld [vmem:[#allocation19 + $0x2b0] sm:$0xff]
        %v3446 = vld [vmem:[#allocation19 + $0x2b8] sm:$0xff]
        %v3447 = vld [vmem:[#allocation19 + $0x2c0] sm:$0xff]
        %v3448 = vld [vmem:[#allocation19 + $0x2c8] sm:$0xff]
        %v3449 = vld [vmem:[#allocation19 + $0x2d0] sm:$0xff]
        %v3450 = vld [vmem:[#allocation19 + $0x2d8] sm:$0xff]
        %v3451 = vld [vmem:[#allocation19 + $0x2e0] sm:$0xff]
        %v3452 = vld [vmem:[#allocation19 + $0x2e8] sm:$0xff]
        %v3453 = vld [vmem:[#allocation19 + $0x2f0] sm:$0xff]
        %v3454 = vld [vmem:[#allocation19 + $0x2f8] sm:$0xff]
        %v3455 = vld [vmem:[#allocation19 + $0x300] sm:$0xff]
        %v3456 = vld [vmem:[#allocation19 + $0x308] sm:$0xff]
        %v3457 = vld [vmem:[#allocation19 + $0x310] sm:$0xff]
        %v3458 = vld [vmem:[#allocation19 + $0x318] sm:$0xff]
        %v3459 = vld [vmem:[#allocation19 + $0x320] sm:$0xff]
        %v3460 = vld [vmem:[#allocation19 + $0x328] sm:$0xff]
        %v3461 = vld [vmem:[#allocation19 + $0x330] sm:$0xff]
        %v3462 = vld [vmem:[#allocation19 + $0x338] sm:$0xff]
        %v3463 = vld [vmem:[#allocation19 + $0x340] sm:$0xff]
        %v3464 = vld [vmem:[#allocation19 + $0x348] sm:$0xff]
        %v3465 = vld [vmem:[#allocation19 + $0x350] sm:$0xff]
        %v3466 = vld [vmem:[#allocation19 + $0x358] sm:$0xff]
        %v3467 = vld [vmem:[#allocation19 + $0x360] sm:$0xff]
        %v3468 = vld [vmem:[#allocation19 + $0x368] sm:$0xff]
        %v3469 = vld [vmem:[#allocation19 + $0x370] sm:$0xff]
        %v3470 = vld [vmem:[#allocation19 + $0x378] sm:$0xff]
        %v3471 = vld [vmem:[#allocation19 + $0x380] sm:$0xff]
        %v3472 = vld [vmem:[#allocation19 + $0x388] sm:$0xff]
        %v3473 = vld [vmem:[#allocation19 + $0x390] sm:$0xff]
        %v3474 = vld [vmem:[#allocation19 + $0x398] sm:$0xff]
        %v3475 = vld [vmem:[#allocation19 + $0x3a0] sm:$0xff]
        %v3476 = vld [vmem:[#allocation19 + $0x3a8] sm:$0xff]
        %v3477 = vld [vmem:[#allocation19 + $0x3b0] sm:$0xff]
        %v3478 = vld [vmem:[#allocation19 + $0x3b8] sm:$0xff]
        %v3479 = vld [vmem:[#allocation19 + $0x3c0] sm:$0xff]
        %v3480 = vld [vmem:[#allocation19 + $0x3c8] sm:$0xff]
        %v3481 = vld [vmem:[#allocation19 + $0x3d0] sm:$0xff]
        %v3482 = vld [vmem:[#allocation19 + $0x3d8] sm:$0xff]
        %v3483 = vld [vmem:[#allocation19 + $0x3e0] sm:$0xff]
        %v3484 = vld [vmem:[#allocation19 + $0x3e8] sm:$0xff]
        %v3485 = vld [vmem:[#allocation19 + $0x3f0] sm:$0xff]
        %v3486 = vld [vmem:[#allocation19 + $0x3f8] sm:$0xff]
        %v3487 = vld [vmem:[%s12] sm:$0x3]
        %v3489 = vperm.slane %v3487, 0
        %v3490 = vperm.slane %v3487, 1
        %v3621 = vunpack.c.l.b16 %v3359
        %v3622 = vunpack.c.h.b16 %v3359
        %v3623 = vunpack.c.l.b16 %v3360
        %v3624 = vunpack.c.h.b16 %v3360
        %v3625 = vunpack.c.l.b16 %v3361
        %v3626 = vunpack.c.h.b16 %v3361
        %v3627 = vunpack.c.l.b16 %v3362
        %v3628 = vunpack.c.h.b16 %v3362
        %v3629 = vunpack.c.l.b16 %v3363
        %v3630 = vunpack.c.h.b16 %v3363
        %v3631 = vunpack.c.l.b16 %v3364
        %v3632 = vunpack.c.h.b16 %v3364
        %v3633 = vunpack.c.l.b16 %v3365
        %v3634 = vunpack.c.h.b16 %v3365
        %v3635 = vunpack.c.l.b16 %v3366
        %v3636 = vunpack.c.h.b16 %v3366
        %v3637 = vunpack.c.l.b16 %v3367
        %v3638 = vunpack.c.h.b16 %v3367
        %v3639 = vunpack.c.l.b16 %v3368
        %v3640 = vunpack.c.h.b16 %v3368
        %v3641 = vunpack.c.l.b16 %v3369
        %v3642 = vunpack.c.h.b16 %v3369
        %v3643 = vunpack.c.l.b16 %v3370
        %v3644 = vunpack.c.h.b16 %v3370
        %v3645 = vunpack.c.l.b16 %v3371
        %v3646 = vunpack.c.h.b16 %v3371
        %v3647 = vunpack.c.l.b16 %v3372
        %v3648 = vunpack.c.h.b16 %v3372
        %v3649 = vunpack.c.l.b16 %v3373
        %v3650 = vunpack.c.h.b16 %v3373
        %v3651 = vunpack.c.l.b16 %v3374
        %v3652 = vunpack.c.h.b16 %v3374
        %v3653 = vunpack.c.l.b16 %v3375
        %v3654 = vunpack.c.h.b16 %v3375
        %v3655 = vunpack.c.l.b16 %v3376
        %v3656 = vunpack.c.h.b16 %v3376
        %v3657 = vunpack.c.l.b16 %v3377
        %v3658 = vunpack.c.h.b16 %v3377
        %v3659 = vunpack.c.l.b16 %v3378
        %v3660 = vunpack.c.h.b16 %v3378
        %v3661 = vunpack.c.l.b16 %v3379
        %v3662 = vunpack.c.h.b16 %v3379
        %v3663 = vunpack.c.l.b16 %v3380
        %v3664 = vunpack.c.h.b16 %v3380
        %v3665 = vunpack.c.l.b16 %v3381
        %v3666 = vunpack.c.h.b16 %v3381
        %v3667 = vunpack.c.l.b16 %v3382
        %v3668 = vunpack.c.h.b16 %v3382
        %v3669 = vunpack.c.l.b16 %v3383
        %v3670 = vunpack.c.h.b16 %v3383
        %v3671 = vunpack.c.l.b16 %v3384
        %v3672 = vunpack.c.h.b16 %v3384
        %v3673 = vunpack.c.l.b16 %v3385
        %v3674 = vunpack.c.h.b16 %v3385
        %v3675 = vunpack.c.l.b16 %v3386
        %v3676 = vunpack.c.h.b16 %v3386
        %v3677 = vunpack.c.l.b16 %v3387
        %v3678 = vunpack.c.h.b16 %v3387
        %v3679 = vunpack.c.l.b16 %v3388
        %v3680 = vunpack.c.h.b16 %v3388
        %v3681 = vunpack.c.l.b16 %v3389
        %v3682 = vunpack.c.h.b16 %v3389
        %v3683 = vunpack.c.l.b16 %v3390
        %v3684 = vunpack.c.h.b16 %v3390
        %v3685 = vunpack.c.l.b16 %v3391
        %v3686 = vunpack.c.h.b16 %v3391
        %v3687 = vunpack.c.l.b16 %v3392
        %v3688 = vunpack.c.h.b16 %v3392
        %v3689 = vunpack.c.l.b16 %v3393
        %v3690 = vunpack.c.h.b16 %v3393
        %v3691 = vunpack.c.l.b16 %v3394
        %v3692 = vunpack.c.h.b16 %v3394
        %v3693 = vunpack.c.l.b16 %v3395
        %v3694 = vunpack.c.h.b16 %v3395
        %v3695 = vunpack.c.l.b16 %v3396
        %v3696 = vunpack.c.h.b16 %v3396
        %v3697 = vunpack.c.l.b16 %v3397
        %v3698 = vunpack.c.h.b16 %v3397
        %v3699 = vunpack.c.l.b16 %v3398
        %v3700 = vunpack.c.h.b16 %v3398
        %v3701 = vunpack.c.l.b16 %v3399
        %v3702 = vunpack.c.h.b16 %v3399
        %v3703 = vunpack.c.l.b16 %v3400
        %v3704 = vunpack.c.h.b16 %v3400
        %v3705 = vunpack.c.l.b16 %v3401
        %v3706 = vunpack.c.h.b16 %v3401
        %v3707 = vunpack.c.l.b16 %v3402
        %v3708 = vunpack.c.h.b16 %v3402
        %v3709 = vunpack.c.l.b16 %v3403
        %v3710 = vunpack.c.h.b16 %v3403
        %v3711 = vunpack.c.l.b16 %v3404
        %v3712 = vunpack.c.h.b16 %v3404
        %v3713 = vunpack.c.l.b16 %v3405
        %v3714 = vunpack.c.h.b16 %v3405
        %v3715 = vunpack.c.l.b16 %v3406
        %v3716 = vunpack.c.h.b16 %v3406
        %v3717 = vunpack.c.l.b16 %v3407
        %v3718 = vunpack.c.h.b16 %v3407
        %v3719 = vunpack.c.l.b16 %v3408
        %v3720 = vunpack.c.h.b16 %v3408
        %v3721 = vunpack.c.l.b16 %v3409
        %v3722 = vunpack.c.h.b16 %v3409
        %v3723 = vunpack.c.l.b16 %v3410
        %v3724 = vunpack.c.h.b16 %v3410
        %v3725 = vunpack.c.l.b16 %v3411
        %v3726 = vunpack.c.h.b16 %v3411
        %v3727 = vunpack.c.l.b16 %v3412
        %v3728 = vunpack.c.h.b16 %v3412
        %v3729 = vunpack.c.l.b16 %v3413
        %v3730 = vunpack.c.h.b16 %v3413
        %v3731 = vunpack.c.l.b16 %v3414
        %v3732 = vunpack.c.h.b16 %v3414
        %v3733 = vunpack.c.l.b16 %v3415
        %v3734 = vunpack.c.h.b16 %v3415
        %v3735 = vunpack.c.l.b16 %v3416
        %v3736 = vunpack.c.h.b16 %v3416
        %v3737 = vunpack.c.l.b16 %v3417
        %v3738 = vunpack.c.h.b16 %v3417
        %v3739 = vunpack.c.l.b16 %v3418
        %v3740 = vunpack.c.h.b16 %v3418
        %v3741 = vunpack.c.l.b16 %v3419
        %v3742 = vunpack.c.h.b16 %v3419
        %v3743 = vunpack.c.l.b16 %v3420
        %v3744 = vunpack.c.h.b16 %v3420
        %v3745 = vunpack.c.l.b16 %v3421
        %v3746 = vunpack.c.h.b16 %v3421
        %v3747 = vunpack.c.l.b16 %v3422
        %v3748 = vunpack.c.h.b16 %v3422
        %v3749 = vunpack.c.l.b16 %v3423
        %v3750 = vunpack.c.h.b16 %v3423
        %v3751 = vunpack.c.l.b16 %v3424
        %v3752 = vunpack.c.h.b16 %v3424
        %v3753 = vunpack.c.l.b16 %v3425
        %v3754 = vunpack.c.h.b16 %v3425
        %v3755 = vunpack.c.l.b16 %v3426
        %v3756 = vunpack.c.h.b16 %v3426
        %v3757 = vunpack.c.l.b16 %v3427
        %v3758 = vunpack.c.h.b16 %v3427
        %v3759 = vunpack.c.l.b16 %v3428
        %v3760 = vunpack.c.h.b16 %v3428
        %v3761 = vunpack.c.l.b16 %v3429
        %v3762 = vunpack.c.h.b16 %v3429
        %v3763 = vunpack.c.l.b16 %v3430
        %v3764 = vunpack.c.h.b16 %v3430
        %v3765 = vunpack.c.l.b16 %v3431
        %v3766 = vunpack.c.h.b16 %v3431
        %v3767 = vunpack.c.l.b16 %v3432
        %v3768 = vunpack.c.h.b16 %v3432
        %v3769 = vunpack.c.l.b16 %v3433
        %v3770 = vunpack.c.h.b16 %v3433
        %v3771 = vunpack.c.l.b16 %v3434
        %v3772 = vunpack.c.h.b16 %v3434
        %v3773 = vunpack.c.l.b16 %v3435
        %v3774 = vunpack.c.h.b16 %v3435
        %v3775 = vunpack.c.l.b16 %v3436
        %v3776 = vunpack.c.h.b16 %v3436
        %v3777 = vunpack.c.l.b16 %v3437
        %v3778 = vunpack.c.h.b16 %v3437
        %v3779 = vunpack.c.l.b16 %v3438
        %v3780 = vunpack.c.h.b16 %v3438
        %v3781 = vunpack.c.l.b16 %v3439
        %v3782 = vunpack.c.h.b16 %v3439
        %v3783 = vunpack.c.l.b16 %v3440
        %v3784 = vunpack.c.h.b16 %v3440
        %v3785 = vunpack.c.l.b16 %v3441
        %v3786 = vunpack.c.h.b16 %v3441
        %v3787 = vunpack.c.l.b16 %v3442
        %v3788 = vunpack.c.h.b16 %v3442
        %v3789 = vunpack.c.l.b16 %v3443
        %v3790 = vunpack.c.h.b16 %v3443
        %v3791 = vunpack.c.l.b16 %v3444
        %v3792 = vunpack.c.h.b16 %v3444
        %v3793 = vunpack.c.l.b16 %v3445
        %v3794 = vunpack.c.h.b16 %v3445
        %v3795 = vunpack.c.l.b16 %v3446
        %v3796 = vunpack.c.h.b16 %v3446
        %v3797 = vunpack.c.l.b16 %v3447
        %v3798 = vunpack.c.h.b16 %v3447
        %v3799 = vunpack.c.l.b16 %v3448
        %v3800 = vunpack.c.h.b16 %v3448
        %v3801 = vunpack.c.l.b16 %v3449
        %v3802 = vunpack.c.h.b16 %v3449
        %v3803 = vunpack.c.l.b16 %v3450
        %v3804 = vunpack.c.h.b16 %v3450
        %v3805 = vunpack.c.l.b16 %v3451
        %v3806 = vunpack.c.h.b16 %v3451
        %v3807 = vunpack.c.l.b16 %v3452
        %v3808 = vunpack.c.h.b16 %v3452
        %v3809 = vunpack.c.l.b16 %v3453
        %v3810 = vunpack.c.h.b16 %v3453
        %v3811 = vunpack.c.l.b16 %v3454
        %v3812 = vunpack.c.h.b16 %v3454
        %v3813 = vunpack.c.l.b16 %v3455
        %v3814 = vunpack.c.h.b16 %v3455
        %v3815 = vunpack.c.l.b16 %v3456
        %v3816 = vunpack.c.h.b16 %v3456
        %v3817 = vunpack.c.l.b16 %v3457
        %v3818 = vunpack.c.h.b16 %v3457
        %v3819 = vunpack.c.l.b16 %v3458
        %v3820 = vunpack.c.h.b16 %v3458
        %v3821 = vunpack.c.l.b16 %v3459
        %v3822 = vunpack.c.h.b16 %v3459
        %v3823 = vunpack.c.l.b16 %v3460
        %v3824 = vunpack.c.h.b16 %v3460
        %v3825 = vunpack.c.l.b16 %v3461
        %v3826 = vunpack.c.h.b16 %v3461
        %v3827 = vunpack.c.l.b16 %v3462
        %v3828 = vunpack.c.h.b16 %v3462
        %v3829 = vunpack.c.l.b16 %v3463
        %v3830 = vunpack.c.h.b16 %v3463
        %v3831 = vunpack.c.l.b16 %v3464
        %v3832 = vunpack.c.h.b16 %v3464
        %v3833 = vunpack.c.l.b16 %v3465
        %v3834 = vunpack.c.h.b16 %v3465
        %v3835 = vunpack.c.l.b16 %v3466
        %v3836 = vunpack.c.h.b16 %v3466
        %v3837 = vunpack.c.l.b16 %v3467
        %v3838 = vunpack.c.h.b16 %v3467
        %v3839 = vunpack.c.l.b16 %v3468
        %v3840 = vunpack.c.h.b16 %v3468
        %v3841 = vunpack.c.l.b16 %v3469
        %v3842 = vunpack.c.h.b16 %v3469
        %v3843 = vunpack.c.l.b16 %v3470
        %v3844 = vunpack.c.h.b16 %v3470
        %v3845 = vunpack.c.l.b16 %v3471
        %v3846 = vunpack.c.h.b16 %v3471
        %v3847 = vunpack.c.l.b16 %v3472
        %v3848 = vunpack.c.h.b16 %v3472
        %v3849 = vunpack.c.l.b16 %v3473
        %v3850 = vunpack.c.h.b16 %v3473
        %v3851 = vunpack.c.l.b16 %v3474
        %v3852 = vunpack.c.h.b16 %v3474
        %v3853 = vunpack.c.l.b16 %v3475
        %v3854 = vunpack.c.h.b16 %v3475
        %v3855 = vunpack.c.l.b16 %v3476
        %v3856 = vunpack.c.h.b16 %v3476
        %v3857 = vunpack.c.l.b16 %v3477
        %v3858 = vunpack.c.h.b16 %v3477
        %v3859 = vunpack.c.l.b16 %v3478
        %v3860 = vunpack.c.h.b16 %v3478
        %v3861 = vunpack.c.l.b16 %v3479
        %v3862 = vunpack.c.h.b16 %v3479
        %v3863 = vunpack.c.l.b16 %v3480
        %v3864 = vunpack.c.h.b16 %v3480
        %v3865 = vunpack.c.l.b16 %v3481
        %v3866 = vunpack.c.h.b16 %v3481
        %v3867 = vunpack.c.l.b16 %v3482
        %v3868 = vunpack.c.h.b16 %v3482
        %v3869 = vunpack.c.l.b16 %v3483
        %v3870 = vunpack.c.h.b16 %v3483
        %v3871 = vunpack.c.l.b16 %v3484
        %v3872 = vunpack.c.h.b16 %v3484
        %v3873 = vunpack.c.l.b16 %v3485
        %v3874 = vunpack.c.h.b16 %v3485
        %v3875 = vunpack.c.l.b16 %v3486
        %v3876 = vunpack.c.h.b16 %v3486
        %v3877 = vpack.c.b16 %v3623, %v3621
        %v3878 = vpack.c.b16 %v3624, %v3622
        %v3879 = vpack.c.b16 %v3627, %v3625
        %v3880 = vpack.c.b16 %v3628, %v3626
        %v3881 = vpack.c.b16 %v3631, %v3629
        %v3882 = vpack.c.b16 %v3632, %v3630
        %v3883 = vpack.c.b16 %v3635, %v3633
        %v3884 = vpack.c.b16 %v3636, %v3634
        %v3885 = vpack.c.b16 %v3639, %v3637
        %v3886 = vpack.c.b16 %v3640, %v3638
        %v3887 = vpack.c.b16 %v3643, %v3641
        %v3888 = vpack.c.b16 %v3644, %v3642
        %v3889 = vpack.c.b16 %v3647, %v3645
        %v3890 = vpack.c.b16 %v3648, %v3646
        %v3891 = vpack.c.b16 %v3651, %v3649
        %v3892 = vpack.c.b16 %v3652, %v3650
        %v3893 = vpack.c.b16 %v3655, %v3653
        %v3894 = vpack.c.b16 %v3656, %v3654
        %v3895 = vpack.c.b16 %v3659, %v3657
        %v3896 = vpack.c.b16 %v3660, %v3658
        %v3897 = vpack.c.b16 %v3663, %v3661
        %v3898 = vpack.c.b16 %v3664, %v3662
        %v3899 = vpack.c.b16 %v3667, %v3665
        %v3900 = vpack.c.b16 %v3668, %v3666
        %v3901 = vpack.c.b16 %v3671, %v3669
        %v3902 = vpack.c.b16 %v3672, %v3670
        %v3903 = vpack.c.b16 %v3675, %v3673
        %v3904 = vpack.c.b16 %v3676, %v3674
        %v3905 = vpack.c.b16 %v3679, %v3677
        %v3906 = vpack.c.b16 %v3680, %v3678
        %v3907 = vpack.c.b16 %v3683, %v3681
        %v3908 = vpack.c.b16 %v3684, %v3682
        %v3909 = vpack.c.b16 %v3687, %v3685
        %v3910 = vpack.c.b16 %v3688, %v3686
        %v3911 = vpack.c.b16 %v3691, %v3689
        %v3912 = vpack.c.b16 %v3692, %v3690
        %v3913 = vpack.c.b16 %v3695, %v3693
        %v3914 = vpack.c.b16 %v3696, %v3694
        %v3915 = vpack.c.b16 %v3699, %v3697
        %v3916 = vpack.c.b16 %v3700, %v3698
        %v3917 = vpack.c.b16 %v3703, %v3701
        %v3918 = vpack.c.b16 %v3704, %v3702
        %v3919 = vpack.c.b16 %v3707, %v3705
        %v3920 = vpack.c.b16 %v3708, %v3706
        %v3921 = vpack.c.b16 %v3711, %v3709
        %v3922 = vpack.c.b16 %v3712, %v3710
        %v3923 = vpack.c.b16 %v3715, %v3713
        %v3924 = vpack.c.b16 %v3716, %v3714
        %v3925 = vpack.c.b16 %v3719, %v3717
        %v3926 = vpack.c.b16 %v3720, %v3718
        %v3927 = vpack.c.b16 %v3723, %v3721
        %v3928 = vpack.c.b16 %v3724, %v3722
        %v3929 = vpack.c.b16 %v3727, %v3725
        %v3930 = vpack.c.b16 %v3728, %v3726
        %v3931 = vpack.c.b16 %v3731, %v3729
        %v3932 = vpack.c.b16 %v3732, %v3730
        %v3933 = vpack.c.b16 %v3735, %v3733
        %v3934 = vpack.c.b16 %v3736, %v3734
        %v3935 = vpack.c.b16 %v3739, %v3737
        %v3936 = vpack.c.b16 %v3740, %v3738
        %v3937 = vpack.c.b16 %v3743, %v3741
        %v3938 = vpack.c.b16 %v3744, %v3742
        %v3939 = vpack.c.b16 %v3747, %v3745
        %v3940 = vpack.c.b16 %v3748, %v3746
        %v3941 = vpack.c.b16 %v3751, %v3749
        %v3942 = vpack.c.b16 %v3752, %v3750
        %v3943 = vpack.c.b16 %v3755, %v3753
        %v3944 = vpack.c.b16 %v3756, %v3754
        %v3945 = vpack.c.b16 %v3759, %v3757
        %v3946 = vpack.c.b16 %v3760, %v3758
        %v3947 = vpack.c.b16 %v3763, %v3761
        %v3948 = vpack.c.b16 %v3764, %v3762
        %v3949 = vpack.c.b16 %v3767, %v3765
        %v3950 = vpack.c.b16 %v3768, %v3766
        %v3951 = vpack.c.b16 %v3771, %v3769
        %v3952 = vpack.c.b16 %v3772, %v3770
        %v3953 = vpack.c.b16 %v3775, %v3773
        %v3954 = vpack.c.b16 %v3776, %v3774
        %v3955 = vpack.c.b16 %v3779, %v3777
        %v3956 = vpack.c.b16 %v3780, %v3778
        %v3957 = vpack.c.b16 %v3783, %v3781
        %v3958 = vpack.c.b16 %v3784, %v3782
        %v3959 = vpack.c.b16 %v3787, %v3785
        %v3960 = vpack.c.b16 %v3788, %v3786
        %v3961 = vpack.c.b16 %v3791, %v3789
        %v3962 = vpack.c.b16 %v3792, %v3790
        %v3963 = vpack.c.b16 %v3795, %v3793
        %v3964 = vpack.c.b16 %v3796, %v3794
        %v3965 = vpack.c.b16 %v3799, %v3797
        %v3966 = vpack.c.b16 %v3800, %v3798
        %v3967 = vpack.c.b16 %v3803, %v3801
        %v3968 = vpack.c.b16 %v3804, %v3802
        %v3969 = vpack.c.b16 %v3807, %v3805
        %v3970 = vpack.c.b16 %v3808, %v3806
        %v3971 = vpack.c.b16 %v3811, %v3809
        %v3972 = vpack.c.b16 %v3812, %v3810
        %v3973 = vpack.c.b16 %v3815, %v3813
        %v3974 = vpack.c.b16 %v3816, %v3814
        %v3975 = vpack.c.b16 %v3819, %v3817
        %v3976 = vpack.c.b16 %v3820, %v3818
        %v3977 = vpack.c.b16 %v3823, %v3821
        %v3978 = vpack.c.b16 %v3824, %v3822
        %v3979 = vpack.c.b16 %v3827, %v3825
        %v3980 = vpack.c.b16 %v3828, %v3826
        %v3981 = vpack.c.b16 %v3831, %v3829
        %v3982 = vpack.c.b16 %v3832, %v3830
        %v3983 = vpack.c.b16 %v3835, %v3833
        %v3984 = vpack.c.b16 %v3836, %v3834
        %v3985 = vpack.c.b16 %v3839, %v3837
        %v3986 = vpack.c.b16 %v3840, %v3838
        %v3987 = vpack.c.b16 %v3843, %v3841
        %v3988 = vpack.c.b16 %v3844, %v3842
        %v3989 = vpack.c.b16 %v3847, %v3845
        %v3990 = vpack.c.b16 %v3848, %v3846
        %v3991 = vpack.c.b16 %v3851, %v3849
        %v3992 = vpack.c.b16 %v3852, %v3850
        %v3993 = vpack.c.b16 %v3855, %v3853
        %v3994 = vpack.c.b16 %v3856, %v3854
        %v3995 = vpack.c.b16 %v3859, %v3857
        %v3996 = vpack.c.b16 %v3860, %v3858
        %v3997 = vpack.c.b16 %v3863, %v3861
        %v3998 = vpack.c.b16 %v3864, %v3862
        %v3999 = vpack.c.b16 %v3867, %v3865
        %v4000 = vpack.c.b16 %v3868, %v3866
        %v4001 = vpack.c.b16 %v3871, %v3869
        %v4002 = vpack.c.b16 %v3872, %v3870
        %v4003 = vpack.c.b16 %v3875, %v3873
        %v4004 = vpack.c.b16 %v3876, %v3874
        %4133 = vmatpush.bf16.msra.mxu0 %v3891
        %4134 = vmatpush.bf16.msra.mxu0 %v3889
        %4135 = vmatpush.bf16.msra.mxu0 %v3887
        %4136 = vmatpush.bf16.msra.mxu0 %v3885
        %4137 = vmatpush.bf16.msra.mxu0 %v3883
        %4138 = vmatpush.bf16.msra.mxu0 %v3881
        %4139 = vmatpush.bf16.msra.mxu0 %v3879
        %4140 = vmatpush.bf16.msra.mxu0 %v3877
        %4141 = vmatmul.bf16.gmra.mxu0 %v3351
        %v4142 = vpop.f32.mrf.mxu0
        %v4143 = vadd.f32 %v3489, %v4142
        %v4144 = vpop.f32.mrf.mxu0
        %v4145 = vadd.f32 %v3489, %v4144
        %4146 = vdwg.mxu0
        %4147 = vmatpush.bf16.msra.mxu0 %v3907
        %4148 = vmatpush.bf16.msra.mxu0 %v3905
        %4149 = vmatpush.bf16.msra.mxu0 %v3903
        %4150 = vmatpush.bf16.msra.mxu0 %v3901
        %4151 = vmatpush.bf16.msra.mxu0 %v3899
        %4152 = vmatpush.bf16.msra.mxu0 %v3897
        %4153 = vmatpush.bf16.msra.mxu0 %v3895
        %4154 = vmatpush.bf16.msra.mxu0 %v3893
        %4155 = vmatmul.bf16.gmra.mxu0 %v3352
        %v4156 = vpop.f32.mrf.mxu0
        %v4157 = vadd.f32 %v4143, %v4156
        %v4158 = vpop.f32.mrf.mxu0
        %v4159 = vadd.f32 %v4145, %v4158
        %4160 = vdwg.mxu0
        %4161 = vmatpush.bf16.msra.mxu0 %v3923
        %4162 = vmatpush.bf16.msra.mxu0 %v3921
        %4163 = vmatpush.bf16.msra.mxu0 %v3919
        %4164 = vmatpush.bf16.msra.mxu0 %v3917
        %4165 = vmatpush.bf16.msra.mxu0 %v3915
        %4166 = vmatpush.bf16.msra.mxu0 %v3913
        %4167 = vmatpush.bf16.msra.mxu0 %v3911
        %4168 = vmatpush.bf16.msra.mxu0 %v3909
        %4169 = vmatmul.bf16.gmra.mxu0 %v3353
        %v4170 = vpop.f32.mrf.mxu0
        %v4171 = vadd.f32 %v4157, %v4170
        %v4172 = vpop.f32.mrf.mxu0
        %v4173 = vadd.f32 %v4159, %v4172
        %4174 = vdwg.mxu0
        %4175 = vmatpush.bf16.msra.mxu0 %v3939
        %4176 = vmatpush.bf16.msra.mxu0 %v3937
        %4177 = vmatpush.bf16.msra.mxu0 %v3935
        %4178 = vmatpush.bf16.msra.mxu0 %v3933
        %4179 = vmatpush.bf16.msra.mxu0 %v3931
        %4180 = vmatpush.bf16.msra.mxu0 %v3929
        %4181 = vmatpush.bf16.msra.mxu0 %v3927
        %4182 = vmatpush.bf16.msra.mxu0 %v3925
        %4183 = vmatmul.bf16.gmra.mxu0 %v3354
        %v4184 = vpop.f32.mrf.mxu0
        %v4185 = vadd.f32 %v4171, %v4184
        %v4186 = vpop.f32.mrf.mxu0
        %v4187 = vadd.f32 %v4173, %v4186
        %4188 = vdwg.mxu0
        %4189 = vmatpush.bf16.msra.mxu0 %v3955
        %4190 = vmatpush.bf16.msra.mxu0 %v3953
        %4191 = vmatpush.bf16.msra.mxu0 %v3951
        %4192 = vmatpush.bf16.msra.mxu0 %v3949
        %4193 = vmatpush.bf16.msra.mxu0 %v3947
        %4194 = vmatpush.bf16.msra.mxu0 %v3945
        %4195 = vmatpush.bf16.msra.mxu0 %v3943
        %4196 = vmatpush.bf16.msra.mxu0 %v3941
        %4197 = vmatmul.bf16.gmra.mxu0 %v3355
        %v4198 = vpop.f32.mrf.mxu0
        %v4199 = vadd.f32 %v4185, %v4198
        %v4200 = vpop.f32.mrf.mxu0
        %v4201 = vadd.f32 %v4187, %v4200
        %4202 = vdwg.mxu0
        %4203 = vmatpush.bf16.msra.mxu0 %v3971
        %4204 = vmatpush.bf16.msra.mxu0 %v3969
        %4205 = vmatpush.bf16.msra.mxu0 %v3967
        %4206 = vmatpush.bf16.msra.mxu0 %v3965
        %4207 = vmatpush.bf16.msra.mxu0 %v3963
        %4208 = vmatpush.bf16.msra.mxu0 %v3961
        %4209 = vmatpush.bf16.msra.mxu0 %v3959
        %4210 = vmatpush.bf16.msra.mxu0 %v3957
        %4211 = vmatmul.bf16.gmra.mxu0 %v3356
        %v4212 = vpop.f32.mrf.mxu0
        %v4213 = vadd.f32 %v4199, %v4212
        %v4214 = vpop.f32.mrf.mxu0
        %v4215 = vadd.f32 %v4201, %v4214
        %4216 = vdwg.mxu0
        %4217 = vmatpush.bf16.msra.mxu0 %v3987
        %4218 = vmatpush.bf16.msra.mxu0 %v3985
        %4219 = vmatpush.bf16.msra.mxu0 %v3983
        %4220 = vmatpush.bf16.msra.mxu0 %v3981
        %4221 = vmatpush.bf16.msra.mxu0 %v3979
        %4222 = vmatpush.bf16.msra.mxu0 %v3977
        %4223 = vmatpush.bf16.msra.mxu0 %v3975
        %4224 = vmatpush.bf16.msra.mxu0 %v3973
        %4225 = vmatmul.bf16.gmra.mxu0 %v3357
        %v4226 = vpop.f32.mrf.mxu0
        %v4227 = vadd.f32 %v4213, %v4226
        %v4228 = vpop.f32.mrf.mxu0
        %v4229 = vadd.f32 %v4215, %v4228
        %4230 = vdwg.mxu0
        %4231 = vmatpush.bf16.msra.mxu0 %v4003
        %4232 = vmatpush.bf16.msra.mxu0 %v4001
        %4233 = vmatpush.bf16.msra.mxu0 %v3999
        %4234 = vmatpush.bf16.msra.mxu0 %v3997
        %4235 = vmatpush.bf16.msra.mxu0 %v3995
        %4236 = vmatpush.bf16.msra.mxu0 %v3993
        %4237 = vmatpush.bf16.msra.mxu0 %v3991
        %4238 = vmatpush.bf16.msra.mxu0 %v3989
        %4239 = vmatmul.bf16.gmra.mxu0 %v3358
        %v4240 = vpop.f32.mrf.mxu0
        %v4241 = vadd.f32 %v4227, %v4240
        %v4242 = vpop.f32.mrf.mxu0
        %v4243 = vadd.f32 %v4229, %v4242
        %4244 = vdwg.mxu0
        %4245 = vmatpush.bf16.msra.mxu0 %v3892
        %4246 = vmatpush.bf16.msra.mxu0 %v3890
        %4247 = vmatpush.bf16.msra.mxu0 %v3888
        %4248 = vmatpush.bf16.msra.mxu0 %v3886
        %4249 = vmatpush.bf16.msra.mxu0 %v3884
        %4250 = vmatpush.bf16.msra.mxu0 %v3882
        %4251 = vmatpush.bf16.msra.mxu0 %v3880
        %4252 = vmatpush.bf16.msra.mxu0 %v3878
        %4253 = vmatmul.bf16.gmra.mxu0 %v3351
        %v4254 = vpop.f32.mrf.mxu0
        %v4255 = vadd.f32 %v3490, %v4254
        %v4256 = vpop.f32.mrf.mxu0
        %v4257 = vadd.f32 %v3490, %v4256
        %4258 = vdwg.mxu0
        %4259 = vmatpush.bf16.msra.mxu0 %v3908
        %4260 = vmatpush.bf16.msra.mxu0 %v3906
        %4261 = vmatpush.bf16.msra.mxu0 %v3904
        %4262 = vmatpush.bf16.msra.mxu0 %v3902
        %4263 = vmatpush.bf16.msra.mxu0 %v3900
        %4264 = vmatpush.bf16.msra.mxu0 %v3898
        %4265 = vmatpush.bf16.msra.mxu0 %v3896
        %4266 = vmatpush.bf16.msra.mxu0 %v3894
        %4267 = vmatmul.bf16.gmra.mxu0 %v3352
        %v4268 = vpop.f32.mrf.mxu0
        %v4269 = vadd.f32 %v4255, %v4268
        %v4270 = vpop.f32.mrf.mxu0
        %v4271 = vadd.f32 %v4257, %v4270
        %4272 = vdwg.mxu0
        %4273 = vmatpush.bf16.msra.mxu0 %v3924
        %4274 = vmatpush.bf16.msra.mxu0 %v3922
        %4275 = vmatpush.bf16.msra.mxu0 %v3920
        %4276 = vmatpush.bf16.msra.mxu0 %v3918
        %4277 = vmatpush.bf16.msra.mxu0 %v3916
        %4278 = vmatpush.bf16.msra.mxu0 %v3914
        %4279 = vmatpush.bf16.msra.mxu0 %v3912
        %4280 = vmatpush.bf16.msra.mxu0 %v3910
        %4281 = vmatmul.bf16.gmra.mxu0 %v3353
        %v4282 = vpop.f32.mrf.mxu0
        %v4283 = vadd.f32 %v4269, %v4282
        %v4284 = vpop.f32.mrf.mxu0
        %v4285 = vadd.f32 %v4271, %v4284
        %4286 = vdwg.mxu0
        %4287 = vmatpush.bf16.msra.mxu0 %v3940
        %4288 = vmatpush.bf16.msra.mxu0 %v3938
        %4289 = vmatpush.bf16.msra.mxu0 %v3936
        %4290 = vmatpush.bf16.msra.mxu0 %v3934
        %4291 = vmatpush.bf16.msra.mxu0 %v3932
        %4292 = vmatpush.bf16.msra.mxu0 %v3930
        %4293 = vmatpush.bf16.msra.mxu0 %v3928
        %4294 = vmatpush.bf16.msra.mxu0 %v3926
        %4295 = vmatmul.bf16.gmra.mxu0 %v3354
        %v4296 = vpop.f32.mrf.mxu0
        %v4297 = vadd.f32 %v4283, %v4296
        %v4298 = vpop.f32.mrf.mxu0
        %v4299 = vadd.f32 %v4285, %v4298
        %4300 = vdwg.mxu0
        %4301 = vmatpush.bf16.msra.mxu0 %v3956
        %4302 = vmatpush.bf16.msra.mxu0 %v3954
        %4303 = vmatpush.bf16.msra.mxu0 %v3952
        %4304 = vmatpush.bf16.msra.mxu0 %v3950
        %4305 = vmatpush.bf16.msra.mxu0 %v3948
        %4306 = vmatpush.bf16.msra.mxu0 %v3946
        %4307 = vmatpush.bf16.msra.mxu0 %v3944
        %4308 = vmatpush.bf16.msra.mxu0 %v3942
        %4309 = vmatmul.bf16.gmra.mxu0 %v3355
        %v4310 = vpop.f32.mrf.mxu0
        %v4311 = vadd.f32 %v4297, %v4310
        %v4312 = vpop.f32.mrf.mxu0
        %v4313 = vadd.f32 %v4299, %v4312
        %4314 = vdwg.mxu0
        %4315 = vmatpush.bf16.msra.mxu0 %v3972
        %4316 = vmatpush.bf16.msra.mxu0 %v3970
        %4317 = vmatpush.bf16.msra.mxu0 %v3968
        %4318 = vmatpush.bf16.msra.mxu0 %v3966
        %4319 = vmatpush.bf16.msra.mxu0 %v3964
        %4320 = vmatpush.bf16.msra.mxu0 %v3962
        %4321 = vmatpush.bf16.msra.mxu0 %v3960
        %4322 = vmatpush.bf16.msra.mxu0 %v3958
        %4323 = vmatmul.bf16.gmra.mxu0 %v3356
        %v4324 = vpop.f32.mrf.mxu0
        %v4325 = vadd.f32 %v4311, %v4324
        %v4326 = vpop.f32.mrf.mxu0
        %v4327 = vadd.f32 %v4313, %v4326
        %4328 = vdwg.mxu0
        %4329 = vmatpush.bf16.msra.mxu0 %v3988
        %4330 = vmatpush.bf16.msra.mxu0 %v3986
        %4331 = vmatpush.bf16.msra.mxu0 %v3984
        %4332 = vmatpush.bf16.msra.mxu0 %v3982
        %4333 = vmatpush.bf16.msra.mxu0 %v3980
        %4334 = vmatpush.bf16.msra.mxu0 %v3978
        %4335 = vmatpush.bf16.msra.mxu0 %v3976
        %4336 = vmatpush.bf16.msra.mxu0 %v3974
        %4337 = vmatmul.bf16.gmra.mxu0 %v3357
        %v4338 = vpop.f32.mrf.mxu0
        %v4339 = vadd.f32 %v4325, %v4338
        %v4340 = vpop.f32.mrf.mxu0
        %v4341 = vadd.f32 %v4327, %v4340
        %4342 = vdwg.mxu0
        %4343 = vmatpush.bf16.msra.mxu0 %v4004
        %4344 = vmatpush.bf16.msra.mxu0 %v4002
        %4345 = vmatpush.bf16.msra.mxu0 %v4000
        %4346 = vmatpush.bf16.msra.mxu0 %v3998
        %4347 = vmatpush.bf16.msra.mxu0 %v3996
        %4348 = vmatpush.bf16.msra.mxu0 %v3994
        %4349 = vmatpush.bf16.msra.mxu0 %v3992
        %4350 = vmatpush.bf16.msra.mxu0 %v3990
        %4351 = vmatmul.bf16.gmra.mxu0 %v3358
        %v4352 = vpop.f32.mrf.mxu0
        %v4353 = vadd.f32 %v4339, %v4352
        %v4354 = vpop.f32.mrf.mxu0
        %v4355 = vadd.f32 %v4341, %v4354
        %4356 = vdwg.mxu0
        %v4357 = vadd.f32 %v1929, %v4241
        %v4358 = vadd.f32 %v1930, %v4353
        %v4359 = vadd.f32 %v1931, %v4243
        %v4360 = vadd.f32 %v1932, %v4355
        %4361 = vst [vmem:[%s614] sm:$0xff] %v4357
        %4362 = vst [vmem:[%s614 + $0x8] sm:$0xff] %v4358
        %4363 = vst [vmem:[%s614 + $0x10] sm:$0xff] %v4359
        %4364 = vst [vmem:[%s614 + $0x18] sm:$0xff] %v4360
        %s4365 = sand.u32 %s321, 1
        %s4366 = scalar_lea.sflag [#allocation4], %s4365
        %s4367 = sand.u32 %s321, 1
        %s4368 = smul.addr %s4367, 32
        %s4369 = scalar_lea.vmem [#allocation20], %s4368
        // Predicated region
        $region117: #{tpu_custom_call.1} parent=71 // pred_check
          %p4370 = pneg %p331
        $region118: #{tpu_custom_call.1} parent=71 // pred_check_branch
          %4372 = sbr.rel (%p4370) target = $region120
        $region119: #{tpu_custom_call.1} parent=71 // pred_region
          %s4373 = smul.u32 2, %s35
          %4375 = vsyncadd %s4366, 0
          %s4376 = smul.addr %s4373, 2
          %s4377 = smul.addr %s4376, 8
          %s4378 = scalar_lea.hbm %s13, %s4377
          %s4379 = sshll.u32 %s4369, 4
          %s4380 = int_to_ptr.vmem [resolvable:$true] %s4379
          %s4381 = sshll.u32 %s4378, 4
          %s4382 = int_to_ptr.hbm [resolvable:$true] %s4381
          %4387 = dma.vmem_to_hbm [thread:$0]  %s4380, 512, %s4382, %s4366, 256, 256, 16
        $region120: #{tpu_custom_call.1} parent=71 // pred_fallthru
          _
      $region72: #{tpu_custom_call.1} parent=5 // pred_fallthru
        _
      %p4388 = scmp.le.s32.totalorder 2, %s30
      // Predicated region
      $region121: #{tpu_custom_call.1} parent=5 // pred_check
        %p4389 = pneg %p4388
      $region122: #{tpu_custom_call.1} parent=5 // pred_check_branch
        %4391 = sbr.rel (%p4389) target = $region124
      $region123: #{tpu_custom_call.1} parent=5 // pred_region
        %s4392 = ssub.s32 %s30, 2
        // Predicated region
        $region125: #{tpu_custom_call.1} parent=123 // pred_check
          %p4393 = pneg %p337
        $region126: #{tpu_custom_call.1} parent=123 // pred_check_branch
          %4395 = sbr.rel (%p4393) target = $region128
        $region127: #{tpu_custom_call.1} parent=123 // pred_region
          %s4396 = sand.u32 %s322, 1
          %s4397 = scalar_lea.sflag [#allocation4], %s4396
          %s4398 = sand.u32 %s322, 1
          %s4399 = smul.addr %s4398, 32
          %s4400 = scalar_lea.vmem [#allocation20], %s4399
          %4402 = dma.done %s4397, 512
        $region128: #{tpu_custom_call.1} parent=123 // pred_fallthru
          _
      $region124: #{tpu_custom_call.1} parent=5 // pred_fallthru
        _
    $region6: #{tpu_custom_call.1} parent=1 // loop_footer
      %s34 = sadd.s32 1, %s30
    $region7: #{tpu_custom_call.1} parent=1 // loop_footer_branch
      %29 = sbr.rel target = $region3
    $region8: #{tpu_custom_call.1} parent=1 // loop_exit
      _
    %4403 = vsyncpa [#allocation3], 1
    %s4404 = scalar_lea.sflag [#allocation3], 1
    %4405 = vsyncpa %s4404, 1
    %4406 = vsyncpa [#allocation6], 1
    %4407 = vsyncpa [#allocation9], 1
    %4408 = vsyncpa [#allocation12], 1
    %4409 = vsyncpa [#allocation15], 1
    %4410 = vsyncpa [#allocation18], 1
    %4411 = vsyncpa [#allocation4], 1
    %s4412 = scalar_lea.sflag [#allocation4], 1
    %4413 = vsyncpa %s4412, 1

</llo_original>
